<compile_context>
chip_gen: v7x
topology: tpu7x:2x2x1
jax: 0.10.0
libtpu: 0.0.40
codegen_flags: <defaults>
</compile_context>

<pallas_src>
import jax
import jax.numpy as jnp
from jax.experimental import pallas as pl
from jax.experimental.pallas import tpu as pltpu

BINS = 16


# ----------------------------------------------------------------------------
# Fused kernel: histogram + hist-linear + conv1..4 + pool + feat/out linears
# ----------------------------------------------------------------------------
def _fused_kernel(xh_ref, p1_ref, mask_m_ref, mask_p_ref,
                  w1_ref, b1_ref, w2_ref, b2_ref, w3_ref, b3_ref,
                  w4_ref, b4_ref, wf_ref, bf_ref, wh_ref, bh_ref,
                  wo_ref, bo_ref, o_ref, pad_ref, h2s_ref):
    f32 = jnp.float32
    B = o_ref.shape[0]
    nbins = wh_ref.shape[1]
    hw = xh_ref.shape[2]

    # ---- ColorHistogram + linear_hist (one one-hot compare + one reduction) --
    hist_feat = jnp.zeros((B, wh_ref.shape[2]), f32)
    for c in range(xh_ref.shape[0]):
        v = (xh_ref[c] + 1.0) * 0.5                                # (B, H*W), [0,1]
        # torch.histc(v, bins, min=-1, max=1): bin = floor((v + 1) * bins / 2)
        idx = jnp.clip(jnp.floor((v + 1.0) * (nbins / 2.0)), 0.0, nbins - 1.0)
        idx = idx.astype(jnp.int32)
        bins_iota = jax.lax.broadcasted_iota(jnp.int32, (B, nbins, hw), 1)
        onehot = (idx[:, None, :] == bins_iota).astype(f32)        # (B, bins, H*W)
        counts = jnp.sum(onehot, axis=-1)                          # (B, bins)
        norm = counts / (jnp.sum(counts, axis=-1, keepdims=True) + 1e-6)
        hist_feat = hist_feat + jnp.dot(norm, wh_ref[c],
                                        preferred_element_type=f32)
    hist_feat = hist_feat + bh_ref[...]                            # (B, 64)

    # ---- conv1 (im2col rows prepared outside, parity-nested row order) ------
    h1 = jnp.dot(p1_ref[...], w1_ref[...], preferred_element_type=f32)
    h1 = jnp.maximum(h1 + b1_ref[...], 0.0)                        # (64B, 64)

    # ---- conv2: 16 tap-matmuls over flat shifts of the parity grids ---------
    GR = 16 * B            # rows per parity group (4x4 block grid x batch)
    PAD = 5 * B            # max |flat shift|
    pad_ref[...] = jnp.zeros(pad_ref.shape, f32)
    for g in range(4):
        pad_ref[g, PAD:PAD + GR, :] = h1[g * GR:(g + 1) * GR, :]

    off = (-1, 0, 0, 1)    # block offset for kernel tap index 0..3
    par = (1, 0, 1, 0)     # parity for kernel tap index 0..3
    acc2 = jnp.zeros((GR, w2_ref.shape[2]), f32)
    for kh in range(4):
        du, pr = off[kh], par[kh]
        for kw in range(4):
            dv, pc = off[kw], par[kw]
            g = pr * 2 + pc
            shift = (du * 4 + dv) * B
            s = pad_ref[g, PAD + shift:PAD + shift + GR, :]        # (16B, 64)
            if dv == -1:
                s = s * mask_m_ref[...]
            elif dv == 1:
                s = s * mask_p_ref[...]
            acc2 = acc2 + jnp.dot(s, w2_ref[kh * 4 + kw],
                                  preferred_element_type=f32)
    h2 = jnp.maximum(acc2 + b2_ref[...], 0.0)                      # (16B, 128)
    h2s_ref[...] = h2

    # ---- conv3 (4x4 -> 2x2): unrolled per output position / tap -------------
    b3 = b3_ref[...]
    h3 = []
    for oi in range(2):
        for oj in range(2):
            acc = jnp.zeros((B, w3_ref.shape[2]), f32)
            for kh in range(4):
                r = 2 * oi + kh - 1
                if r < 0 or r > 3:
                    continue
                for kw in range(4):
                    c = 2 * oj + kw - 1
                    if c < 0 or c > 3:
                        continue
                    rows = h2s_ref[(r * 4 + c) * B:(r * 4 + c) * B + B, :]
                    acc = acc + jnp.dot(rows, w3_ref[kh * 4 + kw],
                                        preferred_element_type=f32)
            h3.append(jnp.maximum(acc + b3, 0.0))                  # (B, 256)

    # ---- conv4 (2x2 -> 1x1; only the 4 centre taps touch data) + avg-pool ---
    acc4 = jnp.zeros((B, w4_ref.shape[2]), f32)
    for di in range(2):
        for dj in range(2):
            acc4 = acc4 + jnp.dot(h3[di * 2 + dj], w4_ref[di * 2 + dj],
                                  preferred_element_type=f32)
    pooled = jnp.maximum(acc4 + b4_ref[...], 0.0)                  # (B, 512)

    # ---- head: linear_feat + concat([img, hist]) + linear_out ---------------
    img_feat = jnp.dot(pooled, wf_ref[...], preferred_element_type=f32)
    img_feat = img_feat + bf_ref[...]                              # (B, 64)
    nf = wf_ref.shape[1]
    color = (jnp.dot(img_feat, wo_ref[0:nf, :], preferred_element_type=f32)
             + jnp.dot(hist_feat, wo_ref[nf:2 * nf, :],
                       preferred_element_type=f32)
             + bo_ref[...])
    o_ref[...] = color                                             # (B, 3)


# ----------------------------------------------------------------------------
# XLA glue (tiny, boundary-only ops)
# ----------------------------------------------------------------------------
def _conv1_patches(x):
    """im2col for conv1 (k=4, s=2, p=1) with parity-nested row order.

    Row order: (i%2, j%2, i//2, j//2, b); column order: (kh, kw, cin).
    """
    B = x.shape[0]
    xp = jnp.pad(x, ((0, 0), (0, 0), (1, 1), (1, 1)))              # (B, 3, 18, 18)
    slabs = [xp[:, :, kh:kh + 16:2, kw:kw + 16:2]
             for kh in range(4) for kw in range(4)]                # each (B,3,8,8)
    pat = jnp.stack(slabs, axis=2).reshape(B, 3, 4, 4, 8, 8)       # b,cin,kh,kw,i,j
    pat = pat.reshape(B, 3, 4, 4, 4, 2, 4, 2)                      # i->(U,pr), j->(V,pc)
    pat = pat.transpose(5, 7, 4, 6, 0, 2, 3, 1)                    # pr,pc,U,V,b,kh,kw,cin
    return pat.reshape(64 * B, 48)


def color_embedding_forward(x, params):
    B, C, H, W = x.shape
    assert (C, H, W) == (3, 16, 16), "kernel is specialised to 3x16x16 inputs"
    x = x.astype(jnp.float32)

    xh = x.transpose(1, 0, 2, 3).reshape(C, B, H * W)              # hist rows (c, b)
    patches1 = _conv1_patches(x)                                   # (64B, 48)

    # row masks for the conv2 flat-shift trick (depend only on B)
    j_of_row = (jnp.arange(16 * B, dtype=jnp.int32) // B) % 4
    mask_m = (j_of_row != 0).astype(jnp.float32).reshape(16 * B, 1)
    mask_p = (j_of_row != 3).astype(jnp.float32).reshape(16 * B, 1)

    color = pl.pallas_call(
        _fused_kernel,
        out_shape=jax.ShapeDtypeStruct((B, 3), jnp.float32),
        scratch_shapes=[
            pltpu.VMEM((4, 26 * B, 64), jnp.float32),    # zero-padded parity grids
            pltpu.VMEM((16 * B, 128), jnp.float32),      # conv2 output
        ],
        compiler_params=pltpu.CompilerParams(vmem_limit_bytes=32 * 1024 * 1024),
    )(xh, patches1, mask_m, mask_p,
      params['w1'], params['b1'], params['w2'], params['b2'],
      params['w3'], params['b3'], params['w4'], params['b4'],
      params['wfeat'], params['bfeat'], params['whist'], params['bhist'],
      params['wout'], params['bout'])

    # color_feat.unsqueeze(-1).unsqueeze(-1).expand(-1, -1, H, W)
    return jnp.broadcast_to(color[:, :, None, None], (B, 3, H, W))


# ----------------------------------------------------------------------------
# Parameters: PyTorch-layout init + one-time kernel-layout rearrangement
# ----------------------------------------------------------------------------
def init_params(key, bins=BINS):
    conv_dims = [(3, 64), (64, 128), (128, 256), (256, 512)]
    keys = jax.random.split(key, 2 * len(conv_dims) + 6)
    p, ki = {}, 0
    for li, (cin, cout) in enumerate(conv_dims):
        p[f'conv{li}_w'] = 0.05 * jax.random.normal(keys[ki], (cout, cin, 4, 4), jnp.float32); ki += 1
        p[f'conv{li}_b'] = 0.01 * jax.random.normal(keys[ki], (cout,), jnp.float32); ki += 1
    p['w_feat'] = 0.05 * jax.random.normal(keys[ki], (64, 512), jnp.float32); ki += 1
    p['b_feat'] = 0.01 * jax.random.normal(keys[ki], (64,), jnp.float32); ki += 1
    p['w_hist'] = 0.05 * jax.random.normal(keys[ki], (64, bins * 3), jnp.float32); ki += 1
    p['b_hist'] = 0.01 * jax.random.normal(keys[ki], (64,), jnp.float32); ki += 1
    p['w_out'] = 0.05 * jax.random.normal(keys[ki], (3, 128), jnp.float32); ki += 1
    p['b_out'] = 0.01 * jax.random.normal(keys[ki], (3,), jnp.float32); ki += 1
    return p


def prepare_params(p, bins=BINS):
    """One-time rearrangement of PyTorch-layout weights into kernel layouts."""
    def taps(w):                                    # (Cout,Cin,4,4) -> (16,Cin,Cout)
        return w.transpose(2, 3, 1, 0).reshape(16, w.shape[1], w.shape[0])
    q = {
        'w1': p['conv0_w'].transpose(2, 3, 1, 0).reshape(48, 64),
        'b1': p['conv0_b'].reshape(1, -1),
        'w2': taps(p['conv1_w']),
        'b2': p['conv1_b'].reshape(1, -1),
        'w3': taps(p['conv2_w']),
        'b3': p['conv2_b'].reshape(1, -1),
        # conv4 input is 2x2 (pad 1): only the centre 2x2 of its 4x4 kernel is used
        'w4': p['conv3_w'][:, :, 1:3, 1:3].transpose(2, 3, 1, 0).reshape(4, 256, 512),
        'b4': p['conv3_b'].reshape(1, -1),
        'wfeat': p['w_feat'].T,                               # (512, 64)
        'bfeat': p['b_feat'].reshape(1, -1),
        'whist': p['w_hist'].T.reshape(3, bins, 64),          # per-channel slices
        'bhist': p['b_hist'].reshape(1, -1),
        'wout': p['w_out'].T,                                 # (128, 3)
        'bout': p['b_out'].reshape(1, -1),
    }
    return {k: v.astype(jnp.float32) for k, v in q.items()}


if __name__ == "__main__":
    key = jax.random.PRNGKey(0)
    k_img, k_par = jax.random.split(key)
    # input image in [-1, 1] (as the histogram rescaling implies), NCHW
    x = jax.random.uniform(k_img, (2, 3, 16, 16), jnp.float32, minval=-1.0, maxval=1.0)
    params = prepare_params(init_params(k_par))

    fwd = jax.jit(color_embedding_forward)
    out = jax.block_until_ready(fwd(x, params))
    assert out.shape == (2, 3, 16, 16), out.shape
    assert bool(jnp.all(jnp.isfinite(out)))
    print("KERNEL_OK")
</pallas_src>

<mosaic_0001>
module attributes {stable_mosaic.version = 11 : i64} {
  func.func @_fused_kernel(%arg0: memref<3x2x256xf32, #tpu.memory_space<vmem>>, %arg1: memref<128x48xf32, #tpu.memory_space<vmem>>, %arg2: memref<32x1xf32, #tpu.memory_space<vmem>>, %arg3: memref<32x1xf32, #tpu.memory_space<vmem>>, %arg4: memref<48x64xf32, #tpu.memory_space<vmem>>, %arg5: memref<1x64xf32, #tpu.memory_space<vmem>>, %arg6: memref<16x64x128xf32, #tpu.memory_space<vmem>>, %arg7: memref<1x128xf32, #tpu.memory_space<vmem>>, %arg8: memref<16x128x256xf32, #tpu.memory_space<vmem>>, %arg9: memref<1x256xf32, #tpu.memory_space<vmem>>, %arg10: memref<4x256x512xf32, #tpu.memory_space<vmem>>, %arg11: memref<1x512xf32, #tpu.memory_space<vmem>>, %arg12: memref<512x64xf32, #tpu.memory_space<vmem>>, %arg13: memref<1x64xf32, #tpu.memory_space<vmem>>, %arg14: memref<3x16x64xf32, #tpu.memory_space<vmem>>, %arg15: memref<1x64xf32, #tpu.memory_space<vmem>>, %arg16: memref<128x3xf32, #tpu.memory_space<vmem>>, %arg17: memref<1x3xf32, #tpu.memory_space<vmem>>, %arg18: memref<2x3xf32, #tpu.memory_space<vmem>>, %arg19: memref<4x52x64xf32, #tpu.memory_space<vmem>>, %arg20: memref<32x128xf32, #tpu.memory_space<vmem>>) attributes {dimension_semantics = [], scalar_prefetch = 0 : i64, scratch_operands = 2 : i64, tpu.core_type = #tpu.core_type<tc>} {
    %cst = arith.constant 0.000000e+00 : f32
    %0 = vector.broadcast %cst : f32 to vector<2x64xf32>
    %c0 = arith.constant 0 : index
    %c0_0 = arith.constant 0 : index
    %c0_1 = arith.constant 0 : index
    %1 = vector.load %arg0[%c0, %c0_0, %c0_1] : memref<3x2x256xf32, #tpu.memory_space<vmem>>, vector<1x2x256xf32>
    %2 = vector.shape_cast %1 : vector<1x2x256xf32> to vector<2x256xf32>
    %cst_2 = arith.constant 1.000000e+00 : f32
    %3 = vector.broadcast %cst_2 : f32 to vector<2x256xf32>
    %4 = arith.addf %2, %3 : vector<2x256xf32>
    %cst_3 = arith.constant 5.000000e-01 : f32
    %5 = vector.broadcast %cst_3 : f32 to vector<2x256xf32>
    %6 = arith.mulf %4, %5 : vector<2x256xf32>
    %cst_4 = arith.constant 1.000000e+00 : f32
    %7 = vector.broadcast %cst_4 : f32 to vector<2x256xf32>
    %8 = arith.addf %6, %7 : vector<2x256xf32>
    %cst_5 = arith.constant 8.000000e+00 : f32
    %9 = vector.broadcast %cst_5 : f32 to vector<2x256xf32>
    %10 = arith.mulf %8, %9 : vector<2x256xf32>
    %11 = math.floor %10 : vector<2x256xf32>
    %cst_6 = arith.constant 0.000000e+00 : f32
    %cst_7 = arith.constant 1.500000e+01 : f32
    %12 = vector.broadcast %cst_6 : f32 to vector<2x256xf32>
    %13 = arith.maximumf %12, %11 : vector<2x256xf32>
    %14 = vector.broadcast %cst_7 : f32 to vector<2x256xf32>
    %15 = arith.minimumf %14, %13 : vector<2x256xf32>
    %16 = arith.fptosi %15 : vector<2x256xf32> to vector<2x256xi32>
    %17 = tpu.iota {dimensions = array<i32: 1>} : vector<2x16x256xi32>
    %18 = vector.shape_cast %16 : vector<2x256xi32> to vector<2x1x256xi32>
    %19 = vector.broadcast %18 : vector<2x1x256xi32> to vector<2x16x256xi32>
    %20 = arith.cmpi eq, %19, %17 : vector<2x16x256xi32>
    %21 = arith.extui %20 : vector<2x16x256xi1> to vector<2x16x256xi32>
    %22 = arith.sitofp %21 : vector<2x16x256xi32> to vector<2x16x256xf32>
    %cst_8 = arith.constant dense<0.000000e+00> : vector<2x16xf32>
    %23 = vector.multi_reduction <add>, %22, %cst_8 [2] : vector<2x16x256xf32> to vector<2x16xf32>
    %cst_9 = arith.constant dense<0.000000e+00> : vector<2xf32>
    %24 = vector.multi_reduction <add>, %23, %cst_9 [1] : vector<2x16xf32> to vector<2xf32>
    %25 = vector.shape_cast %24 : vector<2xf32> to vector<2x1xf32>
    %cst_10 = arith.constant 9.99999997E-7 : f32
    %26 = vector.broadcast %cst_10 : f32 to vector<2x1xf32>
    %27 = arith.addf %25, %26 : vector<2x1xf32>
    %28 = vector.broadcast %27 : vector<2x1xf32> to vector<2x16xf32>
    %29 = arith.divf %23, %28 : vector<2x16xf32>
    %c0_11 = arith.constant 0 : index
    %c0_12 = arith.constant 0 : index
    %c0_13 = arith.constant 0 : index
    %30 = vector.load %arg14[%c0_11, %c0_12, %c0_13] : memref<3x16x64xf32, #tpu.memory_space<vmem>>, vector<1x16x64xf32>
    %31 = vector.shape_cast %30 : vector<1x16x64xf32> to vector<16x64xf32>
    %cst_14 = arith.constant dense<0.000000e+00> : vector<2x64xf32>
    %32 = tpu.matmul %29, %31, %cst_14 {dimension_numbers = #tpu.dot_dimension_numbers<[1], [0], [0], [1], [0, 0, 1, 1], [], []>} : vector<2x16xf32>, vector<16x64xf32>, vector<2x64xf32> -> vector<2x64xf32>
    %33 = arith.addf %0, %32 : vector<2x64xf32>
    %c1 = arith.constant 1 : index
    %c0_15 = arith.constant 0 : index
    %c0_16 = arith.constant 0 : index
    %34 = vector.load %arg0[%c1, %c0_15, %c0_16] : memref<3x2x256xf32, #tpu.memory_space<vmem>>, vector<1x2x256xf32>
    %35 = vector.shape_cast %34 : vector<1x2x256xf32> to vector<2x256xf32>
    %cst_17 = arith.constant 1.000000e+00 : f32
    %36 = vector.broadcast %cst_17 : f32 to vector<2x256xf32>
    %37 = arith.addf %35, %36 : vector<2x256xf32>
    %cst_18 = arith.constant 5.000000e-01 : f32
    %38 = vector.broadcast %cst_18 : f32 to vector<2x256xf32>
    %39 = arith.mulf %37, %38 : vector<2x256xf32>
    %cst_19 = arith.constant 1.000000e+00 : f32
    %40 = vector.broadcast %cst_19 : f32 to vector<2x256xf32>
    %41 = arith.addf %39, %40 : vector<2x256xf32>
    %cst_20 = arith.constant 8.000000e+00 : f32
    %42 = vector.broadcast %cst_20 : f32 to vector<2x256xf32>
    %43 = arith.mulf %41, %42 : vector<2x256xf32>
    %44 = math.floor %43 : vector<2x256xf32>
    %cst_21 = arith.constant 0.000000e+00 : f32
    %cst_22 = arith.constant 1.500000e+01 : f32
    %45 = vector.broadcast %cst_21 : f32 to vector<2x256xf32>
    %46 = arith.maximumf %45, %44 : vector<2x256xf32>
    %47 = vector.broadcast %cst_22 : f32 to vector<2x256xf32>
    %48 = arith.minimumf %47, %46 : vector<2x256xf32>
    %49 = arith.fptosi %48 : vector<2x256xf32> to vector<2x256xi32>
    %50 = tpu.iota {dimensions = array<i32: 1>} : vector<2x16x256xi32>
    %51 = vector.shape_cast %49 : vector<2x256xi32> to vector<2x1x256xi32>
    %52 = vector.broadcast %51 : vector<2x1x256xi32> to vector<2x16x256xi32>
    %53 = arith.cmpi eq, %52, %50 : vector<2x16x256xi32>
    %54 = arith.extui %53 : vector<2x16x256xi1> to vector<2x16x256xi32>
    %55 = arith.sitofp %54 : vector<2x16x256xi32> to vector<2x16x256xf32>
    %cst_23 = arith.constant dense<0.000000e+00> : vector<2x16xf32>
    %56 = vector.multi_reduction <add>, %55, %cst_23 [2] : vector<2x16x256xf32> to vector<2x16xf32>
    %cst_24 = arith.constant dense<0.000000e+00> : vector<2xf32>
    %57 = vector.multi_reduction <add>, %56, %cst_24 [1] : vector<2x16xf32> to vector<2xf32>
    %58 = vector.shape_cast %57 : vector<2xf32> to vector<2x1xf32>
    %cst_25 = arith.constant 9.99999997E-7 : f32
    %59 = vector.broadcast %cst_25 : f32 to vector<2x1xf32>
    %60 = arith.addf %58, %59 : vector<2x1xf32>
    %61 = vector.broadcast %60 : vector<2x1xf32> to vector<2x16xf32>
    %62 = arith.divf %56, %61 : vector<2x16xf32>
    %c1_26 = arith.constant 1 : index
    %c0_27 = arith.constant 0 : index
    %c0_28 = arith.constant 0 : index
    %63 = vector.load %arg14[%c1_26, %c0_27, %c0_28] : memref<3x16x64xf32, #tpu.memory_space<vmem>>, vector<1x16x64xf32>
    %64 = vector.shape_cast %63 : vector<1x16x64xf32> to vector<16x64xf32>
    %cst_29 = arith.constant dense<0.000000e+00> : vector<2x64xf32>
    %65 = tpu.matmul %62, %64, %cst_29 {dimension_numbers = #tpu.dot_dimension_numbers<[1], [0], [0], [1], [0, 0, 1, 1], [], []>} : vector<2x16xf32>, vector<16x64xf32>, vector<2x64xf32> -> vector<2x64xf32>
    %66 = arith.addf %33, %65 : vector<2x64xf32>
    %c2 = arith.constant 2 : index
    %c0_30 = arith.constant 0 : index
    %c0_31 = arith.constant 0 : index
    %67 = vector.load %arg0[%c2, %c0_30, %c0_31] : memref<3x2x256xf32, #tpu.memory_space<vmem>>, vector<1x2x256xf32>
    %68 = vector.shape_cast %67 : vector<1x2x256xf32> to vector<2x256xf32>
    %cst_32 = arith.constant 1.000000e+00 : f32
    %69 = vector.broadcast %cst_32 : f32 to vector<2x256xf32>
    %70 = arith.addf %68, %69 : vector<2x256xf32>
    %cst_33 = arith.constant 5.000000e-01 : f32
    %71 = vector.broadcast %cst_33 : f32 to vector<2x256xf32>
    %72 = arith.mulf %70, %71 : vector<2x256xf32>
    %cst_34 = arith.constant 1.000000e+00 : f32
    %73 = vector.broadcast %cst_34 : f32 to vector<2x256xf32>
    %74 = arith.addf %72, %73 : vector<2x256xf32>
    %cst_35 = arith.constant 8.000000e+00 : f32
    %75 = vector.broadcast %cst_35 : f32 to vector<2x256xf32>
    %76 = arith.mulf %74, %75 : vector<2x256xf32>
    %77 = math.floor %76 : vector<2x256xf32>
    %cst_36 = arith.constant 0.000000e+00 : f32
    %cst_37 = arith.constant 1.500000e+01 : f32
    %78 = vector.broadcast %cst_36 : f32 to vector<2x256xf32>
    %79 = arith.maximumf %78, %77 : vector<2x256xf32>
    %80 = vector.broadcast %cst_37 : f32 to vector<2x256xf32>
    %81 = arith.minimumf %80, %79 : vector<2x256xf32>
    %82 = arith.fptosi %81 : vector<2x256xf32> to vector<2x256xi32>
    %83 = tpu.iota {dimensions = array<i32: 1>} : vector<2x16x256xi32>
    %84 = vector.shape_cast %82 : vector<2x256xi32> to vector<2x1x256xi32>
    %85 = vector.broadcast %84 : vector<2x1x256xi32> to vector<2x16x256xi32>
    %86 = arith.cmpi eq, %85, %83 : vector<2x16x256xi32>
    %87 = arith.extui %86 : vector<2x16x256xi1> to vector<2x16x256xi32>
    %88 = arith.sitofp %87 : vector<2x16x256xi32> to vector<2x16x256xf32>
    %cst_38 = arith.constant dense<0.000000e+00> : vector<2x16xf32>
    %89 = vector.multi_reduction <add>, %88, %cst_38 [2] : vector<2x16x256xf32> to vector<2x16xf32>
    %cst_39 = arith.constant dense<0.000000e+00> : vector<2xf32>
    %90 = vector.multi_reduction <add>, %89, %cst_39 [1] : vector<2x16xf32> to vector<2xf32>
    %91 = vector.shape_cast %90 : vector<2xf32> to vector<2x1xf32>
    %cst_40 = arith.constant 9.99999997E-7 : f32
    %92 = vector.broadcast %cst_40 : f32 to vector<2x1xf32>
    %93 = arith.addf %91, %92 : vector<2x1xf32>
    %94 = vector.broadcast %93 : vector<2x1xf32> to vector<2x16xf32>
    %95 = arith.divf %89, %94 : vector<2x16xf32>
    %c2_41 = arith.constant 2 : index
    %c0_42 = arith.constant 0 : index
    %c0_43 = arith.constant 0 : index
    %96 = vector.load %arg14[%c2_41, %c0_42, %c0_43] : memref<3x16x64xf32, #tpu.memory_space<vmem>>, vector<1x16x64xf32>
    %97 = vector.shape_cast %96 : vector<1x16x64xf32> to vector<16x64xf32>
    %cst_44 = arith.constant dense<0.000000e+00> : vector<2x64xf32>
    %98 = tpu.matmul %95, %97, %cst_44 {dimension_numbers = #tpu.dot_dimension_numbers<[1], [0], [0], [1], [0, 0, 1, 1], [], []>} : vector<2x16xf32>, vector<16x64xf32>, vector<2x64xf32> -> vector<2x64xf32>
    %99 = arith.addf %66, %98 : vector<2x64xf32>
    %c0_45 = arith.constant 0 : index
    %c0_46 = arith.constant 0 : index
    %100 = vector.load %arg15[%c0_45, %c0_46] : memref<1x64xf32, #tpu.memory_space<vmem>>, vector<1x64xf32>
    %101 = vector.broadcast %100 : vector<1x64xf32> to vector<2x64xf32>
    %102 = arith.addf %99, %101 : vector<2x64xf32>
    %c0_47 = arith.constant 0 : index
    %c0_48 = arith.constant 0 : index
    %103 = vector.load %arg1[%c0_47, %c0_48] : memref<128x48xf32, #tpu.memory_space<vmem>>, vector<128x48xf32>
    %c0_49 = arith.constant 0 : index
    %c0_50 = arith.constant 0 : index
    %104 = vector.load %arg4[%c0_49, %c0_50] : memref<48x64xf32, #tpu.memory_space<vmem>>, vector<48x64xf32>
    %cst_51 = arith.constant dense<0.000000e+00> : vector<128x64xf32>
    %105 = tpu.matmul %103, %104, %cst_51 {dimension_numbers = #tpu.dot_dimension_numbers<[1], [0], [0], [1], [0, 0, 1, 1], [], []>} : vector<128x48xf32>, vector<48x64xf32>, vector<128x64xf32> -> vector<128x64xf32>
    %c0_52 = arith.constant 0 : index
    %c0_53 = arith.constant 0 : index
    %106 = vector.load %arg5[%c0_52, %c0_53] : memref<1x64xf32, #tpu.memory_space<vmem>>, vector<1x64xf32>
    %107 = vector.broadcast %106 : vector<1x64xf32> to vector<128x64xf32>
    %108 = arith.addf %105, %107 : vector<128x64xf32>
    %cst_54 = arith.constant 0.000000e+00 : f32
    %109 = vector.broadcast %cst_54 : f32 to vector<128x64xf32>
    %110 = arith.maximumf %108, %109 : vector<128x64xf32>
    %cst_55 = arith.constant 0.000000e+00 : f32
    %111 = vector.broadcast %cst_55 : f32 to vector<4x52x64xf32>
    %c0_56 = arith.constant 0 : index
    %c0_57 = arith.constant 0 : index
    %c0_58 = arith.constant 0 : index
    %112 = vector.load %arg19[%c0_56, %c0_57, %c0_58] : memref<4x52x64xf32, #tpu.memory_space<vmem>>, vector<4x52x64xf32>
    tpu.vector_store %arg19[%c0_56, %c0_57, %c0_58], %111 {strides = array<i32>} : memref<4x52x64xf32, #tpu.memory_space<vmem>>, vector<4x52x64xf32>,
    %113 = vector.extract_strided_slice %110 {offsets = [0, 0], sizes = [32, 64], strides = [1, 1]} : vector<128x64xf32> to vector<32x64xf32>
    %c0_59 = arith.constant 0 : index
    %c10 = arith.constant 10 : index
    %c0_60 = arith.constant 0 : index
    %114 = vector.load %arg19[%c0_59, %c10, %c0_60] : memref<4x52x64xf32, #tpu.memory_space<vmem>>, vector<1x32x64xf32>
    %115 = vector.shape_cast %114 : vector<1x32x64xf32> to vector<32x64xf32>
    %116 = vector.shape_cast %113 : vector<32x64xf32> to vector<1x32x64xf32>
    tpu.vector_store %arg19[%c0_59, %c10, %c0_60], %116 {strides = array<i32>} : memref<4x52x64xf32, #tpu.memory_space<vmem>>, vector<1x32x64xf32>,
    %117 = vector.extract_strided_slice %110 {offsets = [32, 0], sizes = [32, 64], strides = [1, 1]} : vector<128x64xf32> to vector<32x64xf32>
    %c1_61 = arith.constant 1 : index
    %c10_62 = arith.constant 10 : index
    %c0_63 = arith.constant 0 : index
    %118 = vector.load %arg19[%c1_61, %c10_62, %c0_63] : memref<4x52x64xf32, #tpu.memory_space<vmem>>, vector<1x32x64xf32>
    %119 = vector.shape_cast %118 : vector<1x32x64xf32> to vector<32x64xf32>
    %120 = vector.shape_cast %117 : vector<32x64xf32> to vector<1x32x64xf32>
    tpu.vector_store %arg19[%c1_61, %c10_62, %c0_63], %120 {strides = array<i32>} : memref<4x52x64xf32, #tpu.memory_space<vmem>>, vector<1x32x64xf32>,
    %121 = vector.extract_strided_slice %110 {offsets = [64, 0], sizes = [32, 64], strides = [1, 1]} : vector<128x64xf32> to vector<32x64xf32>
    %c2_64 = arith.constant 2 : index
    %c10_65 = arith.constant 10 : index
    %c0_66 = arith.constant 0 : index
    %122 = vector.load %arg19[%c2_64, %c10_65, %c0_66] : memref<4x52x64xf32, #tpu.memory_space<vmem>>, vector<1x32x64xf32>
    %123 = vector.shape_cast %122 : vector<1x32x64xf32> to vector<32x64xf32>
    %124 = vector.shape_cast %121 : vector<32x64xf32> to vector<1x32x64xf32>
    tpu.vector_store %arg19[%c2_64, %c10_65, %c0_66], %124 {strides = array<i32>} : memref<4x52x64xf32, #tpu.memory_space<vmem>>, vector<1x32x64xf32>,
    %125 = vector.extract_strided_slice %110 {offsets = [96, 0], sizes = [32, 64], strides = [1, 1]} : vector<128x64xf32> to vector<32x64xf32>
    %c3 = arith.constant 3 : index
    %c10_67 = arith.constant 10 : index
    %c0_68 = arith.constant 0 : index
    %126 = vector.load %arg19[%c3, %c10_67, %c0_68] : memref<4x52x64xf32, #tpu.memory_space<vmem>>, vector<1x32x64xf32>
    %127 = vector.shape_cast %126 : vector<1x32x64xf32> to vector<32x64xf32>
    %128 = vector.shape_cast %125 : vector<32x64xf32> to vector<1x32x64xf32>
    tpu.vector_store %arg19[%c3, %c10_67, %c0_68], %128 {strides = array<i32>} : memref<4x52x64xf32, #tpu.memory_space<vmem>>, vector<1x32x64xf32>,
    %cst_69 = arith.constant 0.000000e+00 : f32
    %129 = vector.broadcast %cst_69 : f32 to vector<32x128xf32>
    %c3_70 = arith.constant 3 : index
    %c0_71 = arith.constant 0 : index
    %c0_72 = arith.constant 0 : index
    %130 = vector.load %arg19[%c3_70, %c0_71, %c0_72] : memref<4x52x64xf32, #tpu.memory_space<vmem>>, vector<1x32x64xf32>
    %131 = vector.shape_cast %130 : vector<1x32x64xf32> to vector<32x64xf32>
    %c0_73 = arith.constant 0 : index
    %c0_74 = arith.constant 0 : index
    %132 = vector.load %arg2[%c0_73, %c0_74] : memref<32x1xf32, #tpu.memory_space<vmem>>, vector<32x1xf32>
    %133 = vector.broadcast %132 : vector<32x1xf32> to vector<32x64xf32>
    %134 = arith.mulf %131, %133 : vector<32x64xf32>
    %c0_75 = arith.constant 0 : index
    %c0_76 = arith.constant 0 : index
    %c0_77 = arith.constant 0 : index
    %135 = vector.load %arg6[%c0_75, %c0_76, %c0_77] : memref<16x64x128xf32, #tpu.memory_space<vmem>>, vector<1x64x128xf32>
    %136 = vector.shape_cast %135 : vector<1x64x128xf32> to vector<64x128xf32>
    %cst_78 = arith.constant dense<0.000000e+00> : vector<32x128xf32>
    %137 = tpu.matmul %134, %136, %cst_78 {dimension_numbers = #tpu.dot_dimension_numbers<[1], [0], [0], [1], [0, 0, 1, 1], [], []>} : vector<32x64xf32>, vector<64x128xf32>, vector<32x128xf32> -> vector<32x128xf32>
    %138 = arith.addf %129, %137 : vector<32x128xf32>
    %c2_79 = arith.constant 2 : index
    %c2_80 = arith.constant 2 : index
    %c0_81 = arith.constant 0 : index
    %139 = vector.load %arg19[%c2_79, %c2_80, %c0_81] : memref<4x52x64xf32, #tpu.memory_space<vmem>>, vector<1x32x64xf32>
    %140 = vector.shape_cast %139 : vector<1x32x64xf32> to vector<32x64xf32>
    %c1_82 = arith.constant 1 : index
    %c0_83 = arith.constant 0 : index
    %c0_84 = arith.constant 0 : index
    %141 = vector.load %arg6[%c1_82, %c0_83, %c0_84] : memref<16x64x128xf32, #tpu.memory_space<vmem>>, vector<1x64x128xf32>
    %142 = vector.shape_cast %141 : vector<1x64x128xf32> to vector<64x128xf32>
    %cst_85 = arith.constant dense<0.000000e+00> : vector<32x128xf32>
    %143 = tpu.matmul %140, %142, %cst_85 {dimension_numbers = #tpu.dot_dimension_numbers<[1], [0], [0], [1], [0, 0, 1, 1], [], []>} : vector<32x64xf32>, vector<64x128xf32>, vector<32x128xf32> -> vector<32x128xf32>
    %144 = arith.addf %138, %143 : vector<32x128xf32>
    %c3_86 = arith.constant 3 : index
    %c2_87 = arith.constant 2 : index
    %c0_88 = arith.constant 0 : index
    %145 = vector.load %arg19[%c3_86, %c2_87, %c0_88] : memref<4x52x64xf32, #tpu.memory_space<vmem>>, vector<1x32x64xf32>
    %146 = vector.shape_cast %145 : vector<1x32x64xf32> to vector<32x64xf32>
    %c2_89 = arith.constant 2 : index
    %c0_90 = arith.constant 0 : index
    %c0_91 = arith.constant 0 : index
    %147 = vector.load %arg6[%c2_89, %c0_90, %c0_91] : memref<16x64x128xf32, #tpu.memory_space<vmem>>, vector<1x64x128xf32>
    %148 = vector.shape_cast %147 : vector<1x64x128xf32> to vector<64x128xf32>
    %cst_92 = arith.constant dense<0.000000e+00> : vector<32x128xf32>
    %149 = tpu.matmul %146, %148, %cst_92 {dimension_numbers = #tpu.dot_dimension_numbers<[1], [0], [0], [1], [0, 0, 1, 1], [], []>} : vector<32x64xf32>, vector<64x128xf32>, vector<32x128xf32> -> vector<32x128xf32>
    %150 = arith.addf %144, %149 : vector<32x128xf32>
    %c2_93 = arith.constant 2 : index
    %c4 = arith.constant 4 : index
    %c0_94 = arith.constant 0 : index
    %151 = vector.load %arg19[%c2_93, %c4, %c0_94] : memref<4x52x64xf32, #tpu.memory_space<vmem>>, vector<1x32x64xf32>
    %152 = vector.shape_cast %151 : vector<1x32x64xf32> to vector<32x64xf32>
    %c0_95 = arith.constant 0 : index
    %c0_96 = arith.constant 0 : index
    %153 = vector.load %arg3[%c0_95, %c0_96] : memref<32x1xf32, #tpu.memory_space<vmem>>, vector<32x1xf32>
    %154 = vector.broadcast %153 : vector<32x1xf32> to vector<32x64xf32>
    %155 = arith.mulf %152, %154 : vector<32x64xf32>
    %c3_97 = arith.constant 3 : index
    %c0_98 = arith.constant 0 : index
    %c0_99 = arith.constant 0 : index
    %156 = vector.load %arg6[%c3_97, %c0_98, %c0_99] : memref<16x64x128xf32, #tpu.memory_space<vmem>>, vector<1x64x128xf32>
    %157 = vector.shape_cast %156 : vector<1x64x128xf32> to vector<64x128xf32>
    %cst_100 = arith.constant dense<0.000000e+00> : vector<32x128xf32>
    %158 = tpu.matmul %155, %157, %cst_100 {dimension_numbers = #tpu.dot_dimension_numbers<[1], [0], [0], [1], [0, 0, 1, 1], [], []>} : vector<32x64xf32>, vector<64x128xf32>, vector<32x128xf32> -> vector<32x128xf32>
    %159 = arith.addf %150, %158 : vector<32x128xf32>
    %c1_101 = arith.constant 1 : index
    %c8 = arith.constant 8 : index
    %c0_102 = arith.constant 0 : index
    %160 = vector.load %arg19[%c1_101, %c8, %c0_102] : memref<4x52x64xf32, #tpu.memory_space<vmem>>, vector<1x32x64xf32>
    %161 = vector.shape_cast %160 : vector<1x32x64xf32> to vector<32x64xf32>
    %c0_103 = arith.constant 0 : index
    %c0_104 = arith.constant 0 : index
    %162 = vector.load %arg2[%c0_103, %c0_104] : memref<32x1xf32, #tpu.memory_space<vmem>>, vector<32x1xf32>
    %163 = vector.broadcast %162 : vector<32x1xf32> to vector<32x64xf32>
    %164 = arith.mulf %161, %163 : vector<32x64xf32>
    %c4_105 = arith.constant 4 : index
    %c0_106 = arith.constant 0 : index
    %c0_107 = arith.constant 0 : index
    %165 = vector.load %arg6[%c4_105, %c0_106, %c0_107] : memref<16x64x128xf32, #tpu.memory_space<vmem>>, vector<1x64x128xf32>
    %166 = vector.shape_cast %165 : vector<1x64x128xf32> to vector<64x128xf32>
    %cst_108 = arith.constant dense<0.000000e+00> : vector<32x128xf32>
    %167 = tpu.matmul %164, %166, %cst_108 {dimension_numbers = #tpu.dot_dimension_numbers<[1], [0], [0], [1], [0, 0, 1, 1], [], []>} : vector<32x64xf32>, vector<64x128xf32>, vector<32x128xf32> -> vector<32x128xf32>
    %168 = arith.addf %159, %167 : vector<32x128xf32>
    %c0_109 = arith.constant 0 : index
    %c10_110 = arith.constant 10 : index
    %c0_111 = arith.constant 0 : index
    %169 = vector.load %arg19[%c0_109, %c10_110, %c0_111] : memref<4x52x64xf32, #tpu.memory_space<vmem>>, vector<1x32x64xf32>
    %170 = vector.shape_cast %169 : vector<1x32x64xf32> to vector<32x64xf32>
    %c5 = arith.constant 5 : index
    %c0_112 = arith.constant 0 : index
    %c0_113 = arith.constant 0 : index
    %171 = vector.load %arg6[%c5, %c0_112, %c0_113] : memref<16x64x128xf32, #tpu.memory_space<vmem>>, vector<1x64x128xf32>
    %172 = vector.shape_cast %171 : vector<1x64x128xf32> to vector<64x128xf32>
    %cst_114 = arith.constant dense<0.000000e+00> : vector<32x128xf32>
    %173 = tpu.matmul %170, %172, %cst_114 {dimension_numbers = #tpu.dot_dimension_numbers<[1], [0], [0], [1], [0, 0, 1, 1], [], []>} : vector<32x64xf32>, vector<64x128xf32>, vector<32x128xf32> -> vector<32x128xf32>
    %174 = arith.addf %168, %173 : vector<32x128xf32>
    %c1_115 = arith.constant 1 : index
    %c10_116 = arith.constant 10 : index
    %c0_117 = arith.constant 0 : index
    %175 = vector.load %arg19[%c1_115, %c10_116, %c0_117] : memref<4x52x64xf32, #tpu.memory_space<vmem>>, vector<1x32x64xf32>
    %176 = vector.shape_cast %175 : vector<1x32x64xf32> to vector<32x64xf32>
    %c6 = arith.constant 6 : index
    %c0_118 = arith.constant 0 : index
    %c0_119 = arith.constant 0 : index
    %177 = vector.load %arg6[%c6, %c0_118, %c0_119] : memref<16x64x128xf32, #tpu.memory_space<vmem>>, vector<1x64x128xf32>
    %178 = vector.shape_cast %177 : vector<1x64x128xf32> to vector<64x128xf32>
    %cst_120 = arith.constant dense<0.000000e+00> : vector<32x128xf32>
    %179 = tpu.matmul %176, %178, %cst_120 {dimension_numbers = #tpu.dot_dimension_numbers<[1], [0], [0], [1], [0, 0, 1, 1], [], []>} : vector<32x64xf32>, vector<64x128xf32>, vector<32x128xf32> -> vector<32x128xf32>
    %180 = arith.addf %174, %179 : vector<32x128xf32>
    %c0_121 = arith.constant 0 : index
    %c12 = arith.constant 12 : index
    %c0_122 = arith.constant 0 : index
    %181 = vector.load %arg19[%c0_121, %c12, %c0_122] : memref<4x52x64xf32, #tpu.memory_space<vmem>>, vector<1x32x64xf32>
    %182 = vector.shape_cast %181 : vector<1x32x64xf32> to vector<32x64xf32>
    %c0_123 = arith.constant 0 : index
    %c0_124 = arith.constant 0 : index
    %183 = vector.load %arg3[%c0_123, %c0_124] : memref<32x1xf32, #tpu.memory_space<vmem>>, vector<32x1xf32>
    %184 = vector.broadcast %183 : vector<32x1xf32> to vector<32x64xf32>
    %185 = arith.mulf %182, %184 : vector<32x64xf32>
    %c7 = arith.constant 7 : index
    %c0_125 = arith.constant 0 : index
    %c0_126 = arith.constant 0 : index
    %186 = vector.load %arg6[%c7, %c0_125, %c0_126] : memref<16x64x128xf32, #tpu.memory_space<vmem>>, vector<1x64x128xf32>
    %187 = vector.shape_cast %186 : vector<1x64x128xf32> to vector<64x128xf32>
    %cst_127 = arith.constant dense<0.000000e+00> : vector<32x128xf32>
    %188 = tpu.matmul %185, %187, %cst_127 {dimension_numbers = #tpu.dot_dimension_numbers<[1], [0], [0], [1], [0, 0, 1, 1], [], []>} : vector<32x64xf32>, vector<64x128xf32>, vector<32x128xf32> -> vector<32x128xf32>
    %189 = arith.addf %180, %188 : vector<32x128xf32>
    %c3_128 = arith.constant 3 : index
    %c8_129 = arith.constant 8 : index
    %c0_130 = arith.constant 0 : index
    %190 = vector.load %arg19[%c3_128, %c8_129, %c0_130] : memref<4x52x64xf32, #tpu.memory_space<vmem>>, vector<1x32x64xf32>
    %191 = vector.shape_cast %190 : vector<1x32x64xf32> to vector<32x64xf32>
    %c0_131 = arith.constant 0 : index
    %c0_132 = arith.constant 0 : index
    %192 = vector.load %arg2[%c0_131, %c0_132] : memref<32x1xf32, #tpu.memory_space<vmem>>, vector<32x1xf32>
    %193 = vector.broadcast %192 : vector<32x1xf32> to vector<32x64xf32>
    %194 = arith.mulf %191, %193 : vector<32x64xf32>
    %c8_133 = arith.constant 8 : index
    %c0_134 = arith.constant 0 : index
    %c0_135 = arith.constant 0 : index
    %195 = vector.load %arg6[%c8_133, %c0_134, %c0_135] : memref<16x64x128xf32, #tpu.memory_space<vmem>>, vector<1x64x128xf32>
    %196 = vector.shape_cast %195 : vector<1x64x128xf32> to vector<64x128xf32>
    %cst_136 = arith.constant dense<0.000000e+00> : vector<32x128xf32>
    %197 = tpu.matmul %194, %196, %cst_136 {dimension_numbers = #tpu.dot_dimension_numbers<[1], [0], [0], [1], [0, 0, 1, 1], [], []>} : vector<32x64xf32>, vector<64x128xf32>, vector<32x128xf32> -> vector<32x128xf32>
    %198 = arith.addf %189, %197 : vector<32x128xf32>
    %c2_137 = arith.constant 2 : index
    %c10_138 = arith.constant 10 : index
    %c0_139 = arith.constant 0 : index
    %199 = vector.load %arg19[%c2_137, %c10_138, %c0_139] : memref<4x52x64xf32, #tpu.memory_space<vmem>>, vector<1x32x64xf32>
    %200 = vector.shape_cast %199 : vector<1x32x64xf32> to vector<32x64xf32>
    %c9 = arith.constant 9 : index
    %c0_140 = arith.constant 0 : index
    %c0_141 = arith.constant 0 : index
    %201 = vector.load %arg6[%c9, %c0_140, %c0_141] : memref<16x64x128xf32, #tpu.memory_space<vmem>>, vector<1x64x128xf32>
    %202 = vector.shape_cast %201 : vector<1x64x128xf32> to vector<64x128xf32>
    %cst_142 = arith.constant dense<0.000000e+00> : vector<32x128xf32>
    %203 = tpu.matmul %200, %202, %cst_142 {dimension_numbers = #tpu.dot_dimension_numbers<[1], [0], [0], [1], [0, 0, 1, 1], [], []>} : vector<32x64xf32>, vector<64x128xf32>, vector<32x128xf32> -> vector<32x128xf32>
    %204 = arith.addf %198, %203 : vector<32x128xf32>
    %c3_143 = arith.constant 3 : index
    %c10_144 = arith.constant 10 : index
    %c0_145 = arith.constant 0 : index
    %205 = vector.load %arg19[%c3_143, %c10_144, %c0_145] : memref<4x52x64xf32, #tpu.memory_space<vmem>>, vector<1x32x64xf32>
    %206 = vector.shape_cast %205 : vector<1x32x64xf32> to vector<32x64xf32>
    %c10_146 = arith.constant 10 : index
    %c0_147 = arith.constant 0 : index
    %c0_148 = arith.constant 0 : index
    %207 = vector.load %arg6[%c10_146, %c0_147, %c0_148] : memref<16x64x128xf32, #tpu.memory_space<vmem>>, vector<1x64x128xf32>
    %208 = vector.shape_cast %207 : vector<1x64x128xf32> to vector<64x128xf32>
    %cst_149 = arith.constant dense<0.000000e+00> : vector<32x128xf32>
    %209 = tpu.matmul %206, %208, %cst_149 {dimension_numbers = #tpu.dot_dimension_numbers<[1], [0], [0], [1], [0, 0, 1, 1], [], []>} : vector<32x64xf32>, vector<64x128xf32>, vector<32x128xf32> -> vector<32x128xf32>
    %210 = arith.addf %204, %209 : vector<32x128xf32>
    %c2_150 = arith.constant 2 : index
    %c12_151 = arith.constant 12 : index
    %c0_152 = arith.constant 0 : index
    %211 = vector.load %arg19[%c2_150, %c12_151, %c0_152] : memref<4x52x64xf32, #tpu.memory_space<vmem>>, vector<1x32x64xf32>
    %212 = vector.shape_cast %211 : vector<1x32x64xf32> to vector<32x64xf32>
    %c0_153 = arith.constant 0 : index
    %c0_154 = arith.constant 0 : index
    %213 = vector.load %arg3[%c0_153, %c0_154] : memref<32x1xf32, #tpu.memory_space<vmem>>, vector<32x1xf32>
    %214 = vector.broadcast %213 : vector<32x1xf32> to vector<32x64xf32>
    %215 = arith.mulf %212, %214 : vector<32x64xf32>
    %c11 = arith.constant 11 : index
    %c0_155 = arith.constant 0 : index
    %c0_156 = arith.constant 0 : index
    %216 = vector.load %arg6[%c11, %c0_155, %c0_156] : memref<16x64x128xf32, #tpu.memory_space<vmem>>, vector<1x64x128xf32>
    %217 = vector.shape_cast %216 : vector<1x64x128xf32> to vector<64x128xf32>
    %cst_157 = arith.constant dense<0.000000e+00> : vector<32x128xf32>
    %218 = tpu.matmul %215, %217, %cst_157 {dimension_numbers = #tpu.dot_dimension_numbers<[1], [0], [0], [1], [0, 0, 1, 1], [], []>} : vector<32x64xf32>, vector<64x128xf32>, vector<32x128xf32> -> vector<32x128xf32>
    %219 = arith.addf %210, %218 : vector<32x128xf32>
    %c1_158 = arith.constant 1 : index
    %c16 = arith.constant 16 : index
    %c0_159 = arith.constant 0 : index
    %220 = vector.load %arg19[%c1_158, %c16, %c0_159] : memref<4x52x64xf32, #tpu.memory_space<vmem>>, vector<1x32x64xf32>
    %221 = vector.shape_cast %220 : vector<1x32x64xf32> to vector<32x64xf32>
    %c0_160 = arith.constant 0 : index
    %c0_161 = arith.constant 0 : index
    %222 = vector.load %arg2[%c0_160, %c0_161] : memref<32x1xf32, #tpu.memory_space<vmem>>, vector<32x1xf32>
    %223 = vector.broadcast %222 : vector<32x1xf32> to vector<32x64xf32>
    %224 = arith.mulf %221, %223 : vector<32x64xf32>
    %c12_162 = arith.constant 12 : index
    %c0_163 = arith.constant 0 : index
    %c0_164 = arith.constant 0 : index
    %225 = vector.load %arg6[%c12_162, %c0_163, %c0_164] : memref<16x64x128xf32, #tpu.memory_space<vmem>>, vector<1x64x128xf32>
    %226 = vector.shape_cast %225 : vector<1x64x128xf32> to vector<64x128xf32>
    %cst_165 = arith.constant dense<0.000000e+00> : vector<32x128xf32>
    %227 = tpu.matmul %224, %226, %cst_165 {dimension_numbers = #tpu.dot_dimension_numbers<[1], [0], [0], [1], [0, 0, 1, 1], [], []>} : vector<32x64xf32>, vector<64x128xf32>, vector<32x128xf32> -> vector<32x128xf32>
    %228 = arith.addf %219, %227 : vector<32x128xf32>
    %c0_166 = arith.constant 0 : index
    %c18 = arith.constant 18 : index
    %c0_167 = arith.constant 0 : index
    %229 = vector.load %arg19[%c0_166, %c18, %c0_167] : memref<4x52x64xf32, #tpu.memory_space<vmem>>, vector<1x32x64xf32>
    %230 = vector.shape_cast %229 : vector<1x32x64xf32> to vector<32x64xf32>
    %c13 = arith.constant 13 : index
    %c0_168 = arith.constant 0 : index
    %c0_169 = arith.constant 0 : index
    %231 = vector.load %arg6[%c13, %c0_168, %c0_169] : memref<16x64x128xf32, #tpu.memory_space<vmem>>, vector<1x64x128xf32>
    %232 = vector.shape_cast %231 : vector<1x64x128xf32> to vector<64x128xf32>
    %cst_170 = arith.constant dense<0.000000e+00> : vector<32x128xf32>
    %233 = tpu.matmul %230, %232, %cst_170 {dimension_numbers = #tpu.dot_dimension_numbers<[1], [0], [0], [1], [0, 0, 1, 1], [], []>} : vector<32x64xf32>, vector<64x128xf32>, vector<32x128xf32> -> vector<32x128xf32>
    %234 = arith.addf %228, %233 : vector<32x128xf32>
    %c1_171 = arith.constant 1 : index
    %c18_172 = arith.constant 18 : index
    %c0_173 = arith.constant 0 : index
    %235 = vector.load %arg19[%c1_171, %c18_172, %c0_173] : memref<4x52x64xf32, #tpu.memory_space<vmem>>, vector<1x32x64xf32>
    %236 = vector.shape_cast %235 : vector<1x32x64xf32> to vector<32x64xf32>
    %c14 = arith.constant 14 : index
    %c0_174 = arith.constant 0 : index
    %c0_175 = arith.constant 0 : index
    %237 = vector.load %arg6[%c14, %c0_174, %c0_175] : memref<16x64x128xf32, #tpu.memory_space<vmem>>, vector<1x64x128xf32>
    %238 = vector.shape_cast %237 : vector<1x64x128xf32> to vector<64x128xf32>
    %cst_176 = arith.constant dense<0.000000e+00> : vector<32x128xf32>
    %239 = tpu.matmul %236, %238, %cst_176 {dimension_numbers = #tpu.dot_dimension_numbers<[1], [0], [0], [1], [0, 0, 1, 1], [], []>} : vector<32x64xf32>, vector<64x128xf32>, vector<32x128xf32> -> vector<32x128xf32>
    %240 = arith.addf %234, %239 : vector<32x128xf32>
    %c0_177 = arith.constant 0 : index
    %c20 = arith.constant 20 : index
    %c0_178 = arith.constant 0 : index
    %241 = vector.load %arg19[%c0_177, %c20, %c0_178] : memref<4x52x64xf32, #tpu.memory_space<vmem>>, vector<1x32x64xf32>
    %242 = vector.shape_cast %241 : vector<1x32x64xf32> to vector<32x64xf32>
    %c0_179 = arith.constant 0 : index
    %c0_180 = arith.constant 0 : index
    %243 = vector.load %arg3[%c0_179, %c0_180] : memref<32x1xf32, #tpu.memory_space<vmem>>, vector<32x1xf32>
    %244 = vector.broadcast %243 : vector<32x1xf32> to vector<32x64xf32>
    %245 = arith.mulf %242, %244 : vector<32x64xf32>
    %c15 = arith.constant 15 : index
    %c0_181 = arith.constant 0 : index
    %c0_182 = arith.constant 0 : index
    %246 = vector.load %arg6[%c15, %c0_181, %c0_182] : memref<16x64x128xf32, #tpu.memory_space<vmem>>, vector<1x64x128xf32>
    %247 = vector.shape_cast %246 : vector<1x64x128xf32> to vector<64x128xf32>
    %cst_183 = arith.constant dense<0.000000e+00> : vector<32x128xf32>
    %248 = tpu.matmul %245, %247, %cst_183 {dimension_numbers = #tpu.dot_dimension_numbers<[1], [0], [0], [1], [0, 0, 1, 1], [], []>} : vector<32x64xf32>, vector<64x128xf32>, vector<32x128xf32> -> vector<32x128xf32>
    %249 = arith.addf %240, %248 : vector<32x128xf32>
    %c0_184 = arith.constant 0 : index
    %c0_185 = arith.constant 0 : index
    %250 = vector.load %arg7[%c0_184, %c0_185] : memref<1x128xf32, #tpu.memory_space<vmem>>, vector<1x128xf32>
    %251 = vector.broadcast %250 : vector<1x128xf32> to vector<32x128xf32>
    %252 = arith.addf %249, %251 : vector<32x128xf32>
    %cst_186 = arith.constant 0.000000e+00 : f32
    %253 = vector.broadcast %cst_186 : f32 to vector<32x128xf32>
    %254 = arith.maximumf %252, %253 : vector<32x128xf32>
    %c0_187 = arith.constant 0 : index
    %c0_188 = arith.constant 0 : index
    %255 = vector.load %arg20[%c0_187, %c0_188] : memref<32x128xf32, #tpu.memory_space<vmem>>, vector<32x128xf32>
    tpu.vector_store %arg20[%c0_187, %c0_188], %254 {strides = array<i32>} : memref<32x128xf32, #tpu.memory_space<vmem>>, vector<32x128xf32>,
    %c0_189 = arith.constant 0 : index
    %c0_190 = arith.constant 0 : index
    %256 = vector.load %arg9[%c0_189, %c0_190] : memref<1x256xf32, #tpu.memory_space<vmem>>, vector<1x256xf32>
    %cst_191 = arith.constant 0.000000e+00 : f32
    %257 = vector.broadcast %cst_191 : f32 to vector<2x256xf32>
    %c0_192 = arith.constant 0 : index
    %c0_193 = arith.constant 0 : index
    %258 = vector.load %arg20[%c0_192, %c0_193] : memref<32x128xf32, #tpu.memory_space<vmem>>, vector<2x128xf32>
    %c5_194 = arith.constant 5 : index
    %c0_195 = arith.constant 0 : index
    %c0_196 = arith.constant 0 : index
    %259 = vector.load %arg8[%c5_194, %c0_195, %c0_196] : memref<16x128x256xf32, #tpu.memory_space<vmem>>, vector<1x128x256xf32>
    %260 = vector.shape_cast %259 : vector<1x128x256xf32> to vector<128x256xf32>
    %cst_197 = arith.constant dense<0.000000e+00> : vector<2x256xf32>
    %261 = tpu.matmul %258, %260, %cst_197 {dimension_numbers = #tpu.dot_dimension_numbers<[1], [0], [0], [1], [0, 0, 1, 1], [], []>} : vector<2x128xf32>, vector<128x256xf32>, vector<2x256xf32> -> vector<2x256xf32>
    %262 = arith.addf %257, %261 : vector<2x256xf32>
    %c2_198 = arith.constant 2 : index
    %c0_199 = arith.constant 0 : index
    %263 = vector.load %arg20[%c2_198, %c0_199] : memref<32x128xf32, #tpu.memory_space<vmem>>, vector<2x128xf32>
    %c6_200 = arith.constant 6 : index
    %c0_201 = arith.constant 0 : index
    %c0_202 = arith.constant 0 : index
    %264 = vector.load %arg8[%c6_200, %c0_201, %c0_202] : memref<16x128x256xf32, #tpu.memory_space<vmem>>, vector<1x128x256xf32>
    %265 = vector.shape_cast %264 : vector<1x128x256xf32> to vector<128x256xf32>
    %cst_203 = arith.constant dense<0.000000e+00> : vector<2x256xf32>
    %266 = tpu.matmul %263, %265, %cst_203 {dimension_numbers = #tpu.dot_dimension_numbers<[1], [0], [0], [1], [0, 0, 1, 1], [], []>} : vector<2x128xf32>, vector<128x256xf32>, vector<2x256xf32> -> vector<2x256xf32>
    %267 = arith.addf %262, %266 : vector<2x256xf32>
    %c4_204 = arith.constant 4 : index
    %c0_205 = arith.constant 0 : index
    %268 = vector.load %arg20[%c4_204, %c0_205] : memref<32x128xf32, #tpu.memory_space<vmem>>, vector<2x128xf32>
    %c7_206 = arith.constant 7 : index
    %c0_207 = arith.constant 0 : index
    %c0_208 = arith.constant 0 : index
    %269 = vector.load %arg8[%c7_206, %c0_207, %c0_208] : memref<16x128x256xf32, #tpu.memory_space<vmem>>, vector<1x128x256xf32>
    %270 = vector.shape_cast %269 : vector<1x128x256xf32> to vector<128x256xf32>
    %cst_209 = arith.constant dense<0.000000e+00> : vector<2x256xf32>
    %271 = tpu.matmul %268, %270, %cst_209 {dimension_numbers = #tpu.dot_dimension_numbers<[1], [0], [0], [1], [0, 0, 1, 1], [], []>} : vector<2x128xf32>, vector<128x256xf32>, vector<2x256xf32> -> vector<2x256xf32>
    %272 = arith.addf %267, %271 : vector<2x256xf32>
    %c8_210 = arith.constant 8 : index
    %c0_211 = arith.constant 0 : index
    %273 = vector.load %arg20[%c8_210, %c0_211] : memref<32x128xf32, #tpu.memory_space<vmem>>, vector<2x128xf32>
    %c9_212 = arith.constant 9 : index
    %c0_213 = arith.constant 0 : index
    %c0_214 = arith.constant 0 : index
    %274 = vector.load %arg8[%c9_212, %c0_213, %c0_214] : memref<16x128x256xf32, #tpu.memory_space<vmem>>, vector<1x128x256xf32>
    %275 = vector.shape_cast %274 : vector<1x128x256xf32> to vector<128x256xf32>
    %cst_215 = arith.constant dense<0.000000e+00> : vector<2x256xf32>
    %276 = tpu.matmul %273, %275, %cst_215 {dimension_numbers = #tpu.dot_dimension_numbers<[1], [0], [0], [1], [0, 0, 1, 1], [], []>} : vector<2x128xf32>, vector<128x256xf32>, vector<2x256xf32> -> vector<2x256xf32>
    %277 = arith.addf %272, %276 : vector<2x256xf32>
    %c10_216 = arith.constant 10 : index
    %c0_217 = arith.constant 0 : index
    %278 = vector.load %arg20[%c10_216, %c0_217] : memref<32x128xf32, #tpu.memory_space<vmem>>, vector<2x128xf32>
    %c10_218 = arith.constant 10 : index
    %c0_219 = arith.constant 0 : index
    %c0_220 = arith.constant 0 : index
    %279 = vector.load %arg8[%c10_218, %c0_219, %c0_220] : memref<16x128x256xf32, #tpu.memory_space<vmem>>, vector<1x128x256xf32>
    %280 = vector.shape_cast %279 : vector<1x128x256xf32> to vector<128x256xf32>
    %cst_221 = arith.constant dense<0.000000e+00> : vector<2x256xf32>
    %281 = tpu.matmul %278, %280, %cst_221 {dimension_numbers = #tpu.dot_dimension_numbers<[1], [0], [0], [1], [0, 0, 1, 1], [], []>} : vector<2x128xf32>, vector<128x256xf32>, vector<2x256xf32> -> vector<2x256xf32>
    %282 = arith.addf %277, %281 : vector<2x256xf32>
    %c12_222 = arith.constant 12 : index
    %c0_223 = arith.constant 0 : index
    %283 = vector.load %arg20[%c12_222, %c0_223] : memref<32x128xf32, #tpu.memory_space<vmem>>, vector<2x128xf32>
    %c11_224 = arith.constant 11 : index
    %c0_225 = arith.constant 0 : index
    %c0_226 = arith.constant 0 : index
    %284 = vector.load %arg8[%c11_224, %c0_225, %c0_226] : memref<16x128x256xf32, #tpu.memory_space<vmem>>, vector<1x128x256xf32>
    %285 = vector.shape_cast %284 : vector<1x128x256xf32> to vector<128x256xf32>
    %cst_227 = arith.constant dense<0.000000e+00> : vector<2x256xf32>
    %286 = tpu.matmul %283, %285, %cst_227 {dimension_numbers = #tpu.dot_dimension_numbers<[1], [0], [0], [1], [0, 0, 1, 1], [], []>} : vector<2x128xf32>, vector<128x256xf32>, vector<2x256xf32> -> vector<2x256xf32>
    %287 = arith.addf %282, %286 : vector<2x256xf32>
    %c16_228 = arith.constant 16 : index
    %c0_229 = arith.constant 0 : index
    %288 = vector.load %arg20[%c16_228, %c0_229] : memref<32x128xf32, #tpu.memory_space<vmem>>, vector<2x128xf32>
    %c13_230 = arith.constant 13 : index
    %c0_231 = arith.constant 0 : index
    %c0_232 = arith.constant 0 : index
    %289 = vector.load %arg8[%c13_230, %c0_231, %c0_232] : memref<16x128x256xf32, #tpu.memory_space<vmem>>, vector<1x128x256xf32>
    %290 = vector.shape_cast %289 : vector<1x128x256xf32> to vector<128x256xf32>
    %cst_233 = arith.constant dense<0.000000e+00> : vector<2x256xf32>
    %291 = tpu.matmul %288, %290, %cst_233 {dimension_numbers = #tpu.dot_dimension_numbers<[1], [0], [0], [1], [0, 0, 1, 1], [], []>} : vector<2x128xf32>, vector<128x256xf32>, vector<2x256xf32> -> vector<2x256xf32>
    %292 = arith.addf %287, %291 : vector<2x256xf32>
    %c18_234 = arith.constant 18 : index
    %c0_235 = arith.constant 0 : index
    %293 = vector.load %arg20[%c18_234, %c0_235] : memref<32x128xf32, #tpu.memory_space<vmem>>, vector<2x128xf32>
    %c14_236 = arith.constant 14 : index
    %c0_237 = arith.constant 0 : index
    %c0_238 = arith.constant 0 : index
    %294 = vector.load %arg8[%c14_236, %c0_237, %c0_238] : memref<16x128x256xf32, #tpu.memory_space<vmem>>, vector<1x128x256xf32>
    %295 = vector.shape_cast %294 : vector<1x128x256xf32> to vector<128x256xf32>
    %cst_239 = arith.constant dense<0.000000e+00> : vector<2x256xf32>
    %296 = tpu.matmul %293, %295, %cst_239 {dimension_numbers = #tpu.dot_dimension_numbers<[1], [0], [0], [1], [0, 0, 1, 1], [], []>} : vector<2x128xf32>, vector<128x256xf32>, vector<2x256xf32> -> vector<2x256xf32>
    %297 = arith.addf %292, %296 : vector<2x256xf32>
    %c20_240 = arith.constant 20 : index
    %c0_241 = arith.constant 0 : index
    %298 = vector.load %arg20[%c20_240, %c0_241] : memref<32x128xf32, #tpu.memory_space<vmem>>, vector<2x128xf32>
    %c15_242 = arith.constant 15 : index
    %c0_243 = arith.constant 0 : index
    %c0_244 = arith.constant 0 : index
    %299 = vector.load %arg8[%c15_242, %c0_243, %c0_244] : memref<16x128x256xf32, #tpu.memory_space<vmem>>, vector<1x128x256xf32>
    %300 = vector.shape_cast %299 : vector<1x128x256xf32> to vector<128x256xf32>
    %cst_245 = arith.constant dense<0.000000e+00> : vector<2x256xf32>
    %301 = tpu.matmul %298, %300, %cst_245 {dimension_numbers = #tpu.dot_dimension_numbers<[1], [0], [0], [1], [0, 0, 1, 1], [], []>} : vector<2x128xf32>, vector<128x256xf32>, vector<2x256xf32> -> vector<2x256xf32>
    %302 = arith.addf %297, %301 : vector<2x256xf32>
    %303 = vector.broadcast %256 : vector<1x256xf32> to vector<2x256xf32>
    %304 = arith.addf %302, %303 : vector<2x256xf32>
    %cst_246 = arith.constant 0.000000e+00 : f32
    %305 = vector.broadcast %cst_246 : f32 to vector<2x256xf32>
    %306 = arith.maximumf %304, %305 : vector<2x256xf32>
    %cst_247 = arith.constant 0.000000e+00 : f32
    %307 = vector.broadcast %cst_247 : f32 to vector<2x256xf32>
    %c2_248 = arith.constant 2 : index
    %c0_249 = arith.constant 0 : index
    %308 = vector.load %arg20[%c2_248, %c0_249] : memref<32x128xf32, #tpu.memory_space<vmem>>, vector<2x128xf32>
    %c4_250 = arith.constant 4 : index
    %c0_251 = arith.constant 0 : index
    %c0_252 = arith.constant 0 : index
    %309 = vector.load %arg8[%c4_250, %c0_251, %c0_252] : memref<16x128x256xf32, #tpu.memory_space<vmem>>, vector<1x128x256xf32>
    %310 = vector.shape_cast %309 : vector<1x128x256xf32> to vector<128x256xf32>
    %cst_253 = arith.constant dense<0.000000e+00> : vector<2x256xf32>
    %311 = tpu.matmul %308, %310, %cst_253 {dimension_numbers = #tpu.dot_dimension_numbers<[1], [0], [0], [1], [0, 0, 1, 1], [], []>} : vector<2x128xf32>, vector<128x256xf32>, vector<2x256xf32> -> vector<2x256xf32>
    %312 = arith.addf %307, %311 : vector<2x256xf32>
    %c4_254 = arith.constant 4 : index
    %c0_255 = arith.constant 0 : index
    %313 = vector.load %arg20[%c4_254, %c0_255] : memref<32x128xf32, #tpu.memory_space<vmem>>, vector<2x128xf32>
    %c5_256 = arith.constant 5 : index
    %c0_257 = arith.constant 0 : index
    %c0_258 = arith.constant 0 : index
    %314 = vector.load %arg8[%c5_256, %c0_257, %c0_258] : memref<16x128x256xf32, #tpu.memory_space<vmem>>, vector<1x128x256xf32>
    %315 = vector.shape_cast %314 : vector<1x128x256xf32> to vector<128x256xf32>
    %cst_259 = arith.constant dense<0.000000e+00> : vector<2x256xf32>
    %316 = tpu.matmul %313, %315, %cst_259 {dimension_numbers = #tpu.dot_dimension_numbers<[1], [0], [0], [1], [0, 0, 1, 1], [], []>} : vector<2x128xf32>, vector<128x256xf32>, vector<2x256xf32> -> vector<2x256xf32>
    %317 = arith.addf %312, %316 : vector<2x256xf32>
    %c6_260 = arith.constant 6 : index
    %c0_261 = arith.constant 0 : index
    %318 = vector.load %arg20[%c6_260, %c0_261] : memref<32x128xf32, #tpu.memory_space<vmem>>, vector<2x128xf32>
    %c6_262 = arith.constant 6 : index
    %c0_263 = arith.constant 0 : index
    %c0_264 = arith.constant 0 : index
    %319 = vector.load %arg8[%c6_262, %c0_263, %c0_264] : memref<16x128x256xf32, #tpu.memory_space<vmem>>, vector<1x128x256xf32>
    %320 = vector.shape_cast %319 : vector<1x128x256xf32> to vector<128x256xf32>
    %cst_265 = arith.constant dense<0.000000e+00> : vector<2x256xf32>
    %321 = tpu.matmul %318, %320, %cst_265 {dimension_numbers = #tpu.dot_dimension_numbers<[1], [0], [0], [1], [0, 0, 1, 1], [], []>} : vector<2x128xf32>, vector<128x256xf32>, vector<2x256xf32> -> vector<2x256xf32>
    %322 = arith.addf %317, %321 : vector<2x256xf32>
    %c10_266 = arith.constant 10 : index
    %c0_267 = arith.constant 0 : index
    %323 = vector.load %arg20[%c10_266, %c0_267] : memref<32x128xf32, #tpu.memory_space<vmem>>, vector<2x128xf32>
    %c8_268 = arith.constant 8 : index
    %c0_269 = arith.constant 0 : index
    %c0_270 = arith.constant 0 : index
    %324 = vector.load %arg8[%c8_268, %c0_269, %c0_270] : memref<16x128x256xf32, #tpu.memory_space<vmem>>, vector<1x128x256xf32>
    %325 = vector.shape_cast %324 : vector<1x128x256xf32> to vector<128x256xf32>
    %cst_271 = arith.constant dense<0.000000e+00> : vector<2x256xf32>
    %326 = tpu.matmul %323, %325, %cst_271 {dimension_numbers = #tpu.dot_dimension_numbers<[1], [0], [0], [1], [0, 0, 1, 1], [], []>} : vector<2x128xf32>, vector<128x256xf32>, vector<2x256xf32> -> vector<2x256xf32>
    %327 = arith.addf %322, %326 : vector<2x256xf32>
    %c12_272 = arith.constant 12 : index
    %c0_273 = arith.constant 0 : index
    %328 = vector.load %arg20[%c12_272, %c0_273] : memref<32x128xf32, #tpu.memory_space<vmem>>, vector<2x128xf32>
    %c9_274 = arith.constant 9 : index
    %c0_275 = arith.constant 0 : index
    %c0_276 = arith.constant 0 : index
    %329 = vector.load %arg8[%c9_274, %c0_275, %c0_276] : memref<16x128x256xf32, #tpu.memory_space<vmem>>, vector<1x128x256xf32>
    %330 = vector.shape_cast %329 : vector<1x128x256xf32> to vector<128x256xf32>
    %cst_277 = arith.constant dense<0.000000e+00> : vector<2x256xf32>
    %331 = tpu.matmul %328, %330, %cst_277 {dimension_numbers = #tpu.dot_dimension_numbers<[1], [0], [0], [1], [0, 0, 1, 1], [], []>} : vector<2x128xf32>, vector<128x256xf32>, vector<2x256xf32> -> vector<2x256xf32>
    %332 = arith.addf %327, %331 : vector<2x256xf32>
    %c14_278 = arith.constant 14 : index
    %c0_279 = arith.constant 0 : index
    %333 = vector.load %arg20[%c14_278, %c0_279] : memref<32x128xf32, #tpu.memory_space<vmem>>, vector<2x128xf32>
    %c10_280 = arith.constant 10 : index
    %c0_281 = arith.constant 0 : index
    %c0_282 = arith.constant 0 : index
    %334 = vector.load %arg8[%c10_280, %c0_281, %c0_282] : memref<16x128x256xf32, #tpu.memory_space<vmem>>, vector<1x128x256xf32>
    %335 = vector.shape_cast %334 : vector<1x128x256xf32> to vector<128x256xf32>
    %cst_283 = arith.constant dense<0.000000e+00> : vector<2x256xf32>
    %336 = tpu.matmul %333, %335, %cst_283 {dimension_numbers = #tpu.dot_dimension_numbers<[1], [0], [0], [1], [0, 0, 1, 1], [], []>} : vector<2x128xf32>, vector<128x256xf32>, vector<2x256xf32> -> vector<2x256xf32>
    %337 = arith.addf %332, %336 : vector<2x256xf32>
    %c18_284 = arith.constant 18 : index
    %c0_285 = arith.constant 0 : index
    %338 = vector.load %arg20[%c18_284, %c0_285] : memref<32x128xf32, #tpu.memory_space<vmem>>, vector<2x128xf32>
    %c12_286 = arith.constant 12 : index
    %c0_287 = arith.constant 0 : index
    %c0_288 = arith.constant 0 : index
    %339 = vector.load %arg8[%c12_286, %c0_287, %c0_288] : memref<16x128x256xf32, #tpu.memory_space<vmem>>, vector<1x128x256xf32>
    %340 = vector.shape_cast %339 : vector<1x128x256xf32> to vector<128x256xf32>
    %cst_289 = arith.constant dense<0.000000e+00> : vector<2x256xf32>
    %341 = tpu.matmul %338, %340, %cst_289 {dimension_numbers = #tpu.dot_dimension_numbers<[1], [0], [0], [1], [0, 0, 1, 1], [], []>} : vector<2x128xf32>, vector<128x256xf32>, vector<2x256xf32> -> vector<2x256xf32>
    %342 = arith.addf %337, %341 : vector<2x256xf32>
    %c20_290 = arith.constant 20 : index
    %c0_291 = arith.constant 0 : index
    %343 = vector.load %arg20[%c20_290, %c0_291] : memref<32x128xf32, #tpu.memory_space<vmem>>, vector<2x128xf32>
    %c13_292 = arith.constant 13 : index
    %c0_293 = arith.constant 0 : index
    %c0_294 = arith.constant 0 : index
    %344 = vector.load %arg8[%c13_292, %c0_293, %c0_294] : memref<16x128x256xf32, #tpu.memory_space<vmem>>, vector<1x128x256xf32>
    %345 = vector.shape_cast %344 : vector<1x128x256xf32> to vector<128x256xf32>
    %cst_295 = arith.constant dense<0.000000e+00> : vector<2x256xf32>
    %346 = tpu.matmul %343, %345, %cst_295 {dimension_numbers = #tpu.dot_dimension_numbers<[1], [0], [0], [1], [0, 0, 1, 1], [], []>} : vector<2x128xf32>, vector<128x256xf32>, vector<2x256xf32> -> vector<2x256xf32>
    %347 = arith.addf %342, %346 : vector<2x256xf32>
    %c22 = arith.constant 22 : index
    %c0_296 = arith.constant 0 : index
    %348 = vector.load %arg20[%c22, %c0_296] : memref<32x128xf32, #tpu.memory_space<vmem>>, vector<2x128xf32>
    %c14_297 = arith.constant 14 : index
    %c0_298 = arith.constant 0 : index
    %c0_299 = arith.constant 0 : index
    %349 = vector.load %arg8[%c14_297, %c0_298, %c0_299] : memref<16x128x256xf32, #tpu.memory_space<vmem>>, vector<1x128x256xf32>
    %350 = vector.shape_cast %349 : vector<1x128x256xf32> to vector<128x256xf32>
    %cst_300 = arith.constant dense<0.000000e+00> : vector<2x256xf32>
    %351 = tpu.matmul %348, %350, %cst_300 {dimension_numbers = #tpu.dot_dimension_numbers<[1], [0], [0], [1], [0, 0, 1, 1], [], []>} : vector<2x128xf32>, vector<128x256xf32>, vector<2x256xf32> -> vector<2x256xf32>
    %352 = arith.addf %347, %351 : vector<2x256xf32>
    %353 = vector.broadcast %256 : vector<1x256xf32> to vector<2x256xf32>
    %354 = arith.addf %352, %353 : vector<2x256xf32>
    %cst_301 = arith.constant 0.000000e+00 : f32
    %355 = vector.broadcast %cst_301 : f32 to vector<2x256xf32>
    %356 = arith.maximumf %354, %355 : vector<2x256xf32>
    %cst_302 = arith.constant 0.000000e+00 : f32
    %357 = vector.broadcast %cst_302 : f32 to vector<2x256xf32>
    %c8_303 = arith.constant 8 : index
    %c0_304 = arith.constant 0 : index
    %358 = vector.load %arg20[%c8_303, %c0_304] : memref<32x128xf32, #tpu.memory_space<vmem>>, vector<2x128xf32>
    %c1_305 = arith.constant 1 : index
    %c0_306 = arith.constant 0 : index
    %c0_307 = arith.constant 0 : index
    %359 = vector.load %arg8[%c1_305, %c0_306, %c0_307] : memref<16x128x256xf32, #tpu.memory_space<vmem>>, vector<1x128x256xf32>
    %360 = vector.shape_cast %359 : vector<1x128x256xf32> to vector<128x256xf32>
    %cst_308 = arith.constant dense<0.000000e+00> : vector<2x256xf32>
    %361 = tpu.matmul %358, %360, %cst_308 {dimension_numbers = #tpu.dot_dimension_numbers<[1], [0], [0], [1], [0, 0, 1, 1], [], []>} : vector<2x128xf32>, vector<128x256xf32>, vector<2x256xf32> -> vector<2x256xf32>
    %362 = arith.addf %357, %361 : vector<2x256xf32>
    %c10_309 = arith.constant 10 : index
    %c0_310 = arith.constant 0 : index
    %363 = vector.load %arg20[%c10_309, %c0_310] : memref<32x128xf32, #tpu.memory_space<vmem>>, vector<2x128xf32>
    %c2_311 = arith.constant 2 : index
    %c0_312 = arith.constant 0 : index
    %c0_313 = arith.constant 0 : index
    %364 = vector.load %arg8[%c2_311, %c0_312, %c0_313] : memref<16x128x256xf32, #tpu.memory_space<vmem>>, vector<1x128x256xf32>
    %365 = vector.shape_cast %364 : vector<1x128x256xf32> to vector<128x256xf32>
    %cst_314 = arith.constant dense<0.000000e+00> : vector<2x256xf32>
    %366 = tpu.matmul %363, %365, %cst_314 {dimension_numbers = #tpu.dot_dimension_numbers<[1], [0], [0], [1], [0, 0, 1, 1], [], []>} : vector<2x128xf32>, vector<128x256xf32>, vector<2x256xf32> -> vector<2x256xf32>
    %367 = arith.addf %362, %366 : vector<2x256xf32>
    %c12_315 = arith.constant 12 : index
    %c0_316 = arith.constant 0 : index
    %368 = vector.load %arg20[%c12_315, %c0_316] : memref<32x128xf32, #tpu.memory_space<vmem>>, vector<2x128xf32>
    %c3_317 = arith.constant 3 : index
    %c0_318 = arith.constant 0 : index
    %c0_319 = arith.constant 0 : index
    %369 = vector.load %arg8[%c3_317, %c0_318, %c0_319] : memref<16x128x256xf32, #tpu.memory_space<vmem>>, vector<1x128x256xf32>
    %370 = vector.shape_cast %369 : vector<1x128x256xf32> to vector<128x256xf32>
    %cst_320 = arith.constant dense<0.000000e+00> : vector<2x256xf32>
    %371 = tpu.matmul %368, %370, %cst_320 {dimension_numbers = #tpu.dot_dimension_numbers<[1], [0], [0], [1], [0, 0, 1, 1], [], []>} : vector<2x128xf32>, vector<128x256xf32>, vector<2x256xf32> -> vector<2x256xf32>
    %372 = arith.addf %367, %371 : vector<2x256xf32>
    %c16_321 = arith.constant 16 : index
    %c0_322 = arith.constant 0 : index
    %373 = vector.load %arg20[%c16_321, %c0_322] : memref<32x128xf32, #tpu.memory_space<vmem>>, vector<2x128xf32>
    %c5_323 = arith.constant 5 : index
    %c0_324 = arith.constant 0 : index
    %c0_325 = arith.constant 0 : index
    %374 = vector.load %arg8[%c5_323, %c0_324, %c0_325] : memref<16x128x256xf32, #tpu.memory_space<vmem>>, vector<1x128x256xf32>
    %375 = vector.shape_cast %374 : vector<1x128x256xf32> to vector<128x256xf32>
    %cst_326 = arith.constant dense<0.000000e+00> : vector<2x256xf32>
    %376 = tpu.matmul %373, %375, %cst_326 {dimension_numbers = #tpu.dot_dimension_numbers<[1], [0], [0], [1], [0, 0, 1, 1], [], []>} : vector<2x128xf32>, vector<128x256xf32>, vector<2x256xf32> -> vector<2x256xf32>
    %377 = arith.addf %372, %376 : vector<2x256xf32>
    %c18_327 = arith.constant 18 : index
    %c0_328 = arith.constant 0 : index
    %378 = vector.load %arg20[%c18_327, %c0_328] : memref<32x128xf32, #tpu.memory_space<vmem>>, vector<2x128xf32>
    %c6_329 = arith.constant 6 : index
    %c0_330 = arith.constant 0 : index
    %c0_331 = arith.constant 0 : index
    %379 = vector.load %arg8[%c6_329, %c0_330, %c0_331] : memref<16x128x256xf32, #tpu.memory_space<vmem>>, vector<1x128x256xf32>
    %380 = vector.shape_cast %379 : vector<1x128x256xf32> to vector<128x256xf32>
    %cst_332 = arith.constant dense<0.000000e+00> : vector<2x256xf32>
    %381 = tpu.matmul %378, %380, %cst_332 {dimension_numbers = #tpu.dot_dimension_numbers<[1], [0], [0], [1], [0, 0, 1, 1], [], []>} : vector<2x128xf32>, vector<128x256xf32>, vector<2x256xf32> -> vector<2x256xf32>
    %382 = arith.addf %377, %381 : vector<2x256xf32>
    %c20_333 = arith.constant 20 : index
    %c0_334 = arith.constant 0 : index
    %383 = vector.load %arg20[%c20_333, %c0_334] : memref<32x128xf32, #tpu.memory_space<vmem>>, vector<2x128xf32>
    %c7_335 = arith.constant 7 : index
    %c0_336 = arith.constant 0 : index
    %c0_337 = arith.constant 0 : index
    %384 = vector.load %arg8[%c7_335, %c0_336, %c0_337] : memref<16x128x256xf32, #tpu.memory_space<vmem>>, vector<1x128x256xf32>
    %385 = vector.shape_cast %384 : vector<1x128x256xf32> to vector<128x256xf32>
    %cst_338 = arith.constant dense<0.000000e+00> : vector<2x256xf32>
    %386 = tpu.matmul %383, %385, %cst_338 {dimension_numbers = #tpu.dot_dimension_numbers<[1], [0], [0], [1], [0, 0, 1, 1], [], []>} : vector<2x128xf32>, vector<128x256xf32>, vector<2x256xf32> -> vector<2x256xf32>
    %387 = arith.addf %382, %386 : vector<2x256xf32>
    %c24 = arith.constant 24 : index
    %c0_339 = arith.constant 0 : index
    %388 = vector.load %arg20[%c24, %c0_339] : memref<32x128xf32, #tpu.memory_space<vmem>>, vector<2x128xf32>
    %c9_340 = arith.constant 9 : index
    %c0_341 = arith.constant 0 : index
    %c0_342 = arith.constant 0 : index
    %389 = vector.load %arg8[%c9_340, %c0_341, %c0_342] : memref<16x128x256xf32, #tpu.memory_space<vmem>>, vector<1x128x256xf32>
    %390 = vector.shape_cast %389 : vector<1x128x256xf32> to vector<128x256xf32>
    %cst_343 = arith.constant dense<0.000000e+00> : vector<2x256xf32>
    %391 = tpu.matmul %388, %390, %cst_343 {dimension_numbers = #tpu.dot_dimension_numbers<[1], [0], [0], [1], [0, 0, 1, 1], [], []>} : vector<2x128xf32>, vector<128x256xf32>, vector<2x256xf32> -> vector<2x256xf32>
    %392 = arith.addf %387, %391 : vector<2x256xf32>
    %c26 = arith.constant 26 : index
    %c0_344 = arith.constant 0 : index
    %393 = vector.load %arg20[%c26, %c0_344] : memref<32x128xf32, #tpu.memory_space<vmem>>, vector<2x128xf32>
    %c10_345 = arith.constant 10 : index
    %c0_346 = arith.constant 0 : index
    %c0_347 = arith.constant 0 : index
    %394 = vector.load %arg8[%c10_345, %c0_346, %c0_347] : memref<16x128x256xf32, #tpu.memory_space<vmem>>, vector<1x128x256xf32>
    %395 = vector.shape_cast %394 : vector<1x128x256xf32> to vector<128x256xf32>
    %cst_348 = arith.constant dense<0.000000e+00> : vector<2x256xf32>
    %396 = tpu.matmul %393, %395, %cst_348 {dimension_numbers = #tpu.dot_dimension_numbers<[1], [0], [0], [1], [0, 0, 1, 1], [], []>} : vector<2x128xf32>, vector<128x256xf32>, vector<2x256xf32> -> vector<2x256xf32>
    %397 = arith.addf %392, %396 : vector<2x256xf32>
    %c28 = arith.constant 28 : index
    %c0_349 = arith.constant 0 : index
    %398 = vector.load %arg20[%c28, %c0_349] : memref<32x128xf32, #tpu.memory_space<vmem>>, vector<2x128xf32>
    %c11_350 = arith.constant 11 : index
    %c0_351 = arith.constant 0 : index
    %c0_352 = arith.constant 0 : index
    %399 = vector.load %arg8[%c11_350, %c0_351, %c0_352] : memref<16x128x256xf32, #tpu.memory_space<vmem>>, vector<1x128x256xf32>
    %400 = vector.shape_cast %399 : vector<1x128x256xf32> to vector<128x256xf32>
    %cst_353 = arith.constant dense<0.000000e+00> : vector<2x256xf32>
    %401 = tpu.matmul %398, %400, %cst_353 {dimension_numbers = #tpu.dot_dimension_numbers<[1], [0], [0], [1], [0, 0, 1, 1], [], []>} : vector<2x128xf32>, vector<128x256xf32>, vector<2x256xf32> -> vector<2x256xf32>
    %402 = arith.addf %397, %401 : vector<2x256xf32>
    %403 = vector.broadcast %256 : vector<1x256xf32> to vector<2x256xf32>
    %404 = arith.addf %402, %403 : vector<2x256xf32>
    %cst_354 = arith.constant 0.000000e+00 : f32
    %405 = vector.broadcast %cst_354 : f32 to vector<2x256xf32>
    %406 = arith.maximumf %404, %405 : vector<2x256xf32>
    %cst_355 = arith.constant 0.000000e+00 : f32
    %407 = vector.broadcast %cst_355 : f32 to vector<2x256xf32>
    %c10_356 = arith.constant 10 : index
    %c0_357 = arith.constant 0 : index
    %408 = vector.load %arg20[%c10_356, %c0_357] : memref<32x128xf32, #tpu.memory_space<vmem>>, vector<2x128xf32>
    %c0_358 = arith.constant 0 : index
    %c0_359 = arith.constant 0 : index
    %c0_360 = arith.constant 0 : index
    %409 = vector.load %arg8[%c0_358, %c0_359, %c0_360] : memref<16x128x256xf32, #tpu.memory_space<vmem>>, vector<1x128x256xf32>
    %410 = vector.shape_cast %409 : vector<1x128x256xf32> to vector<128x256xf32>
    %cst_361 = arith.constant dense<0.000000e+00> : vector<2x256xf32>
    %411 = tpu.matmul %408, %410, %cst_361 {dimension_numbers = #tpu.dot_dimension_numbers<[1], [0], [0], [1], [0, 0, 1, 1], [], []>} : vector<2x128xf32>, vector<128x256xf32>, vector<2x256xf32> -> vector<2x256xf32>
    %412 = arith.addf %407, %411 : vector<2x256xf32>
    %c12_362 = arith.constant 12 : index
    %c0_363 = arith.constant 0 : index
    %413 = vector.load %arg20[%c12_362, %c0_363] : memref<32x128xf32, #tpu.memory_space<vmem>>, vector<2x128xf32>
    %c1_364 = arith.constant 1 : index
    %c0_365 = arith.constant 0 : index
    %c0_366 = arith.constant 0 : index
    %414 = vector.load %arg8[%c1_364, %c0_365, %c0_366] : memref<16x128x256xf32, #tpu.memory_space<vmem>>, vector<1x128x256xf32>
    %415 = vector.shape_cast %414 : vector<1x128x256xf32> to vector<128x256xf32>
    %cst_367 = arith.constant dense<0.000000e+00> : vector<2x256xf32>
    %416 = tpu.matmul %413, %415, %cst_367 {dimension_numbers = #tpu.dot_dimension_numbers<[1], [0], [0], [1], [0, 0, 1, 1], [], []>} : vector<2x128xf32>, vector<128x256xf32>, vector<2x256xf32> -> vector<2x256xf32>
    %417 = arith.addf %412, %416 : vector<2x256xf32>
    %c14_368 = arith.constant 14 : index
    %c0_369 = arith.constant 0 : index
    %418 = vector.load %arg20[%c14_368, %c0_369] : memref<32x128xf32, #tpu.memory_space<vmem>>, vector<2x128xf32>
    %c2_370 = arith.constant 2 : index
    %c0_371 = arith.constant 0 : index
    %c0_372 = arith.constant 0 : index
    %419 = vector.load %arg8[%c2_370, %c0_371, %c0_372] : memref<16x128x256xf32, #tpu.memory_space<vmem>>, vector<1x128x256xf32>
    %420 = vector.shape_cast %419 : vector<1x128x256xf32> to vector<128x256xf32>
    %cst_373 = arith.constant dense<0.000000e+00> : vector<2x256xf32>
    %421 = tpu.matmul %418, %420, %cst_373 {dimension_numbers = #tpu.dot_dimension_numbers<[1], [0], [0], [1], [0, 0, 1, 1], [], []>} : vector<2x128xf32>, vector<128x256xf32>, vector<2x256xf32> -> vector<2x256xf32>
    %422 = arith.addf %417, %421 : vector<2x256xf32>
    %c18_374 = arith.constant 18 : index
    %c0_375 = arith.constant 0 : index
    %423 = vector.load %arg20[%c18_374, %c0_375] : memref<32x128xf32, #tpu.memory_space<vmem>>, vector<2x128xf32>
    %c4_376 = arith.constant 4 : index
    %c0_377 = arith.constant 0 : index
    %c0_378 = arith.constant 0 : index
    %424 = vector.load %arg8[%c4_376, %c0_377, %c0_378] : memref<16x128x256xf32, #tpu.memory_space<vmem>>, vector<1x128x256xf32>
    %425 = vector.shape_cast %424 : vector<1x128x256xf32> to vector<128x256xf32>
    %cst_379 = arith.constant dense<0.000000e+00> : vector<2x256xf32>
    %426 = tpu.matmul %423, %425, %cst_379 {dimension_numbers = #tpu.dot_dimension_numbers<[1], [0], [0], [1], [0, 0, 1, 1], [], []>} : vector<2x128xf32>, vector<128x256xf32>, vector<2x256xf32> -> vector<2x256xf32>
    %427 = arith.addf %422, %426 : vector<2x256xf32>
    %c20_380 = arith.constant 20 : index
    %c0_381 = arith.constant 0 : index
    %428 = vector.load %arg20[%c20_380, %c0_381] : memref<32x128xf32, #tpu.memory_space<vmem>>, vector<2x128xf32>
    %c5_382 = arith.constant 5 : index
    %c0_383 = arith.constant 0 : index
    %c0_384 = arith.constant 0 : index
    %429 = vector.load %arg8[%c5_382, %c0_383, %c0_384] : memref<16x128x256xf32, #tpu.memory_space<vmem>>, vector<1x128x256xf32>
    %430 = vector.shape_cast %429 : vector<1x128x256xf32> to vector<128x256xf32>
    %cst_385 = arith.constant dense<0.000000e+00> : vector<2x256xf32>
    %431 = tpu.matmul %428, %430, %cst_385 {dimension_numbers = #tpu.dot_dimension_numbers<[1], [0], [0], [1], [0, 0, 1, 1], [], []>} : vector<2x128xf32>, vector<128x256xf32>, vector<2x256xf32> -> vector<2x256xf32>
    %432 = arith.addf %427, %431 : vector<2x256xf32>
    %c22_386 = arith.constant 22 : index
    %c0_387 = arith.constant 0 : index
    %433 = vector.load %arg20[%c22_386, %c0_387] : memref<32x128xf32, #tpu.memory_space<vmem>>, vector<2x128xf32>
    %c6_388 = arith.constant 6 : index
    %c0_389 = arith.constant 0 : index
    %c0_390 = arith.constant 0 : index
    %434 = vector.load %arg8[%c6_388, %c0_389, %c0_390] : memref<16x128x256xf32, #tpu.memory_space<vmem>>, vector<1x128x256xf32>
    %435 = vector.shape_cast %434 : vector<1x128x256xf32> to vector<128x256xf32>
    %cst_391 = arith.constant dense<0.000000e+00> : vector<2x256xf32>
    %436 = tpu.matmul %433, %435, %cst_391 {dimension_numbers = #tpu.dot_dimension_numbers<[1], [0], [0], [1], [0, 0, 1, 1], [], []>} : vector<2x128xf32>, vector<128x256xf32>, vector<2x256xf32> -> vector<2x256xf32>
    %437 = arith.addf %432, %436 : vector<2x256xf32>
    %c26_392 = arith.constant 26 : index
    %c0_393 = arith.constant 0 : index
    %438 = vector.load %arg20[%c26_392, %c0_393] : memref<32x128xf32, #tpu.memory_space<vmem>>, vector<2x128xf32>
    %c8_394 = arith.constant 8 : index
    %c0_395 = arith.constant 0 : index
    %c0_396 = arith.constant 0 : index
    %439 = vector.load %arg8[%c8_394, %c0_395, %c0_396] : memref<16x128x256xf32, #tpu.memory_space<vmem>>, vector<1x128x256xf32>
    %440 = vector.shape_cast %439 : vector<1x128x256xf32> to vector<128x256xf32>
    %cst_397 = arith.constant dense<0.000000e+00> : vector<2x256xf32>
    %441 = tpu.matmul %438, %440, %cst_397 {dimension_numbers = #tpu.dot_dimension_numbers<[1], [0], [0], [1], [0, 0, 1, 1], [], []>} : vector<2x128xf32>, vector<128x256xf32>, vector<2x256xf32> -> vector<2x256xf32>
    %442 = arith.addf %437, %441 : vector<2x256xf32>
    %c28_398 = arith.constant 28 : index
    %c0_399 = arith.constant 0 : index
    %443 = vector.load %arg20[%c28_398, %c0_399] : memref<32x128xf32, #tpu.memory_space<vmem>>, vector<2x128xf32>
    %c9_400 = arith.constant 9 : index
    %c0_401 = arith.constant 0 : index
    %c0_402 = arith.constant 0 : index
    %444 = vector.load %arg8[%c9_400, %c0_401, %c0_402] : memref<16x128x256xf32, #tpu.memory_space<vmem>>, vector<1x128x256xf32>
    %445 = vector.shape_cast %444 : vector<1x128x256xf32> to vector<128x256xf32>
    %cst_403 = arith.constant dense<0.000000e+00> : vector<2x256xf32>
    %446 = tpu.matmul %443, %445, %cst_403 {dimension_numbers = #tpu.dot_dimension_numbers<[1], [0], [0], [1], [0, 0, 1, 1], [], []>} : vector<2x128xf32>, vector<128x256xf32>, vector<2x256xf32> -> vector<2x256xf32>
    %447 = arith.addf %442, %446 : vector<2x256xf32>
    %c30 = arith.constant 30 : index
    %c0_404 = arith.constant 0 : index
    %448 = vector.load %arg20[%c30, %c0_404] : memref<32x128xf32, #tpu.memory_space<vmem>>, vector<2x128xf32>
    %c10_405 = arith.constant 10 : index
    %c0_406 = arith.constant 0 : index
    %c0_407 = arith.constant 0 : index
    %449 = vector.load %arg8[%c10_405, %c0_406, %c0_407] : memref<16x128x256xf32, #tpu.memory_space<vmem>>, vector<1x128x256xf32>
    %450 = vector.shape_cast %449 : vector<1x128x256xf32> to vector<128x256xf32>
    %cst_408 = arith.constant dense<0.000000e+00> : vector<2x256xf32>
    %451 = tpu.matmul %448, %450, %cst_408 {dimension_numbers = #tpu.dot_dimension_numbers<[1], [0], [0], [1], [0, 0, 1, 1], [], []>} : vector<2x128xf32>, vector<128x256xf32>, vector<2x256xf32> -> vector<2x256xf32>
    %452 = arith.addf %447, %451 : vector<2x256xf32>
    %453 = vector.broadcast %256 : vector<1x256xf32> to vector<2x256xf32>
    %454 = arith.addf %452, %453 : vector<2x256xf32>
    %cst_409 = arith.constant 0.000000e+00 : f32
    %455 = vector.broadcast %cst_409 : f32 to vector<2x256xf32>
    %456 = arith.maximumf %454, %455 : vector<2x256xf32>
    %cst_410 = arith.constant 0.000000e+00 : f32
    %457 = vector.broadcast %cst_410 : f32 to vector<2x512xf32>
    %c0_411 = arith.constant 0 : index
    %c0_412 = arith.constant 0 : index
    %c0_413 = arith.constant 0 : index
    %458 = vector.load %arg10[%c0_411, %c0_412, %c0_413] : memref<4x256x512xf32, #tpu.memory_space<vmem>>, vector<1x256x512xf32>
    %459 = vector.shape_cast %458 : vector<1x256x512xf32> to vector<256x512xf32>
    %cst_414 = arith.constant dense<0.000000e+00> : vector<2x512xf32>
    %460 = tpu.matmul %306, %459, %cst_414 {dimension_numbers = #tpu.dot_dimension_numbers<[1], [0], [0], [1], [0, 0, 1, 1], [], []>} : vector<2x256xf32>, vector<256x512xf32>, vector<2x512xf32> -> vector<2x512xf32>
    %461 = arith.addf %457, %460 : vector<2x512xf32>
    %c1_415 = arith.constant 1 : index
    %c0_416 = arith.constant 0 : index
    %c0_417 = arith.constant 0 : index
    %462 = vector.load %arg10[%c1_415, %c0_416, %c0_417] : memref<4x256x512xf32, #tpu.memory_space<vmem>>, vector<1x256x512xf32>
    %463 = vector.shape_cast %462 : vector<1x256x512xf32> to vector<256x512xf32>
    %cst_418 = arith.constant dense<0.000000e+00> : vector<2x512xf32>
    %464 = tpu.matmul %356, %463, %cst_418 {dimension_numbers = #tpu.dot_dimension_numbers<[1], [0], [0], [1], [0, 0, 1, 1], [], []>} : vector<2x256xf32>, vector<256x512xf32>, vector<2x512xf32> -> vector<2x512xf32>
    %465 = arith.addf %461, %464 : vector<2x512xf32>
    %c2_419 = arith.constant 2 : index
    %c0_420 = arith.constant 0 : index
    %c0_421 = arith.constant 0 : index
    %466 = vector.load %arg10[%c2_419, %c0_420, %c0_421] : memref<4x256x512xf32, #tpu.memory_space<vmem>>, vector<1x256x512xf32>
    %467 = vector.shape_cast %466 : vector<1x256x512xf32> to vector<256x512xf32>
    %cst_422 = arith.constant dense<0.000000e+00> : vector<2x512xf32>
    %468 = tpu.matmul %406, %467, %cst_422 {dimension_numbers = #tpu.dot_dimension_numbers<[1], [0], [0], [1], [0, 0, 1, 1], [], []>} : vector<2x256xf32>, vector<256x512xf32>, vector<2x512xf32> -> vector<2x512xf32>
    %469 = arith.addf %465, %468 : vector<2x512xf32>
    %c3_423 = arith.constant 3 : index
    %c0_424 = arith.constant 0 : index
    %c0_425 = arith.constant 0 : index
    %470 = vector.load %arg10[%c3_423, %c0_424, %c0_425] : memref<4x256x512xf32, #tpu.memory_space<vmem>>, vector<1x256x512xf32>
    %471 = vector.shape_cast %470 : vector<1x256x512xf32> to vector<256x512xf32>
    %cst_426 = arith.constant dense<0.000000e+00> : vector<2x512xf32>
    %472 = tpu.matmul %456, %471, %cst_426 {dimension_numbers = #tpu.dot_dimension_numbers<[1], [0], [0], [1], [0, 0, 1, 1], [], []>} : vector<2x256xf32>, vector<256x512xf32>, vector<2x512xf32> -> vector<2x512xf32>
    %473 = arith.addf %469, %472 : vector<2x512xf32>
    %c0_427 = arith.constant 0 : index
    %c0_428 = arith.constant 0 : index
    %474 = vector.load %arg11[%c0_427, %c0_428] : memref<1x512xf32, #tpu.memory_space<vmem>>, vector<1x512xf32>
    %475 = vector.broadcast %474 : vector<1x512xf32> to vector<2x512xf32>
    %476 = arith.addf %473, %475 : vector<2x512xf32>
    %cst_429 = arith.constant 0.000000e+00 : f32
    %477 = vector.broadcast %cst_429 : f32 to vector<2x512xf32>
    %478 = arith.maximumf %476, %477 : vector<2x512xf32>
    %c0_430 = arith.constant 0 : index
    %c0_431 = arith.constant 0 : index
    %479 = vector.load %arg12[%c0_430, %c0_431] : memref<512x64xf32, #tpu.memory_space<vmem>>, vector<512x64xf32>
    %cst_432 = arith.constant dense<0.000000e+00> : vector<2x64xf32>
    %480 = tpu.matmul %478, %479, %cst_432 {dimension_numbers = #tpu.dot_dimension_numbers<[1], [0], [0], [1], [0, 0, 1, 1], [], []>} : vector<2x512xf32>, vector<512x64xf32>, vector<2x64xf32> -> vector<2x64xf32>
    %c0_433 = arith.constant 0 : index
    %c0_434 = arith.constant 0 : index
    %481 = vector.load %arg13[%c0_433, %c0_434] : memref<1x64xf32, #tpu.memory_space<vmem>>, vector<1x64xf32>
    %482 = vector.broadcast %481 : vector<1x64xf32> to vector<2x64xf32>
    %483 = arith.addf %480, %482 : vector<2x64xf32>
    %c0_435 = arith.constant 0 : index
    %c0_436 = arith.constant 0 : index
    %484 = vector.load %arg16[%c0_435, %c0_436] : memref<128x3xf32, #tpu.memory_space<vmem>>, vector<64x3xf32>
    %cst_437 = arith.constant dense<0.000000e+00> : vector<2x3xf32>
    %485 = tpu.matmul %483, %484, %cst_437 {dimension_numbers = #tpu.dot_dimension_numbers<[1], [0], [0], [1], [0, 0, 1, 1], [], []>} : vector<2x64xf32>, vector<64x3xf32>, vector<2x3xf32> -> vector<2x3xf32>
    %c64 = arith.constant 64 : index
    %c0_438 = arith.constant 0 : index
    %486 = vector.load %arg16[%c64, %c0_438] : memref<128x3xf32, #tpu.memory_space<vmem>>, vector<64x3xf32>
    %cst_439 = arith.constant dense<0.000000e+00> : vector<2x3xf32>
    %487 = tpu.matmul %102, %486, %cst_439 {dimension_numbers = #tpu.dot_dimension_numbers<[1], [0], [0], [1], [0, 0, 1, 1], [], []>} : vector<2x64xf32>, vector<64x3xf32>, vector<2x3xf32> -> vector<2x3xf32>
    %488 = arith.addf %485, %487 : vector<2x3xf32>
    %c0_440 = arith.constant 0 : index
    %c0_441 = arith.constant 0 : index
    %489 = vector.load %arg17[%c0_440, %c0_441] : memref<1x3xf32, #tpu.memory_space<vmem>>, vector<1x3xf32>
    %490 = vector.broadcast %489 : vector<1x3xf32> to vector<2x3xf32>
    %491 = arith.addf %488, %490 : vector<2x3xf32>
    %c0_442 = arith.constant 0 : index
    %c0_443 = arith.constant 0 : index
    %492 = vector.load %arg18[%c0_442, %c0_443] : memref<2x3xf32, #tpu.memory_space<vmem>>, vector<2x3xf32>
    tpu.vector_store %arg18[%c0_442, %c0_443], %491 {strides = array<i32>} : memref<2x3xf32, #tpu.memory_space<vmem>>, vector<2x3xf32>,
    return
  }
}

</mosaic_0001>

<llo_original>
// kernel: color_embedding_forward.1
$region0: #{color_embedding_forward.1}
  #allocation0 [shape = 'u32[]', space=smem, size = 0x4, offset = 0x4, fixed_abs, tag = 'smem constant byte address 0x4 - core index']
  #allocation1 [shape = 'u32[144,128]{1,0:T(1,128)}', space=vmem, size = 0x12000, scoped, tag = 'internal scratch']
  #allocation2 [shape = 'f32[4,52,64]{2,1,0:T(8,128)}', space=vmem, size = 0x1c000, scoped, tag = 'scratch operand']
  #allocation3 [shape = 'f32[32,128]{1,0:T(8,128)}', space=vmem, size = 0x4000, scoped, tag = 'scratch operand']
  %s0 = inlined_call_operand.vmem [shape: f32[3,2,256], index: 0, kind: input, shape index: {}]
  %s1 = inlined_call_operand.vmem [shape: f32[128,48], index: 1, kind: input, shape index: {}]
  %s2 = inlined_call_operand.vmem [shape: f32[32,1], index: 2, kind: input, shape index: {}]
  %s3 = inlined_call_operand.vmem [shape: f32[32,1], index: 3, kind: input, shape index: {}]
  %s4 = inlined_call_operand.vmem [shape: f32[48,64], index: 4, kind: input, shape index: {}]
  %s5 = inlined_call_operand.vmem [shape: f32[1,64], index: 5, kind: input, shape index: {}]
  %s6 = inlined_call_operand.vmem [shape: f32[16,64,128], index: 6, kind: input, shape index: {}]
  %s7 = inlined_call_operand.vmem [shape: f32[1,128], index: 7, kind: input, shape index: {}]
  %s8 = inlined_call_operand.vmem [shape: f32[16,128,256], index: 8, kind: input, shape index: {}]
  %s9 = inlined_call_operand.vmem [shape: f32[1,256], index: 9, kind: input, shape index: {}]
  %s10 = inlined_call_operand.vmem [shape: f32[4,256,512], index: 10, kind: input, shape index: {}]
  %s11 = inlined_call_operand.vmem [shape: f32[1,512], index: 11, kind: input, shape index: {}]
  %s12 = inlined_call_operand.vmem [shape: f32[512,64], index: 12, kind: input, shape index: {}]
  %s13 = inlined_call_operand.vmem [shape: f32[1,64], index: 13, kind: input, shape index: {}]
  %s14 = inlined_call_operand.vmem [shape: f32[3,16,64], index: 14, kind: input, shape index: {}]
  %s15 = inlined_call_operand.vmem [shape: f32[1,64], index: 15, kind: input, shape index: {}]
  %s16 = inlined_call_operand.vmem [shape: f32[128,3], index: 16, kind: input, shape index: {}]
  %s17 = inlined_call_operand.vmem [shape: f32[1,3], index: 17, kind: input, shape index: {}]
  %s18 = inlined_call_operand.vmem [shape: f32[2,3], index: 18, kind: output, shape index: {}]
  %s19 = sld [smem:[#allocation0]]
  $region82: #{color_embedding_forward.1} parent=0
    _
  %s21 = ssub.s32 1, %s19
  %s22 = scalar_select 0, %s21, %s19
  // Predicated region
  $region2: #{color_embedding_forward.1} parent=0 // pred_check
    _
  $region3: #{color_embedding_forward.1} parent=0 // pred_check_branch
    %24 = sbr.rel (0) target = $region5
  $region4: #{color_embedding_forward.1} parent=0 // pred_region
    _
  $region5: #{color_embedding_forward.1} parent=0 // pred_fallthru
    _
  // Predicated region
  $region6: #{color_embedding_forward.1} parent=0 // pred_check
    _
  $region7: #{color_embedding_forward.1} parent=0 // pred_check_branch
    %26 = sbr.rel (0) target = $region9
  $region8: #{color_embedding_forward.1} parent=0 // pred_region
    _
  $region9: #{color_embedding_forward.1} parent=0 // pred_fallthru
    _
  // Predicated region
  $region10: #{color_embedding_forward.1} parent=0 // pred_check
    _
  $region11: #{color_embedding_forward.1} parent=0 // pred_check_branch
    %28 = sbr.rel (0) target = $region13
  $region12: #{color_embedding_forward.1} parent=0 // pred_region
    _
  $region13: #{color_embedding_forward.1} parent=0 // pred_fallthru
    _
  // Predicated region
  $region14: #{color_embedding_forward.1} parent=0 // pred_check
    _
  $region15: #{color_embedding_forward.1} parent=0 // pred_check_branch
    %30 = sbr.rel (0) target = $region17
  $region16: #{color_embedding_forward.1} parent=0 // pred_region
    _
  $region17: #{color_embedding_forward.1} parent=0 // pred_fallthru
    _
  // Predicated region
  $region18: #{color_embedding_forward.1} parent=0 // pred_check
    _
  $region19: #{color_embedding_forward.1} parent=0 // pred_check_branch
    %32 = sbr.rel (0) target = $region21
  $region20: #{color_embedding_forward.1} parent=0 // pred_region
    _
  $region21: #{color_embedding_forward.1} parent=0 // pred_fallthru
    _
  // Predicated region
  $region22: #{color_embedding_forward.1} parent=0 // pred_check
    _
  $region23: #{color_embedding_forward.1} parent=0 // pred_check_branch
    %34 = sbr.rel (0) target = $region25
  $region24: #{color_embedding_forward.1} parent=0 // pred_region
    _
  $region25: #{color_embedding_forward.1} parent=0 // pred_fallthru
    _
  // Predicated region
  $region26: #{color_embedding_forward.1} parent=0 // pred_check
    _
  $region27: #{color_embedding_forward.1} parent=0 // pred_check_branch
    %36 = sbr.rel (0) target = $region29
  $region28: #{color_embedding_forward.1} parent=0 // pred_region
    _
  $region29: #{color_embedding_forward.1} parent=0 // pred_fallthru
    _
  // Predicated region
  $region30: #{color_embedding_forward.1} parent=0 // pred_check
    _
  $region31: #{color_embedding_forward.1} parent=0 // pred_check_branch
    %38 = sbr.rel (0) target = $region33
  $region32: #{color_embedding_forward.1} parent=0 // pred_region
    _
  $region33: #{color_embedding_forward.1} parent=0 // pred_fallthru
    _
  // Predicated region
  $region34: #{color_embedding_forward.1} parent=0 // pred_check
    _
  $region35: #{color_embedding_forward.1} parent=0 // pred_check_branch
    %40 = sbr.rel (0) target = $region37
  $region36: #{color_embedding_forward.1} parent=0 // pred_region
    _
  $region37: #{color_embedding_forward.1} parent=0 // pred_fallthru
    _
  // Predicated region
  $region38: #{color_embedding_forward.1} parent=0 // pred_check
    _
  $region39: #{color_embedding_forward.1} parent=0 // pred_check_branch
    %42 = sbr.rel (0) target = $region41
  $region40: #{color_embedding_forward.1} parent=0 // pred_region
    _
  $region41: #{color_embedding_forward.1} parent=0 // pred_fallthru
    _
  // Predicated region
  $region42: #{color_embedding_forward.1} parent=0 // pred_check
    _
  $region43: #{color_embedding_forward.1} parent=0 // pred_check_branch
    %44 = sbr.rel (0) target = $region45
  $region44: #{color_embedding_forward.1} parent=0 // pred_region
    _
  $region45: #{color_embedding_forward.1} parent=0 // pred_fallthru
    _
  // Predicated region
  $region46: #{color_embedding_forward.1} parent=0 // pred_check
    _
  $region47: #{color_embedding_forward.1} parent=0 // pred_check_branch
    %46 = sbr.rel (0) target = $region49
  $region48: #{color_embedding_forward.1} parent=0 // pred_region
    _
  $region49: #{color_embedding_forward.1} parent=0 // pred_fallthru
    _
  // Predicated region
  $region50: #{color_embedding_forward.1} parent=0 // pred_check
    _
  $region51: #{color_embedding_forward.1} parent=0 // pred_check_branch
    %48 = sbr.rel (0) target = $region53
  $region52: #{color_embedding_forward.1} parent=0 // pred_region
    _
  $region53: #{color_embedding_forward.1} parent=0 // pred_fallthru
    _
  // Predicated region
  $region54: #{color_embedding_forward.1} parent=0 // pred_check
    _
  $region55: #{color_embedding_forward.1} parent=0 // pred_check_branch
    %50 = sbr.rel (0) target = $region57
  $region56: #{color_embedding_forward.1} parent=0 // pred_region
    _
  $region57: #{color_embedding_forward.1} parent=0 // pred_fallthru
    _
  // Predicated region
  $region58: #{color_embedding_forward.1} parent=0 // pred_check
    _
  $region59: #{color_embedding_forward.1} parent=0 // pred_check_branch
    %52 = sbr.rel (0) target = $region61
  $region60: #{color_embedding_forward.1} parent=0 // pred_region
    _
  $region61: #{color_embedding_forward.1} parent=0 // pred_fallthru
    _
  // Predicated region
  $region62: #{color_embedding_forward.1} parent=0 // pred_check
    _
  $region63: #{color_embedding_forward.1} parent=0 // pred_check_branch
    %54 = sbr.rel (0) target = $region65
  $region64: #{color_embedding_forward.1} parent=0 // pred_region
    _
  $region65: #{color_embedding_forward.1} parent=0 // pred_fallthru
    _
  // Predicated region
  $region66: #{color_embedding_forward.1} parent=0 // pred_check
    _
  $region67: #{color_embedding_forward.1} parent=0 // pred_check_branch
    %56 = sbr.rel (0) target = $region69
  $region68: #{color_embedding_forward.1} parent=0 // pred_region
    _
  $region69: #{color_embedding_forward.1} parent=0 // pred_fallthru
    _
  // Predicated region
  $region70: #{color_embedding_forward.1} parent=0 // pred_check
    _
  $region71: #{color_embedding_forward.1} parent=0 // pred_check_branch
    %58 = sbr.rel (0) target = $region73
  $region72: #{color_embedding_forward.1} parent=0 // pred_region
    _
  $region73: #{color_embedding_forward.1} parent=0 // pred_fallthru
    _
  %v59 = vld [vmem:[%s0] sm:$0xf]
  %v60 = vadd.f32 %v59, 1.0
  %v61 = vmul.f32 %v60, 0.5
  %v62 = vadd.f32 %v61, 1.0
  %v63 = vmul.f32 %v62, 8.0
  %v64 = vfloor.f32 %v63
  %v65 = vmax.f32 %v64, 0.0
  %v66 = vmin.f32 %v65, 15.0
  %v67 = vcvt.f32.s32.to.zero.pseudo %v66
  %v68 = vlaneseq
  %v69 = vshrl.u32 %v68, 7
  %v70 = vadd.s32 %v69, 8
  %v72 = vunpack.c.l.s4 1966171168
  %v73 = vunpack.c.0.s8 %v72
  %v74 = vlaneseq
  %v75 = vshrl.u32 %v74, 7
  %v76 = vsub.s32 %v73, %v75
  %v77 = vrot.slane %v67, %v76
  %v78 = vcombine.high %v77, %v77
  %v79 = vlaneseq
  %v80 = vshrl.u32 %v79, 7
  %v81 = vsub.s32 0, %v80
  %v82 = vrot.slane %v77, %v81
  %v83 = vlaneseq
  %v84 = vshrl.u32 %v83, 7
  %v85 = vsub.s32 1, %v84
  %v86 = vrot.slane %v77, %v85
  %v87 = vlaneseq
  %v88 = vshrl.u32 %v87, 7
  %v89 = vsub.s32 0, %v88
  %v90 = vrot.slane %v78, %v89
  %v91 = vlaneseq
  %v92 = vshrl.u32 %v91, 7
  %v93 = vsub.s32 1, %v92
  %v94 = vrot.slane %v78, %v93
  %vm95 = vcmp.eq.s32.totalorder %v82, %v69
  %vm96 = vcmp.eq.s32.totalorder %v86, %v69
  %vm97 = vcmp.eq.s32.totalorder %v82, %v70
  %vm98 = vcmp.eq.s32.totalorder %v86, %v70
  %vm99 = vcmp.eq.s32.totalorder %v90, %v69
  %vm100 = vcmp.eq.s32.totalorder %v94, %v69
  %vm101 = vcmp.eq.s32.totalorder %v90, %v70
  %vm102 = vcmp.eq.s32.totalorder %v94, %v70
  %v103 = vsel %vm95, 1, 0
  %v104 = vsel %vm96, 1, 0
  %v105 = vsel %vm97, 1, 0
  %v106 = vsel %vm98, 1, 0
  %v107 = vsel %vm99, 1, 0
  %v108 = vsel %vm100, 1, 0
  %v109 = vsel %vm101, 1, 0
  %v110 = vsel %vm102, 1, 0
  %v111 = vcvt.s32.f32 %v103
  %v112 = vcvt.s32.f32 %v104
  %v113 = vcvt.s32.f32 %v105
  %v114 = vcvt.s32.f32 %v106
  %v115 = vcvt.s32.f32 %v107
  %v116 = vcvt.s32.f32 %v108
  %v117 = vcvt.s32.f32 %v109
  %v118 = vcvt.s32.f32 %v110
  %v119 = vadd.f32 %v111, %v112
  %120 = vadd.xlane.f32.xlu0 %v119
  %v121 = vpop.xlane.xlu0 %120
  %v122 = vadd.f32 %v113, %v114
  %123 = vadd.xlane.f32.xlu0 %v122
  %v124 = vpop.xlane.xlu0 %123
  %v125 = vadd.f32 %v115, %v116
  %126 = vadd.xlane.f32.xlu0 %v125
  %v127 = vpop.xlane.xlu0 %126
  %v128 = vadd.f32 %v117, %v118
  %129 = vadd.xlane.f32.xlu0 %v128
  %v130 = vpop.xlane.xlu0 %129
  %v135 = vlaneseq
  %v136 = vand.u32 %v135, 127
  %v137 = vlaneseq
  %v138 = vshrl.u32 %v137, 7
  %v139 = vsub.s32 %v136, %v138
  %v140 = vrot.slane %v121, %v139
  %v141 = vadd.s32 %v136, 4294967288
  %v142 = vlaneseq
  %v143 = vshrl.u32 %v142, 7
  %v144 = vsub.s32 %v141, %v143
  %v145 = vrot.slane %v124, %v144
  %vm146 = vcmask 130112
  %v147 = vsel %vm146, %v145, %v140
  %v148 = vlaneseq
  %v149 = vshrl.u32 %v148, 7
  %v150 = vsub.s32 %v136, %v149
  %v151 = vrot.slane %v127, %v150
  %v152 = vlaneseq
  %v153 = vshrl.u32 %v152, 7
  %v154 = vsub.s32 %v141, %v153
  %v155 = vrot.slane %v130, %v154
  %v156 = vsel %vm146, %v155, %v151
  %vm157 = vcmask 1041409
  %v158 = vsel %vm157, %v156, %v147
  %vm160 = vcmask 123904
  %v161 = vsel %vm160, %v158, 0.0
  %162 = vadd.xlane.f32.xlu0 %v161
  %v163 = vpop.xlane.xlu0 %162
  %v164 = vadd.f32 %v163, 1e-06
  %v166 = vlaneseq
  %v167 = vshrl.u32 %v166, 7
  %v168 = vsub.s32 0, %v167
  %v169 = vrot.slane %v164, %v168
  %v170 = vlaneseq
  %v171 = vshrl.u32 %v170, 7
  %v172 = vsub.s32 1, %v171
  %v173 = vrot.slane %v164, %v172
  %v176 = vrcp.pop %v169
  %v177 = vmul.f32 %v121, %v176
  %v178 = vmul.f32 %v124, %v176
  %v179 = vrcp.pop %v173
  %v180 = vmul.f32 %v127, %v179
  %v181 = vmul.f32 %v130, %v179
  %v182 = vld [vmem:[%s14] sm:$0xff]
  %v183 = vld [vmem:[%s14 + $0x8] sm:$0xff]
  %s184 = scalar_lea.vmem %s0, 4
  %v185 = vld [vmem:[%s184] sm:$0xf]
  %v186 = vadd.f32 %v185, 1.0
  %v187 = vmul.f32 %v186, 0.5
  %v188 = vadd.f32 %v187, 1.0
  %v189 = vmul.f32 %v188, 8.0
  %v190 = vfloor.f32 %v189
  %v191 = vmax.f32 %v190, 0.0
  %v192 = vmin.f32 %v191, 15.0
  %v193 = vcvt.f32.s32.to.zero.pseudo %v192
  %v195 = vunpack.c.l.s4 1966171168
  %v196 = vunpack.c.0.s8 %v195
  %v197 = vlaneseq
  %v198 = vshrl.u32 %v197, 7
  %v199 = vsub.s32 %v196, %v198
  %v200 = vrot.slane %v193, %v199
  %v201 = vcombine.high %v200, %v200
  %v202 = vlaneseq
  %v203 = vshrl.u32 %v202, 7
  %v204 = vsub.s32 0, %v203
  %v205 = vrot.slane %v200, %v204
  %v206 = vlaneseq
  %v207 = vshrl.u32 %v206, 7
  %v208 = vsub.s32 1, %v207
  %v209 = vrot.slane %v200, %v208
  %v210 = vlaneseq
  %v211 = vshrl.u32 %v210, 7
  %v212 = vsub.s32 0, %v211
  %v213 = vrot.slane %v201, %v212
  %v214 = vlaneseq
  %v215 = vshrl.u32 %v214, 7
  %v216 = vsub.s32 1, %v215
  %v217 = vrot.slane %v201, %v216
  %vm218 = vcmp.eq.s32.totalorder %v205, %v69
  %vm219 = vcmp.eq.s32.totalorder %v209, %v69
  %vm220 = vcmp.eq.s32.totalorder %v205, %v70
  %vm221 = vcmp.eq.s32.totalorder %v209, %v70
  %vm222 = vcmp.eq.s32.totalorder %v213, %v69
  %vm223 = vcmp.eq.s32.totalorder %v217, %v69
  %vm224 = vcmp.eq.s32.totalorder %v213, %v70
  %vm225 = vcmp.eq.s32.totalorder %v217, %v70
  %v226 = vsel %vm218, 1, 0
  %v227 = vsel %vm219, 1, 0
  %v228 = vsel %vm220, 1, 0
  %v229 = vsel %vm221, 1, 0
  %v230 = vsel %vm222, 1, 0
  %v231 = vsel %vm223, 1, 0
  %v232 = vsel %vm224, 1, 0
  %v233 = vsel %vm225, 1, 0
  %v234 = vcvt.s32.f32 %v226
  %v235 = vcvt.s32.f32 %v227
  %v236 = vcvt.s32.f32 %v228
  %v237 = vcvt.s32.f32 %v229
  %v238 = vcvt.s32.f32 %v230
  %v239 = vcvt.s32.f32 %v231
  %v240 = vcvt.s32.f32 %v232
  %v241 = vcvt.s32.f32 %v233
  %v242 = vadd.f32 %v234, %v235
  %243 = vadd.xlane.f32.xlu0 %v242
  %v244 = vpop.xlane.xlu0 %243
  %v245 = vadd.f32 %v236, %v237
  %246 = vadd.xlane.f32.xlu0 %v245
  %v247 = vpop.xlane.xlu0 %246
  %v248 = vadd.f32 %v238, %v239
  %249 = vadd.xlane.f32.xlu0 %v248
  %v250 = vpop.xlane.xlu0 %249
  %v251 = vadd.f32 %v240, %v241
  %252 = vadd.xlane.f32.xlu0 %v251
  %v253 = vpop.xlane.xlu0 %252
  %v258 = vlaneseq
  %v259 = vshrl.u32 %v258, 7
  %v260 = vsub.s32 %v136, %v259
  %v261 = vrot.slane %v244, %v260
  %v262 = vlaneseq
  %v263 = vshrl.u32 %v262, 7
  %v264 = vsub.s32 %v141, %v263
  %v265 = vrot.slane %v247, %v264
  %v266 = vsel %vm146, %v265, %v261
  %v267 = vlaneseq
  %v268 = vshrl.u32 %v267, 7
  %v269 = vsub.s32 %v136, %v268
  %v270 = vrot.slane %v250, %v269
  %v271 = vlaneseq
  %v272 = vshrl.u32 %v271, 7
  %v273 = vsub.s32 %v141, %v272
  %v274 = vrot.slane %v253, %v273
  %v275 = vsel %vm146, %v274, %v270
  %v276 = vsel %vm157, %v275, %v266
  %v278 = vsel %vm160, %v276, 0.0
  %279 = vadd.xlane.f32.xlu0 %v278
  %v280 = vpop.xlane.xlu0 %279
  %v281 = vadd.f32 %v280, 1e-06
  %v283 = vlaneseq
  %v284 = vshrl.u32 %v283, 7
  %v285 = vsub.s32 0, %v284
  %v286 = vrot.slane %v281, %v285
  %v287 = vlaneseq
  %v288 = vshrl.u32 %v287, 7
  %v289 = vsub.s32 1, %v288
  %v290 = vrot.slane %v281, %v289
  %v293 = vrcp.pop %v286
  %v294 = vmul.f32 %v244, %v293
  %v295 = vmul.f32 %v247, %v293
  %v296 = vrcp.pop %v290
  %v297 = vmul.f32 %v250, %v296
  %v298 = vmul.f32 %v253, %v296
  %s299 = scalar_lea.vmem %s14, 16
  %v300 = vld [vmem:[%s299] sm:$0xff]
  %v301 = vld [vmem:[%s299 + $0x8] sm:$0xff]
  %306 = vset.pattern.permute.xlu0 0
  %307 = vperm.xlu0 %306, %v294
  %v308 = vpop.permute.xlu0 %307
  %309 = vset.pattern.permute.xlu0 0
  %310 = vperm.xlu0 %309, %v295
  %v311 = vpop.permute.xlu0 %310
  %312 = vset.pattern.permute.xlu0 0
  %313 = vperm.xlu0 %312, %v297
  %v314 = vpop.permute.xlu0 %313
  %315 = vset.pattern.permute.xlu0 0
  %316 = vperm.xlu0 %315, %v298
  %v317 = vpop.permute.xlu0 %316
  %v318 = vlaneseq
  %v319 = vshrl.u32 %v318, 7
  %v320 = vsub.s32 %v136, %v319
  %v321 = vrot.slane %v308, %v320
  %v322 = vlaneseq
  %v323 = vshrl.u32 %v322, 7
  %v324 = vsub.s32 %v141, %v323
  %v325 = vrot.slane %v311, %v324
  %v326 = vsel %vm146, %v325, %v321
  %v327 = vlaneseq
  %v328 = vshrl.u32 %v327, 7
  %v329 = vsub.s32 %v136, %v328
  %v330 = vrot.slane %v314, %v329
  %v331 = vlaneseq
  %v332 = vshrl.u32 %v331, 7
  %v333 = vsub.s32 %v141, %v332
  %v334 = vrot.slane %v317, %v333
  %v335 = vsel %vm146, %v334, %v330
  %v336 = vsel %vm157, %v335, %v326
  %vm337 = vcmask 130048
  %v338 = vsel %vm337, %v336, 0
  %340 = vmatprep.subr.mxu0 0.0
  %341 = vmatpush1.msra.mxu0 %v300
  %342 = vmatprep.subr.mxu0 0.0
  %343 = vmatpush1.msra.mxu0 %v301
  %344 = vmatprep.subr.mxu0 0.0
  %345 = vmatpush1.msra.mxu0 0.0
  %346 = vmatprep.subr.mxu0 0.0
  %347 = vmatpush1.msra.mxu0 0.0
  %348 = vmatprep.subr.mxu0 0.0
  %349 = vmatpush1.msra.mxu0 0.0
  %350 = vmatprep.subr.mxu0 0.0
  %351 = vmatpush1.msra.mxu0 0.0
  %352 = vmatprep.subr.mxu0 0.0
  %353 = vmatpush1.msra.mxu0 0.0
  %354 = vmatprep.subr.mxu0 0.0
  %355 = vmatpush1.msra.mxu0 0.0
  %356 = vmatprep.subr.mxu0 0.0
  %357 = vmatpush1.msra.mxu0 0.0
  %358 = vmatprep.subr.mxu0 0.0
  %359 = vmatpush1.msra.mxu0 0.0
  %360 = vmatprep.subr.mxu0 0.0
  %361 = vmatpush1.msra.mxu0 0.0
  %362 = vmatprep.subr.mxu0 0.0
  %363 = vmatpush1.msra.mxu0 0.0
  %364 = vmatprep.subr.mxu0 0.0
  %365 = vmatpush1.msra.mxu0 0.0
  %366 = vmatprep.subr.mxu0 0.0
  %367 = vmatpush1.msra.mxu0 0.0
  %368 = vmatprep.subr.mxu0 0.0
  %369 = vmatpush1.msra.mxu0 0.0
  %370 = vmatprep.subr.mxu0 0.0
  %371 = vmatpush1.msra.mxu0 0.0
  %372 = vmatprep.subr.mxu0 0.0
  %373 = vmatpush1.msra.mxu0 0.0
  %374 = vmatprep.subr.mxu0 0.0
  %375 = vmatpush1.msra.mxu0 0.0
  %376 = vmatprep.subr.mxu0 0.0
  %377 = vmatpush1.msra.mxu0 0.0
  %378 = vmatprep.subr.mxu0 0.0
  %379 = vmatpush1.msra.mxu0 0.0
  %380 = vmatprep.subr.mxu0 0.0
  %381 = vmatpush1.msra.mxu0 0.0
  %382 = vmatprep.subr.mxu0 0.0
  %383 = vmatpush1.msra.mxu0 0.0
  %384 = vmatprep.subr.mxu0 0.0
  %385 = vmatpush1.msra.mxu0 0.0
  %386 = vmatprep.subr.mxu0 0.0
  %387 = vmatpush1.msra.mxu0 0.0
  %388 = vmatprep.subr.mxu0 0.0
  %389 = vmatpush1.msra.mxu0 0.0
  %390 = vmatprep.subr.mxu0 0.0
  %391 = vmatpush1.msra.mxu0 0.0
  %392 = vmatprep.subr.mxu0 0.0
  %393 = vmatpush1.msra.mxu0 0.0
  %394 = vmatprep.subr.mxu0 0.0
  %395 = vmatpush1.msra.mxu0 0.0
  %396 = vmatprep.subr.mxu0 0.0
  %397 = vmatpush1.msra.mxu0 0.0
  %398 = vmatprep.subr.mxu0 0.0
  %399 = vmatpush1.msra.mxu0 0.0
  %400 = vmatprep.subr.mxu0 0.0
  %401 = vmatpush1.msra.mxu0 0.0
  %402 = vmatprep.subr.mxu0 0.0
  %403 = vmatpush1.msra.mxu0 0.0
  %404 = vmatprep.mubr.f32.mxu0 0.0
  %405 = vmatmul.mubr.f32.gmra.mrb[0].mxu0 %v338
  %v406 = vpop.f32.mrb[0].mxu0
  %v407 = vadd.f32 0.0, %v406
  %v408 = vpop.f32.mrb[0].mxu0
  %409 = vdwg.mxu0
  %414 = vset.pattern.permute.xlu0 0
  %415 = vperm.xlu0 %414, %v177
  %v416 = vpop.permute.xlu0 %415
  %417 = vset.pattern.permute.xlu0 0
  %418 = vperm.xlu0 %417, %v178
  %v419 = vpop.permute.xlu0 %418
  %420 = vset.pattern.permute.xlu0 0
  %421 = vperm.xlu0 %420, %v180
  %v422 = vpop.permute.xlu0 %421
  %423 = vset.pattern.permute.xlu0 0
  %424 = vperm.xlu0 %423, %v181
  %v425 = vpop.permute.xlu0 %424
  %v426 = vlaneseq
  %v427 = vshrl.u32 %v426, 7
  %v428 = vsub.s32 %v136, %v427
  %v429 = vrot.slane %v416, %v428
  %v430 = vlaneseq
  %v431 = vshrl.u32 %v430, 7
  %v432 = vsub.s32 %v141, %v431
  %v433 = vrot.slane %v419, %v432
  %v434 = vsel %vm146, %v433, %v429
  %v435 = vlaneseq
  %v436 = vshrl.u32 %v435, 7
  %v437 = vsub.s32 %v136, %v436
  %v438 = vrot.slane %v422, %v437
  %v439 = vlaneseq
  %v440 = vshrl.u32 %v439, 7
  %v441 = vsub.s32 %v141, %v440
  %v442 = vrot.slane %v425, %v441
  %v443 = vsel %vm146, %v442, %v438
  %v444 = vsel %vm157, %v443, %v434
  %v445 = vsel %vm337, %v444, 0
  %447 = vmatprep.subr.mxu0 0.0
  %448 = vmatpush1.msra.mxu0 %v182
  %449 = vmatprep.subr.mxu0 0.0
  %450 = vmatpush1.msra.mxu0 %v183
  %451 = vmatprep.subr.mxu0 0.0
  %452 = vmatpush1.msra.mxu0 0.0
  %453 = vmatprep.subr.mxu0 0.0
  %454 = vmatpush1.msra.mxu0 0.0
  %455 = vmatprep.subr.mxu0 0.0
  %456 = vmatpush1.msra.mxu0 0.0
  %457 = vmatprep.subr.mxu0 0.0
  %458 = vmatpush1.msra.mxu0 0.0
  %459 = vmatprep.subr.mxu0 0.0
  %460 = vmatpush1.msra.mxu0 0.0
  %461 = vmatprep.subr.mxu0 0.0
  %462 = vmatpush1.msra.mxu0 0.0
  %463 = vmatprep.subr.mxu0 0.0
  %464 = vmatpush1.msra.mxu0 0.0
  %465 = vmatprep.subr.mxu0 0.0
  %466 = vmatpush1.msra.mxu0 0.0
  %467 = vmatprep.subr.mxu0 0.0
  %468 = vmatpush1.msra.mxu0 0.0
  %469 = vmatprep.subr.mxu0 0.0
  %470 = vmatpush1.msra.mxu0 0.0
  %471 = vmatprep.subr.mxu0 0.0
  %472 = vmatpush1.msra.mxu0 0.0
  %473 = vmatprep.subr.mxu0 0.0
  %474 = vmatpush1.msra.mxu0 0.0
  %475 = vmatprep.subr.mxu0 0.0
  %476 = vmatpush1.msra.mxu0 0.0
  %477 = vmatprep.subr.mxu0 0.0
  %478 = vmatpush1.msra.mxu0 0.0
  %479 = vmatprep.subr.mxu0 0.0
  %480 = vmatpush1.msra.mxu0 0.0
  %481 = vmatprep.subr.mxu0 0.0
  %482 = vmatpush1.msra.mxu0 0.0
  %483 = vmatprep.subr.mxu0 0.0
  %484 = vmatpush1.msra.mxu0 0.0
  %485 = vmatprep.subr.mxu0 0.0
  %486 = vmatpush1.msra.mxu0 0.0
  %487 = vmatprep.subr.mxu0 0.0
  %488 = vmatpush1.msra.mxu0 0.0
  %489 = vmatprep.subr.mxu0 0.0
  %490 = vmatpush1.msra.mxu0 0.0
  %491 = vmatprep.subr.mxu0 0.0
  %492 = vmatpush1.msra.mxu0 0.0
  %493 = vmatprep.subr.mxu0 0.0
  %494 = vmatpush1.msra.mxu0 0.0
  %495 = vmatprep.subr.mxu0 0.0
  %496 = vmatpush1.msra.mxu0 0.0
  %497 = vmatprep.subr.mxu0 0.0
  %498 = vmatpush1.msra.mxu0 0.0
  %499 = vmatprep.subr.mxu0 0.0
  %500 = vmatpush1.msra.mxu0 0.0
  %501 = vmatprep.subr.mxu0 0.0
  %502 = vmatpush1.msra.mxu0 0.0
  %503 = vmatprep.subr.mxu0 0.0
  %504 = vmatpush1.msra.mxu0 0.0
  %505 = vmatprep.subr.mxu0 0.0
  %506 = vmatpush1.msra.mxu0 0.0
  %507 = vmatprep.subr.mxu0 0.0
  %508 = vmatpush1.msra.mxu0 0.0
  %509 = vmatprep.subr.mxu0 0.0
  %510 = vmatpush1.msra.mxu0 0.0
  %511 = vmatprep.mubr.f32.mxu0 0.0
  %512 = vmatmul.mubr.f32.gmra.mrb[0].mxu0 %v445
  %v513 = vpop.f32.mrb[0].mxu0
  %v514 = vadd.f32 %v407, %v513
  %v515 = vpop.f32.mrb[0].mxu0
  %516 = vdwg.mxu0
  %s517 = scalar_lea.vmem %s0, 8
  %v518 = vld [vmem:[%s517] sm:$0xf]
  %v519 = vadd.f32 %v518, 1.0
  %v520 = vmul.f32 %v519, 0.5
  %v521 = vadd.f32 %v520, 1.0
  %v522 = vmul.f32 %v521, 8.0
  %v523 = vfloor.f32 %v522
  %v524 = vmax.f32 %v523, 0.0
  %v525 = vmin.f32 %v524, 15.0
  %v526 = vcvt.f32.s32.to.zero.pseudo %v525
  %v528 = vunpack.c.l.s4 1966171168
  %v529 = vunpack.c.0.s8 %v528
  %v530 = vlaneseq
  %v531 = vshrl.u32 %v530, 7
  %v532 = vsub.s32 %v529, %v531
  %v533 = vrot.slane %v526, %v532
  %v534 = vcombine.high %v533, %v533
  %v535 = vlaneseq
  %v536 = vshrl.u32 %v535, 7
  %v537 = vsub.s32 0, %v536
  %v538 = vrot.slane %v533, %v537
  %v539 = vlaneseq
  %v540 = vshrl.u32 %v539, 7
  %v541 = vsub.s32 1, %v540
  %v542 = vrot.slane %v533, %v541
  %v543 = vlaneseq
  %v544 = vshrl.u32 %v543, 7
  %v545 = vsub.s32 0, %v544
  %v546 = vrot.slane %v534, %v545
  %v547 = vlaneseq
  %v548 = vshrl.u32 %v547, 7
  %v549 = vsub.s32 1, %v548
  %v550 = vrot.slane %v534, %v549
  %vm551 = vcmp.eq.s32.totalorder %v538, %v69
  %vm552 = vcmp.eq.s32.totalorder %v542, %v69
  %vm553 = vcmp.eq.s32.totalorder %v538, %v70
  %vm554 = vcmp.eq.s32.totalorder %v542, %v70
  %vm555 = vcmp.eq.s32.totalorder %v546, %v69
  %vm556 = vcmp.eq.s32.totalorder %v550, %v69
  %vm557 = vcmp.eq.s32.totalorder %v546, %v70
  %vm558 = vcmp.eq.s32.totalorder %v550, %v70
  %v559 = vsel %vm551, 1, 0
  %v560 = vsel %vm552, 1, 0
  %v561 = vsel %vm553, 1, 0
  %v562 = vsel %vm554, 1, 0
  %v563 = vsel %vm555, 1, 0
  %v564 = vsel %vm556, 1, 0
  %v565 = vsel %vm557, 1, 0
  %v566 = vsel %vm558, 1, 0
  %v567 = vcvt.s32.f32 %v559
  %v568 = vcvt.s32.f32 %v560
  %v569 = vcvt.s32.f32 %v561
  %v570 = vcvt.s32.f32 %v562
  %v571 = vcvt.s32.f32 %v563
  %v572 = vcvt.s32.f32 %v564
  %v573 = vcvt.s32.f32 %v565
  %v574 = vcvt.s32.f32 %v566
  %v575 = vadd.f32 %v567, %v568
  %576 = vadd.xlane.f32.xlu0 %v575
  %v577 = vpop.xlane.xlu0 %576
  %v578 = vadd.f32 %v569, %v570
  %579 = vadd.xlane.f32.xlu0 %v578
  %v580 = vpop.xlane.xlu0 %579
  %v581 = vadd.f32 %v571, %v572
  %582 = vadd.xlane.f32.xlu0 %v581
  %v583 = vpop.xlane.xlu0 %582
  %v584 = vadd.f32 %v573, %v574
  %585 = vadd.xlane.f32.xlu0 %v584
  %v586 = vpop.xlane.xlu0 %585
  %v591 = vlaneseq
  %v592 = vshrl.u32 %v591, 7
  %v593 = vsub.s32 %v136, %v592
  %v594 = vrot.slane %v577, %v593
  %v595 = vlaneseq
  %v596 = vshrl.u32 %v595, 7
  %v597 = vsub.s32 %v141, %v596
  %v598 = vrot.slane %v580, %v597
  %v599 = vsel %vm146, %v598, %v594
  %v600 = vlaneseq
  %v601 = vshrl.u32 %v600, 7
  %v602 = vsub.s32 %v136, %v601
  %v603 = vrot.slane %v583, %v602
  %v604 = vlaneseq
  %v605 = vshrl.u32 %v604, 7
  %v606 = vsub.s32 %v141, %v605
  %v607 = vrot.slane %v586, %v606
  %v608 = vsel %vm146, %v607, %v603
  %v609 = vsel %vm157, %v608, %v599
  %v611 = vsel %vm160, %v609, 0.0
  %612 = vadd.xlane.f32.xlu0 %v611
  %v613 = vpop.xlane.xlu0 %612
  %v614 = vadd.f32 %v613, 1e-06
  %v616 = vlaneseq
  %v617 = vshrl.u32 %v616, 7
  %v618 = vsub.s32 0, %v617
  %v619 = vrot.slane %v614, %v618
  %v620 = vlaneseq
  %v621 = vshrl.u32 %v620, 7
  %v622 = vsub.s32 1, %v621
  %v623 = vrot.slane %v614, %v622
  %v626 = vrcp.pop %v619
  %v627 = vmul.f32 %v577, %v626
  %v628 = vmul.f32 %v580, %v626
  %v629 = vrcp.pop %v623
  %v630 = vmul.f32 %v583, %v629
  %v631 = vmul.f32 %v586, %v629
  %s632 = scalar_lea.vmem %s14, 32
  %v633 = vld [vmem:[%s632] sm:$0xff]
  %v634 = vld [vmem:[%s632 + $0x8] sm:$0xff]
  %639 = vset.pattern.permute.xlu0 0
  %640 = vperm.xlu0 %639, %v627
  %v641 = vpop.permute.xlu0 %640
  %642 = vset.pattern.permute.xlu0 0
  %643 = vperm.xlu0 %642, %v628
  %v644 = vpop.permute.xlu0 %643
  %645 = vset.pattern.permute.xlu0 0
  %646 = vperm.xlu0 %645, %v630
  %v647 = vpop.permute.xlu0 %646
  %648 = vset.pattern.permute.xlu0 0
  %649 = vperm.xlu0 %648, %v631
  %v650 = vpop.permute.xlu0 %649
  %v651 = vlaneseq
  %v652 = vshrl.u32 %v651, 7
  %v653 = vsub.s32 %v136, %v652
  %v654 = vrot.slane %v641, %v653
  %v655 = vlaneseq
  %v656 = vshrl.u32 %v655, 7
  %v657 = vsub.s32 %v141, %v656
  %v658 = vrot.slane %v644, %v657
  %v659 = vsel %vm146, %v658, %v654
  %v660 = vlaneseq
  %v661 = vshrl.u32 %v660, 7
  %v662 = vsub.s32 %v136, %v661
  %v663 = vrot.slane %v647, %v662
  %v664 = vlaneseq
  %v665 = vshrl.u32 %v664, 7
  %v666 = vsub.s32 %v141, %v665
  %v667 = vrot.slane %v650, %v666
  %v668 = vsel %vm146, %v667, %v663
  %v669 = vsel %vm157, %v668, %v659
  %v670 = vsel %vm337, %v669, 0
  %672 = vmatprep.subr.mxu0 0.0
  %673 = vmatpush1.msra.mxu0 %v633
  %674 = vmatprep.subr.mxu0 0.0
  %675 = vmatpush1.msra.mxu0 %v634
  %676 = vmatprep.subr.mxu0 0.0
  %677 = vmatpush1.msra.mxu0 0.0
  %678 = vmatprep.subr.mxu0 0.0
  %679 = vmatpush1.msra.mxu0 0.0
  %680 = vmatprep.subr.mxu0 0.0
  %681 = vmatpush1.msra.mxu0 0.0
  %682 = vmatprep.subr.mxu0 0.0
  %683 = vmatpush1.msra.mxu0 0.0
  %684 = vmatprep.subr.mxu0 0.0
  %685 = vmatpush1.msra.mxu0 0.0
  %686 = vmatprep.subr.mxu0 0.0
  %687 = vmatpush1.msra.mxu0 0.0
  %688 = vmatprep.subr.mxu0 0.0
  %689 = vmatpush1.msra.mxu0 0.0
  %690 = vmatprep.subr.mxu0 0.0
  %691 = vmatpush1.msra.mxu0 0.0
  %692 = vmatprep.subr.mxu0 0.0
  %693 = vmatpush1.msra.mxu0 0.0
  %694 = vmatprep.subr.mxu0 0.0
  %695 = vmatpush1.msra.mxu0 0.0
  %696 = vmatprep.subr.mxu0 0.0
  %697 = vmatpush1.msra.mxu0 0.0
  %698 = vmatprep.subr.mxu0 0.0
  %699 = vmatpush1.msra.mxu0 0.0
  %700 = vmatprep.subr.mxu0 0.0
  %701 = vmatpush1.msra.mxu0 0.0
  %702 = vmatprep.subr.mxu0 0.0
  %703 = vmatpush1.msra.mxu0 0.0
  %704 = vmatprep.subr.mxu0 0.0
  %705 = vmatpush1.msra.mxu0 0.0
  %706 = vmatprep.subr.mxu0 0.0
  %707 = vmatpush1.msra.mxu0 0.0
  %708 = vmatprep.subr.mxu0 0.0
  %709 = vmatpush1.msra.mxu0 0.0
  %710 = vmatprep.subr.mxu0 0.0
  %711 = vmatpush1.msra.mxu0 0.0
  %712 = vmatprep.subr.mxu0 0.0
  %713 = vmatpush1.msra.mxu0 0.0
  %714 = vmatprep.subr.mxu0 0.0
  %715 = vmatpush1.msra.mxu0 0.0
  %716 = vmatprep.subr.mxu0 0.0
  %717 = vmatpush1.msra.mxu0 0.0
  %718 = vmatprep.subr.mxu0 0.0
  %719 = vmatpush1.msra.mxu0 0.0
  %720 = vmatprep.subr.mxu0 0.0
  %721 = vmatpush1.msra.mxu0 0.0
  %722 = vmatprep.subr.mxu0 0.0
  %723 = vmatpush1.msra.mxu0 0.0
  %724 = vmatprep.subr.mxu0 0.0
  %725 = vmatpush1.msra.mxu0 0.0
  %726 = vmatprep.subr.mxu0 0.0
  %727 = vmatpush1.msra.mxu0 0.0
  %728 = vmatprep.subr.mxu0 0.0
  %729 = vmatpush1.msra.mxu0 0.0
  %730 = vmatprep.subr.mxu0 0.0
  %731 = vmatpush1.msra.mxu0 0.0
  %732 = vmatprep.subr.mxu0 0.0
  %733 = vmatpush1.msra.mxu0 0.0
  %734 = vmatprep.subr.mxu0 0.0
  %735 = vmatpush1.msra.mxu0 0.0
  %736 = vmatprep.mubr.f32.mxu0 0.0
  %737 = vmatmul.mubr.f32.gmra.mrb[0].mxu0 %v670
  %v738 = vpop.f32.mrb[0].mxu0
  %v739 = vadd.f32 0.0, %v738
  %v740 = vpop.f32.mrb[0].mxu0
  %741 = vdwg.mxu0
  %v742 = vadd.f32 %v514, %v739
  %v743 = vld [vmem:[%s15] sm:$0x1]
  %v745 = vlaneseq
  %v746 = vshrl.u32 %v745, 7
  %v747 = vsub.s32 0, %v746
  %v748 = vrot.slane %v743, %v747
  %v750 = vadd.f32 %v742, %v748
  %v751 = vld [vmem:[%s1] sm:$0xff]
  %v752 = vld [vmem:[%s1 + $0x8] sm:$0xff]
  %v753 = vld [vmem:[%s1 + $0x10] sm:$0xff]
  %v754 = vld [vmem:[%s1 + $0x18] sm:$0xff]
  %v755 = vld [vmem:[%s1 + $0x20] sm:$0xff]
  %v756 = vld [vmem:[%s1 + $0x28] sm:$0xff]
  %v757 = vld [vmem:[%s1 + $0x30] sm:$0xff]
  %v758 = vld [vmem:[%s1 + $0x38] sm:$0xff]
  %v759 = vld [vmem:[%s1 + $0x40] sm:$0xff]
  %v760 = vld [vmem:[%s1 + $0x48] sm:$0xff]
  %v761 = vld [vmem:[%s1 + $0x50] sm:$0xff]
  %v762 = vld [vmem:[%s1 + $0x58] sm:$0xff]
  %v763 = vld [vmem:[%s1 + $0x60] sm:$0xff]
  %v764 = vld [vmem:[%s1 + $0x68] sm:$0xff]
  %v765 = vld [vmem:[%s1 + $0x70] sm:$0xff]
  %v766 = vld [vmem:[%s1 + $0x78] sm:$0xff]
  %v767 = vld [vmem:[%s4] sm:$0xff]
  %v768 = vld [vmem:[%s4 + $0x8] sm:$0xff]
  %v769 = vld [vmem:[%s4 + $0x10] sm:$0xff]
  %v770 = vld [vmem:[%s4 + $0x18] sm:$0xff]
  %v771 = vld [vmem:[%s4 + $0x20] sm:$0xff]
  %v772 = vld [vmem:[%s4 + $0x28] sm:$0xff]
  %v773 = vld [vmem:[%s5] sm:$0x1]
  %v775 = vlaneseq
  %v776 = vshrl.u32 %v775, 7
  %v777 = vsub.s32 0, %v776
  %v778 = vrot.slane %v773, %v777
  %vm780 = vcmask 392192
  %v782 = vsel %vm780, %v751, 0
  %v785 = vsel %vm780, %v752, 0
  %v788 = vsel %vm780, %v753, 0
  %v791 = vsel %vm780, %v754, 0
  %v794 = vsel %vm780, %v755, 0
  %v797 = vsel %vm780, %v756, 0
  %v800 = vsel %vm780, %v757, 0
  %v803 = vsel %vm780, %v758, 0
  %v806 = vsel %vm780, %v759, 0
  %v809 = vsel %vm780, %v760, 0
  %v812 = vsel %vm780, %v761, 0
  %v815 = vsel %vm780, %v762, 0
  %v818 = vsel %vm780, %v763, 0
  %v821 = vsel %vm780, %v764, 0
  %v824 = vsel %vm780, %v765, 0
  %v827 = vsel %vm780, %v766, 0
  %829 = vmatprep.subr.mxu0 0.0
  %830 = vmatpush1.msra.mxu0 %v767
  %831 = vmatprep.subr.mxu0 0.0
  %832 = vmatpush1.msra.mxu0 %v768
  %833 = vmatprep.subr.mxu0 0.0
  %834 = vmatpush1.msra.mxu0 %v769
  %835 = vmatprep.subr.mxu0 0.0
  %836 = vmatpush1.msra.mxu0 %v770
  %837 = vmatprep.subr.mxu0 0.0
  %838 = vmatpush1.msra.mxu0 %v771
  %839 = vmatprep.subr.mxu0 0.0
  %840 = vmatpush1.msra.mxu0 %v772
  %841 = vmatprep.subr.mxu0 0.0
  %842 = vmatpush1.msra.mxu0 0.0
  %843 = vmatprep.subr.mxu0 0.0
  %844 = vmatpush1.msra.mxu0 0.0
  %845 = vmatprep.subr.mxu0 0.0
  %846 = vmatpush1.msra.mxu0 0.0
  %847 = vmatprep.subr.mxu0 0.0
  %848 = vmatpush1.msra.mxu0 0.0
  %849 = vmatprep.subr.mxu0 0.0
  %850 = vmatpush1.msra.mxu0 0.0
  %851 = vmatprep.subr.mxu0 0.0
  %852 = vmatpush1.msra.mxu0 0.0
  %853 = vmatprep.subr.mxu0 0.0
  %854 = vmatpush1.msra.mxu0 0.0
  %855 = vmatprep.subr.mxu0 0.0
  %856 = vmatpush1.msra.mxu0 0.0
  %857 = vmatprep.subr.mxu0 0.0
  %858 = vmatpush1.msra.mxu0 0.0
  %859 = vmatprep.subr.mxu0 0.0
  %860 = vmatpush1.msra.mxu0 0.0
  %861 = vmatprep.subr.mxu0 0.0
  %862 = vmatpush1.msra.mxu0 0.0
  %863 = vmatprep.subr.mxu0 0.0
  %864 = vmatpush1.msra.mxu0 0.0
  %865 = vmatprep.subr.mxu0 0.0
  %866 = vmatpush1.msra.mxu0 0.0
  %867 = vmatprep.subr.mxu0 0.0
  %868 = vmatpush1.msra.mxu0 0.0
  %869 = vmatprep.subr.mxu0 0.0
  %870 = vmatpush1.msra.mxu0 0.0
  %871 = vmatprep.subr.mxu0 0.0
  %872 = vmatpush1.msra.mxu0 0.0
  %873 = vmatprep.subr.mxu0 0.0
  %874 = vmatpush1.msra.mxu0 0.0
  %875 = vmatprep.subr.mxu0 0.0
  %876 = vmatpush1.msra.mxu0 0.0
  %877 = vmatprep.subr.mxu0 0.0
  %878 = vmatpush1.msra.mxu0 0.0
  %879 = vmatprep.subr.mxu0 0.0
  %880 = vmatpush1.msra.mxu0 0.0
  %881 = vmatprep.subr.mxu0 0.0
  %882 = vmatpush1.msra.mxu0 0.0
  %883 = vmatprep.subr.mxu0 0.0
  %884 = vmatpush1.msra.mxu0 0.0
  %885 = vmatprep.subr.mxu0 0.0
  %886 = vmatpush1.msra.mxu0 0.0
  %887 = vmatprep.subr.mxu0 0.0
  %888 = vmatpush1.msra.mxu0 0.0
  %889 = vmatprep.subr.mxu0 0.0
  %890 = vmatpush1.msra.mxu0 0.0
  %891 = vmatprep.subr.mxu0 0.0
  %892 = vmatpush1.msra.mxu0 0.0
  %893 = vmatprep.mubr.f32.mxu0 0.0
  %894 = vmatmul.mubr.f32.gmra.mrb[0].mxu0 %v782
  %v895 = vpop.f32.mrb[0].mxu0
  %v896 = vadd.f32 %v778, %v895
  %v897 = vpop.f32.mrb[0].mxu0
  %898 = vmatprep.mubr.f32.mxu0 0.0
  %899 = vmatmul.mubr.f32.gmra.mrb[0].mxu0 %v785
  %v900 = vpop.f32.mrb[0].mxu0
  %v901 = vadd.f32 %v778, %v900
  %v902 = vpop.f32.mrb[0].mxu0
  %903 = vmatprep.mubr.f32.mxu0 0.0
  %904 = vmatmul.mubr.f32.gmra.mrb[0].mxu0 %v788
  %v905 = vpop.f32.mrb[0].mxu0
  %v906 = vadd.f32 %v778, %v905
  %v907 = vpop.f32.mrb[0].mxu0
  %908 = vmatprep.mubr.f32.mxu0 0.0
  %909 = vmatmul.mubr.f32.gmra.mrb[0].mxu0 %v791
  %v910 = vpop.f32.mrb[0].mxu0
  %v911 = vadd.f32 %v778, %v910
  %v912 = vpop.f32.mrb[0].mxu0
  %913 = vmatprep.mubr.f32.mxu0 0.0
  %914 = vmatmul.mubr.f32.gmra.mrb[0].mxu0 %v794
  %v915 = vpop.f32.mrb[0].mxu0
  %v916 = vadd.f32 %v778, %v915
  %v917 = vpop.f32.mrb[0].mxu0
  %918 = vmatprep.mubr.f32.mxu0 0.0
  %919 = vmatmul.mubr.f32.gmra.mrb[0].mxu0 %v797
  %v920 = vpop.f32.mrb[0].mxu0
  %v921 = vadd.f32 %v778, %v920
  %v922 = vpop.f32.mrb[0].mxu0
  %923 = vmatprep.mubr.f32.mxu0 0.0
  %924 = vmatmul.mubr.f32.gmra.mrb[0].mxu0 %v800
  %v925 = vpop.f32.mrb[0].mxu0
  %v926 = vadd.f32 %v778, %v925
  %v927 = vpop.f32.mrb[0].mxu0
  %928 = vmatprep.mubr.f32.mxu0 0.0
  %929 = vmatmul.mubr.f32.gmra.mrb[0].mxu0 %v803
  %v930 = vpop.f32.mrb[0].mxu0
  %v931 = vadd.f32 %v778, %v930
  %v932 = vpop.f32.mrb[0].mxu0
  %933 = vmatprep.mubr.f32.mxu0 0.0
  %934 = vmatmul.mubr.f32.gmra.mrb[0].mxu0 %v806
  %v935 = vpop.f32.mrb[0].mxu0
  %v936 = vadd.f32 %v778, %v935
  %v937 = vpop.f32.mrb[0].mxu0
  %938 = vmatprep.mubr.f32.mxu0 0.0
  %939 = vmatmul.mubr.f32.gmra.mrb[0].mxu0 %v809
  %v940 = vpop.f32.mrb[0].mxu0
  %v941 = vadd.f32 %v778, %v940
  %v942 = vpop.f32.mrb[0].mxu0
  %943 = vmatprep.mubr.f32.mxu0 0.0
  %944 = vmatmul.mubr.f32.gmra.mrb[0].mxu0 %v812
  %v945 = vpop.f32.mrb[0].mxu0
  %v946 = vadd.f32 %v778, %v945
  %v947 = vpop.f32.mrb[0].mxu0
  %948 = vmatprep.mubr.f32.mxu0 0.0
  %949 = vmatmul.mubr.f32.gmra.mrb[0].mxu0 %v815
  %v950 = vpop.f32.mrb[0].mxu0
  %v951 = vadd.f32 %v778, %v950
  %v952 = vpop.f32.mrb[0].mxu0
  %953 = vmatprep.mubr.f32.mxu0 0.0
  %954 = vmatmul.mubr.f32.gmra.mrb[0].mxu0 %v818
  %v955 = vpop.f32.mrb[0].mxu0
  %v956 = vadd.f32 %v778, %v955
  %v957 = vpop.f32.mrb[0].mxu0
  %958 = vmatprep.mubr.f32.mxu0 0.0
  %959 = vmatmul.mubr.f32.gmra.mrb[0].mxu0 %v821
  %v960 = vpop.f32.mrb[0].mxu0
  %v961 = vadd.f32 %v778, %v960
  %v962 = vpop.f32.mrb[0].mxu0
  %963 = vmatprep.mubr.f32.mxu0 0.0
  %964 = vmatmul.mubr.f32.gmra.mrb[0].mxu0 %v824
  %v965 = vpop.f32.mrb[0].mxu0
  %v966 = vadd.f32 %v778, %v965
  %v967 = vpop.f32.mrb[0].mxu0
  %968 = vmatprep.mubr.f32.mxu0 0.0
  %969 = vmatmul.mubr.f32.gmra.mrb[0].mxu0 %v827
  %v970 = vpop.f32.mrb[0].mxu0
  %v971 = vadd.f32 %v778, %v970
  %v972 = vpop.f32.mrb[0].mxu0
  %973 = vdwg.mxu0
  %v974 = vmax.f32 %v896, 0.0
  %v975 = vmax.f32 %v901, 0.0
  %v976 = vmax.f32 %v906, 0.0
  %v977 = vmax.f32 %v911, 0.0
  %v978 = vmax.f32 %v916, 0.0
  %v979 = vmax.f32 %v921, 0.0
  %v980 = vmax.f32 %v926, 0.0
  %v981 = vmax.f32 %v931, 0.0
  %v982 = vmax.f32 %v936, 0.0
  %v983 = vmax.f32 %v941, 0.0
  %v984 = vmax.f32 %v946, 0.0
  %v985 = vmax.f32 %v951, 0.0
  %v986 = vmax.f32 %v956, 0.0
  %v987 = vmax.f32 %v961, 0.0
  %v988 = vmax.f32 %v966, 0.0
  %v989 = vmax.f32 %v971, 0.0
  %vm990 = vcmask 523264
  %991 = vst.msk [vmem:[#allocation2] sm:$0xff] %vm990, 0.0
  %992 = vst.msk [vmem:[#allocation2 + $0x8] sm:$0xff] %vm990, 0.0
  %993 = vst.msk [vmem:[#allocation2 + $0x10] sm:$0xff] %vm990, 0.0
  %994 = vst.msk [vmem:[#allocation2 + $0x18] sm:$0xff] %vm990, 0.0
  %995 = vst.msk [vmem:[#allocation2 + $0x20] sm:$0xff] %vm990, 0.0
  %996 = vst.msk [vmem:[#allocation2 + $0x28] sm:$0xff] %vm990, 0.0
  %vm997 = vcmask 519168
  %998 = vst.msk [vmem:[#allocation2 + $0x30] sm:$0xf] %vm997, 0.0
  %999 = vst.msk [vmem:[#allocation2 + $0x38] sm:$0xff] %vm990, 0.0
  %1000 = vst.msk [vmem:[#allocation2 + $0x40] sm:$0xff] %vm990, 0.0
  %1001 = vst.msk [vmem:[#allocation2 + $0x48] sm:$0xff] %vm990, 0.0
  %1002 = vst.msk [vmem:[#allocation2 + $0x50] sm:$0xff] %vm990, 0.0
  %1003 = vst.msk [vmem:[#allocation2 + $0x58] sm:$0xff] %vm990, 0.0
  %1004 = vst.msk [vmem:[#allocation2 + $0x60] sm:$0xff] %vm990, 0.0
  %1005 = vst.msk [vmem:[#allocation2 + $0x68] sm:$0xf] %vm997, 0.0
  %1006 = vst.msk [vmem:[#allocation2 + $0x70] sm:$0xff] %vm990, 0.0
  %1007 = vst.msk [vmem:[#allocation2 + $0x78] sm:$0xff] %vm990, 0.0
  %1008 = vst.msk [vmem:[#allocation2 + $0x80] sm:$0xff] %vm990, 0.0
  %1009 = vst.msk [vmem:[#allocation2 + $0x88] sm:$0xff] %vm990, 0.0
  %1010 = vst.msk [vmem:[#allocation2 + $0x90] sm:$0xff] %vm990, 0.0
  %1011 = vst.msk [vmem:[#allocation2 + $0x98] sm:$0xff] %vm990, 0.0
  %1012 = vst.msk [vmem:[#allocation2 + $0xa0] sm:$0xf] %vm997, 0.0
  %1013 = vst.msk [vmem:[#allocation2 + $0xa8] sm:$0xff] %vm990, 0.0
  %1014 = vst.msk [vmem:[#allocation2 + $0xb0] sm:$0xff] %vm990, 0.0
  %1015 = vst.msk [vmem:[#allocation2 + $0xb8] sm:$0xff] %vm990, 0.0
  %1016 = vst.msk [vmem:[#allocation2 + $0xc0] sm:$0xff] %vm990, 0.0
  %1017 = vst.msk [vmem:[#allocation2 + $0xc8] sm:$0xff] %vm990, 0.0
  %1018 = vst.msk [vmem:[#allocation2 + $0xd0] sm:$0xff] %vm990, 0.0
  %1019 = vst.msk [vmem:[#allocation2 + $0xd8] sm:$0xf] %vm997, 0.0
  %1020 = vst.msk [vmem:[#allocation2 + $0xa] sm:$0xff] %vm990, %v974
  %1021 = vst.msk [vmem:[#allocation2 + $0x12] sm:$0xff] %vm990, %v975
  %1022 = vst.msk [vmem:[#allocation2 + $0x1a] sm:$0xff] %vm990, %v976
  %1023 = vst.msk [vmem:[#allocation2 + $0x22] sm:$0xff] %vm990, %v977
  %s1024 = scalar_lea.vmem [#allocation2], 56
  %1025 = vst.msk [vmem:[%s1024 + $0xa] sm:$0xff] %vm990, %v978
  %1026 = vst.msk [vmem:[%s1024 + $0x12] sm:$0xff] %vm990, %v979
  %1027 = vst.msk [vmem:[%s1024 + $0x1a] sm:$0xff] %vm990, %v980
  %1028 = vst.msk [vmem:[%s1024 + $0x22] sm:$0xff] %vm990, %v981
  %s1029 = scalar_lea.vmem [#allocation2], 112
  %1030 = vst.msk [vmem:[%s1029 + $0xa] sm:$0xff] %vm990, %v982
  %1031 = vst.msk [vmem:[%s1029 + $0x12] sm:$0xff] %vm990, %v983
  %1032 = vst.msk [vmem:[%s1029 + $0x1a] sm:$0xff] %vm990, %v984
  %1033 = vst.msk [vmem:[%s1029 + $0x22] sm:$0xff] %vm990, %v985
  %s1034 = scalar_lea.vmem [#allocation2], 168
  %1035 = vst.msk [vmem:[%s1034 + $0xa] sm:$0xff] %vm990, %v986
  %1036 = vst.msk [vmem:[%s1034 + $0x12] sm:$0xff] %vm990, %v987
  %1037 = vst.msk [vmem:[%s1034 + $0x1a] sm:$0xff] %vm990, %v988
  %1038 = vst.msk [vmem:[%s1034 + $0x22] sm:$0xff] %vm990, %v989
  %v1039 = vld [vmem:[%s1034] sm:$0xff]
  %v1040 = vld [vmem:[%s1034 + $0x8] sm:$0xff]
  %v1041 = vld [vmem:[%s1034 + $0x10] sm:$0xff]
  %v1042 = vld [vmem:[%s1034 + $0x18] sm:$0xff]
  %v1043 = vld [vmem:[%s2] sm:$0xff]
  %v1044 = vld [vmem:[%s2 + $0x8] sm:$0xff]
  %v1045 = vld [vmem:[%s2 + $0x10] sm:$0xff]
  %v1046 = vld [vmem:[%s2 + $0x18] sm:$0xff]
  %1048 = vset.pattern.permute.xlu0 0
  %1049 = vperm.xlu0 %1048, %v1043
  %v1050 = vpop.permute.xlu0 %1049
  %1053 = vset.pattern.permute.xlu0 0
  %1054 = vperm.xlu0 %1053, %v1044
  %v1055 = vpop.permute.xlu0 %1054
  %1058 = vset.pattern.permute.xlu0 0
  %1059 = vperm.xlu0 %1058, %v1045
  %v1060 = vpop.permute.xlu0 %1059
  %1063 = vset.pattern.permute.xlu0 0
  %1064 = vperm.xlu0 %1063, %v1046
  %v1065 = vpop.permute.xlu0 %1064
  %v1067 = vmul.f32 %v1039, %v1050
  %v1068 = vmul.f32 %v1040, %v1055
  %v1069 = vmul.f32 %v1041, %v1060
  %v1070 = vmul.f32 %v1042, %v1065
  %v1071 = vld [vmem:[%s6] sm:$0xff]
  %v1072 = vld [vmem:[%s6 + $0x8] sm:$0xff]
  %v1073 = vld [vmem:[%s6 + $0x10] sm:$0xff]
  %v1074 = vld [vmem:[%s6 + $0x18] sm:$0xff]
  %v1075 = vld [vmem:[%s6 + $0x20] sm:$0xff]
  %v1076 = vld [vmem:[%s6 + $0x28] sm:$0xff]
  %v1077 = vld [vmem:[%s6 + $0x30] sm:$0xff]
  %v1078 = vld [vmem:[%s6 + $0x38] sm:$0xff]
  %v1079 = vld [vmem:[%s1029 + $0x2] sm:$0xff]
  %v1080 = vld [vmem:[%s1029 + $0xa] sm:$0xff]
  %v1081 = vld [vmem:[%s1029 + $0x12] sm:$0xff]
  %v1082 = vld [vmem:[%s1029 + $0x1a] sm:$0xff]
  %s1083 = scalar_lea.vmem %s6, 64
  %v1084 = vld [vmem:[%s1083] sm:$0xff]
  %v1085 = vld [vmem:[%s1083 + $0x8] sm:$0xff]
  %v1086 = vld [vmem:[%s1083 + $0x10] sm:$0xff]
  %v1087 = vld [vmem:[%s1083 + $0x18] sm:$0xff]
  %v1088 = vld [vmem:[%s1083 + $0x20] sm:$0xff]
  %v1089 = vld [vmem:[%s1083 + $0x28] sm:$0xff]
  %v1090 = vld [vmem:[%s1083 + $0x30] sm:$0xff]
  %v1091 = vld [vmem:[%s1083 + $0x38] sm:$0xff]
  %v1093 = vsel %vm990, %v1079, 0
  %v1096 = vsel %vm990, %v1080, 0
  %v1099 = vsel %vm990, %v1081, 0
  %v1102 = vsel %vm990, %v1082, 0
  %1104 = vmatprep.subr.mxu0 0.0
  %1105 = vmatpush1.msra.mxu0 %v1084
  %1106 = vmatprep.subr.mxu0 0.0
  %1107 = vmatpush1.msra.mxu0 %v1085
  %1108 = vmatprep.subr.mxu0 0.0
  %1109 = vmatpush1.msra.mxu0 %v1086
  %1110 = vmatprep.subr.mxu0 0.0
  %1111 = vmatpush1.msra.mxu0 %v1087
  %1112 = vmatprep.subr.mxu0 0.0
  %1113 = vmatpush1.msra.mxu0 %v1088
  %1114 = vmatprep.subr.mxu0 0.0
  %1115 = vmatpush1.msra.mxu0 %v1089
  %1116 = vmatprep.subr.mxu0 0.0
  %1117 = vmatpush1.msra.mxu0 %v1090
  %1118 = vmatprep.subr.mxu0 0.0
  %1119 = vmatpush1.msra.mxu0 %v1091
  %1120 = vmatprep.subr.mxu0 0.0
  %1121 = vmatpush1.msra.mxu0 0.0
  %1122 = vmatprep.subr.mxu0 0.0
  %1123 = vmatpush1.msra.mxu0 0.0
  %1124 = vmatprep.subr.mxu0 0.0
  %1125 = vmatpush1.msra.mxu0 0.0
  %1126 = vmatprep.subr.mxu0 0.0
  %1127 = vmatpush1.msra.mxu0 0.0
  %1128 = vmatprep.subr.mxu0 0.0
  %1129 = vmatpush1.msra.mxu0 0.0
  %1130 = vmatprep.subr.mxu0 0.0
  %1131 = vmatpush1.msra.mxu0 0.0
  %1132 = vmatprep.subr.mxu0 0.0
  %1133 = vmatpush1.msra.mxu0 0.0
  %1134 = vmatprep.subr.mxu0 0.0
  %1135 = vmatpush1.msra.mxu0 0.0
  %1136 = vmatprep.subr.mxu0 0.0
  %1137 = vmatpush1.msra.mxu0 0.0
  %1138 = vmatprep.subr.mxu0 0.0
  %1139 = vmatpush1.msra.mxu0 0.0
  %1140 = vmatprep.subr.mxu0 0.0
  %1141 = vmatpush1.msra.mxu0 0.0
  %1142 = vmatprep.subr.mxu0 0.0
  %1143 = vmatpush1.msra.mxu0 0.0
  %1144 = vmatprep.subr.mxu0 0.0
  %1145 = vmatpush1.msra.mxu0 0.0
  %1146 = vmatprep.subr.mxu0 0.0
  %1147 = vmatpush1.msra.mxu0 0.0
  %1148 = vmatprep.subr.mxu0 0.0
  %1149 = vmatpush1.msra.mxu0 0.0
  %1150 = vmatprep.subr.mxu0 0.0
  %1151 = vmatpush1.msra.mxu0 0.0
  %1152 = vmatprep.subr.mxu0 0.0
  %1153 = vmatpush1.msra.mxu0 0.0
  %1154 = vmatprep.subr.mxu0 0.0
  %1155 = vmatpush1.msra.mxu0 0.0
  %1156 = vmatprep.subr.mxu0 0.0
  %1157 = vmatpush1.msra.mxu0 0.0
  %1158 = vmatprep.subr.mxu0 0.0
  %1159 = vmatpush1.msra.mxu0 0.0
  %1160 = vmatprep.subr.mxu0 0.0
  %1161 = vmatpush1.msra.mxu0 0.0
  %1162 = vmatprep.subr.mxu0 0.0
  %1163 = vmatpush1.msra.mxu0 0.0
  %1164 = vmatprep.subr.mxu0 0.0
  %1165 = vmatpush1.msra.mxu0 0.0
  %1166 = vmatprep.subr.mxu0 0.0
  %1167 = vmatpush1.msra.mxu0 0.0
  %1168 = vmatprep.mubr.f32.mxu0 0.0
  %1169 = vmatmul.mubr.f32.gmra.mrb[0].mxu0 %v1093
  %v1170 = vpop.f32.mrb[0].mxu0
  %v1171 = vadd.f32 0.0, %v1170
  %v1172 = vpop.f32.mrb[0].mxu0
  %1173 = vmatprep.mubr.f32.mxu0 0.0
  %1174 = vmatmul.mubr.f32.gmra.mrb[0].mxu0 %v1096
  %v1175 = vpop.f32.mrb[0].mxu0
  %v1176 = vadd.f32 0.0, %v1175
  %v1177 = vpop.f32.mrb[0].mxu0
  %1178 = vmatprep.mubr.f32.mxu0 0.0
  %1179 = vmatmul.mubr.f32.gmra.mrb[0].mxu0 %v1099
  %v1180 = vpop.f32.mrb[0].mxu0
  %v1181 = vadd.f32 0.0, %v1180
  %v1182 = vpop.f32.mrb[0].mxu0
  %1183 = vmatprep.mubr.f32.mxu0 0.0
  %1184 = vmatmul.mubr.f32.gmra.mrb[0].mxu0 %v1102
  %v1185 = vpop.f32.mrb[0].mxu0
  %v1186 = vadd.f32 0.0, %v1185
  %v1187 = vpop.f32.mrb[0].mxu0
  %1188 = vdwg.mxu0
  %v1190 = vsel %vm990, %v1067, 0
  %v1193 = vsel %vm990, %v1068, 0
  %v1196 = vsel %vm990, %v1069, 0
  %v1199 = vsel %vm990, %v1070, 0
  %1201 = vmatprep.subr.mxu0 0.0
  %1202 = vmatpush1.msra.mxu0 %v1071
  %1203 = vmatprep.subr.mxu0 0.0
  %1204 = vmatpush1.msra.mxu0 %v1072
  %1205 = vmatprep.subr.mxu0 0.0
  %1206 = vmatpush1.msra.mxu0 %v1073
  %1207 = vmatprep.subr.mxu0 0.0
  %1208 = vmatpush1.msra.mxu0 %v1074
  %1209 = vmatprep.subr.mxu0 0.0
  %1210 = vmatpush1.msra.mxu0 %v1075
  %1211 = vmatprep.subr.mxu0 0.0
  %1212 = vmatpush1.msra.mxu0 %v1076
  %1213 = vmatprep.subr.mxu0 0.0
  %1214 = vmatpush1.msra.mxu0 %v1077
  %1215 = vmatprep.subr.mxu0 0.0
  %1216 = vmatpush1.msra.mxu0 %v1078
  %1217 = vmatprep.subr.mxu0 0.0
  %1218 = vmatpush1.msra.mxu0 0.0
  %1219 = vmatprep.subr.mxu0 0.0
  %1220 = vmatpush1.msra.mxu0 0.0
  %1221 = vmatprep.subr.mxu0 0.0
  %1222 = vmatpush1.msra.mxu0 0.0
  %1223 = vmatprep.subr.mxu0 0.0
  %1224 = vmatpush1.msra.mxu0 0.0
  %1225 = vmatprep.subr.mxu0 0.0
  %1226 = vmatpush1.msra.mxu0 0.0
  %1227 = vmatprep.subr.mxu0 0.0
  %1228 = vmatpush1.msra.mxu0 0.0
  %1229 = vmatprep.subr.mxu0 0.0
  %1230 = vmatpush1.msra.mxu0 0.0
  %1231 = vmatprep.subr.mxu0 0.0
  %1232 = vmatpush1.msra.mxu0 0.0
  %1233 = vmatprep.subr.mxu0 0.0
  %1234 = vmatpush1.msra.mxu0 0.0
  %1235 = vmatprep.subr.mxu0 0.0
  %1236 = vmatpush1.msra.mxu0 0.0
  %1237 = vmatprep.subr.mxu0 0.0
  %1238 = vmatpush1.msra.mxu0 0.0
  %1239 = vmatprep.subr.mxu0 0.0
  %1240 = vmatpush1.msra.mxu0 0.0
  %1241 = vmatprep.subr.mxu0 0.0
  %1242 = vmatpush1.msra.mxu0 0.0
  %1243 = vmatprep.subr.mxu0 0.0
  %1244 = vmatpush1.msra.mxu0 0.0
  %1245 = vmatprep.subr.mxu0 0.0
  %1246 = vmatpush1.msra.mxu0 0.0
  %1247 = vmatprep.subr.mxu0 0.0
  %1248 = vmatpush1.msra.mxu0 0.0
  %1249 = vmatprep.subr.mxu0 0.0
  %1250 = vmatpush1.msra.mxu0 0.0
  %1251 = vmatprep.subr.mxu0 0.0
  %1252 = vmatpush1.msra.mxu0 0.0
  %1253 = vmatprep.subr.mxu0 0.0
  %1254 = vmatpush1.msra.mxu0 0.0
  %1255 = vmatprep.subr.mxu0 0.0
  %1256 = vmatpush1.msra.mxu0 0.0
  %1257 = vmatprep.subr.mxu0 0.0
  %1258 = vmatpush1.msra.mxu0 0.0
  %1259 = vmatprep.subr.mxu0 0.0
  %1260 = vmatpush1.msra.mxu0 0.0
  %1261 = vmatprep.subr.mxu0 0.0
  %1262 = vmatpush1.msra.mxu0 0.0
  %1263 = vmatprep.subr.mxu0 0.0
  %1264 = vmatpush1.msra.mxu0 0.0
  %1265 = vmatprep.mubr.f32.mxu0 0.0
  %1266 = vmatmul.mubr.f32.gmra.mrb[0].mxu0 %v1190
  %v1267 = vpop.f32.mrb[0].mxu0
  %v1268 = vadd.f32 %v1171, %v1267
  %v1269 = vpop.f32.mrb[0].mxu0
  %1270 = vmatprep.mubr.f32.mxu0 0.0
  %1271 = vmatmul.mubr.f32.gmra.mrb[0].mxu0 %v1193
  %v1272 = vpop.f32.mrb[0].mxu0
  %v1273 = vadd.f32 %v1176, %v1272
  %v1274 = vpop.f32.mrb[0].mxu0
  %1275 = vmatprep.mubr.f32.mxu0 0.0
  %1276 = vmatmul.mubr.f32.gmra.mrb[0].mxu0 %v1196
  %v1277 = vpop.f32.mrb[0].mxu0
  %v1278 = vadd.f32 %v1181, %v1277
  %v1279 = vpop.f32.mrb[0].mxu0
  %1280 = vmatprep.mubr.f32.mxu0 0.0
  %1281 = vmatmul.mubr.f32.gmra.mrb[0].mxu0 %v1199
  %v1282 = vpop.f32.mrb[0].mxu0
  %v1283 = vadd.f32 %v1186, %v1282
  %v1284 = vpop.f32.mrb[0].mxu0
  %1285 = vdwg.mxu0
  %v1286 = vld [vmem:[%s1034 + $0x2] sm:$0xff]
  %v1287 = vld [vmem:[%s1034 + $0xa] sm:$0xff]
  %v1288 = vld [vmem:[%s1034 + $0x12] sm:$0xff]
  %v1289 = vld [vmem:[%s1034 + $0x1a] sm:$0xff]
  %s1290 = scalar_lea.vmem %s6, 128
  %v1291 = vld [vmem:[%s1290] sm:$0xff]
  %v1292 = vld [vmem:[%s1290 + $0x8] sm:$0xff]
  %v1293 = vld [vmem:[%s1290 + $0x10] sm:$0xff]
  %v1294 = vld [vmem:[%s1290 + $0x18] sm:$0xff]
  %v1295 = vld [vmem:[%s1290 + $0x20] sm:$0xff]
  %v1296 = vld [vmem:[%s1290 + $0x28] sm:$0xff]
  %v1297 = vld [vmem:[%s1290 + $0x30] sm:$0xff]
  %v1298 = vld [vmem:[%s1290 + $0x38] sm:$0xff]
  %v1300 = vsel %vm990, %v1286, 0
  %v1303 = vsel %vm990, %v1287, 0
  %v1306 = vsel %vm990, %v1288, 0
  %v1309 = vsel %vm990, %v1289, 0
  %1311 = vmatprep.subr.mxu0 0.0
  %1312 = vmatpush1.msra.mxu0 %v1291
  %1313 = vmatprep.subr.mxu0 0.0
  %1314 = vmatpush1.msra.mxu0 %v1292
  %1315 = vmatprep.subr.mxu0 0.0
  %1316 = vmatpush1.msra.mxu0 %v1293
  %1317 = vmatprep.subr.mxu0 0.0
  %1318 = vmatpush1.msra.mxu0 %v1294
  %1319 = vmatprep.subr.mxu0 0.0
  %1320 = vmatpush1.msra.mxu0 %v1295
  %1321 = vmatprep.subr.mxu0 0.0
  %1322 = vmatpush1.msra.mxu0 %v1296
  %1323 = vmatprep.subr.mxu0 0.0
  %1324 = vmatpush1.msra.mxu0 %v1297
  %1325 = vmatprep.subr.mxu0 0.0
  %1326 = vmatpush1.msra.mxu0 %v1298
  %1327 = vmatprep.subr.mxu0 0.0
  %1328 = vmatpush1.msra.mxu0 0.0
  %1329 = vmatprep.subr.mxu0 0.0
  %1330 = vmatpush1.msra.mxu0 0.0
  %1331 = vmatprep.subr.mxu0 0.0
  %1332 = vmatpush1.msra.mxu0 0.0
  %1333 = vmatprep.subr.mxu0 0.0
  %1334 = vmatpush1.msra.mxu0 0.0
  %1335 = vmatprep.subr.mxu0 0.0
  %1336 = vmatpush1.msra.mxu0 0.0
  %1337 = vmatprep.subr.mxu0 0.0
  %1338 = vmatpush1.msra.mxu0 0.0
  %1339 = vmatprep.subr.mxu0 0.0
  %1340 = vmatpush1.msra.mxu0 0.0
  %1341 = vmatprep.subr.mxu0 0.0
  %1342 = vmatpush1.msra.mxu0 0.0
  %1343 = vmatprep.subr.mxu0 0.0
  %1344 = vmatpush1.msra.mxu0 0.0
  %1345 = vmatprep.subr.mxu0 0.0
  %1346 = vmatpush1.msra.mxu0 0.0
  %1347 = vmatprep.subr.mxu0 0.0
  %1348 = vmatpush1.msra.mxu0 0.0
  %1349 = vmatprep.subr.mxu0 0.0
  %1350 = vmatpush1.msra.mxu0 0.0
  %1351 = vmatprep.subr.mxu0 0.0
  %1352 = vmatpush1.msra.mxu0 0.0
  %1353 = vmatprep.subr.mxu0 0.0
  %1354 = vmatpush1.msra.mxu0 0.0
  %1355 = vmatprep.subr.mxu0 0.0
  %1356 = vmatpush1.msra.mxu0 0.0
  %1357 = vmatprep.subr.mxu0 0.0
  %1358 = vmatpush1.msra.mxu0 0.0
  %1359 = vmatprep.subr.mxu0 0.0
  %1360 = vmatpush1.msra.mxu0 0.0
  %1361 = vmatprep.subr.mxu0 0.0
  %1362 = vmatpush1.msra.mxu0 0.0
  %1363 = vmatprep.subr.mxu0 0.0
  %1364 = vmatpush1.msra.mxu0 0.0
  %1365 = vmatprep.subr.mxu0 0.0
  %1366 = vmatpush1.msra.mxu0 0.0
  %1367 = vmatprep.subr.mxu0 0.0
  %1368 = vmatpush1.msra.mxu0 0.0
  %1369 = vmatprep.subr.mxu0 0.0
  %1370 = vmatpush1.msra.mxu0 0.0
  %1371 = vmatprep.subr.mxu0 0.0
  %1372 = vmatpush1.msra.mxu0 0.0
  %1373 = vmatprep.subr.mxu0 0.0
  %1374 = vmatpush1.msra.mxu0 0.0
  %1375 = vmatprep.mubr.f32.mxu0 0.0
  %1376 = vmatmul.mubr.f32.gmra.mrb[0].mxu0 %v1300
  %v1377 = vpop.f32.mrb[0].mxu0
  %v1378 = vadd.f32 0.0, %v1377
  %v1379 = vpop.f32.mrb[0].mxu0
  %1380 = vmatprep.mubr.f32.mxu0 0.0
  %1381 = vmatmul.mubr.f32.gmra.mrb[0].mxu0 %v1303
  %v1382 = vpop.f32.mrb[0].mxu0
  %v1383 = vadd.f32 0.0, %v1382
  %v1384 = vpop.f32.mrb[0].mxu0
  %1385 = vmatprep.mubr.f32.mxu0 0.0
  %1386 = vmatmul.mubr.f32.gmra.mrb[0].mxu0 %v1306
  %v1387 = vpop.f32.mrb[0].mxu0
  %v1388 = vadd.f32 0.0, %v1387
  %v1389 = vpop.f32.mrb[0].mxu0
  %1390 = vmatprep.mubr.f32.mxu0 0.0
  %1391 = vmatmul.mubr.f32.gmra.mrb[0].mxu0 %v1309
  %v1392 = vpop.f32.mrb[0].mxu0
  %v1393 = vadd.f32 0.0, %v1392
  %v1394 = vpop.f32.mrb[0].mxu0
  %1395 = vdwg.mxu0
  %v1396 = vadd.f32 %v1268, %v1378
  %v1397 = vadd.f32 %v1273, %v1383
  %v1398 = vadd.f32 %v1278, %v1388
  %v1399 = vadd.f32 %v1283, %v1393
  %v1400 = vld [vmem:[%s1029 + $0x4] sm:$0xff]
  %v1401 = vld [vmem:[%s1029 + $0xc] sm:$0xff]
  %v1402 = vld [vmem:[%s1029 + $0x14] sm:$0xff]
  %v1403 = vld [vmem:[%s1029 + $0x1c] sm:$0xff]
  %v1404 = vld [vmem:[%s3] sm:$0xff]
  %v1405 = vld [vmem:[%s3 + $0x8] sm:$0xff]
  %v1406 = vld [vmem:[%s3 + $0x10] sm:$0xff]
  %v1407 = vld [vmem:[%s3 + $0x18] sm:$0xff]
  %1409 = vset.pattern.permute.xlu0 0
  %1410 = vperm.xlu0 %1409, %v1404
  %v1411 = vpop.permute.xlu0 %1410
  %1414 = vset.pattern.permute.xlu0 0
  %1415 = vperm.xlu0 %1414, %v1405
  %v1416 = vpop.permute.xlu0 %1415
  %1419 = vset.pattern.permute.xlu0 0
  %1420 = vperm.xlu0 %1419, %v1406
  %v1421 = vpop.permute.xlu0 %1420
  %1424 = vset.pattern.permute.xlu0 0
  %1425 = vperm.xlu0 %1424, %v1407
  %v1426 = vpop.permute.xlu0 %1425
  %v1428 = vmul.f32 %v1400, %v1411
  %v1429 = vmul.f32 %v1401, %v1416
  %v1430 = vmul.f32 %v1402, %v1421
  %v1431 = vmul.f32 %v1403, %v1426
  %s1432 = scalar_lea.vmem %s6, 192
  %v1433 = vld [vmem:[%s1432] sm:$0xff]
  %v1434 = vld [vmem:[%s1432 + $0x8] sm:$0xff]
  %v1435 = vld [vmem:[%s1432 + $0x10] sm:$0xff]
  %v1436 = vld [vmem:[%s1432 + $0x18] sm:$0xff]
  %v1437 = vld [vmem:[%s1432 + $0x20] sm:$0xff]
  %v1438 = vld [vmem:[%s1432 + $0x28] sm:$0xff]
  %v1439 = vld [vmem:[%s1432 + $0x30] sm:$0xff]
  %v1440 = vld [vmem:[%s1432 + $0x38] sm:$0xff]
  %v1442 = vsel %vm990, %v1428, 0
  %v1445 = vsel %vm990, %v1429, 0
  %v1448 = vsel %vm990, %v1430, 0
  %v1451 = vsel %vm990, %v1431, 0
  %1453 = vmatprep.subr.mxu0 0.0
  %1454 = vmatpush1.msra.mxu0 %v1433
  %1455 = vmatprep.subr.mxu0 0.0
  %1456 = vmatpush1.msra.mxu0 %v1434
  %1457 = vmatprep.subr.mxu0 0.0
  %1458 = vmatpush1.msra.mxu0 %v1435
  %1459 = vmatprep.subr.mxu0 0.0
  %1460 = vmatpush1.msra.mxu0 %v1436
  %1461 = vmatprep.subr.mxu0 0.0
  %1462 = vmatpush1.msra.mxu0 %v1437
  %1463 = vmatprep.subr.mxu0 0.0
  %1464 = vmatpush1.msra.mxu0 %v1438
  %1465 = vmatprep.subr.mxu0 0.0
  %1466 = vmatpush1.msra.mxu0 %v1439
  %1467 = vmatprep.subr.mxu0 0.0
  %1468 = vmatpush1.msra.mxu0 %v1440
  %1469 = vmatprep.subr.mxu0 0.0
  %1470 = vmatpush1.msra.mxu0 0.0
  %1471 = vmatprep.subr.mxu0 0.0
  %1472 = vmatpush1.msra.mxu0 0.0
  %1473 = vmatprep.subr.mxu0 0.0
  %1474 = vmatpush1.msra.mxu0 0.0
  %1475 = vmatprep.subr.mxu0 0.0
  %1476 = vmatpush1.msra.mxu0 0.0
  %1477 = vmatprep.subr.mxu0 0.0
  %1478 = vmatpush1.msra.mxu0 0.0
  %1479 = vmatprep.subr.mxu0 0.0
  %1480 = vmatpush1.msra.mxu0 0.0
  %1481 = vmatprep.subr.mxu0 0.0
  %1482 = vmatpush1.msra.mxu0 0.0
  %1483 = vmatprep.subr.mxu0 0.0
  %1484 = vmatpush1.msra.mxu0 0.0
  %1485 = vmatprep.subr.mxu0 0.0
  %1486 = vmatpush1.msra.mxu0 0.0
  %1487 = vmatprep.subr.mxu0 0.0
  %1488 = vmatpush1.msra.mxu0 0.0
  %1489 = vmatprep.subr.mxu0 0.0
  %1490 = vmatpush1.msra.mxu0 0.0
  %1491 = vmatprep.subr.mxu0 0.0
  %1492 = vmatpush1.msra.mxu0 0.0
  %1493 = vmatprep.subr.mxu0 0.0
  %1494 = vmatpush1.msra.mxu0 0.0
  %1495 = vmatprep.subr.mxu0 0.0
  %1496 = vmatpush1.msra.mxu0 0.0
  %1497 = vmatprep.subr.mxu0 0.0
  %1498 = vmatpush1.msra.mxu0 0.0
  %1499 = vmatprep.subr.mxu0 0.0
  %1500 = vmatpush1.msra.mxu0 0.0
  %1501 = vmatprep.subr.mxu0 0.0
  %1502 = vmatpush1.msra.mxu0 0.0
  %1503 = vmatprep.subr.mxu0 0.0
  %1504 = vmatpush1.msra.mxu0 0.0
  %1505 = vmatprep.subr.mxu0 0.0
  %1506 = vmatpush1.msra.mxu0 0.0
  %1507 = vmatprep.subr.mxu0 0.0
  %1508 = vmatpush1.msra.mxu0 0.0
  %1509 = vmatprep.subr.mxu0 0.0
  %1510 = vmatpush1.msra.mxu0 0.0
  %1511 = vmatprep.subr.mxu0 0.0
  %1512 = vmatpush1.msra.mxu0 0.0
  %1513 = vmatprep.subr.mxu0 0.0
  %1514 = vmatpush1.msra.mxu0 0.0
  %1515 = vmatprep.subr.mxu0 0.0
  %1516 = vmatpush1.msra.mxu0 0.0
  %1517 = vmatprep.mubr.f32.mxu0 0.0
  %1518 = vmatmul.mubr.f32.gmra.mrb[0].mxu0 %v1442
  %v1519 = vpop.f32.mrb[0].mxu0
  %v1520 = vadd.f32 0.0, %v1519
  %v1521 = vpop.f32.mrb[0].mxu0
  %1522 = vmatprep.mubr.f32.mxu0 0.0
  %1523 = vmatmul.mubr.f32.gmra.mrb[0].mxu0 %v1445
  %v1524 = vpop.f32.mrb[0].mxu0
  %v1525 = vadd.f32 0.0, %v1524
  %v1526 = vpop.f32.mrb[0].mxu0
  %1527 = vmatprep.mubr.f32.mxu0 0.0
  %1528 = vmatmul.mubr.f32.gmra.mrb[0].mxu0 %v1448
  %v1529 = vpop.f32.mrb[0].mxu0
  %v1530 = vadd.f32 0.0, %v1529
  %v1531 = vpop.f32.mrb[0].mxu0
  %1532 = vmatprep.mubr.f32.mxu0 0.0
  %1533 = vmatmul.mubr.f32.gmra.mrb[0].mxu0 %v1451
  %v1534 = vpop.f32.mrb[0].mxu0
  %v1535 = vadd.f32 0.0, %v1534
  %v1536 = vpop.f32.mrb[0].mxu0
  %1537 = vdwg.mxu0
  %v1538 = vadd.f32 %v1396, %v1520
  %v1539 = vadd.f32 %v1397, %v1525
  %v1540 = vadd.f32 %v1398, %v1530
  %v1541 = vadd.f32 %v1399, %v1535
  %v1542 = vld [vmem:[%s1024 + $0x8] sm:$0xff]
  %v1543 = vld [vmem:[%s1024 + $0x10] sm:$0xff]
  %v1544 = vld [vmem:[%s1024 + $0x18] sm:$0xff]
  %v1545 = vld [vmem:[%s1024 + $0x20] sm:$0xff]
  %v1546 = vmul.f32 %v1542, %v1050
  %v1547 = vmul.f32 %v1543, %v1055
  %v1548 = vmul.f32 %v1544, %v1060
  %v1549 = vmul.f32 %v1545, %v1065
  %s1550 = scalar_lea.vmem %s6, 256
  %v1551 = vld [vmem:[%s1550] sm:$0xff]
  %v1552 = vld [vmem:[%s1550 + $0x8] sm:$0xff]
  %v1553 = vld [vmem:[%s1550 + $0x10] sm:$0xff]
  %v1554 = vld [vmem:[%s1550 + $0x18] sm:$0xff]
  %v1555 = vld [vmem:[%s1550 + $0x20] sm:$0xff]
  %v1556 = vld [vmem:[%s1550 + $0x28] sm:$0xff]
  %v1557 = vld [vmem:[%s1550 + $0x30] sm:$0xff]
  %v1558 = vld [vmem:[%s1550 + $0x38] sm:$0xff]
  %v1560 = vsel %vm990, %v1546, 0
  %v1563 = vsel %vm990, %v1547, 0
  %v1566 = vsel %vm990, %v1548, 0
  %v1569 = vsel %vm990, %v1549, 0
  %1571 = vmatprep.subr.mxu0 0.0
  %1572 = vmatpush1.msra.mxu0 %v1551
  %1573 = vmatprep.subr.mxu0 0.0
  %1574 = vmatpush1.msra.mxu0 %v1552
  %1575 = vmatprep.subr.mxu0 0.0
  %1576 = vmatpush1.msra.mxu0 %v1553
  %1577 = vmatprep.subr.mxu0 0.0
  %1578 = vmatpush1.msra.mxu0 %v1554
  %1579 = vmatprep.subr.mxu0 0.0
  %1580 = vmatpush1.msra.mxu0 %v1555
  %1581 = vmatprep.subr.mxu0 0.0
  %1582 = vmatpush1.msra.mxu0 %v1556
  %1583 = vmatprep.subr.mxu0 0.0
  %1584 = vmatpush1.msra.mxu0 %v1557
  %1585 = vmatprep.subr.mxu0 0.0
  %1586 = vmatpush1.msra.mxu0 %v1558
  %1587 = vmatprep.subr.mxu0 0.0
  %1588 = vmatpush1.msra.mxu0 0.0
  %1589 = vmatprep.subr.mxu0 0.0
  %1590 = vmatpush1.msra.mxu0 0.0
  %1591 = vmatprep.subr.mxu0 0.0
  %1592 = vmatpush1.msra.mxu0 0.0
  %1593 = vmatprep.subr.mxu0 0.0
  %1594 = vmatpush1.msra.mxu0 0.0
  %1595 = vmatprep.subr.mxu0 0.0
  %1596 = vmatpush1.msra.mxu0 0.0
  %1597 = vmatprep.subr.mxu0 0.0
  %1598 = vmatpush1.msra.mxu0 0.0
  %1599 = vmatprep.subr.mxu0 0.0
  %1600 = vmatpush1.msra.mxu0 0.0
  %1601 = vmatprep.subr.mxu0 0.0
  %1602 = vmatpush1.msra.mxu0 0.0
  %1603 = vmatprep.subr.mxu0 0.0
  %1604 = vmatpush1.msra.mxu0 0.0
  %1605 = vmatprep.subr.mxu0 0.0
  %1606 = vmatpush1.msra.mxu0 0.0
  %1607 = vmatprep.subr.mxu0 0.0
  %1608 = vmatpush1.msra.mxu0 0.0
  %1609 = vmatprep.subr.mxu0 0.0
  %1610 = vmatpush1.msra.mxu0 0.0
  %1611 = vmatprep.subr.mxu0 0.0
  %1612 = vmatpush1.msra.mxu0 0.0
  %1613 = vmatprep.subr.mxu0 0.0
  %1614 = vmatpush1.msra.mxu0 0.0
  %1615 = vmatprep.subr.mxu0 0.0
  %1616 = vmatpush1.msra.mxu0 0.0
  %1617 = vmatprep.subr.mxu0 0.0
  %1618 = vmatpush1.msra.mxu0 0.0
  %1619 = vmatprep.subr.mxu0 0.0
  %1620 = vmatpush1.msra.mxu0 0.0
  %1621 = vmatprep.subr.mxu0 0.0
  %1622 = vmatpush1.msra.mxu0 0.0
  %1623 = vmatprep.subr.mxu0 0.0
  %1624 = vmatpush1.msra.mxu0 0.0
  %1625 = vmatprep.subr.mxu0 0.0
  %1626 = vmatpush1.msra.mxu0 0.0
  %1627 = vmatprep.subr.mxu0 0.0
  %1628 = vmatpush1.msra.mxu0 0.0
  %1629 = vmatprep.subr.mxu0 0.0
  %1630 = vmatpush1.msra.mxu0 0.0
  %1631 = vmatprep.subr.mxu0 0.0
  %1632 = vmatpush1.msra.mxu0 0.0
  %1633 = vmatprep.subr.mxu0 0.0
  %1634 = vmatpush1.msra.mxu0 0.0
  %1635 = vmatprep.mubr.f32.mxu0 0.0
  %1636 = vmatmul.mubr.f32.gmra.mrb[0].mxu0 %v1560
  %v1637 = vpop.f32.mrb[0].mxu0
  %v1638 = vadd.f32 0.0, %v1637
  %v1639 = vpop.f32.mrb[0].mxu0
  %1640 = vmatprep.mubr.f32.mxu0 0.0
  %1641 = vmatmul.mubr.f32.gmra.mrb[0].mxu0 %v1563
  %v1642 = vpop.f32.mrb[0].mxu0
  %v1643 = vadd.f32 0.0, %v1642
  %v1644 = vpop.f32.mrb[0].mxu0
  %1645 = vmatprep.mubr.f32.mxu0 0.0
  %1646 = vmatmul.mubr.f32.gmra.mrb[0].mxu0 %v1566
  %v1647 = vpop.f32.mrb[0].mxu0
  %v1648 = vadd.f32 0.0, %v1647
  %v1649 = vpop.f32.mrb[0].mxu0
  %1650 = vmatprep.mubr.f32.mxu0 0.0
  %1651 = vmatmul.mubr.f32.gmra.mrb[0].mxu0 %v1569
  %v1652 = vpop.f32.mrb[0].mxu0
  %v1653 = vadd.f32 0.0, %v1652
  %v1654 = vpop.f32.mrb[0].mxu0
  %1655 = vdwg.mxu0
  %v1656 = vadd.f32 %v1538, %v1638
  %v1657 = vadd.f32 %v1539, %v1643
  %v1658 = vadd.f32 %v1540, %v1648
  %v1659 = vadd.f32 %v1541, %v1653
  %v1660 = vld [vmem:[#allocation2 + $0xa] sm:$0xff]
  %v1661 = vld [vmem:[#allocation2 + $0x12] sm:$0xff]
  %v1662 = vld [vmem:[#allocation2 + $0x1a] sm:$0xff]
  %v1663 = vld [vmem:[#allocation2 + $0x22] sm:$0xff]
  %s1664 = scalar_lea.vmem %s6, 320
  %v1665 = vld [vmem:[%s1664] sm:$0xff]
  %v1666 = vld [vmem:[%s1664 + $0x8] sm:$0xff]
  %v1667 = vld [vmem:[%s1664 + $0x10] sm:$0xff]
  %v1668 = vld [vmem:[%s1664 + $0x18] sm:$0xff]
  %v1669 = vld [vmem:[%s1664 + $0x20] sm:$0xff]
  %v1670 = vld [vmem:[%s1664 + $0x28] sm:$0xff]
  %v1671 = vld [vmem:[%s1664 + $0x30] sm:$0xff]
  %v1672 = vld [vmem:[%s1664 + $0x38] sm:$0xff]
  %v1674 = vsel %vm990, %v1660, 0
  %v1677 = vsel %vm990, %v1661, 0
  %v1680 = vsel %vm990, %v1662, 0
  %v1683 = vsel %vm990, %v1663, 0
  %1685 = vmatprep.subr.mxu0 0.0
  %1686 = vmatpush1.msra.mxu0 %v1665
  %1687 = vmatprep.subr.mxu0 0.0
  %1688 = vmatpush1.msra.mxu0 %v1666
  %1689 = vmatprep.subr.mxu0 0.0
  %1690 = vmatpush1.msra.mxu0 %v1667
  %1691 = vmatprep.subr.mxu0 0.0
  %1692 = vmatpush1.msra.mxu0 %v1668
  %1693 = vmatprep.subr.mxu0 0.0
  %1694 = vmatpush1.msra.mxu0 %v1669
  %1695 = vmatprep.subr.mxu0 0.0
  %1696 = vmatpush1.msra.mxu0 %v1670
  %1697 = vmatprep.subr.mxu0 0.0
  %1698 = vmatpush1.msra.mxu0 %v1671
  %1699 = vmatprep.subr.mxu0 0.0
  %1700 = vmatpush1.msra.mxu0 %v1672
  %1701 = vmatprep.subr.mxu0 0.0
  %1702 = vmatpush1.msra.mxu0 0.0
  %1703 = vmatprep.subr.mxu0 0.0
  %1704 = vmatpush1.msra.mxu0 0.0
  %1705 = vmatprep.subr.mxu0 0.0
  %1706 = vmatpush1.msra.mxu0 0.0
  %1707 = vmatprep.subr.mxu0 0.0
  %1708 = vmatpush1.msra.mxu0 0.0
  %1709 = vmatprep.subr.mxu0 0.0
  %1710 = vmatpush1.msra.mxu0 0.0
  %1711 = vmatprep.subr.mxu0 0.0
  %1712 = vmatpush1.msra.mxu0 0.0
  %1713 = vmatprep.subr.mxu0 0.0
  %1714 = vmatpush1.msra.mxu0 0.0
  %1715 = vmatprep.subr.mxu0 0.0
  %1716 = vmatpush1.msra.mxu0 0.0
  %1717 = vmatprep.subr.mxu0 0.0
  %1718 = vmatpush1.msra.mxu0 0.0
  %1719 = vmatprep.subr.mxu0 0.0
  %1720 = vmatpush1.msra.mxu0 0.0
  %1721 = vmatprep.subr.mxu0 0.0
  %1722 = vmatpush1.msra.mxu0 0.0
  %1723 = vmatprep.subr.mxu0 0.0
  %1724 = vmatpush1.msra.mxu0 0.0
  %1725 = vmatprep.subr.mxu0 0.0
  %1726 = vmatpush1.msra.mxu0 0.0
  %1727 = vmatprep.subr.mxu0 0.0
  %1728 = vmatpush1.msra.mxu0 0.0
  %1729 = vmatprep.subr.mxu0 0.0
  %1730 = vmatpush1.msra.mxu0 0.0
  %1731 = vmatprep.subr.mxu0 0.0
  %1732 = vmatpush1.msra.mxu0 0.0
  %1733 = vmatprep.subr.mxu0 0.0
  %1734 = vmatpush1.msra.mxu0 0.0
  %1735 = vmatprep.subr.mxu0 0.0
  %1736 = vmatpush1.msra.mxu0 0.0
  %1737 = vmatprep.subr.mxu0 0.0
  %1738 = vmatpush1.msra.mxu0 0.0
  %1739 = vmatprep.subr.mxu0 0.0
  %1740 = vmatpush1.msra.mxu0 0.0
  %1741 = vmatprep.subr.mxu0 0.0
  %1742 = vmatpush1.msra.mxu0 0.0
  %1743 = vmatprep.subr.mxu0 0.0
  %1744 = vmatpush1.msra.mxu0 0.0
  %1745 = vmatprep.subr.mxu0 0.0
  %1746 = vmatpush1.msra.mxu0 0.0
  %1747 = vmatprep.subr.mxu0 0.0
  %1748 = vmatpush1.msra.mxu0 0.0
  %1749 = vmatprep.mubr.f32.mxu0 0.0
  %1750 = vmatmul.mubr.f32.gmra.mrb[0].mxu0 %v1674
  %v1751 = vpop.f32.mrb[0].mxu0
  %v1752 = vadd.f32 0.0, %v1751
  %v1753 = vpop.f32.mrb[0].mxu0
  %1754 = vmatprep.mubr.f32.mxu0 0.0
  %1755 = vmatmul.mubr.f32.gmra.mrb[0].mxu0 %v1677
  %v1756 = vpop.f32.mrb[0].mxu0
  %v1757 = vadd.f32 0.0, %v1756
  %v1758 = vpop.f32.mrb[0].mxu0
  %1759 = vmatprep.mubr.f32.mxu0 0.0
  %1760 = vmatmul.mubr.f32.gmra.mrb[0].mxu0 %v1680
  %v1761 = vpop.f32.mrb[0].mxu0
  %v1762 = vadd.f32 0.0, %v1761
  %v1763 = vpop.f32.mrb[0].mxu0
  %1764 = vmatprep.mubr.f32.mxu0 0.0
  %1765 = vmatmul.mubr.f32.gmra.mrb[0].mxu0 %v1683
  %v1766 = vpop.f32.mrb[0].mxu0
  %v1767 = vadd.f32 0.0, %v1766
  %v1768 = vpop.f32.mrb[0].mxu0
  %1769 = vdwg.mxu0
  %v1770 = vadd.f32 %v1656, %v1752
  %v1771 = vadd.f32 %v1657, %v1757
  %v1772 = vadd.f32 %v1658, %v1762
  %v1773 = vadd.f32 %v1659, %v1767
  %v1774 = vld [vmem:[%s1024 + $0xa] sm:$0xff]
  %v1775 = vld [vmem:[%s1024 + $0x12] sm:$0xff]
  %v1776 = vld [vmem:[%s1024 + $0x1a] sm:$0xff]
  %v1777 = vld [vmem:[%s1024 + $0x22] sm:$0xff]
  %s1778 = scalar_lea.vmem %s6, 384
  %v1779 = vld [vmem:[%s1778] sm:$0xff]
  %v1780 = vld [vmem:[%s1778 + $0x8] sm:$0xff]
  %v1781 = vld [vmem:[%s1778 + $0x10] sm:$0xff]
  %v1782 = vld [vmem:[%s1778 + $0x18] sm:$0xff]
  %v1783 = vld [vmem:[%s1778 + $0x20] sm:$0xff]
  %v1784 = vld [vmem:[%s1778 + $0x28] sm:$0xff]
  %v1785 = vld [vmem:[%s1778 + $0x30] sm:$0xff]
  %v1786 = vld [vmem:[%s1778 + $0x38] sm:$0xff]
  %v1788 = vsel %vm990, %v1774, 0
  %v1791 = vsel %vm990, %v1775, 0
  %v1794 = vsel %vm990, %v1776, 0
  %v1797 = vsel %vm990, %v1777, 0
  %1799 = vmatprep.subr.mxu0 0.0
  %1800 = vmatpush1.msra.mxu0 %v1779
  %1801 = vmatprep.subr.mxu0 0.0
  %1802 = vmatpush1.msra.mxu0 %v1780
  %1803 = vmatprep.subr.mxu0 0.0
  %1804 = vmatpush1.msra.mxu0 %v1781
  %1805 = vmatprep.subr.mxu0 0.0
  %1806 = vmatpush1.msra.mxu0 %v1782
  %1807 = vmatprep.subr.mxu0 0.0
  %1808 = vmatpush1.msra.mxu0 %v1783
  %1809 = vmatprep.subr.mxu0 0.0
  %1810 = vmatpush1.msra.mxu0 %v1784
  %1811 = vmatprep.subr.mxu0 0.0
  %1812 = vmatpush1.msra.mxu0 %v1785
  %1813 = vmatprep.subr.mxu0 0.0
  %1814 = vmatpush1.msra.mxu0 %v1786
  %1815 = vmatprep.subr.mxu0 0.0
  %1816 = vmatpush1.msra.mxu0 0.0
  %1817 = vmatprep.subr.mxu0 0.0
  %1818 = vmatpush1.msra.mxu0 0.0
  %1819 = vmatprep.subr.mxu0 0.0
  %1820 = vmatpush1.msra.mxu0 0.0
  %1821 = vmatprep.subr.mxu0 0.0
  %1822 = vmatpush1.msra.mxu0 0.0
  %1823 = vmatprep.subr.mxu0 0.0
  %1824 = vmatpush1.msra.mxu0 0.0
  %1825 = vmatprep.subr.mxu0 0.0
  %1826 = vmatpush1.msra.mxu0 0.0
  %1827 = vmatprep.subr.mxu0 0.0
  %1828 = vmatpush1.msra.mxu0 0.0
  %1829 = vmatprep.subr.mxu0 0.0
  %1830 = vmatpush1.msra.mxu0 0.0
  %1831 = vmatprep.subr.mxu0 0.0
  %1832 = vmatpush1.msra.mxu0 0.0
  %1833 = vmatprep.subr.mxu0 0.0
  %1834 = vmatpush1.msra.mxu0 0.0
  %1835 = vmatprep.subr.mxu0 0.0
  %1836 = vmatpush1.msra.mxu0 0.0
  %1837 = vmatprep.subr.mxu0 0.0
  %1838 = vmatpush1.msra.mxu0 0.0
  %1839 = vmatprep.subr.mxu0 0.0
  %1840 = vmatpush1.msra.mxu0 0.0
  %1841 = vmatprep.subr.mxu0 0.0
  %1842 = vmatpush1.msra.mxu0 0.0
  %1843 = vmatprep.subr.mxu0 0.0
  %1844 = vmatpush1.msra.mxu0 0.0
  %1845 = vmatprep.subr.mxu0 0.0
  %1846 = vmatpush1.msra.mxu0 0.0
  %1847 = vmatprep.subr.mxu0 0.0
  %1848 = vmatpush1.msra.mxu0 0.0
  %1849 = vmatprep.subr.mxu0 0.0
  %1850 = vmatpush1.msra.mxu0 0.0
  %1851 = vmatprep.subr.mxu0 0.0
  %1852 = vmatpush1.msra.mxu0 0.0
  %1853 = vmatprep.subr.mxu0 0.0
  %1854 = vmatpush1.msra.mxu0 0.0
  %1855 = vmatprep.subr.mxu0 0.0
  %1856 = vmatpush1.msra.mxu0 0.0
  %1857 = vmatprep.subr.mxu0 0.0
  %1858 = vmatpush1.msra.mxu0 0.0
  %1859 = vmatprep.subr.mxu0 0.0
  %1860 = vmatpush1.msra.mxu0 0.0
  %1861 = vmatprep.subr.mxu0 0.0
  %1862 = vmatpush1.msra.mxu0 0.0
  %1863 = vmatprep.mubr.f32.mxu0 0.0
  %1864 = vmatmul.mubr.f32.gmra.mrb[0].mxu0 %v1788
  %v1865 = vpop.f32.mrb[0].mxu0
  %v1866 = vadd.f32 0.0, %v1865
  %v1867 = vpop.f32.mrb[0].mxu0
  %1868 = vmatprep.mubr.f32.mxu0 0.0
  %1869 = vmatmul.mubr.f32.gmra.mrb[0].mxu0 %v1791
  %v1870 = vpop.f32.mrb[0].mxu0
  %v1871 = vadd.f32 0.0, %v1870
  %v1872 = vpop.f32.mrb[0].mxu0
  %1873 = vmatprep.mubr.f32.mxu0 0.0
  %1874 = vmatmul.mubr.f32.gmra.mrb[0].mxu0 %v1794
  %v1875 = vpop.f32.mrb[0].mxu0
  %v1876 = vadd.f32 0.0, %v1875
  %v1877 = vpop.f32.mrb[0].mxu0
  %1878 = vmatprep.mubr.f32.mxu0 0.0
  %1879 = vmatmul.mubr.f32.gmra.mrb[0].mxu0 %v1797
  %v1880 = vpop.f32.mrb[0].mxu0
  %v1881 = vadd.f32 0.0, %v1880
  %v1882 = vpop.f32.mrb[0].mxu0
  %1883 = vdwg.mxu0
  %v1884 = vadd.f32 %v1770, %v1866
  %v1885 = vadd.f32 %v1771, %v1871
  %v1886 = vadd.f32 %v1772, %v1876
  %v1887 = vadd.f32 %v1773, %v1881
  %v1888 = vld [vmem:[#allocation2 + $0xc] sm:$0xff]
  %v1889 = vld [vmem:[#allocation2 + $0x14] sm:$0xff]
  %v1890 = vld [vmem:[#allocation2 + $0x1c] sm:$0xff]
  %v1891 = vld [vmem:[#allocation2 + $0x24] sm:$0xff]
  %v1892 = vmul.f32 %v1888, %v1411
  %v1893 = vmul.f32 %v1889, %v1416
  %v1894 = vmul.f32 %v1890, %v1421
  %v1895 = vmul.f32 %v1891, %v1426
  %s1896 = scalar_lea.vmem %s6, 448
  %v1897 = vld [vmem:[%s1896] sm:$0xff]
  %v1898 = vld [vmem:[%s1896 + $0x8] sm:$0xff]
  %v1899 = vld [vmem:[%s1896 + $0x10] sm:$0xff]
  %v1900 = vld [vmem:[%s1896 + $0x18] sm:$0xff]
  %v1901 = vld [vmem:[%s1896 + $0x20] sm:$0xff]
  %v1902 = vld [vmem:[%s1896 + $0x28] sm:$0xff]
  %v1903 = vld [vmem:[%s1896 + $0x30] sm:$0xff]
  %v1904 = vld [vmem:[%s1896 + $0x38] sm:$0xff]
  %v1906 = vsel %vm990, %v1892, 0
  %v1909 = vsel %vm990, %v1893, 0
  %v1912 = vsel %vm990, %v1894, 0
  %v1915 = vsel %vm990, %v1895, 0
  %1917 = vmatprep.subr.mxu0 0.0
  %1918 = vmatpush1.msra.mxu0 %v1897
  %1919 = vmatprep.subr.mxu0 0.0
  %1920 = vmatpush1.msra.mxu0 %v1898
  %1921 = vmatprep.subr.mxu0 0.0
  %1922 = vmatpush1.msra.mxu0 %v1899
  %1923 = vmatprep.subr.mxu0 0.0
  %1924 = vmatpush1.msra.mxu0 %v1900
  %1925 = vmatprep.subr.mxu0 0.0
  %1926 = vmatpush1.msra.mxu0 %v1901
  %1927 = vmatprep.subr.mxu0 0.0
  %1928 = vmatpush1.msra.mxu0 %v1902
  %1929 = vmatprep.subr.mxu0 0.0
  %1930 = vmatpush1.msra.mxu0 %v1903
  %1931 = vmatprep.subr.mxu0 0.0
  %1932 = vmatpush1.msra.mxu0 %v1904
  %1933 = vmatprep.subr.mxu0 0.0
  %1934 = vmatpush1.msra.mxu0 0.0
  %1935 = vmatprep.subr.mxu0 0.0
  %1936 = vmatpush1.msra.mxu0 0.0
  %1937 = vmatprep.subr.mxu0 0.0
  %1938 = vmatpush1.msra.mxu0 0.0
  %1939 = vmatprep.subr.mxu0 0.0
  %1940 = vmatpush1.msra.mxu0 0.0
  %1941 = vmatprep.subr.mxu0 0.0
  %1942 = vmatpush1.msra.mxu0 0.0
  %1943 = vmatprep.subr.mxu0 0.0
  %1944 = vmatpush1.msra.mxu0 0.0
  %1945 = vmatprep.subr.mxu0 0.0
  %1946 = vmatpush1.msra.mxu0 0.0
  %1947 = vmatprep.subr.mxu0 0.0
  %1948 = vmatpush1.msra.mxu0 0.0
  %1949 = vmatprep.subr.mxu0 0.0
  %1950 = vmatpush1.msra.mxu0 0.0
  %1951 = vmatprep.subr.mxu0 0.0
  %1952 = vmatpush1.msra.mxu0 0.0
  %1953 = vmatprep.subr.mxu0 0.0
  %1954 = vmatpush1.msra.mxu0 0.0
  %1955 = vmatprep.subr.mxu0 0.0
  %1956 = vmatpush1.msra.mxu0 0.0
  %1957 = vmatprep.subr.mxu0 0.0
  %1958 = vmatpush1.msra.mxu0 0.0
  %1959 = vmatprep.subr.mxu0 0.0
  %1960 = vmatpush1.msra.mxu0 0.0
  %1961 = vmatprep.subr.mxu0 0.0
  %1962 = vmatpush1.msra.mxu0 0.0
  %1963 = vmatprep.subr.mxu0 0.0
  %1964 = vmatpush1.msra.mxu0 0.0
  %1965 = vmatprep.subr.mxu0 0.0
  %1966 = vmatpush1.msra.mxu0 0.0
  %1967 = vmatprep.subr.mxu0 0.0
  %1968 = vmatpush1.msra.mxu0 0.0
  %1969 = vmatprep.subr.mxu0 0.0
  %1970 = vmatpush1.msra.mxu0 0.0
  %1971 = vmatprep.subr.mxu0 0.0
  %1972 = vmatpush1.msra.mxu0 0.0
  %1973 = vmatprep.subr.mxu0 0.0
  %1974 = vmatpush1.msra.mxu0 0.0
  %1975 = vmatprep.subr.mxu0 0.0
  %1976 = vmatpush1.msra.mxu0 0.0
  %1977 = vmatprep.subr.mxu0 0.0
  %1978 = vmatpush1.msra.mxu0 0.0
  %1979 = vmatprep.subr.mxu0 0.0
  %1980 = vmatpush1.msra.mxu0 0.0
  %1981 = vmatprep.mubr.f32.mxu0 0.0
  %1982 = vmatmul.mubr.f32.gmra.mrb[0].mxu0 %v1906
  %v1983 = vpop.f32.mrb[0].mxu0
  %v1984 = vadd.f32 0.0, %v1983
  %v1985 = vpop.f32.mrb[0].mxu0
  %1986 = vmatprep.mubr.f32.mxu0 0.0
  %1987 = vmatmul.mubr.f32.gmra.mrb[0].mxu0 %v1909
  %v1988 = vpop.f32.mrb[0].mxu0
  %v1989 = vadd.f32 0.0, %v1988
  %v1990 = vpop.f32.mrb[0].mxu0
  %1991 = vmatprep.mubr.f32.mxu0 0.0
  %1992 = vmatmul.mubr.f32.gmra.mrb[0].mxu0 %v1912
  %v1993 = vpop.f32.mrb[0].mxu0
  %v1994 = vadd.f32 0.0, %v1993
  %v1995 = vpop.f32.mrb[0].mxu0
  %1996 = vmatprep.mubr.f32.mxu0 0.0
  %1997 = vmatmul.mubr.f32.gmra.mrb[0].mxu0 %v1915
  %v1998 = vpop.f32.mrb[0].mxu0
  %v1999 = vadd.f32 0.0, %v1998
  %v2000 = vpop.f32.mrb[0].mxu0
  %2001 = vdwg.mxu0
  %v2002 = vadd.f32 %v1884, %v1984
  %v2003 = vadd.f32 %v1885, %v1989
  %v2004 = vadd.f32 %v1886, %v1994
  %v2005 = vadd.f32 %v1887, %v1999
  %v2006 = vld [vmem:[%s1034 + $0x8] sm:$0xff]
  %v2007 = vld [vmem:[%s1034 + $0x10] sm:$0xff]
  %v2008 = vld [vmem:[%s1034 + $0x18] sm:$0xff]
  %v2009 = vld [vmem:[%s1034 + $0x20] sm:$0xff]
  %v2010 = vmul.f32 %v2006, %v1050
  %v2011 = vmul.f32 %v2007, %v1055
  %v2012 = vmul.f32 %v2008, %v1060
  %v2013 = vmul.f32 %v2009, %v1065
  %s2014 = scalar_lea.vmem %s6, 512
  %v2015 = vld [vmem:[%s2014] sm:$0xff]
  %v2016 = vld [vmem:[%s2014 + $0x8] sm:$0xff]
  %v2017 = vld [vmem:[%s2014 + $0x10] sm:$0xff]
  %v2018 = vld [vmem:[%s2014 + $0x18] sm:$0xff]
  %v2019 = vld [vmem:[%s2014 + $0x20] sm:$0xff]
  %v2020 = vld [vmem:[%s2014 + $0x28] sm:$0xff]
  %v2021 = vld [vmem:[%s2014 + $0x30] sm:$0xff]
  %v2022 = vld [vmem:[%s2014 + $0x38] sm:$0xff]
  %v2024 = vsel %vm990, %v2010, 0
  %v2027 = vsel %vm990, %v2011, 0
  %v2030 = vsel %vm990, %v2012, 0
  %v2033 = vsel %vm990, %v2013, 0
  %2035 = vmatprep.subr.mxu0 0.0
  %2036 = vmatpush1.msra.mxu0 %v2015
  %2037 = vmatprep.subr.mxu0 0.0
  %2038 = vmatpush1.msra.mxu0 %v2016
  %2039 = vmatprep.subr.mxu0 0.0
  %2040 = vmatpush1.msra.mxu0 %v2017
  %2041 = vmatprep.subr.mxu0 0.0
  %2042 = vmatpush1.msra.mxu0 %v2018
  %2043 = vmatprep.subr.mxu0 0.0
  %2044 = vmatpush1.msra.mxu0 %v2019
  %2045 = vmatprep.subr.mxu0 0.0
  %2046 = vmatpush1.msra.mxu0 %v2020
  %2047 = vmatprep.subr.mxu0 0.0
  %2048 = vmatpush1.msra.mxu0 %v2021
  %2049 = vmatprep.subr.mxu0 0.0
  %2050 = vmatpush1.msra.mxu0 %v2022
  %2051 = vmatprep.subr.mxu0 0.0
  %2052 = vmatpush1.msra.mxu0 0.0
  %2053 = vmatprep.subr.mxu0 0.0
  %2054 = vmatpush1.msra.mxu0 0.0
  %2055 = vmatprep.subr.mxu0 0.0
  %2056 = vmatpush1.msra.mxu0 0.0
  %2057 = vmatprep.subr.mxu0 0.0
  %2058 = vmatpush1.msra.mxu0 0.0
  %2059 = vmatprep.subr.mxu0 0.0
  %2060 = vmatpush1.msra.mxu0 0.0
  %2061 = vmatprep.subr.mxu0 0.0
  %2062 = vmatpush1.msra.mxu0 0.0
  %2063 = vmatprep.subr.mxu0 0.0
  %2064 = vmatpush1.msra.mxu0 0.0
  %2065 = vmatprep.subr.mxu0 0.0
  %2066 = vmatpush1.msra.mxu0 0.0
  %2067 = vmatprep.subr.mxu0 0.0
  %2068 = vmatpush1.msra.mxu0 0.0
  %2069 = vmatprep.subr.mxu0 0.0
  %2070 = vmatpush1.msra.mxu0 0.0
  %2071 = vmatprep.subr.mxu0 0.0
  %2072 = vmatpush1.msra.mxu0 0.0
  %2073 = vmatprep.subr.mxu0 0.0
  %2074 = vmatpush1.msra.mxu0 0.0
  %2075 = vmatprep.subr.mxu0 0.0
  %2076 = vmatpush1.msra.mxu0 0.0
  %2077 = vmatprep.subr.mxu0 0.0
  %2078 = vmatpush1.msra.mxu0 0.0
  %2079 = vmatprep.subr.mxu0 0.0
  %2080 = vmatpush1.msra.mxu0 0.0
  %2081 = vmatprep.subr.mxu0 0.0
  %2082 = vmatpush1.msra.mxu0 0.0
  %2083 = vmatprep.subr.mxu0 0.0
  %2084 = vmatpush1.msra.mxu0 0.0
  %2085 = vmatprep.subr.mxu0 0.0
  %2086 = vmatpush1.msra.mxu0 0.0
  %2087 = vmatprep.subr.mxu0 0.0
  %2088 = vmatpush1.msra.mxu0 0.0
  %2089 = vmatprep.subr.mxu0 0.0
  %2090 = vmatpush1.msra.mxu0 0.0
  %2091 = vmatprep.subr.mxu0 0.0
  %2092 = vmatpush1.msra.mxu0 0.0
  %2093 = vmatprep.subr.mxu0 0.0
  %2094 = vmatpush1.msra.mxu0 0.0
  %2095 = vmatprep.subr.mxu0 0.0
  %2096 = vmatpush1.msra.mxu0 0.0
  %2097 = vmatprep.subr.mxu0 0.0
  %2098 = vmatpush1.msra.mxu0 0.0
  %2099 = vmatprep.mubr.f32.mxu0 0.0
  %2100 = vmatmul.mubr.f32.gmra.mrb[0].mxu0 %v2024
  %v2101 = vpop.f32.mrb[0].mxu0
  %v2102 = vadd.f32 0.0, %v2101
  %v2103 = vpop.f32.mrb[0].mxu0
  %2104 = vmatprep.mubr.f32.mxu0 0.0
  %2105 = vmatmul.mubr.f32.gmra.mrb[0].mxu0 %v2027
  %v2106 = vpop.f32.mrb[0].mxu0
  %v2107 = vadd.f32 0.0, %v2106
  %v2108 = vpop.f32.mrb[0].mxu0
  %2109 = vmatprep.mubr.f32.mxu0 0.0
  %2110 = vmatmul.mubr.f32.gmra.mrb[0].mxu0 %v2030
  %v2111 = vpop.f32.mrb[0].mxu0
  %v2112 = vadd.f32 0.0, %v2111
  %v2113 = vpop.f32.mrb[0].mxu0
  %2114 = vmatprep.mubr.f32.mxu0 0.0
  %2115 = vmatmul.mubr.f32.gmra.mrb[0].mxu0 %v2033
  %v2116 = vpop.f32.mrb[0].mxu0
  %v2117 = vadd.f32 0.0, %v2116
  %v2118 = vpop.f32.mrb[0].mxu0
  %2119 = vdwg.mxu0
  %v2120 = vadd.f32 %v2002, %v2102
  %v2121 = vadd.f32 %v2003, %v2107
  %v2122 = vadd.f32 %v2004, %v2112
  %v2123 = vadd.f32 %v2005, %v2117
  %v2124 = vld [vmem:[%s1029 + $0xa] sm:$0xff]
  %v2125 = vld [vmem:[%s1029 + $0x12] sm:$0xff]
  %v2126 = vld [vmem:[%s1029 + $0x1a] sm:$0xff]
  %v2127 = vld [vmem:[%s1029 + $0x22] sm:$0xff]
  %s2128 = scalar_lea.vmem %s6, 576
  %v2129 = vld [vmem:[%s2128] sm:$0xff]
  %v2130 = vld [vmem:[%s2128 + $0x8] sm:$0xff]
  %v2131 = vld [vmem:[%s2128 + $0x10] sm:$0xff]
  %v2132 = vld [vmem:[%s2128 + $0x18] sm:$0xff]
  %v2133 = vld [vmem:[%s2128 + $0x20] sm:$0xff]
  %v2134 = vld [vmem:[%s2128 + $0x28] sm:$0xff]
  %v2135 = vld [vmem:[%s2128 + $0x30] sm:$0xff]
  %v2136 = vld [vmem:[%s2128 + $0x38] sm:$0xff]
  %v2138 = vsel %vm990, %v2124, 0
  %v2141 = vsel %vm990, %v2125, 0
  %v2144 = vsel %vm990, %v2126, 0
  %v2147 = vsel %vm990, %v2127, 0
  %2149 = vmatprep.subr.mxu0 0.0
  %2150 = vmatpush1.msra.mxu0 %v2129
  %2151 = vmatprep.subr.mxu0 0.0
  %2152 = vmatpush1.msra.mxu0 %v2130
  %2153 = vmatprep.subr.mxu0 0.0
  %2154 = vmatpush1.msra.mxu0 %v2131
  %2155 = vmatprep.subr.mxu0 0.0
  %2156 = vmatpush1.msra.mxu0 %v2132
  %2157 = vmatprep.subr.mxu0 0.0
  %2158 = vmatpush1.msra.mxu0 %v2133
  %2159 = vmatprep.subr.mxu0 0.0
  %2160 = vmatpush1.msra.mxu0 %v2134
  %2161 = vmatprep.subr.mxu0 0.0
  %2162 = vmatpush1.msra.mxu0 %v2135
  %2163 = vmatprep.subr.mxu0 0.0
  %2164 = vmatpush1.msra.mxu0 %v2136
  %2165 = vmatprep.subr.mxu0 0.0
  %2166 = vmatpush1.msra.mxu0 0.0
  %2167 = vmatprep.subr.mxu0 0.0
  %2168 = vmatpush1.msra.mxu0 0.0
  %2169 = vmatprep.subr.mxu0 0.0
  %2170 = vmatpush1.msra.mxu0 0.0
  %2171 = vmatprep.subr.mxu0 0.0
  %2172 = vmatpush1.msra.mxu0 0.0
  %2173 = vmatprep.subr.mxu0 0.0
  %2174 = vmatpush1.msra.mxu0 0.0
  %2175 = vmatprep.subr.mxu0 0.0
  %2176 = vmatpush1.msra.mxu0 0.0
  %2177 = vmatprep.subr.mxu0 0.0
  %2178 = vmatpush1.msra.mxu0 0.0
  %2179 = vmatprep.subr.mxu0 0.0
  %2180 = vmatpush1.msra.mxu0 0.0
  %2181 = vmatprep.subr.mxu0 0.0
  %2182 = vmatpush1.msra.mxu0 0.0
  %2183 = vmatprep.subr.mxu0 0.0
  %2184 = vmatpush1.msra.mxu0 0.0
  %2185 = vmatprep.subr.mxu0 0.0
  %2186 = vmatpush1.msra.mxu0 0.0
  %2187 = vmatprep.subr.mxu0 0.0
  %2188 = vmatpush1.msra.mxu0 0.0
  %2189 = vmatprep.subr.mxu0 0.0
  %2190 = vmatpush1.msra.mxu0 0.0
  %2191 = vmatprep.subr.mxu0 0.0
  %2192 = vmatpush1.msra.mxu0 0.0
  %2193 = vmatprep.subr.mxu0 0.0
  %2194 = vmatpush1.msra.mxu0 0.0
  %2195 = vmatprep.subr.mxu0 0.0
  %2196 = vmatpush1.msra.mxu0 0.0
  %2197 = vmatprep.subr.mxu0 0.0
  %2198 = vmatpush1.msra.mxu0 0.0
  %2199 = vmatprep.subr.mxu0 0.0
  %2200 = vmatpush1.msra.mxu0 0.0
  %2201 = vmatprep.subr.mxu0 0.0
  %2202 = vmatpush1.msra.mxu0 0.0
  %2203 = vmatprep.subr.mxu0 0.0
  %2204 = vmatpush1.msra.mxu0 0.0
  %2205 = vmatprep.subr.mxu0 0.0
  %2206 = vmatpush1.msra.mxu0 0.0
  %2207 = vmatprep.subr.mxu0 0.0
  %2208 = vmatpush1.msra.mxu0 0.0
  %2209 = vmatprep.subr.mxu0 0.0
  %2210 = vmatpush1.msra.mxu0 0.0
  %2211 = vmatprep.subr.mxu0 0.0
  %2212 = vmatpush1.msra.mxu0 0.0
  %2213 = vmatprep.mubr.f32.mxu0 0.0
  %2214 = vmatmul.mubr.f32.gmra.mrb[0].mxu0 %v2138
  %v2215 = vpop.f32.mrb[0].mxu0
  %v2216 = vadd.f32 0.0, %v2215
  %v2217 = vpop.f32.mrb[0].mxu0
  %2218 = vmatprep.mubr.f32.mxu0 0.0
  %2219 = vmatmul.mubr.f32.gmra.mrb[0].mxu0 %v2141
  %v2220 = vpop.f32.mrb[0].mxu0
  %v2221 = vadd.f32 0.0, %v2220
  %v2222 = vpop.f32.mrb[0].mxu0
  %2223 = vmatprep.mubr.f32.mxu0 0.0
  %2224 = vmatmul.mubr.f32.gmra.mrb[0].mxu0 %v2144
  %v2225 = vpop.f32.mrb[0].mxu0
  %v2226 = vadd.f32 0.0, %v2225
  %v2227 = vpop.f32.mrb[0].mxu0
  %2228 = vmatprep.mubr.f32.mxu0 0.0
  %2229 = vmatmul.mubr.f32.gmra.mrb[0].mxu0 %v2147
  %v2230 = vpop.f32.mrb[0].mxu0
  %v2231 = vadd.f32 0.0, %v2230
  %v2232 = vpop.f32.mrb[0].mxu0
  %2233 = vdwg.mxu0
  %v2234 = vadd.f32 %v2120, %v2216
  %v2235 = vadd.f32 %v2121, %v2221
  %v2236 = vadd.f32 %v2122, %v2226
  %v2237 = vadd.f32 %v2123, %v2231
  %v2238 = vld [vmem:[%s1034 + $0xa] sm:$0xff]
  %v2239 = vld [vmem:[%s1034 + $0x12] sm:$0xff]
  %v2240 = vld [vmem:[%s1034 + $0x1a] sm:$0xff]
  %v2241 = vld [vmem:[%s1034 + $0x22] sm:$0xff]
  %s2242 = scalar_lea.vmem %s6, 640
  %v2243 = vld [vmem:[%s2242] sm:$0xff]
  %v2244 = vld [vmem:[%s2242 + $0x8] sm:$0xff]
  %v2245 = vld [vmem:[%s2242 + $0x10] sm:$0xff]
  %v2246 = vld [vmem:[%s2242 + $0x18] sm:$0xff]
  %v2247 = vld [vmem:[%s2242 + $0x20] sm:$0xff]
  %v2248 = vld [vmem:[%s2242 + $0x28] sm:$0xff]
  %v2249 = vld [vmem:[%s2242 + $0x30] sm:$0xff]
  %v2250 = vld [vmem:[%s2242 + $0x38] sm:$0xff]
  %v2252 = vsel %vm990, %v2238, 0
  %v2255 = vsel %vm990, %v2239, 0
  %v2258 = vsel %vm990, %v2240, 0
  %v2261 = vsel %vm990, %v2241, 0
  %2263 = vmatprep.subr.mxu0 0.0
  %2264 = vmatpush1.msra.mxu0 %v2243
  %2265 = vmatprep.subr.mxu0 0.0
  %2266 = vmatpush1.msra.mxu0 %v2244
  %2267 = vmatprep.subr.mxu0 0.0
  %2268 = vmatpush1.msra.mxu0 %v2245
  %2269 = vmatprep.subr.mxu0 0.0
  %2270 = vmatpush1.msra.mxu0 %v2246
  %2271 = vmatprep.subr.mxu0 0.0
  %2272 = vmatpush1.msra.mxu0 %v2247
  %2273 = vmatprep.subr.mxu0 0.0
  %2274 = vmatpush1.msra.mxu0 %v2248
  %2275 = vmatprep.subr.mxu0 0.0
  %2276 = vmatpush1.msra.mxu0 %v2249
  %2277 = vmatprep.subr.mxu0 0.0
  %2278 = vmatpush1.msra.mxu0 %v2250
  %2279 = vmatprep.subr.mxu0 0.0
  %2280 = vmatpush1.msra.mxu0 0.0
  %2281 = vmatprep.subr.mxu0 0.0
  %2282 = vmatpush1.msra.mxu0 0.0
  %2283 = vmatprep.subr.mxu0 0.0
  %2284 = vmatpush1.msra.mxu0 0.0
  %2285 = vmatprep.subr.mxu0 0.0
  %2286 = vmatpush1.msra.mxu0 0.0
  %2287 = vmatprep.subr.mxu0 0.0
  %2288 = vmatpush1.msra.mxu0 0.0
  %2289 = vmatprep.subr.mxu0 0.0
  %2290 = vmatpush1.msra.mxu0 0.0
  %2291 = vmatprep.subr.mxu0 0.0
  %2292 = vmatpush1.msra.mxu0 0.0
  %2293 = vmatprep.subr.mxu0 0.0
  %2294 = vmatpush1.msra.mxu0 0.0
  %2295 = vmatprep.subr.mxu0 0.0
  %2296 = vmatpush1.msra.mxu0 0.0
  %2297 = vmatprep.subr.mxu0 0.0
  %2298 = vmatpush1.msra.mxu0 0.0
  %2299 = vmatprep.subr.mxu0 0.0
  %2300 = vmatpush1.msra.mxu0 0.0
  %2301 = vmatprep.subr.mxu0 0.0
  %2302 = vmatpush1.msra.mxu0 0.0
  %2303 = vmatprep.subr.mxu0 0.0
  %2304 = vmatpush1.msra.mxu0 0.0
  %2305 = vmatprep.subr.mxu0 0.0
  %2306 = vmatpush1.msra.mxu0 0.0
  %2307 = vmatprep.subr.mxu0 0.0
  %2308 = vmatpush1.msra.mxu0 0.0
  %2309 = vmatprep.subr.mxu0 0.0
  %2310 = vmatpush1.msra.mxu0 0.0
  %2311 = vmatprep.subr.mxu0 0.0
  %2312 = vmatpush1.msra.mxu0 0.0
  %2313 = vmatprep.subr.mxu0 0.0
  %2314 = vmatpush1.msra.mxu0 0.0
  %2315 = vmatprep.subr.mxu0 0.0
  %2316 = vmatpush1.msra.mxu0 0.0
  %2317 = vmatprep.subr.mxu0 0.0
  %2318 = vmatpush1.msra.mxu0 0.0
  %2319 = vmatprep.subr.mxu0 0.0
  %2320 = vmatpush1.msra.mxu0 0.0
  %2321 = vmatprep.subr.mxu0 0.0
  %2322 = vmatpush1.msra.mxu0 0.0
  %2323 = vmatprep.subr.mxu0 0.0
  %2324 = vmatpush1.msra.mxu0 0.0
  %2325 = vmatprep.subr.mxu0 0.0
  %2326 = vmatpush1.msra.mxu0 0.0
  %2327 = vmatprep.mubr.f32.mxu0 0.0
  %2328 = vmatmul.mubr.f32.gmra.mrb[0].mxu0 %v2252
  %v2329 = vpop.f32.mrb[0].mxu0
  %v2330 = vadd.f32 0.0, %v2329
  %v2331 = vpop.f32.mrb[0].mxu0
  %2332 = vmatprep.mubr.f32.mxu0 0.0
  %2333 = vmatmul.mubr.f32.gmra.mrb[0].mxu0 %v2255
  %v2334 = vpop.f32.mrb[0].mxu0
  %v2335 = vadd.f32 0.0, %v2334
  %v2336 = vpop.f32.mrb[0].mxu0
  %2337 = vmatprep.mubr.f32.mxu0 0.0
  %2338 = vmatmul.mubr.f32.gmra.mrb[0].mxu0 %v2258
  %v2339 = vpop.f32.mrb[0].mxu0
  %v2340 = vadd.f32 0.0, %v2339
  %v2341 = vpop.f32.mrb[0].mxu0
  %2342 = vmatprep.mubr.f32.mxu0 0.0
  %2343 = vmatmul.mubr.f32.gmra.mrb[0].mxu0 %v2261
  %v2344 = vpop.f32.mrb[0].mxu0
  %v2345 = vadd.f32 0.0, %v2344
  %v2346 = vpop.f32.mrb[0].mxu0
  %2347 = vdwg.mxu0
  %v2348 = vadd.f32 %v2234, %v2330
  %v2349 = vadd.f32 %v2235, %v2335
  %v2350 = vadd.f32 %v2236, %v2340
  %v2351 = vadd.f32 %v2237, %v2345
  %v2352 = vld [vmem:[%s1029 + $0xc] sm:$0xff]
  %v2353 = vld [vmem:[%s1029 + $0x14] sm:$0xff]
  %v2354 = vld [vmem:[%s1029 + $0x1c] sm:$0xff]
  %v2355 = vld [vmem:[%s1029 + $0x24] sm:$0xff]
  %v2356 = vmul.f32 %v2352, %v1411
  %v2357 = vmul.f32 %v2353, %v1416
  %v2358 = vmul.f32 %v2354, %v1421
  %v2359 = vmul.f32 %v2355, %v1426
  %s2360 = scalar_lea.vmem %s6, 704
  %v2361 = vld [vmem:[%s2360] sm:$0xff]
  %v2362 = vld [vmem:[%s2360 + $0x8] sm:$0xff]
  %v2363 = vld [vmem:[%s2360 + $0x10] sm:$0xff]
  %v2364 = vld [vmem:[%s2360 + $0x18] sm:$0xff]
  %v2365 = vld [vmem:[%s2360 + $0x20] sm:$0xff]
  %v2366 = vld [vmem:[%s2360 + $0x28] sm:$0xff]
  %v2367 = vld [vmem:[%s2360 + $0x30] sm:$0xff]
  %v2368 = vld [vmem:[%s2360 + $0x38] sm:$0xff]
  %v2370 = vsel %vm990, %v2356, 0
  %v2373 = vsel %vm990, %v2357, 0
  %v2376 = vsel %vm990, %v2358, 0
  %v2379 = vsel %vm990, %v2359, 0
  %2381 = vmatprep.subr.mxu0 0.0
  %2382 = vmatpush1.msra.mxu0 %v2361
  %2383 = vmatprep.subr.mxu0 0.0
  %2384 = vmatpush1.msra.mxu0 %v2362
  %2385 = vmatprep.subr.mxu0 0.0
  %2386 = vmatpush1.msra.mxu0 %v2363
  %2387 = vmatprep.subr.mxu0 0.0
  %2388 = vmatpush1.msra.mxu0 %v2364
  %2389 = vmatprep.subr.mxu0 0.0
  %2390 = vmatpush1.msra.mxu0 %v2365
  %2391 = vmatprep.subr.mxu0 0.0
  %2392 = vmatpush1.msra.mxu0 %v2366
  %2393 = vmatprep.subr.mxu0 0.0
  %2394 = vmatpush1.msra.mxu0 %v2367
  %2395 = vmatprep.subr.mxu0 0.0
  %2396 = vmatpush1.msra.mxu0 %v2368
  %2397 = vmatprep.subr.mxu0 0.0
  %2398 = vmatpush1.msra.mxu0 0.0
  %2399 = vmatprep.subr.mxu0 0.0
  %2400 = vmatpush1.msra.mxu0 0.0
  %2401 = vmatprep.subr.mxu0 0.0
  %2402 = vmatpush1.msra.mxu0 0.0
  %2403 = vmatprep.subr.mxu0 0.0
  %2404 = vmatpush1.msra.mxu0 0.0
  %2405 = vmatprep.subr.mxu0 0.0
  %2406 = vmatpush1.msra.mxu0 0.0
  %2407 = vmatprep.subr.mxu0 0.0
  %2408 = vmatpush1.msra.mxu0 0.0
  %2409 = vmatprep.subr.mxu0 0.0
  %2410 = vmatpush1.msra.mxu0 0.0
  %2411 = vmatprep.subr.mxu0 0.0
  %2412 = vmatpush1.msra.mxu0 0.0
  %2413 = vmatprep.subr.mxu0 0.0
  %2414 = vmatpush1.msra.mxu0 0.0
  %2415 = vmatprep.subr.mxu0 0.0
  %2416 = vmatpush1.msra.mxu0 0.0
  %2417 = vmatprep.subr.mxu0 0.0
  %2418 = vmatpush1.msra.mxu0 0.0
  %2419 = vmatprep.subr.mxu0 0.0
  %2420 = vmatpush1.msra.mxu0 0.0
  %2421 = vmatprep.subr.mxu0 0.0
  %2422 = vmatpush1.msra.mxu0 0.0
  %2423 = vmatprep.subr.mxu0 0.0
  %2424 = vmatpush1.msra.mxu0 0.0
  %2425 = vmatprep.subr.mxu0 0.0
  %2426 = vmatpush1.msra.mxu0 0.0
  %2427 = vmatprep.subr.mxu0 0.0
  %2428 = vmatpush1.msra.mxu0 0.0
  %2429 = vmatprep.subr.mxu0 0.0
  %2430 = vmatpush1.msra.mxu0 0.0
  %2431 = vmatprep.subr.mxu0 0.0
  %2432 = vmatpush1.msra.mxu0 0.0
  %2433 = vmatprep.subr.mxu0 0.0
  %2434 = vmatpush1.msra.mxu0 0.0
  %2435 = vmatprep.subr.mxu0 0.0
  %2436 = vmatpush1.msra.mxu0 0.0
  %2437 = vmatprep.subr.mxu0 0.0
  %2438 = vmatpush1.msra.mxu0 0.0
  %2439 = vmatprep.subr.mxu0 0.0
  %2440 = vmatpush1.msra.mxu0 0.0
  %2441 = vmatprep.subr.mxu0 0.0
  %2442 = vmatpush1.msra.mxu0 0.0
  %2443 = vmatprep.subr.mxu0 0.0
  %2444 = vmatpush1.msra.mxu0 0.0
  %2445 = vmatprep.mubr.f32.mxu0 0.0
  %2446 = vmatmul.mubr.f32.gmra.mrb[0].mxu0 %v2370
  %v2447 = vpop.f32.mrb[0].mxu0
  %v2448 = vadd.f32 0.0, %v2447
  %v2449 = vpop.f32.mrb[0].mxu0
  %2450 = vmatprep.mubr.f32.mxu0 0.0
  %2451 = vmatmul.mubr.f32.gmra.mrb[0].mxu0 %v2373
  %v2452 = vpop.f32.mrb[0].mxu0
  %v2453 = vadd.f32 0.0, %v2452
  %v2454 = vpop.f32.mrb[0].mxu0
  %2455 = vmatprep.mubr.f32.mxu0 0.0
  %2456 = vmatmul.mubr.f32.gmra.mrb[0].mxu0 %v2376
  %v2457 = vpop.f32.mrb[0].mxu0
  %v2458 = vadd.f32 0.0, %v2457
  %v2459 = vpop.f32.mrb[0].mxu0
  %2460 = vmatprep.mubr.f32.mxu0 0.0
  %2461 = vmatmul.mubr.f32.gmra.mrb[0].mxu0 %v2379
  %v2462 = vpop.f32.mrb[0].mxu0
  %v2463 = vadd.f32 0.0, %v2462
  %v2464 = vpop.f32.mrb[0].mxu0
  %2465 = vdwg.mxu0
  %v2466 = vadd.f32 %v2348, %v2448
  %v2467 = vadd.f32 %v2349, %v2453
  %v2468 = vadd.f32 %v2350, %v2458
  %v2469 = vadd.f32 %v2351, %v2463
  %v2470 = vld [vmem:[%s1024 + $0x10] sm:$0xff]
  %v2471 = vld [vmem:[%s1024 + $0x18] sm:$0xff]
  %v2472 = vld [vmem:[%s1024 + $0x20] sm:$0xff]
  %v2473 = vld [vmem:[%s1024 + $0x28] sm:$0xff]
  %v2474 = vmul.f32 %v2470, %v1050
  %v2475 = vmul.f32 %v2471, %v1055
  %v2476 = vmul.f32 %v2472, %v1060
  %v2477 = vmul.f32 %v2473, %v1065
  %s2478 = scalar_lea.vmem %s6, 768
  %v2479 = vld [vmem:[%s2478] sm:$0xff]
  %v2480 = vld [vmem:[%s2478 + $0x8] sm:$0xff]
  %v2481 = vld [vmem:[%s2478 + $0x10] sm:$0xff]
  %v2482 = vld [vmem:[%s2478 + $0x18] sm:$0xff]
  %v2483 = vld [vmem:[%s2478 + $0x20] sm:$0xff]
  %v2484 = vld [vmem:[%s2478 + $0x28] sm:$0xff]
  %v2485 = vld [vmem:[%s2478 + $0x30] sm:$0xff]
  %v2486 = vld [vmem:[%s2478 + $0x38] sm:$0xff]
  %v2488 = vsel %vm990, %v2474, 0
  %v2491 = vsel %vm990, %v2475, 0
  %v2494 = vsel %vm990, %v2476, 0
  %v2497 = vsel %vm990, %v2477, 0
  %2499 = vmatprep.subr.mxu0 0.0
  %2500 = vmatpush1.msra.mxu0 %v2479
  %2501 = vmatprep.subr.mxu0 0.0
  %2502 = vmatpush1.msra.mxu0 %v2480
  %2503 = vmatprep.subr.mxu0 0.0
  %2504 = vmatpush1.msra.mxu0 %v2481
  %2505 = vmatprep.subr.mxu0 0.0
  %2506 = vmatpush1.msra.mxu0 %v2482
  %2507 = vmatprep.subr.mxu0 0.0
  %2508 = vmatpush1.msra.mxu0 %v2483
  %2509 = vmatprep.subr.mxu0 0.0
  %2510 = vmatpush1.msra.mxu0 %v2484
  %2511 = vmatprep.subr.mxu0 0.0
  %2512 = vmatpush1.msra.mxu0 %v2485
  %2513 = vmatprep.subr.mxu0 0.0
  %2514 = vmatpush1.msra.mxu0 %v2486
  %2515 = vmatprep.subr.mxu0 0.0
  %2516 = vmatpush1.msra.mxu0 0.0
  %2517 = vmatprep.subr.mxu0 0.0
  %2518 = vmatpush1.msra.mxu0 0.0
  %2519 = vmatprep.subr.mxu0 0.0
  %2520 = vmatpush1.msra.mxu0 0.0
  %2521 = vmatprep.subr.mxu0 0.0
  %2522 = vmatpush1.msra.mxu0 0.0
  %2523 = vmatprep.subr.mxu0 0.0
  %2524 = vmatpush1.msra.mxu0 0.0
  %2525 = vmatprep.subr.mxu0 0.0
  %2526 = vmatpush1.msra.mxu0 0.0
  %2527 = vmatprep.subr.mxu0 0.0
  %2528 = vmatpush1.msra.mxu0 0.0
  %2529 = vmatprep.subr.mxu0 0.0
  %2530 = vmatpush1.msra.mxu0 0.0
  %2531 = vmatprep.subr.mxu0 0.0
  %2532 = vmatpush1.msra.mxu0 0.0
  %2533 = vmatprep.subr.mxu0 0.0
  %2534 = vmatpush1.msra.mxu0 0.0
  %2535 = vmatprep.subr.mxu0 0.0
  %2536 = vmatpush1.msra.mxu0 0.0
  %2537 = vmatprep.subr.mxu0 0.0
  %2538 = vmatpush1.msra.mxu0 0.0
  %2539 = vmatprep.subr.mxu0 0.0
  %2540 = vmatpush1.msra.mxu0 0.0
  %2541 = vmatprep.subr.mxu0 0.0
  %2542 = vmatpush1.msra.mxu0 0.0
  %2543 = vmatprep.subr.mxu0 0.0
  %2544 = vmatpush1.msra.mxu0 0.0
  %2545 = vmatprep.subr.mxu0 0.0
  %2546 = vmatpush1.msra.mxu0 0.0
  %2547 = vmatprep.subr.mxu0 0.0
  %2548 = vmatpush1.msra.mxu0 0.0
  %2549 = vmatprep.subr.mxu0 0.0
  %2550 = vmatpush1.msra.mxu0 0.0
  %2551 = vmatprep.subr.mxu0 0.0
  %2552 = vmatpush1.msra.mxu0 0.0
  %2553 = vmatprep.subr.mxu0 0.0
  %2554 = vmatpush1.msra.mxu0 0.0
  %2555 = vmatprep.subr.mxu0 0.0
  %2556 = vmatpush1.msra.mxu0 0.0
  %2557 = vmatprep.subr.mxu0 0.0
  %2558 = vmatpush1.msra.mxu0 0.0
  %2559 = vmatprep.subr.mxu0 0.0
  %2560 = vmatpush1.msra.mxu0 0.0
  %2561 = vmatprep.subr.mxu0 0.0
  %2562 = vmatpush1.msra.mxu0 0.0
  %2563 = vmatprep.mubr.f32.mxu0 0.0
  %2564 = vmatmul.mubr.f32.gmra.mrb[0].mxu0 %v2488
  %v2565 = vpop.f32.mrb[0].mxu0
  %v2566 = vadd.f32 0.0, %v2565
  %v2567 = vpop.f32.mrb[0].mxu0
  %2568 = vmatprep.mubr.f32.mxu0 0.0
  %2569 = vmatmul.mubr.f32.gmra.mrb[0].mxu0 %v2491
  %v2570 = vpop.f32.mrb[0].mxu0
  %v2571 = vadd.f32 0.0, %v2570
  %v2572 = vpop.f32.mrb[0].mxu0
  %2573 = vmatprep.mubr.f32.mxu0 0.0
  %2574 = vmatmul.mubr.f32.gmra.mrb[0].mxu0 %v2494
  %v2575 = vpop.f32.mrb[0].mxu0
  %v2576 = vadd.f32 0.0, %v2575
  %v2577 = vpop.f32.mrb[0].mxu0
  %2578 = vmatprep.mubr.f32.mxu0 0.0
  %2579 = vmatmul.mubr.f32.gmra.mrb[0].mxu0 %v2497
  %v2580 = vpop.f32.mrb[0].mxu0
  %v2581 = vadd.f32 0.0, %v2580
  %v2582 = vpop.f32.mrb[0].mxu0
  %2583 = vdwg.mxu0
  %v2584 = vadd.f32 %v2466, %v2566
  %v2585 = vadd.f32 %v2467, %v2571
  %v2586 = vadd.f32 %v2468, %v2576
  %v2587 = vadd.f32 %v2469, %v2581
  %v2588 = vld [vmem:[#allocation2 + $0x12] sm:$0xff]
  %v2589 = vld [vmem:[#allocation2 + $0x1a] sm:$0xff]
  %v2590 = vld [vmem:[#allocation2 + $0x22] sm:$0xff]
  %v2591 = vld [vmem:[#allocation2 + $0x2a] sm:$0xff]
  %s2592 = scalar_lea.vmem %s6, 832
  %v2593 = vld [vmem:[%s2592] sm:$0xff]
  %v2594 = vld [vmem:[%s2592 + $0x8] sm:$0xff]
  %v2595 = vld [vmem:[%s2592 + $0x10] sm:$0xff]
  %v2596 = vld [vmem:[%s2592 + $0x18] sm:$0xff]
  %v2597 = vld [vmem:[%s2592 + $0x20] sm:$0xff]
  %v2598 = vld [vmem:[%s2592 + $0x28] sm:$0xff]
  %v2599 = vld [vmem:[%s2592 + $0x30] sm:$0xff]
  %v2600 = vld [vmem:[%s2592 + $0x38] sm:$0xff]
  %v2602 = vsel %vm990, %v2588, 0
  %v2605 = vsel %vm990, %v2589, 0
  %v2608 = vsel %vm990, %v2590, 0
  %v2611 = vsel %vm990, %v2591, 0
  %2613 = vmatprep.subr.mxu0 0.0
  %2614 = vmatpush1.msra.mxu0 %v2593
  %2615 = vmatprep.subr.mxu0 0.0
  %2616 = vmatpush1.msra.mxu0 %v2594
  %2617 = vmatprep.subr.mxu0 0.0
  %2618 = vmatpush1.msra.mxu0 %v2595
  %2619 = vmatprep.subr.mxu0 0.0
  %2620 = vmatpush1.msra.mxu0 %v2596
  %2621 = vmatprep.subr.mxu0 0.0
  %2622 = vmatpush1.msra.mxu0 %v2597
  %2623 = vmatprep.subr.mxu0 0.0
  %2624 = vmatpush1.msra.mxu0 %v2598
  %2625 = vmatprep.subr.mxu0 0.0
  %2626 = vmatpush1.msra.mxu0 %v2599
  %2627 = vmatprep.subr.mxu0 0.0
  %2628 = vmatpush1.msra.mxu0 %v2600
  %2629 = vmatprep.subr.mxu0 0.0
  %2630 = vmatpush1.msra.mxu0 0.0
  %2631 = vmatprep.subr.mxu0 0.0
  %2632 = vmatpush1.msra.mxu0 0.0
  %2633 = vmatprep.subr.mxu0 0.0
  %2634 = vmatpush1.msra.mxu0 0.0
  %2635 = vmatprep.subr.mxu0 0.0
  %2636 = vmatpush1.msra.mxu0 0.0
  %2637 = vmatprep.subr.mxu0 0.0
  %2638 = vmatpush1.msra.mxu0 0.0
  %2639 = vmatprep.subr.mxu0 0.0
  %2640 = vmatpush1.msra.mxu0 0.0
  %2641 = vmatprep.subr.mxu0 0.0
  %2642 = vmatpush1.msra.mxu0 0.0
  %2643 = vmatprep.subr.mxu0 0.0
  %2644 = vmatpush1.msra.mxu0 0.0
  %2645 = vmatprep.subr.mxu0 0.0
  %2646 = vmatpush1.msra.mxu0 0.0
  %2647 = vmatprep.subr.mxu0 0.0
  %2648 = vmatpush1.msra.mxu0 0.0
  %2649 = vmatprep.subr.mxu0 0.0
  %2650 = vmatpush1.msra.mxu0 0.0
  %2651 = vmatprep.subr.mxu0 0.0
  %2652 = vmatpush1.msra.mxu0 0.0
  %2653 = vmatprep.subr.mxu0 0.0
  %2654 = vmatpush1.msra.mxu0 0.0
  %2655 = vmatprep.subr.mxu0 0.0
  %2656 = vmatpush1.msra.mxu0 0.0
  %2657 = vmatprep.subr.mxu0 0.0
  %2658 = vmatpush1.msra.mxu0 0.0
  %2659 = vmatprep.subr.mxu0 0.0
  %2660 = vmatpush1.msra.mxu0 0.0
  %2661 = vmatprep.subr.mxu0 0.0
  %2662 = vmatpush1.msra.mxu0 0.0
  %2663 = vmatprep.subr.mxu0 0.0
  %2664 = vmatpush1.msra.mxu0 0.0
  %2665 = vmatprep.subr.mxu0 0.0
  %2666 = vmatpush1.msra.mxu0 0.0
  %2667 = vmatprep.subr.mxu0 0.0
  %2668 = vmatpush1.msra.mxu0 0.0
  %2669 = vmatprep.subr.mxu0 0.0
  %2670 = vmatpush1.msra.mxu0 0.0
  %2671 = vmatprep.subr.mxu0 0.0
  %2672 = vmatpush1.msra.mxu0 0.0
  %2673 = vmatprep.subr.mxu0 0.0
  %2674 = vmatpush1.msra.mxu0 0.0
  %2675 = vmatprep.subr.mxu0 0.0
  %2676 = vmatpush1.msra.mxu0 0.0
  %2677 = vmatprep.mubr.f32.mxu0 0.0
  %2678 = vmatmul.mubr.f32.gmra.mrb[0].mxu0 %v2602
  %v2679 = vpop.f32.mrb[0].mxu0
  %v2680 = vadd.f32 0.0, %v2679
  %v2681 = vpop.f32.mrb[0].mxu0
  %2682 = vmatprep.mubr.f32.mxu0 0.0
  %2683 = vmatmul.mubr.f32.gmra.mrb[0].mxu0 %v2605
  %v2684 = vpop.f32.mrb[0].mxu0
  %v2685 = vadd.f32 0.0, %v2684
  %v2686 = vpop.f32.mrb[0].mxu0
  %2687 = vmatprep.mubr.f32.mxu0 0.0
  %2688 = vmatmul.mubr.f32.gmra.mrb[0].mxu0 %v2608
  %v2689 = vpop.f32.mrb[0].mxu0
  %v2690 = vadd.f32 0.0, %v2689
  %v2691 = vpop.f32.mrb[0].mxu0
  %2692 = vmatprep.mubr.f32.mxu0 0.0
  %2693 = vmatmul.mubr.f32.gmra.mrb[0].mxu0 %v2611
  %v2694 = vpop.f32.mrb[0].mxu0
  %v2695 = vadd.f32 0.0, %v2694
  %v2696 = vpop.f32.mrb[0].mxu0
  %2697 = vdwg.mxu0
  %v2698 = vadd.f32 %v2584, %v2680
  %v2699 = vadd.f32 %v2585, %v2685
  %v2700 = vadd.f32 %v2586, %v2690
  %v2701 = vadd.f32 %v2587, %v2695
  %v2702 = vld [vmem:[%s1024 + $0x12] sm:$0xff]
  %v2703 = vld [vmem:[%s1024 + $0x1a] sm:$0xff]
  %v2704 = vld [vmem:[%s1024 + $0x22] sm:$0xff]
  %v2705 = vld [vmem:[%s1024 + $0x2a] sm:$0xff]
  %s2706 = scalar_lea.vmem %s6, 896
  %v2707 = vld [vmem:[%s2706] sm:$0xff]
  %v2708 = vld [vmem:[%s2706 + $0x8] sm:$0xff]
  %v2709 = vld [vmem:[%s2706 + $0x10] sm:$0xff]
  %v2710 = vld [vmem:[%s2706 + $0x18] sm:$0xff]
  %v2711 = vld [vmem:[%s2706 + $0x20] sm:$0xff]
  %v2712 = vld [vmem:[%s2706 + $0x28] sm:$0xff]
  %v2713 = vld [vmem:[%s2706 + $0x30] sm:$0xff]
  %v2714 = vld [vmem:[%s2706 + $0x38] sm:$0xff]
  %v2716 = vsel %vm990, %v2702, 0
  %v2719 = vsel %vm990, %v2703, 0
  %v2722 = vsel %vm990, %v2704, 0
  %v2725 = vsel %vm990, %v2705, 0
  %2727 = vmatprep.subr.mxu0 0.0
  %2728 = vmatpush1.msra.mxu0 %v2707
  %2729 = vmatprep.subr.mxu0 0.0
  %2730 = vmatpush1.msra.mxu0 %v2708
  %2731 = vmatprep.subr.mxu0 0.0
  %2732 = vmatpush1.msra.mxu0 %v2709
  %2733 = vmatprep.subr.mxu0 0.0
  %2734 = vmatpush1.msra.mxu0 %v2710
  %2735 = vmatprep.subr.mxu0 0.0
  %2736 = vmatpush1.msra.mxu0 %v2711
  %2737 = vmatprep.subr.mxu0 0.0
  %2738 = vmatpush1.msra.mxu0 %v2712
  %2739 = vmatprep.subr.mxu0 0.0
  %2740 = vmatpush1.msra.mxu0 %v2713
  %2741 = vmatprep.subr.mxu0 0.0
  %2742 = vmatpush1.msra.mxu0 %v2714
  %2743 = vmatprep.subr.mxu0 0.0
  %2744 = vmatpush1.msra.mxu0 0.0
  %2745 = vmatprep.subr.mxu0 0.0
  %2746 = vmatpush1.msra.mxu0 0.0
  %2747 = vmatprep.subr.mxu0 0.0
  %2748 = vmatpush1.msra.mxu0 0.0
  %2749 = vmatprep.subr.mxu0 0.0
  %2750 = vmatpush1.msra.mxu0 0.0
  %2751 = vmatprep.subr.mxu0 0.0
  %2752 = vmatpush1.msra.mxu0 0.0
  %2753 = vmatprep.subr.mxu0 0.0
  %2754 = vmatpush1.msra.mxu0 0.0
  %2755 = vmatprep.subr.mxu0 0.0
  %2756 = vmatpush1.msra.mxu0 0.0
  %2757 = vmatprep.subr.mxu0 0.0
  %2758 = vmatpush1.msra.mxu0 0.0
  %2759 = vmatprep.subr.mxu0 0.0
  %2760 = vmatpush1.msra.mxu0 0.0
  %2761 = vmatprep.subr.mxu0 0.0
  %2762 = vmatpush1.msra.mxu0 0.0
  %2763 = vmatprep.subr.mxu0 0.0
  %2764 = vmatpush1.msra.mxu0 0.0
  %2765 = vmatprep.subr.mxu0 0.0
  %2766 = vmatpush1.msra.mxu0 0.0
  %2767 = vmatprep.subr.mxu0 0.0
  %2768 = vmatpush1.msra.mxu0 0.0
  %2769 = vmatprep.subr.mxu0 0.0
  %2770 = vmatpush1.msra.mxu0 0.0
  %2771 = vmatprep.subr.mxu0 0.0
  %2772 = vmatpush1.msra.mxu0 0.0
  %2773 = vmatprep.subr.mxu0 0.0
  %2774 = vmatpush1.msra.mxu0 0.0
  %2775 = vmatprep.subr.mxu0 0.0
  %2776 = vmatpush1.msra.mxu0 0.0
  %2777 = vmatprep.subr.mxu0 0.0
  %2778 = vmatpush1.msra.mxu0 0.0
  %2779 = vmatprep.subr.mxu0 0.0
  %2780 = vmatpush1.msra.mxu0 0.0
  %2781 = vmatprep.subr.mxu0 0.0
  %2782 = vmatpush1.msra.mxu0 0.0
  %2783 = vmatprep.subr.mxu0 0.0
  %2784 = vmatpush1.msra.mxu0 0.0
  %2785 = vmatprep.subr.mxu0 0.0
  %2786 = vmatpush1.msra.mxu0 0.0
  %2787 = vmatprep.subr.mxu0 0.0
  %2788 = vmatpush1.msra.mxu0 0.0
  %2789 = vmatprep.subr.mxu0 0.0
  %2790 = vmatpush1.msra.mxu0 0.0
  %2791 = vmatprep.mubr.f32.mxu0 0.0
  %2792 = vmatmul.mubr.f32.gmra.mrb[0].mxu0 %v2716
  %v2793 = vpop.f32.mrb[0].mxu0
  %v2794 = vadd.f32 0.0, %v2793
  %v2795 = vpop.f32.mrb[0].mxu0
  %2796 = vmatprep.mubr.f32.mxu0 0.0
  %2797 = vmatmul.mubr.f32.gmra.mrb[0].mxu0 %v2719
  %v2798 = vpop.f32.mrb[0].mxu0
  %v2799 = vadd.f32 0.0, %v2798
  %v2800 = vpop.f32.mrb[0].mxu0
  %2801 = vmatprep.mubr.f32.mxu0 0.0
  %2802 = vmatmul.mubr.f32.gmra.mrb[0].mxu0 %v2722
  %v2803 = vpop.f32.mrb[0].mxu0
  %v2804 = vadd.f32 0.0, %v2803
  %v2805 = vpop.f32.mrb[0].mxu0
  %2806 = vmatprep.mubr.f32.mxu0 0.0
  %2807 = vmatmul.mubr.f32.gmra.mrb[0].mxu0 %v2725
  %v2808 = vpop.f32.mrb[0].mxu0
  %v2809 = vadd.f32 0.0, %v2808
  %v2810 = vpop.f32.mrb[0].mxu0
  %2811 = vdwg.mxu0
  %v2812 = vadd.f32 %v2698, %v2794
  %v2813 = vadd.f32 %v2699, %v2799
  %v2814 = vadd.f32 %v2700, %v2804
  %v2815 = vadd.f32 %v2701, %v2809
  %v2816 = vld [vmem:[#allocation2 + $0x14] sm:$0xff]
  %v2817 = vld [vmem:[#allocation2 + $0x1c] sm:$0xff]
  %v2818 = vld [vmem:[#allocation2 + $0x24] sm:$0xff]
  %v2819 = vld [vmem:[#allocation2 + $0x2c] sm:$0xff]
  %v2820 = vmul.f32 %v2816, %v1411
  %v2821 = vmul.f32 %v2817, %v1416
  %v2822 = vmul.f32 %v2818, %v1421
  %v2823 = vmul.f32 %v2819, %v1426
  %s2824 = scalar_lea.vmem %s6, 960
  %v2825 = vld [vmem:[%s2824] sm:$0xff]
  %v2826 = vld [vmem:[%s2824 + $0x8] sm:$0xff]
  %v2827 = vld [vmem:[%s2824 + $0x10] sm:$0xff]
  %v2828 = vld [vmem:[%s2824 + $0x18] sm:$0xff]
  %v2829 = vld [vmem:[%s2824 + $0x20] sm:$0xff]
  %v2830 = vld [vmem:[%s2824 + $0x28] sm:$0xff]
  %v2831 = vld [vmem:[%s2824 + $0x30] sm:$0xff]
  %v2832 = vld [vmem:[%s2824 + $0x38] sm:$0xff]
  %v2834 = vsel %vm990, %v2820, 0
  %v2837 = vsel %vm990, %v2821, 0
  %v2840 = vsel %vm990, %v2822, 0
  %v2843 = vsel %vm990, %v2823, 0
  %2845 = vmatprep.subr.mxu0 0.0
  %2846 = vmatpush1.msra.mxu0 %v2825
  %2847 = vmatprep.subr.mxu0 0.0
  %2848 = vmatpush1.msra.mxu0 %v2826
  %2849 = vmatprep.subr.mxu0 0.0
  %2850 = vmatpush1.msra.mxu0 %v2827
  %2851 = vmatprep.subr.mxu0 0.0
  %2852 = vmatpush1.msra.mxu0 %v2828
  %2853 = vmatprep.subr.mxu0 0.0
  %2854 = vmatpush1.msra.mxu0 %v2829
  %2855 = vmatprep.subr.mxu0 0.0
  %2856 = vmatpush1.msra.mxu0 %v2830
  %2857 = vmatprep.subr.mxu0 0.0
  %2858 = vmatpush1.msra.mxu0 %v2831
  %2859 = vmatprep.subr.mxu0 0.0
  %2860 = vmatpush1.msra.mxu0 %v2832
  %2861 = vmatprep.subr.mxu0 0.0
  %2862 = vmatpush1.msra.mxu0 0.0
  %2863 = vmatprep.subr.mxu0 0.0
  %2864 = vmatpush1.msra.mxu0 0.0
  %2865 = vmatprep.subr.mxu0 0.0
  %2866 = vmatpush1.msra.mxu0 0.0
  %2867 = vmatprep.subr.mxu0 0.0
  %2868 = vmatpush1.msra.mxu0 0.0
  %2869 = vmatprep.subr.mxu0 0.0
  %2870 = vmatpush1.msra.mxu0 0.0
  %2871 = vmatprep.subr.mxu0 0.0
  %2872 = vmatpush1.msra.mxu0 0.0
  %2873 = vmatprep.subr.mxu0 0.0
  %2874 = vmatpush1.msra.mxu0 0.0
  %2875 = vmatprep.subr.mxu0 0.0
  %2876 = vmatpush1.msra.mxu0 0.0
  %2877 = vmatprep.subr.mxu0 0.0
  %2878 = vmatpush1.msra.mxu0 0.0
  %2879 = vmatprep.subr.mxu0 0.0
  %2880 = vmatpush1.msra.mxu0 0.0
  %2881 = vmatprep.subr.mxu0 0.0
  %2882 = vmatpush1.msra.mxu0 0.0
  %2883 = vmatprep.subr.mxu0 0.0
  %2884 = vmatpush1.msra.mxu0 0.0
  %2885 = vmatprep.subr.mxu0 0.0
  %2886 = vmatpush1.msra.mxu0 0.0
  %2887 = vmatprep.subr.mxu0 0.0
  %2888 = vmatpush1.msra.mxu0 0.0
  %2889 = vmatprep.subr.mxu0 0.0
  %2890 = vmatpush1.msra.mxu0 0.0
  %2891 = vmatprep.subr.mxu0 0.0
  %2892 = vmatpush1.msra.mxu0 0.0
  %2893 = vmatprep.subr.mxu0 0.0
  %2894 = vmatpush1.msra.mxu0 0.0
  %2895 = vmatprep.subr.mxu0 0.0
  %2896 = vmatpush1.msra.mxu0 0.0
  %2897 = vmatprep.subr.mxu0 0.0
  %2898 = vmatpush1.msra.mxu0 0.0
  %2899 = vmatprep.subr.mxu0 0.0
  %2900 = vmatpush1.msra.mxu0 0.0
  %2901 = vmatprep.subr.mxu0 0.0
  %2902 = vmatpush1.msra.mxu0 0.0
  %2903 = vmatprep.subr.mxu0 0.0
  %2904 = vmatpush1.msra.mxu0 0.0
  %2905 = vmatprep.subr.mxu0 0.0
  %2906 = vmatpush1.msra.mxu0 0.0
  %2907 = vmatprep.subr.mxu0 0.0
  %2908 = vmatpush1.msra.mxu0 0.0
  %2909 = vmatprep.mubr.f32.mxu0 0.0
  %2910 = vmatmul.mubr.f32.gmra.mrb[0].mxu0 %v2834
  %v2911 = vpop.f32.mrb[0].mxu0
  %v2912 = vadd.f32 0.0, %v2911
  %v2913 = vpop.f32.mrb[0].mxu0
  %2914 = vmatprep.mubr.f32.mxu0 0.0
  %2915 = vmatmul.mubr.f32.gmra.mrb[0].mxu0 %v2837
  %v2916 = vpop.f32.mrb[0].mxu0
  %v2917 = vadd.f32 0.0, %v2916
  %v2918 = vpop.f32.mrb[0].mxu0
  %2919 = vmatprep.mubr.f32.mxu0 0.0
  %2920 = vmatmul.mubr.f32.gmra.mrb[0].mxu0 %v2840
  %v2921 = vpop.f32.mrb[0].mxu0
  %v2922 = vadd.f32 0.0, %v2921
  %v2923 = vpop.f32.mrb[0].mxu0
  %2924 = vmatprep.mubr.f32.mxu0 0.0
  %2925 = vmatmul.mubr.f32.gmra.mrb[0].mxu0 %v2843
  %v2926 = vpop.f32.mrb[0].mxu0
  %v2927 = vadd.f32 0.0, %v2926
  %v2928 = vpop.f32.mrb[0].mxu0
  %2929 = vdwg.mxu0
  %v2930 = vadd.f32 %v2812, %v2912
  %v2931 = vadd.f32 %v2813, %v2917
  %v2932 = vadd.f32 %v2814, %v2922
  %v2933 = vadd.f32 %v2815, %v2927
  %v2934 = vld [vmem:[%s7] sm:$0x1]
  %v2936 = vlaneseq
  %v2937 = vshrl.u32 %v2936, 7
  %v2938 = vsub.s32 0, %v2937
  %v2939 = vrot.slane %v2934, %v2938
  %v2941 = vadd.f32 %v2930, %v2939
  %v2942 = vadd.f32 %v2931, %v2939
  %v2943 = vadd.f32 %v2932, %v2939
  %v2944 = vadd.f32 %v2933, %v2939
  %v2945 = vmax.f32 %v2941, 0.0
  %v2946 = vmax.f32 %v2942, 0.0
  %v2947 = vmax.f32 %v2943, 0.0
  %v2948 = vmax.f32 %v2944, 0.0
  %2949 = vst [vmem:[#allocation3] sm:$0xff] %v2945
  %2950 = vst [vmem:[#allocation3 + $0x8] sm:$0xff] %v2946
  %2951 = vst [vmem:[#allocation3 + $0x10] sm:$0xff] %v2947
  %2952 = vst [vmem:[#allocation3 + $0x18] sm:$0xff] %v2948
  %v2953 = vld [vmem:[%s9] sm:$0x3]
  %v2954 = vld [vmem:[#allocation3] sm:$0x3]
  %s2955 = scalar_lea.vmem %s8, 1280
  %v2956 = vld [vmem:[%s2955] sm:$0xff]
  %v2957 = vld [vmem:[%s2955 + $0x8] sm:$0xff]
  %v2958 = vld [vmem:[%s2955 + $0x10] sm:$0xff]
  %v2959 = vld [vmem:[%s2955 + $0x18] sm:$0xff]
  %v2960 = vld [vmem:[%s2955 + $0x20] sm:$0xff]
  %v2961 = vld [vmem:[%s2955 + $0x28] sm:$0xff]
  %v2962 = vld [vmem:[%s2955 + $0x30] sm:$0xff]
  %v2963 = vld [vmem:[%s2955 + $0x38] sm:$0xff]
  %v2964 = vld [vmem:[%s2955 + $0x40] sm:$0xff]
  %v2965 = vld [vmem:[%s2955 + $0x48] sm:$0xff]
  %v2966 = vld [vmem:[%s2955 + $0x50] sm:$0xff]
  %v2967 = vld [vmem:[%s2955 + $0x58] sm:$0xff]
  %v2968 = vld [vmem:[%s2955 + $0x60] sm:$0xff]
  %v2969 = vld [vmem:[%s2955 + $0x68] sm:$0xff]
  %v2970 = vld [vmem:[%s2955 + $0x70] sm:$0xff]
  %v2971 = vld [vmem:[%s2955 + $0x78] sm:$0xff]
  %v2972 = vld [vmem:[%s2955 + $0x80] sm:$0xff]
  %v2973 = vld [vmem:[%s2955 + $0x88] sm:$0xff]
  %v2974 = vld [vmem:[%s2955 + $0x90] sm:$0xff]
  %v2975 = vld [vmem:[%s2955 + $0x98] sm:$0xff]
  %v2976 = vld [vmem:[%s2955 + $0xa0] sm:$0xff]
  %v2977 = vld [vmem:[%s2955 + $0xa8] sm:$0xff]
  %v2978 = vld [vmem:[%s2955 + $0xb0] sm:$0xff]
  %v2979 = vld [vmem:[%s2955 + $0xb8] sm:$0xff]
  %v2980 = vld [vmem:[%s2955 + $0xc0] sm:$0xff]
  %v2981 = vld [vmem:[%s2955 + $0xc8] sm:$0xff]
  %v2982 = vld [vmem:[%s2955 + $0xd0] sm:$0xff]
  %v2983 = vld [vmem:[%s2955 + $0xd8] sm:$0xff]
  %v2984 = vld [vmem:[%s2955 + $0xe0] sm:$0xff]
  %v2985 = vld [vmem:[%s2955 + $0xe8] sm:$0xff]
  %v2986 = vld [vmem:[%s2955 + $0xf0] sm:$0xff]
  %v2987 = vld [vmem:[%s2955 + $0xf8] sm:$0xff]
  %v2988 = vld [vmem:[#allocation3 + $0x2] sm:$0x3]
  %s2989 = scalar_lea.vmem %s8, 1536
  %v2990 = vld [vmem:[%s2989] sm:$0xff]
  %v2991 = vld [vmem:[%s2989 + $0x8] sm:$0xff]
  %v2992 = vld [vmem:[%s2989 + $0x10] sm:$0xff]
  %v2993 = vld [vmem:[%s2989 + $0x18] sm:$0xff]
  %v2994 = vld [vmem:[%s2989 + $0x20] sm:$0xff]
  %v2995 = vld [vmem:[%s2989 + $0x28] sm:$0xff]
  %v2996 = vld [vmem:[%s2989 + $0x30] sm:$0xff]
  %v2997 = vld [vmem:[%s2989 + $0x38] sm:$0xff]
  %v2998 = vld [vmem:[%s2989 + $0x40] sm:$0xff]
  %v2999 = vld [vmem:[%s2989 + $0x48] sm:$0xff]
  %v3000 = vld [vmem:[%s2989 + $0x50] sm:$0xff]
  %v3001 = vld [vmem:[%s2989 + $0x58] sm:$0xff]
  %v3002 = vld [vmem:[%s2989 + $0x60] sm:$0xff]
  %v3003 = vld [vmem:[%s2989 + $0x68] sm:$0xff]
  %v3004 = vld [vmem:[%s2989 + $0x70] sm:$0xff]
  %v3005 = vld [vmem:[%s2989 + $0x78] sm:$0xff]
  %v3006 = vld [vmem:[%s2989 + $0x80] sm:$0xff]
  %v3007 = vld [vmem:[%s2989 + $0x88] sm:$0xff]
  %v3008 = vld [vmem:[%s2989 + $0x90] sm:$0xff]
  %v3009 = vld [vmem:[%s2989 + $0x98] sm:$0xff]
  %v3010 = vld [vmem:[%s2989 + $0xa0] sm:$0xff]
  %v3011 = vld [vmem:[%s2989 + $0xa8] sm:$0xff]
  %v3012 = vld [vmem:[%s2989 + $0xb0] sm:$0xff]
  %v3013 = vld [vmem:[%s2989 + $0xb8] sm:$0xff]
  %v3014 = vld [vmem:[%s2989 + $0xc0] sm:$0xff]
  %v3015 = vld [vmem:[%s2989 + $0xc8] sm:$0xff]
  %v3016 = vld [vmem:[%s2989 + $0xd0] sm:$0xff]
  %v3017 = vld [vmem:[%s2989 + $0xd8] sm:$0xff]
  %v3018 = vld [vmem:[%s2989 + $0xe0] sm:$0xff]
  %v3019 = vld [vmem:[%s2989 + $0xe8] sm:$0xff]
  %v3020 = vld [vmem:[%s2989 + $0xf0] sm:$0xff]
  %v3021 = vld [vmem:[%s2989 + $0xf8] sm:$0xff]
  %3022 = vmatprep.subr.mxu0 %v2991
  %3023 = vmatpush1.msra.mxu0 %v2990
  %3024 = vmatprep.subr.mxu0 %v2993
  %3025 = vmatpush1.msra.mxu0 %v2992
  %3026 = vmatprep.subr.mxu0 %v2995
  %3027 = vmatpush1.msra.mxu0 %v2994
  %3028 = vmatprep.subr.mxu0 %v2997
  %3029 = vmatpush1.msra.mxu0 %v2996
  %3030 = vmatprep.subr.mxu0 %v2999
  %3031 = vmatpush1.msra.mxu0 %v2998
  %3032 = vmatprep.subr.mxu0 %v3001
  %3033 = vmatpush1.msra.mxu0 %v3000
  %3034 = vmatprep.subr.mxu0 %v3003
  %3035 = vmatpush1.msra.mxu0 %v3002
  %3036 = vmatprep.subr.mxu0 %v3005
  %3037 = vmatpush1.msra.mxu0 %v3004
  %3038 = vmatprep.subr.mxu0 %v3007
  %3039 = vmatpush1.msra.mxu0 %v3006
  %3040 = vmatprep.subr.mxu0 %v3009
  %3041 = vmatpush1.msra.mxu0 %v3008
  %3042 = vmatprep.subr.mxu0 %v3011
  %3043 = vmatpush1.msra.mxu0 %v3010
  %3044 = vmatprep.subr.mxu0 %v3013
  %3045 = vmatpush1.msra.mxu0 %v3012
  %3046 = vmatprep.subr.mxu0 %v3015
  %3047 = vmatpush1.msra.mxu0 %v3014
  %3048 = vmatprep.subr.mxu0 %v3017
  %3049 = vmatpush1.msra.mxu0 %v3016
  %3050 = vmatprep.subr.mxu0 %v3019
  %3051 = vmatpush1.msra.mxu0 %v3018
  %3052 = vmatprep.subr.mxu0 %v3021
  %3053 = vmatpush1.msra.mxu0 %v3020
  %3054 = vmatprep.subr.mxu0 0.0
  %3055 = vmatpush1.msra.mxu0 0.0
  %3056 = vmatprep.subr.mxu0 0.0
  %3057 = vmatpush1.msra.mxu0 0.0
  %3058 = vmatprep.subr.mxu0 0.0
  %3059 = vmatpush1.msra.mxu0 0.0
  %3060 = vmatprep.subr.mxu0 0.0
  %3061 = vmatpush1.msra.mxu0 0.0
  %3062 = vmatprep.subr.mxu0 0.0
  %3063 = vmatpush1.msra.mxu0 0.0
  %3064 = vmatprep.subr.mxu0 0.0
  %3065 = vmatpush1.msra.mxu0 0.0
  %3066 = vmatprep.subr.mxu0 0.0
  %3067 = vmatpush1.msra.mxu0 0.0
  %3068 = vmatprep.subr.mxu0 0.0
  %3069 = vmatpush1.msra.mxu0 0.0
  %3070 = vmatprep.subr.mxu0 0.0
  %3071 = vmatpush1.msra.mxu0 0.0
  %3072 = vmatprep.subr.mxu0 0.0
  %3073 = vmatpush1.msra.mxu0 0.0
  %3074 = vmatprep.subr.mxu0 0.0
  %3075 = vmatpush1.msra.mxu0 0.0
  %3076 = vmatprep.subr.mxu0 0.0
  %3077 = vmatpush1.msra.mxu0 0.0
  %3078 = vmatprep.subr.mxu0 0.0
  %3079 = vmatpush1.msra.mxu0 0.0
  %3080 = vmatprep.subr.mxu0 0.0
  %3081 = vmatpush1.msra.mxu0 0.0
  %3082 = vmatprep.subr.mxu0 0.0
  %3083 = vmatpush1.msra.mxu0 0.0
  %3084 = vmatprep.subr.mxu0 0.0
  %3085 = vmatpush1.msra.mxu0 0.0
  %3086 = vmatprep.mubr.f32.mxu0 0.0
  %3087 = vmatmul.mubr.f32.gmra.mrb[0].mxu0 %v2988
  %v3088 = vpop.f32.mrb[0].mxu0
  %v3089 = vadd.f32 0.0, %v3088
  %v3090 = vpop.f32.mrb[0].mxu0
  %v3091 = vadd.f32 0.0, %v3090
  %3092 = vdwg.mxu0
  %3093 = vmatprep.subr.mxu0 %v2957
  %3094 = vmatpush1.msra.mxu0 %v2956
  %3095 = vmatprep.subr.mxu0 %v2959
  %3096 = vmatpush1.msra.mxu0 %v2958
  %3097 = vmatprep.subr.mxu0 %v2961
  %3098 = vmatpush1.msra.mxu0 %v2960
  %3099 = vmatprep.subr.mxu0 %v2963
  %3100 = vmatpush1.msra.mxu0 %v2962
  %3101 = vmatprep.subr.mxu0 %v2965
  %3102 = vmatpush1.msra.mxu0 %v2964
  %3103 = vmatprep.subr.mxu0 %v2967
  %3104 = vmatpush1.msra.mxu0 %v2966
  %3105 = vmatprep.subr.mxu0 %v2969
  %3106 = vmatpush1.msra.mxu0 %v2968
  %3107 = vmatprep.subr.mxu0 %v2971
  %3108 = vmatpush1.msra.mxu0 %v2970
  %3109 = vmatprep.subr.mxu0 %v2973
  %3110 = vmatpush1.msra.mxu0 %v2972
  %3111 = vmatprep.subr.mxu0 %v2975
  %3112 = vmatpush1.msra.mxu0 %v2974
  %3113 = vmatprep.subr.mxu0 %v2977
  %3114 = vmatpush1.msra.mxu0 %v2976
  %3115 = vmatprep.subr.mxu0 %v2979
  %3116 = vmatpush1.msra.mxu0 %v2978
  %3117 = vmatprep.subr.mxu0 %v2981
  %3118 = vmatpush1.msra.mxu0 %v2980
  %3119 = vmatprep.subr.mxu0 %v2983
  %3120 = vmatpush1.msra.mxu0 %v2982
  %3121 = vmatprep.subr.mxu0 %v2985
  %3122 = vmatpush1.msra.mxu0 %v2984
  %3123 = vmatprep.subr.mxu0 %v2987
  %3124 = vmatpush1.msra.mxu0 %v2986
  %3125 = vmatprep.subr.mxu0 0.0
  %3126 = vmatpush1.msra.mxu0 0.0
  %3127 = vmatprep.subr.mxu0 0.0
  %3128 = vmatpush1.msra.mxu0 0.0
  %3129 = vmatprep.subr.mxu0 0.0
  %3130 = vmatpush1.msra.mxu0 0.0
  %3131 = vmatprep.subr.mxu0 0.0
  %3132 = vmatpush1.msra.mxu0 0.0
  %3133 = vmatprep.subr.mxu0 0.0
  %3134 = vmatpush1.msra.mxu0 0.0
  %3135 = vmatprep.subr.mxu0 0.0
  %3136 = vmatpush1.msra.mxu0 0.0
  %3137 = vmatprep.subr.mxu0 0.0
  %3138 = vmatpush1.msra.mxu0 0.0
  %3139 = vmatprep.subr.mxu0 0.0
  %3140 = vmatpush1.msra.mxu0 0.0
  %3141 = vmatprep.subr.mxu0 0.0
  %3142 = vmatpush1.msra.mxu0 0.0
  %3143 = vmatprep.subr.mxu0 0.0
  %3144 = vmatpush1.msra.mxu0 0.0
  %3145 = vmatprep.subr.mxu0 0.0
  %3146 = vmatpush1.msra.mxu0 0.0
  %3147 = vmatprep.subr.mxu0 0.0
  %3148 = vmatpush1.msra.mxu0 0.0
  %3149 = vmatprep.subr.mxu0 0.0
  %3150 = vmatpush1.msra.mxu0 0.0
  %3151 = vmatprep.subr.mxu0 0.0
  %3152 = vmatpush1.msra.mxu0 0.0
  %3153 = vmatprep.subr.mxu0 0.0
  %3154 = vmatpush1.msra.mxu0 0.0
  %3155 = vmatprep.subr.mxu0 0.0
  %3156 = vmatpush1.msra.mxu0 0.0
  %3157 = vmatprep.mubr.f32.mxu0 0.0
  %3158 = vmatmul.mubr.f32.gmra.mrb[0].mxu0 %v2954
  %v3159 = vpop.f32.mrb[0].mxu0
  %v3160 = vadd.f32 %v3089, %v3159
  %v3161 = vpop.f32.mrb[0].mxu0
  %v3162 = vadd.f32 %v3091, %v3161
  %3163 = vdwg.mxu0
  %v3164 = vld [vmem:[#allocation3 + $0x4] sm:$0x3]
  %s3165 = scalar_lea.vmem %s8, 1792
  %v3166 = vld [vmem:[%s3165] sm:$0xff]
  %v3167 = vld [vmem:[%s3165 + $0x8] sm:$0xff]
  %v3168 = vld [vmem:[%s3165 + $0x10] sm:$0xff]
  %v3169 = vld [vmem:[%s3165 + $0x18] sm:$0xff]
  %v3170 = vld [vmem:[%s3165 + $0x20] sm:$0xff]
  %v3171 = vld [vmem:[%s3165 + $0x28] sm:$0xff]
  %v3172 = vld [vmem:[%s3165 + $0x30] sm:$0xff]
  %v3173 = vld [vmem:[%s3165 + $0x38] sm:$0xff]
  %v3174 = vld [vmem:[%s3165 + $0x40] sm:$0xff]
  %v3175 = vld [vmem:[%s3165 + $0x48] sm:$0xff]
  %v3176 = vld [vmem:[%s3165 + $0x50] sm:$0xff]
  %v3177 = vld [vmem:[%s3165 + $0x58] sm:$0xff]
  %v3178 = vld [vmem:[%s3165 + $0x60] sm:$0xff]
  %v3179 = vld [vmem:[%s3165 + $0x68] sm:$0xff]
  %v3180 = vld [vmem:[%s3165 + $0x70] sm:$0xff]
  %v3181 = vld [vmem:[%s3165 + $0x78] sm:$0xff]
  %v3182 = vld [vmem:[%s3165 + $0x80] sm:$0xff]
  %v3183 = vld [vmem:[%s3165 + $0x88] sm:$0xff]
  %v3184 = vld [vmem:[%s3165 + $0x90] sm:$0xff]
  %v3185 = vld [vmem:[%s3165 + $0x98] sm:$0xff]
  %v3186 = vld [vmem:[%s3165 + $0xa0] sm:$0xff]
  %v3187 = vld [vmem:[%s3165 + $0xa8] sm:$0xff]
  %v3188 = vld [vmem:[%s3165 + $0xb0] sm:$0xff]
  %v3189 = vld [vmem:[%s3165 + $0xb8] sm:$0xff]
  %v3190 = vld [vmem:[%s3165 + $0xc0] sm:$0xff]
  %v3191 = vld [vmem:[%s3165 + $0xc8] sm:$0xff]
  %v3192 = vld [vmem:[%s3165 + $0xd0] sm:$0xff]
  %v3193 = vld [vmem:[%s3165 + $0xd8] sm:$0xff]
  %v3194 = vld [vmem:[%s3165 + $0xe0] sm:$0xff]
  %v3195 = vld [vmem:[%s3165 + $0xe8] sm:$0xff]
  %v3196 = vld [vmem:[%s3165 + $0xf0] sm:$0xff]
  %v3197 = vld [vmem:[%s3165 + $0xf8] sm:$0xff]
  %3198 = vmatprep.subr.mxu0 %v3167
  %3199 = vmatpush1.msra.mxu0 %v3166
  %3200 = vmatprep.subr.mxu0 %v3169
  %3201 = vmatpush1.msra.mxu0 %v3168
  %3202 = vmatprep.subr.mxu0 %v3171
  %3203 = vmatpush1.msra.mxu0 %v3170
  %3204 = vmatprep.subr.mxu0 %v3173
  %3205 = vmatpush1.msra.mxu0 %v3172
  %3206 = vmatprep.subr.mxu0 %v3175
  %3207 = vmatpush1.msra.mxu0 %v3174
  %3208 = vmatprep.subr.mxu0 %v3177
  %3209 = vmatpush1.msra.mxu0 %v3176
  %3210 = vmatprep.subr.mxu0 %v3179
  %3211 = vmatpush1.msra.mxu0 %v3178
  %3212 = vmatprep.subr.mxu0 %v3181
  %3213 = vmatpush1.msra.mxu0 %v3180
  %3214 = vmatprep.subr.mxu0 %v3183
  %3215 = vmatpush1.msra.mxu0 %v3182
  %3216 = vmatprep.subr.mxu0 %v3185
  %3217 = vmatpush1.msra.mxu0 %v3184
  %3218 = vmatprep.subr.mxu0 %v3187
  %3219 = vmatpush1.msra.mxu0 %v3186
  %3220 = vmatprep.subr.mxu0 %v3189
  %3221 = vmatpush1.msra.mxu0 %v3188
  %3222 = vmatprep.subr.mxu0 %v3191
  %3223 = vmatpush1.msra.mxu0 %v3190
  %3224 = vmatprep.subr.mxu0 %v3193
  %3225 = vmatpush1.msra.mxu0 %v3192
  %3226 = vmatprep.subr.mxu0 %v3195
  %3227 = vmatpush1.msra.mxu0 %v3194
  %3228 = vmatprep.subr.mxu0 %v3197
  %3229 = vmatpush1.msra.mxu0 %v3196
  %3230 = vmatprep.subr.mxu0 0.0
  %3231 = vmatpush1.msra.mxu0 0.0
  %3232 = vmatprep.subr.mxu0 0.0
  %3233 = vmatpush1.msra.mxu0 0.0
  %3234 = vmatprep.subr.mxu0 0.0
  %3235 = vmatpush1.msra.mxu0 0.0
  %3236 = vmatprep.subr.mxu0 0.0
  %3237 = vmatpush1.msra.mxu0 0.0
  %3238 = vmatprep.subr.mxu0 0.0
  %3239 = vmatpush1.msra.mxu0 0.0
  %3240 = vmatprep.subr.mxu0 0.0
  %3241 = vmatpush1.msra.mxu0 0.0
  %3242 = vmatprep.subr.mxu0 0.0
  %3243 = vmatpush1.msra.mxu0 0.0
  %3244 = vmatprep.subr.mxu0 0.0
  %3245 = vmatpush1.msra.mxu0 0.0
  %3246 = vmatprep.subr.mxu0 0.0
  %3247 = vmatpush1.msra.mxu0 0.0
  %3248 = vmatprep.subr.mxu0 0.0
  %3249 = vmatpush1.msra.mxu0 0.0
  %3250 = vmatprep.subr.mxu0 0.0
  %3251 = vmatpush1.msra.mxu0 0.0
  %3252 = vmatprep.subr.mxu0 0.0
  %3253 = vmatpush1.msra.mxu0 0.0
  %3254 = vmatprep.subr.mxu0 0.0
  %3255 = vmatpush1.msra.mxu0 0.0
  %3256 = vmatprep.subr.mxu0 0.0
  %3257 = vmatpush1.msra.mxu0 0.0
  %3258 = vmatprep.subr.mxu0 0.0
  %3259 = vmatpush1.msra.mxu0 0.0
  %3260 = vmatprep.subr.mxu0 0.0
  %3261 = vmatpush1.msra.mxu0 0.0
  %3262 = vmatprep.mubr.f32.mxu0 0.0
  %3263 = vmatmul.mubr.f32.gmra.mrb[0].mxu0 %v3164
  %v3264 = vpop.f32.mrb[0].mxu0
  %v3265 = vadd.f32 0.0, %v3264
  %v3266 = vpop.f32.mrb[0].mxu0
  %v3267 = vadd.f32 0.0, %v3266
  %3268 = vdwg.mxu0
  %v3269 = vadd.f32 %v3160, %v3265
  %v3270 = vadd.f32 %v3162, %v3267
  %v3271 = vld [vmem:[#allocation3 + $0x8] sm:$0x3]
  %s3272 = scalar_lea.vmem %s8, 2304
  %v3273 = vld [vmem:[%s3272] sm:$0xff]
  %v3274 = vld [vmem:[%s3272 + $0x8] sm:$0xff]
  %v3275 = vld [vmem:[%s3272 + $0x10] sm:$0xff]
  %v3276 = vld [vmem:[%s3272 + $0x18] sm:$0xff]
  %v3277 = vld [vmem:[%s3272 + $0x20] sm:$0xff]
  %v3278 = vld [vmem:[%s3272 + $0x28] sm:$0xff]
  %v3279 = vld [vmem:[%s3272 + $0x30] sm:$0xff]
  %v3280 = vld [vmem:[%s3272 + $0x38] sm:$0xff]
  %v3281 = vld [vmem:[%s3272 + $0x40] sm:$0xff]
  %v3282 = vld [vmem:[%s3272 + $0x48] sm:$0xff]
  %v3283 = vld [vmem:[%s3272 + $0x50] sm:$0xff]
  %v3284 = vld [vmem:[%s3272 + $0x58] sm:$0xff]
  %v3285 = vld [vmem:[%s3272 + $0x60] sm:$0xff]
  %v3286 = vld [vmem:[%s3272 + $0x68] sm:$0xff]
  %v3287 = vld [vmem:[%s3272 + $0x70] sm:$0xff]
  %v3288 = vld [vmem:[%s3272 + $0x78] sm:$0xff]
  %v3289 = vld [vmem:[%s3272 + $0x80] sm:$0xff]
  %v3290 = vld [vmem:[%s3272 + $0x88] sm:$0xff]
  %v3291 = vld [vmem:[%s3272 + $0x90] sm:$0xff]
  %v3292 = vld [vmem:[%s3272 + $0x98] sm:$0xff]
  %v3293 = vld [vmem:[%s3272 + $0xa0] sm:$0xff]
  %v3294 = vld [vmem:[%s3272 + $0xa8] sm:$0xff]
  %v3295 = vld [vmem:[%s3272 + $0xb0] sm:$0xff]
  %v3296 = vld [vmem:[%s3272 + $0xb8] sm:$0xff]
  %v3297 = vld [vmem:[%s3272 + $0xc0] sm:$0xff]
  %v3298 = vld [vmem:[%s3272 + $0xc8] sm:$0xff]
  %v3299 = vld [vmem:[%s3272 + $0xd0] sm:$0xff]
  %v3300 = vld [vmem:[%s3272 + $0xd8] sm:$0xff]
  %v3301 = vld [vmem:[%s3272 + $0xe0] sm:$0xff]
  %v3302 = vld [vmem:[%s3272 + $0xe8] sm:$0xff]
  %v3303 = vld [vmem:[%s3272 + $0xf0] sm:$0xff]
  %v3304 = vld [vmem:[%s3272 + $0xf8] sm:$0xff]
  %3305 = vmatprep.subr.mxu0 %v3274
  %3306 = vmatpush1.msra.mxu0 %v3273
  %3307 = vmatprep.subr.mxu0 %v3276
  %3308 = vmatpush1.msra.mxu0 %v3275
  %3309 = vmatprep.subr.mxu0 %v3278
  %3310 = vmatpush1.msra.mxu0 %v3277
  %3311 = vmatprep.subr.mxu0 %v3280
  %3312 = vmatpush1.msra.mxu0 %v3279
  %3313 = vmatprep.subr.mxu0 %v3282
  %3314 = vmatpush1.msra.mxu0 %v3281
  %3315 = vmatprep.subr.mxu0 %v3284
  %3316 = vmatpush1.msra.mxu0 %v3283
  %3317 = vmatprep.subr.mxu0 %v3286
  %3318 = vmatpush1.msra.mxu0 %v3285
  %3319 = vmatprep.subr.mxu0 %v3288
  %3320 = vmatpush1.msra.mxu0 %v3287
  %3321 = vmatprep.subr.mxu0 %v3290
  %3322 = vmatpush1.msra.mxu0 %v3289
  %3323 = vmatprep.subr.mxu0 %v3292
  %3324 = vmatpush1.msra.mxu0 %v3291
  %3325 = vmatprep.subr.mxu0 %v3294
  %3326 = vmatpush1.msra.mxu0 %v3293
  %3327 = vmatprep.subr.mxu0 %v3296
  %3328 = vmatpush1.msra.mxu0 %v3295
  %3329 = vmatprep.subr.mxu0 %v3298
  %3330 = vmatpush1.msra.mxu0 %v3297
  %3331 = vmatprep.subr.mxu0 %v3300
  %3332 = vmatpush1.msra.mxu0 %v3299
  %3333 = vmatprep.subr.mxu0 %v3302
  %3334 = vmatpush1.msra.mxu0 %v3301
  %3335 = vmatprep.subr.mxu0 %v3304
  %3336 = vmatpush1.msra.mxu0 %v3303
  %3337 = vmatprep.subr.mxu0 0.0
  %3338 = vmatpush1.msra.mxu0 0.0
  %3339 = vmatprep.subr.mxu0 0.0
  %3340 = vmatpush1.msra.mxu0 0.0
  %3341 = vmatprep.subr.mxu0 0.0
  %3342 = vmatpush1.msra.mxu0 0.0
  %3343 = vmatprep.subr.mxu0 0.0
  %3344 = vmatpush1.msra.mxu0 0.0
  %3345 = vmatprep.subr.mxu0 0.0
  %3346 = vmatpush1.msra.mxu0 0.0
  %3347 = vmatprep.subr.mxu0 0.0
  %3348 = vmatpush1.msra.mxu0 0.0
  %3349 = vmatprep.subr.mxu0 0.0
  %3350 = vmatpush1.msra.mxu0 0.0
  %3351 = vmatprep.subr.mxu0 0.0
  %3352 = vmatpush1.msra.mxu0 0.0
  %3353 = vmatprep.subr.mxu0 0.0
  %3354 = vmatpush1.msra.mxu0 0.0
  %3355 = vmatprep.subr.mxu0 0.0
  %3356 = vmatpush1.msra.mxu0 0.0
  %3357 = vmatprep.subr.mxu0 0.0
  %3358 = vmatpush1.msra.mxu0 0.0
  %3359 = vmatprep.subr.mxu0 0.0
  %3360 = vmatpush1.msra.mxu0 0.0
  %3361 = vmatprep.subr.mxu0 0.0
  %3362 = vmatpush1.msra.mxu0 0.0
  %3363 = vmatprep.subr.mxu0 0.0
  %3364 = vmatpush1.msra.mxu0 0.0
  %3365 = vmatprep.subr.mxu0 0.0
  %3366 = vmatpush1.msra.mxu0 0.0
  %3367 = vmatprep.subr.mxu0 0.0
  %3368 = vmatpush1.msra.mxu0 0.0
  %3369 = vmatprep.mubr.f32.mxu0 0.0
  %3370 = vmatmul.mubr.f32.gmra.mrb[0].mxu0 %v3271
  %v3371 = vpop.f32.mrb[0].mxu0
  %v3372 = vadd.f32 0.0, %v3371
  %v3373 = vpop.f32.mrb[0].mxu0
  %v3374 = vadd.f32 0.0, %v3373
  %3375 = vdwg.mxu0
  %v3376 = vadd.f32 %v3269, %v3372
  %v3377 = vadd.f32 %v3270, %v3374
  %v3378 = vld [vmem:[#allocation3 + $0xa] sm:$0x3]
  %s3379 = scalar_lea.vmem %s8, 2560
  %v3380 = vld [vmem:[%s3379] sm:$0xff]
  %v3381 = vld [vmem:[%s3379 + $0x8] sm:$0xff]
  %v3382 = vld [vmem:[%s3379 + $0x10] sm:$0xff]
  %v3383 = vld [vmem:[%s3379 + $0x18] sm:$0xff]
  %v3384 = vld [vmem:[%s3379 + $0x20] sm:$0xff]
  %v3385 = vld [vmem:[%s3379 + $0x28] sm:$0xff]
  %v3386 = vld [vmem:[%s3379 + $0x30] sm:$0xff]
  %v3387 = vld [vmem:[%s3379 + $0x38] sm:$0xff]
  %v3388 = vld [vmem:[%s3379 + $0x40] sm:$0xff]
  %v3389 = vld [vmem:[%s3379 + $0x48] sm:$0xff]
  %v3390 = vld [vmem:[%s3379 + $0x50] sm:$0xff]
  %v3391 = vld [vmem:[%s3379 + $0x58] sm:$0xff]
  %v3392 = vld [vmem:[%s3379 + $0x60] sm:$0xff]
  %v3393 = vld [vmem:[%s3379 + $0x68] sm:$0xff]
  %v3394 = vld [vmem:[%s3379 + $0x70] sm:$0xff]
  %v3395 = vld [vmem:[%s3379 + $0x78] sm:$0xff]
  %v3396 = vld [vmem:[%s3379 + $0x80] sm:$0xff]
  %v3397 = vld [vmem:[%s3379 + $0x88] sm:$0xff]
  %v3398 = vld [vmem:[%s3379 + $0x90] sm:$0xff]
  %v3399 = vld [vmem:[%s3379 + $0x98] sm:$0xff]
  %v3400 = vld [vmem:[%s3379 + $0xa0] sm:$0xff]
  %v3401 = vld [vmem:[%s3379 + $0xa8] sm:$0xff]
  %v3402 = vld [vmem:[%s3379 + $0xb0] sm:$0xff]
  %v3403 = vld [vmem:[%s3379 + $0xb8] sm:$0xff]
  %v3404 = vld [vmem:[%s3379 + $0xc0] sm:$0xff]
  %v3405 = vld [vmem:[%s3379 + $0xc8] sm:$0xff]
  %v3406 = vld [vmem:[%s3379 + $0xd0] sm:$0xff]
  %v3407 = vld [vmem:[%s3379 + $0xd8] sm:$0xff]
  %v3408 = vld [vmem:[%s3379 + $0xe0] sm:$0xff]
  %v3409 = vld [vmem:[%s3379 + $0xe8] sm:$0xff]
  %v3410 = vld [vmem:[%s3379 + $0xf0] sm:$0xff]
  %v3411 = vld [vmem:[%s3379 + $0xf8] sm:$0xff]
  %3412 = vmatprep.subr.mxu0 %v3381
  %3413 = vmatpush1.msra.mxu0 %v3380
  %3414 = vmatprep.subr.mxu0 %v3383
  %3415 = vmatpush1.msra.mxu0 %v3382
  %3416 = vmatprep.subr.mxu0 %v3385
  %3417 = vmatpush1.msra.mxu0 %v3384
  %3418 = vmatprep.subr.mxu0 %v3387
  %3419 = vmatpush1.msra.mxu0 %v3386
  %3420 = vmatprep.subr.mxu0 %v3389
  %3421 = vmatpush1.msra.mxu0 %v3388
  %3422 = vmatprep.subr.mxu0 %v3391
  %3423 = vmatpush1.msra.mxu0 %v3390
  %3424 = vmatprep.subr.mxu0 %v3393
  %3425 = vmatpush1.msra.mxu0 %v3392
  %3426 = vmatprep.subr.mxu0 %v3395
  %3427 = vmatpush1.msra.mxu0 %v3394
  %3428 = vmatprep.subr.mxu0 %v3397
  %3429 = vmatpush1.msra.mxu0 %v3396
  %3430 = vmatprep.subr.mxu0 %v3399
  %3431 = vmatpush1.msra.mxu0 %v3398
  %3432 = vmatprep.subr.mxu0 %v3401
  %3433 = vmatpush1.msra.mxu0 %v3400
  %3434 = vmatprep.subr.mxu0 %v3403
  %3435 = vmatpush1.msra.mxu0 %v3402
  %3436 = vmatprep.subr.mxu0 %v3405
  %3437 = vmatpush1.msra.mxu0 %v3404
  %3438 = vmatprep.subr.mxu0 %v3407
  %3439 = vmatpush1.msra.mxu0 %v3406
  %3440 = vmatprep.subr.mxu0 %v3409
  %3441 = vmatpush1.msra.mxu0 %v3408
  %3442 = vmatprep.subr.mxu0 %v3411
  %3443 = vmatpush1.msra.mxu0 %v3410
  %3444 = vmatprep.subr.mxu0 0.0
  %3445 = vmatpush1.msra.mxu0 0.0
  %3446 = vmatprep.subr.mxu0 0.0
  %3447 = vmatpush1.msra.mxu0 0.0
  %3448 = vmatprep.subr.mxu0 0.0
  %3449 = vmatpush1.msra.mxu0 0.0
  %3450 = vmatprep.subr.mxu0 0.0
  %3451 = vmatpush1.msra.mxu0 0.0
  %3452 = vmatprep.subr.mxu0 0.0
  %3453 = vmatpush1.msra.mxu0 0.0
  %3454 = vmatprep.subr.mxu0 0.0
  %3455 = vmatpush1.msra.mxu0 0.0
  %3456 = vmatprep.subr.mxu0 0.0
  %3457 = vmatpush1.msra.mxu0 0.0
  %3458 = vmatprep.subr.mxu0 0.0
  %3459 = vmatpush1.msra.mxu0 0.0
  %3460 = vmatprep.subr.mxu0 0.0
  %3461 = vmatpush1.msra.mxu0 0.0
  %3462 = vmatprep.subr.mxu0 0.0
  %3463 = vmatpush1.msra.mxu0 0.0
  %3464 = vmatprep.subr.mxu0 0.0
  %3465 = vmatpush1.msra.mxu0 0.0
  %3466 = vmatprep.subr.mxu0 0.0
  %3467 = vmatpush1.msra.mxu0 0.0
  %3468 = vmatprep.subr.mxu0 0.0
  %3469 = vmatpush1.msra.mxu0 0.0
  %3470 = vmatprep.subr.mxu0 0.0
  %3471 = vmatpush1.msra.mxu0 0.0
  %3472 = vmatprep.subr.mxu0 0.0
  %3473 = vmatpush1.msra.mxu0 0.0
  %3474 = vmatprep.subr.mxu0 0.0
  %3475 = vmatpush1.msra.mxu0 0.0
  %3476 = vmatprep.mubr.f32.mxu0 0.0
  %3477 = vmatmul.mubr.f32.gmra.mrb[0].mxu0 %v3378
  %v3478 = vpop.f32.mrb[0].mxu0
  %v3479 = vadd.f32 0.0, %v3478
  %v3480 = vpop.f32.mrb[0].mxu0
  %v3481 = vadd.f32 0.0, %v3480
  %3482 = vdwg.mxu0
  %v3483 = vadd.f32 %v3376, %v3479
  %v3484 = vadd.f32 %v3377, %v3481
  %v3485 = vld [vmem:[#allocation3 + $0xc] sm:$0x3]
  %s3486 = scalar_lea.vmem %s8, 2816
  %v3487 = vld [vmem:[%s3486] sm:$0xff]
  %v3488 = vld [vmem:[%s3486 + $0x8] sm:$0xff]
  %v3489 = vld [vmem:[%s3486 + $0x10] sm:$0xff]
  %v3490 = vld [vmem:[%s3486 + $0x18] sm:$0xff]
  %v3491 = vld [vmem:[%s3486 + $0x20] sm:$0xff]
  %v3492 = vld [vmem:[%s3486 + $0x28] sm:$0xff]
  %v3493 = vld [vmem:[%s3486 + $0x30] sm:$0xff]
  %v3494 = vld [vmem:[%s3486 + $0x38] sm:$0xff]
  %v3495 = vld [vmem:[%s3486 + $0x40] sm:$0xff]
  %v3496 = vld [vmem:[%s3486 + $0x48] sm:$0xff]
  %v3497 = vld [vmem:[%s3486 + $0x50] sm:$0xff]
  %v3498 = vld [vmem:[%s3486 + $0x58] sm:$0xff]
  %v3499 = vld [vmem:[%s3486 + $0x60] sm:$0xff]
  %v3500 = vld [vmem:[%s3486 + $0x68] sm:$0xff]
  %v3501 = vld [vmem:[%s3486 + $0x70] sm:$0xff]
  %v3502 = vld [vmem:[%s3486 + $0x78] sm:$0xff]
  %v3503 = vld [vmem:[%s3486 + $0x80] sm:$0xff]
  %v3504 = vld [vmem:[%s3486 + $0x88] sm:$0xff]
  %v3505 = vld [vmem:[%s3486 + $0x90] sm:$0xff]
  %v3506 = vld [vmem:[%s3486 + $0x98] sm:$0xff]
  %v3507 = vld [vmem:[%s3486 + $0xa0] sm:$0xff]
  %v3508 = vld [vmem:[%s3486 + $0xa8] sm:$0xff]
  %v3509 = vld [vmem:[%s3486 + $0xb0] sm:$0xff]
  %v3510 = vld [vmem:[%s3486 + $0xb8] sm:$0xff]
  %v3511 = vld [vmem:[%s3486 + $0xc0] sm:$0xff]
  %v3512 = vld [vmem:[%s3486 + $0xc8] sm:$0xff]
  %v3513 = vld [vmem:[%s3486 + $0xd0] sm:$0xff]
  %v3514 = vld [vmem:[%s3486 + $0xd8] sm:$0xff]
  %v3515 = vld [vmem:[%s3486 + $0xe0] sm:$0xff]
  %v3516 = vld [vmem:[%s3486 + $0xe8] sm:$0xff]
  %v3517 = vld [vmem:[%s3486 + $0xf0] sm:$0xff]
  %v3518 = vld [vmem:[%s3486 + $0xf8] sm:$0xff]
  %3519 = vmatprep.subr.mxu0 %v3488
  %3520 = vmatpush1.msra.mxu0 %v3487
  %3521 = vmatprep.subr.mxu0 %v3490
  %3522 = vmatpush1.msra.mxu0 %v3489
  %3523 = vmatprep.subr.mxu0 %v3492
  %3524 = vmatpush1.msra.mxu0 %v3491
  %3525 = vmatprep.subr.mxu0 %v3494
  %3526 = vmatpush1.msra.mxu0 %v3493
  %3527 = vmatprep.subr.mxu0 %v3496
  %3528 = vmatpush1.msra.mxu0 %v3495
  %3529 = vmatprep.subr.mxu0 %v3498
  %3530 = vmatpush1.msra.mxu0 %v3497
  %3531 = vmatprep.subr.mxu0 %v3500
  %3532 = vmatpush1.msra.mxu0 %v3499
  %3533 = vmatprep.subr.mxu0 %v3502
  %3534 = vmatpush1.msra.mxu0 %v3501
  %3535 = vmatprep.subr.mxu0 %v3504
  %3536 = vmatpush1.msra.mxu0 %v3503
  %3537 = vmatprep.subr.mxu0 %v3506
  %3538 = vmatpush1.msra.mxu0 %v3505
  %3539 = vmatprep.subr.mxu0 %v3508
  %3540 = vmatpush1.msra.mxu0 %v3507
  %3541 = vmatprep.subr.mxu0 %v3510
  %3542 = vmatpush1.msra.mxu0 %v3509
  %3543 = vmatprep.subr.mxu0 %v3512
  %3544 = vmatpush1.msra.mxu0 %v3511
  %3545 = vmatprep.subr.mxu0 %v3514
  %3546 = vmatpush1.msra.mxu0 %v3513
  %3547 = vmatprep.subr.mxu0 %v3516
  %3548 = vmatpush1.msra.mxu0 %v3515
  %3549 = vmatprep.subr.mxu0 %v3518
  %3550 = vmatpush1.msra.mxu0 %v3517
  %3551 = vmatprep.subr.mxu0 0.0
  %3552 = vmatpush1.msra.mxu0 0.0
  %3553 = vmatprep.subr.mxu0 0.0
  %3554 = vmatpush1.msra.mxu0 0.0
  %3555 = vmatprep.subr.mxu0 0.0
  %3556 = vmatpush1.msra.mxu0 0.0
  %3557 = vmatprep.subr.mxu0 0.0
  %3558 = vmatpush1.msra.mxu0 0.0
  %3559 = vmatprep.subr.mxu0 0.0
  %3560 = vmatpush1.msra.mxu0 0.0
  %3561 = vmatprep.subr.mxu0 0.0
  %3562 = vmatpush1.msra.mxu0 0.0
  %3563 = vmatprep.subr.mxu0 0.0
  %3564 = vmatpush1.msra.mxu0 0.0
  %3565 = vmatprep.subr.mxu0 0.0
  %3566 = vmatpush1.msra.mxu0 0.0
  %3567 = vmatprep.subr.mxu0 0.0
  %3568 = vmatpush1.msra.mxu0 0.0
  %3569 = vmatprep.subr.mxu0 0.0
  %3570 = vmatpush1.msra.mxu0 0.0
  %3571 = vmatprep.subr.mxu0 0.0
  %3572 = vmatpush1.msra.mxu0 0.0
  %3573 = vmatprep.subr.mxu0 0.0
  %3574 = vmatpush1.msra.mxu0 0.0
  %3575 = vmatprep.subr.mxu0 0.0
  %3576 = vmatpush1.msra.mxu0 0.0
  %3577 = vmatprep.subr.mxu0 0.0
  %3578 = vmatpush1.msra.mxu0 0.0
  %3579 = vmatprep.subr.mxu0 0.0
  %3580 = vmatpush1.msra.mxu0 0.0
  %3581 = vmatprep.subr.mxu0 0.0
  %3582 = vmatpush1.msra.mxu0 0.0
  %3583 = vmatprep.mubr.f32.mxu0 0.0
  %3584 = vmatmul.mubr.f32.gmra.mrb[0].mxu0 %v3485
  %v3585 = vpop.f32.mrb[0].mxu0
  %v3586 = vadd.f32 0.0, %v3585
  %v3587 = vpop.f32.mrb[0].mxu0
  %v3588 = vadd.f32 0.0, %v3587
  %3589 = vdwg.mxu0
  %v3590 = vadd.f32 %v3483, %v3586
  %v3591 = vadd.f32 %v3484, %v3588
  %v3592 = vld [vmem:[#allocation3 + $0x10] sm:$0x3]
  %s3593 = scalar_lea.vmem %s8, 3328
  %v3594 = vld [vmem:[%s3593] sm:$0xff]
  %v3595 = vld [vmem:[%s3593 + $0x8] sm:$0xff]
  %v3596 = vld [vmem:[%s3593 + $0x10] sm:$0xff]
  %v3597 = vld [vmem:[%s3593 + $0x18] sm:$0xff]
  %v3598 = vld [vmem:[%s3593 + $0x20] sm:$0xff]
  %v3599 = vld [vmem:[%s3593 + $0x28] sm:$0xff]
  %v3600 = vld [vmem:[%s3593 + $0x30] sm:$0xff]
  %v3601 = vld [vmem:[%s3593 + $0x38] sm:$0xff]
  %v3602 = vld [vmem:[%s3593 + $0x40] sm:$0xff]
  %v3603 = vld [vmem:[%s3593 + $0x48] sm:$0xff]
  %v3604 = vld [vmem:[%s3593 + $0x50] sm:$0xff]
  %v3605 = vld [vmem:[%s3593 + $0x58] sm:$0xff]
  %v3606 = vld [vmem:[%s3593 + $0x60] sm:$0xff]
  %v3607 = vld [vmem:[%s3593 + $0x68] sm:$0xff]
  %v3608 = vld [vmem:[%s3593 + $0x70] sm:$0xff]
  %v3609 = vld [vmem:[%s3593 + $0x78] sm:$0xff]
  %v3610 = vld [vmem:[%s3593 + $0x80] sm:$0xff]
  %v3611 = vld [vmem:[%s3593 + $0x88] sm:$0xff]
  %v3612 = vld [vmem:[%s3593 + $0x90] sm:$0xff]
  %v3613 = vld [vmem:[%s3593 + $0x98] sm:$0xff]
  %v3614 = vld [vmem:[%s3593 + $0xa0] sm:$0xff]
  %v3615 = vld [vmem:[%s3593 + $0xa8] sm:$0xff]
  %v3616 = vld [vmem:[%s3593 + $0xb0] sm:$0xff]
  %v3617 = vld [vmem:[%s3593 + $0xb8] sm:$0xff]
  %v3618 = vld [vmem:[%s3593 + $0xc0] sm:$0xff]
  %v3619 = vld [vmem:[%s3593 + $0xc8] sm:$0xff]
  %v3620 = vld [vmem:[%s3593 + $0xd0] sm:$0xff]
  %v3621 = vld [vmem:[%s3593 + $0xd8] sm:$0xff]
  %v3622 = vld [vmem:[%s3593 + $0xe0] sm:$0xff]
  %v3623 = vld [vmem:[%s3593 + $0xe8] sm:$0xff]
  %v3624 = vld [vmem:[%s3593 + $0xf0] sm:$0xff]
  %v3625 = vld [vmem:[%s3593 + $0xf8] sm:$0xff]
  %3626 = vmatprep.subr.mxu0 %v3595
  %3627 = vmatpush1.msra.mxu0 %v3594
  %3628 = vmatprep.subr.mxu0 %v3597
  %3629 = vmatpush1.msra.mxu0 %v3596
  %3630 = vmatprep.subr.mxu0 %v3599
  %3631 = vmatpush1.msra.mxu0 %v3598
  %3632 = vmatprep.subr.mxu0 %v3601
  %3633 = vmatpush1.msra.mxu0 %v3600
  %3634 = vmatprep.subr.mxu0 %v3603
  %3635 = vmatpush1.msra.mxu0 %v3602
  %3636 = vmatprep.subr.mxu0 %v3605
  %3637 = vmatpush1.msra.mxu0 %v3604
  %3638 = vmatprep.subr.mxu0 %v3607
  %3639 = vmatpush1.msra.mxu0 %v3606
  %3640 = vmatprep.subr.mxu0 %v3609
  %3641 = vmatpush1.msra.mxu0 %v3608
  %3642 = vmatprep.subr.mxu0 %v3611
  %3643 = vmatpush1.msra.mxu0 %v3610
  %3644 = vmatprep.subr.mxu0 %v3613
  %3645 = vmatpush1.msra.mxu0 %v3612
  %3646 = vmatprep.subr.mxu0 %v3615
  %3647 = vmatpush1.msra.mxu0 %v3614
  %3648 = vmatprep.subr.mxu0 %v3617
  %3649 = vmatpush1.msra.mxu0 %v3616
  %3650 = vmatprep.subr.mxu0 %v3619
  %3651 = vmatpush1.msra.mxu0 %v3618
  %3652 = vmatprep.subr.mxu0 %v3621
  %3653 = vmatpush1.msra.mxu0 %v3620
  %3654 = vmatprep.subr.mxu0 %v3623
  %3655 = vmatpush1.msra.mxu0 %v3622
  %3656 = vmatprep.subr.mxu0 %v3625
  %3657 = vmatpush1.msra.mxu0 %v3624
  %3658 = vmatprep.subr.mxu0 0.0
  %3659 = vmatpush1.msra.mxu0 0.0
  %3660 = vmatprep.subr.mxu0 0.0
  %3661 = vmatpush1.msra.mxu0 0.0
  %3662 = vmatprep.subr.mxu0 0.0
  %3663 = vmatpush1.msra.mxu0 0.0
  %3664 = vmatprep.subr.mxu0 0.0
  %3665 = vmatpush1.msra.mxu0 0.0
  %3666 = vmatprep.subr.mxu0 0.0
  %3667 = vmatpush1.msra.mxu0 0.0
  %3668 = vmatprep.subr.mxu0 0.0
  %3669 = vmatpush1.msra.mxu0 0.0
  %3670 = vmatprep.subr.mxu0 0.0
  %3671 = vmatpush1.msra.mxu0 0.0
  %3672 = vmatprep.subr.mxu0 0.0
  %3673 = vmatpush1.msra.mxu0 0.0
  %3674 = vmatprep.subr.mxu0 0.0
  %3675 = vmatpush1.msra.mxu0 0.0
  %3676 = vmatprep.subr.mxu0 0.0
  %3677 = vmatpush1.msra.mxu0 0.0
  %3678 = vmatprep.subr.mxu0 0.0
  %3679 = vmatpush1.msra.mxu0 0.0
  %3680 = vmatprep.subr.mxu0 0.0
  %3681 = vmatpush1.msra.mxu0 0.0
  %3682 = vmatprep.subr.mxu0 0.0
  %3683 = vmatpush1.msra.mxu0 0.0
  %3684 = vmatprep.subr.mxu0 0.0
  %3685 = vmatpush1.msra.mxu0 0.0
  %3686 = vmatprep.subr.mxu0 0.0
  %3687 = vmatpush1.msra.mxu0 0.0
  %3688 = vmatprep.subr.mxu0 0.0
  %3689 = vmatpush1.msra.mxu0 0.0
  %3690 = vmatprep.mubr.f32.mxu0 0.0
  %3691 = vmatmul.mubr.f32.gmra.mrb[0].mxu0 %v3592
  %v3692 = vpop.f32.mrb[0].mxu0
  %v3693 = vadd.f32 0.0, %v3692
  %v3694 = vpop.f32.mrb[0].mxu0
  %v3695 = vadd.f32 0.0, %v3694
  %3696 = vdwg.mxu0
  %v3697 = vadd.f32 %v3590, %v3693
  %v3698 = vadd.f32 %v3591, %v3695
  %v3699 = vld [vmem:[#allocation3 + $0x12] sm:$0x3]
  %s3700 = scalar_lea.vmem %s8, 3584
  %v3701 = vld [vmem:[%s3700] sm:$0xff]
  %v3702 = vld [vmem:[%s3700 + $0x8] sm:$0xff]
  %v3703 = vld [vmem:[%s3700 + $0x10] sm:$0xff]
  %v3704 = vld [vmem:[%s3700 + $0x18] sm:$0xff]
  %v3705 = vld [vmem:[%s3700 + $0x20] sm:$0xff]
  %v3706 = vld [vmem:[%s3700 + $0x28] sm:$0xff]
  %v3707 = vld [vmem:[%s3700 + $0x30] sm:$0xff]
  %v3708 = vld [vmem:[%s3700 + $0x38] sm:$0xff]
  %v3709 = vld [vmem:[%s3700 + $0x40] sm:$0xff]
  %v3710 = vld [vmem:[%s3700 + $0x48] sm:$0xff]
  %v3711 = vld [vmem:[%s3700 + $0x50] sm:$0xff]
  %v3712 = vld [vmem:[%s3700 + $0x58] sm:$0xff]
  %v3713 = vld [vmem:[%s3700 + $0x60] sm:$0xff]
  %v3714 = vld [vmem:[%s3700 + $0x68] sm:$0xff]
  %v3715 = vld [vmem:[%s3700 + $0x70] sm:$0xff]
  %v3716 = vld [vmem:[%s3700 + $0x78] sm:$0xff]
  %v3717 = vld [vmem:[%s3700 + $0x80] sm:$0xff]
  %v3718 = vld [vmem:[%s3700 + $0x88] sm:$0xff]
  %v3719 = vld [vmem:[%s3700 + $0x90] sm:$0xff]
  %v3720 = vld [vmem:[%s3700 + $0x98] sm:$0xff]
  %v3721 = vld [vmem:[%s3700 + $0xa0] sm:$0xff]
  %v3722 = vld [vmem:[%s3700 + $0xa8] sm:$0xff]
  %v3723 = vld [vmem:[%s3700 + $0xb0] sm:$0xff]
  %v3724 = vld [vmem:[%s3700 + $0xb8] sm:$0xff]
  %v3725 = vld [vmem:[%s3700 + $0xc0] sm:$0xff]
  %v3726 = vld [vmem:[%s3700 + $0xc8] sm:$0xff]
  %v3727 = vld [vmem:[%s3700 + $0xd0] sm:$0xff]
  %v3728 = vld [vmem:[%s3700 + $0xd8] sm:$0xff]
  %v3729 = vld [vmem:[%s3700 + $0xe0] sm:$0xff]
  %v3730 = vld [vmem:[%s3700 + $0xe8] sm:$0xff]
  %v3731 = vld [vmem:[%s3700 + $0xf0] sm:$0xff]
  %v3732 = vld [vmem:[%s3700 + $0xf8] sm:$0xff]
  %3733 = vmatprep.subr.mxu0 %v3702
  %3734 = vmatpush1.msra.mxu0 %v3701
  %3735 = vmatprep.subr.mxu0 %v3704
  %3736 = vmatpush1.msra.mxu0 %v3703
  %3737 = vmatprep.subr.mxu0 %v3706
  %3738 = vmatpush1.msra.mxu0 %v3705
  %3739 = vmatprep.subr.mxu0 %v3708
  %3740 = vmatpush1.msra.mxu0 %v3707
  %3741 = vmatprep.subr.mxu0 %v3710
  %3742 = vmatpush1.msra.mxu0 %v3709
  %3743 = vmatprep.subr.mxu0 %v3712
  %3744 = vmatpush1.msra.mxu0 %v3711
  %3745 = vmatprep.subr.mxu0 %v3714
  %3746 = vmatpush1.msra.mxu0 %v3713
  %3747 = vmatprep.subr.mxu0 %v3716
  %3748 = vmatpush1.msra.mxu0 %v3715
  %3749 = vmatprep.subr.mxu0 %v3718
  %3750 = vmatpush1.msra.mxu0 %v3717
  %3751 = vmatprep.subr.mxu0 %v3720
  %3752 = vmatpush1.msra.mxu0 %v3719
  %3753 = vmatprep.subr.mxu0 %v3722
  %3754 = vmatpush1.msra.mxu0 %v3721
  %3755 = vmatprep.subr.mxu0 %v3724
  %3756 = vmatpush1.msra.mxu0 %v3723
  %3757 = vmatprep.subr.mxu0 %v3726
  %3758 = vmatpush1.msra.mxu0 %v3725
  %3759 = vmatprep.subr.mxu0 %v3728
  %3760 = vmatpush1.msra.mxu0 %v3727
  %3761 = vmatprep.subr.mxu0 %v3730
  %3762 = vmatpush1.msra.mxu0 %v3729
  %3763 = vmatprep.subr.mxu0 %v3732
  %3764 = vmatpush1.msra.mxu0 %v3731
  %3765 = vmatprep.subr.mxu0 0.0
  %3766 = vmatpush1.msra.mxu0 0.0
  %3767 = vmatprep.subr.mxu0 0.0
  %3768 = vmatpush1.msra.mxu0 0.0
  %3769 = vmatprep.subr.mxu0 0.0
  %3770 = vmatpush1.msra.mxu0 0.0
  %3771 = vmatprep.subr.mxu0 0.0
  %3772 = vmatpush1.msra.mxu0 0.0
  %3773 = vmatprep.subr.mxu0 0.0
  %3774 = vmatpush1.msra.mxu0 0.0
  %3775 = vmatprep.subr.mxu0 0.0
  %3776 = vmatpush1.msra.mxu0 0.0
  %3777 = vmatprep.subr.mxu0 0.0
  %3778 = vmatpush1.msra.mxu0 0.0
  %3779 = vmatprep.subr.mxu0 0.0
  %3780 = vmatpush1.msra.mxu0 0.0
  %3781 = vmatprep.subr.mxu0 0.0
  %3782 = vmatpush1.msra.mxu0 0.0
  %3783 = vmatprep.subr.mxu0 0.0
  %3784 = vmatpush1.msra.mxu0 0.0
  %3785 = vmatprep.subr.mxu0 0.0
  %3786 = vmatpush1.msra.mxu0 0.0
  %3787 = vmatprep.subr.mxu0 0.0
  %3788 = vmatpush1.msra.mxu0 0.0
  %3789 = vmatprep.subr.mxu0 0.0
  %3790 = vmatpush1.msra.mxu0 0.0
  %3791 = vmatprep.subr.mxu0 0.0
  %3792 = vmatpush1.msra.mxu0 0.0
  %3793 = vmatprep.subr.mxu0 0.0
  %3794 = vmatpush1.msra.mxu0 0.0
  %3795 = vmatprep.subr.mxu0 0.0
  %3796 = vmatpush1.msra.mxu0 0.0
  %3797 = vmatprep.mubr.f32.mxu0 0.0
  %3798 = vmatmul.mubr.f32.gmra.mrb[0].mxu0 %v3699
  %v3799 = vpop.f32.mrb[0].mxu0
  %v3800 = vadd.f32 0.0, %v3799
  %v3801 = vpop.f32.mrb[0].mxu0
  %v3802 = vadd.f32 0.0, %v3801
  %3803 = vdwg.mxu0
  %v3804 = vadd.f32 %v3697, %v3800
  %v3805 = vadd.f32 %v3698, %v3802
  %v3806 = vld [vmem:[#allocation3 + $0x14] sm:$0x3]
  %s3807 = scalar_lea.vmem %s8, 3840
  %v3808 = vld [vmem:[%s3807] sm:$0xff]
  %v3809 = vld [vmem:[%s3807 + $0x8] sm:$0xff]
  %v3810 = vld [vmem:[%s3807 + $0x10] sm:$0xff]
  %v3811 = vld [vmem:[%s3807 + $0x18] sm:$0xff]
  %v3812 = vld [vmem:[%s3807 + $0x20] sm:$0xff]
  %v3813 = vld [vmem:[%s3807 + $0x28] sm:$0xff]
  %v3814 = vld [vmem:[%s3807 + $0x30] sm:$0xff]
  %v3815 = vld [vmem:[%s3807 + $0x38] sm:$0xff]
  %v3816 = vld [vmem:[%s3807 + $0x40] sm:$0xff]
  %v3817 = vld [vmem:[%s3807 + $0x48] sm:$0xff]
  %v3818 = vld [vmem:[%s3807 + $0x50] sm:$0xff]
  %v3819 = vld [vmem:[%s3807 + $0x58] sm:$0xff]
  %v3820 = vld [vmem:[%s3807 + $0x60] sm:$0xff]
  %v3821 = vld [vmem:[%s3807 + $0x68] sm:$0xff]
  %v3822 = vld [vmem:[%s3807 + $0x70] sm:$0xff]
  %v3823 = vld [vmem:[%s3807 + $0x78] sm:$0xff]
  %v3824 = vld [vmem:[%s3807 + $0x80] sm:$0xff]
  %v3825 = vld [vmem:[%s3807 + $0x88] sm:$0xff]
  %v3826 = vld [vmem:[%s3807 + $0x90] sm:$0xff]
  %v3827 = vld [vmem:[%s3807 + $0x98] sm:$0xff]
  %v3828 = vld [vmem:[%s3807 + $0xa0] sm:$0xff]
  %v3829 = vld [vmem:[%s3807 + $0xa8] sm:$0xff]
  %v3830 = vld [vmem:[%s3807 + $0xb0] sm:$0xff]
  %v3831 = vld [vmem:[%s3807 + $0xb8] sm:$0xff]
  %v3832 = vld [vmem:[%s3807 + $0xc0] sm:$0xff]
  %v3833 = vld [vmem:[%s3807 + $0xc8] sm:$0xff]
  %v3834 = vld [vmem:[%s3807 + $0xd0] sm:$0xff]
  %v3835 = vld [vmem:[%s3807 + $0xd8] sm:$0xff]
  %v3836 = vld [vmem:[%s3807 + $0xe0] sm:$0xff]
  %v3837 = vld [vmem:[%s3807 + $0xe8] sm:$0xff]
  %v3838 = vld [vmem:[%s3807 + $0xf0] sm:$0xff]
  %v3839 = vld [vmem:[%s3807 + $0xf8] sm:$0xff]
  %3840 = vmatprep.subr.mxu0 %v3809
  %3841 = vmatpush1.msra.mxu0 %v3808
  %3842 = vmatprep.subr.mxu0 %v3811
  %3843 = vmatpush1.msra.mxu0 %v3810
  %3844 = vmatprep.subr.mxu0 %v3813
  %3845 = vmatpush1.msra.mxu0 %v3812
  %3846 = vmatprep.subr.mxu0 %v3815
  %3847 = vmatpush1.msra.mxu0 %v3814
  %3848 = vmatprep.subr.mxu0 %v3817
  %3849 = vmatpush1.msra.mxu0 %v3816
  %3850 = vmatprep.subr.mxu0 %v3819
  %3851 = vmatpush1.msra.mxu0 %v3818
  %3852 = vmatprep.subr.mxu0 %v3821
  %3853 = vmatpush1.msra.mxu0 %v3820
  %3854 = vmatprep.subr.mxu0 %v3823
  %3855 = vmatpush1.msra.mxu0 %v3822
  %3856 = vmatprep.subr.mxu0 %v3825
  %3857 = vmatpush1.msra.mxu0 %v3824
  %3858 = vmatprep.subr.mxu0 %v3827
  %3859 = vmatpush1.msra.mxu0 %v3826
  %3860 = vmatprep.subr.mxu0 %v3829
  %3861 = vmatpush1.msra.mxu0 %v3828
  %3862 = vmatprep.subr.mxu0 %v3831
  %3863 = vmatpush1.msra.mxu0 %v3830
  %3864 = vmatprep.subr.mxu0 %v3833
  %3865 = vmatpush1.msra.mxu0 %v3832
  %3866 = vmatprep.subr.mxu0 %v3835
  %3867 = vmatpush1.msra.mxu0 %v3834
  %3868 = vmatprep.subr.mxu0 %v3837
  %3869 = vmatpush1.msra.mxu0 %v3836
  %3870 = vmatprep.subr.mxu0 %v3839
  %3871 = vmatpush1.msra.mxu0 %v3838
  %3872 = vmatprep.subr.mxu0 0.0
  %3873 = vmatpush1.msra.mxu0 0.0
  %3874 = vmatprep.subr.mxu0 0.0
  %3875 = vmatpush1.msra.mxu0 0.0
  %3876 = vmatprep.subr.mxu0 0.0
  %3877 = vmatpush1.msra.mxu0 0.0
  %3878 = vmatprep.subr.mxu0 0.0
  %3879 = vmatpush1.msra.mxu0 0.0
  %3880 = vmatprep.subr.mxu0 0.0
  %3881 = vmatpush1.msra.mxu0 0.0
  %3882 = vmatprep.subr.mxu0 0.0
  %3883 = vmatpush1.msra.mxu0 0.0
  %3884 = vmatprep.subr.mxu0 0.0
  %3885 = vmatpush1.msra.mxu0 0.0
  %3886 = vmatprep.subr.mxu0 0.0
  %3887 = vmatpush1.msra.mxu0 0.0
  %3888 = vmatprep.subr.mxu0 0.0
  %3889 = vmatpush1.msra.mxu0 0.0
  %3890 = vmatprep.subr.mxu0 0.0
  %3891 = vmatpush1.msra.mxu0 0.0
  %3892 = vmatprep.subr.mxu0 0.0
  %3893 = vmatpush1.msra.mxu0 0.0
  %3894 = vmatprep.subr.mxu0 0.0
  %3895 = vmatpush1.msra.mxu0 0.0
  %3896 = vmatprep.subr.mxu0 0.0
  %3897 = vmatpush1.msra.mxu0 0.0
  %3898 = vmatprep.subr.mxu0 0.0
  %3899 = vmatpush1.msra.mxu0 0.0
  %3900 = vmatprep.subr.mxu0 0.0
  %3901 = vmatpush1.msra.mxu0 0.0
  %3902 = vmatprep.subr.mxu0 0.0
  %3903 = vmatpush1.msra.mxu0 0.0
  %3904 = vmatprep.mubr.f32.mxu0 0.0
  %3905 = vmatmul.mubr.f32.gmra.mrb[0].mxu0 %v3806
  %v3906 = vpop.f32.mrb[0].mxu0
  %v3907 = vadd.f32 0.0, %v3906
  %v3908 = vpop.f32.mrb[0].mxu0
  %v3909 = vadd.f32 0.0, %v3908
  %3910 = vdwg.mxu0
  %v3911 = vadd.f32 %v3804, %v3907
  %v3912 = vadd.f32 %v3805, %v3909
  %v3914 = vlaneseq
  %v3915 = vshrl.u32 %v3914, 7
  %v3916 = vsub.s32 0, %v3915
  %v3917 = vrot.slane %v2953, %v3916
  %v3918 = vlaneseq
  %v3919 = vshrl.u32 %v3918, 7
  %v3920 = vsub.s32 1, %v3919
  %v3921 = vrot.slane %v2953, %v3920
  %v3924 = vadd.f32 %v3911, %v3917
  %v3925 = vadd.f32 %v3912, %v3921
  %v3926 = vmax.f32 %v3924, 0.0
  %v3927 = vmax.f32 %v3925, 0.0
  %s3928 = scalar_lea.vmem %s8, 1024
  %v3929 = vld [vmem:[%s3928] sm:$0xff]
  %v3930 = vld [vmem:[%s3928 + $0x8] sm:$0xff]
  %v3931 = vld [vmem:[%s3928 + $0x10] sm:$0xff]
  %v3932 = vld [vmem:[%s3928 + $0x18] sm:$0xff]
  %v3933 = vld [vmem:[%s3928 + $0x20] sm:$0xff]
  %v3934 = vld [vmem:[%s3928 + $0x28] sm:$0xff]
  %v3935 = vld [vmem:[%s3928 + $0x30] sm:$0xff]
  %v3936 = vld [vmem:[%s3928 + $0x38] sm:$0xff]
  %v3937 = vld [vmem:[%s3928 + $0x40] sm:$0xff]
  %v3938 = vld [vmem:[%s3928 + $0x48] sm:$0xff]
  %v3939 = vld [vmem:[%s3928 + $0x50] sm:$0xff]
  %v3940 = vld [vmem:[%s3928 + $0x58] sm:$0xff]
  %v3941 = vld [vmem:[%s3928 + $0x60] sm:$0xff]
  %v3942 = vld [vmem:[%s3928 + $0x68] sm:$0xff]
  %v3943 = vld [vmem:[%s3928 + $0x70] sm:$0xff]
  %v3944 = vld [vmem:[%s3928 + $0x78] sm:$0xff]
  %v3945 = vld [vmem:[%s3928 + $0x80] sm:$0xff]
  %v3946 = vld [vmem:[%s3928 + $0x88] sm:$0xff]
  %v3947 = vld [vmem:[%s3928 + $0x90] sm:$0xff]
  %v3948 = vld [vmem:[%s3928 + $0x98] sm:$0xff]
  %v3949 = vld [vmem:[%s3928 + $0xa0] sm:$0xff]
  %v3950 = vld [vmem:[%s3928 + $0xa8] sm:$0xff]
  %v3951 = vld [vmem:[%s3928 + $0xb0] sm:$0xff]
  %v3952 = vld [vmem:[%s3928 + $0xb8] sm:$0xff]
  %v3953 = vld [vmem:[%s3928 + $0xc0] sm:$0xff]
  %v3954 = vld [vmem:[%s3928 + $0xc8] sm:$0xff]
  %v3955 = vld [vmem:[%s3928 + $0xd0] sm:$0xff]
  %v3956 = vld [vmem:[%s3928 + $0xd8] sm:$0xff]
  %v3957 = vld [vmem:[%s3928 + $0xe0] sm:$0xff]
  %v3958 = vld [vmem:[%s3928 + $0xe8] sm:$0xff]
  %v3959 = vld [vmem:[%s3928 + $0xf0] sm:$0xff]
  %v3960 = vld [vmem:[%s3928 + $0xf8] sm:$0xff]
  %3961 = vmatprep.subr.mxu0 %v2957
  %3962 = vmatpush1.msra.mxu0 %v2956
  %3963 = vmatprep.subr.mxu0 %v2959
  %3964 = vmatpush1.msra.mxu0 %v2958
  %3965 = vmatprep.subr.mxu0 %v2961
  %3966 = vmatpush1.msra.mxu0 %v2960
  %3967 = vmatprep.subr.mxu0 %v2963
  %3968 = vmatpush1.msra.mxu0 %v2962
  %3969 = vmatprep.subr.mxu0 %v2965
  %3970 = vmatpush1.msra.mxu0 %v2964
  %3971 = vmatprep.subr.mxu0 %v2967
  %3972 = vmatpush1.msra.mxu0 %v2966
  %3973 = vmatprep.subr.mxu0 %v2969
  %3974 = vmatpush1.msra.mxu0 %v2968
  %3975 = vmatprep.subr.mxu0 %v2971
  %3976 = vmatpush1.msra.mxu0 %v2970
  %3977 = vmatprep.subr.mxu0 %v2973
  %3978 = vmatpush1.msra.mxu0 %v2972
  %3979 = vmatprep.subr.mxu0 %v2975
  %3980 = vmatpush1.msra.mxu0 %v2974
  %3981 = vmatprep.subr.mxu0 %v2977
  %3982 = vmatpush1.msra.mxu0 %v2976
  %3983 = vmatprep.subr.mxu0 %v2979
  %3984 = vmatpush1.msra.mxu0 %v2978
  %3985 = vmatprep.subr.mxu0 %v2981
  %3986 = vmatpush1.msra.mxu0 %v2980
  %3987 = vmatprep.subr.mxu0 %v2983
  %3988 = vmatpush1.msra.mxu0 %v2982
  %3989 = vmatprep.subr.mxu0 %v2985
  %3990 = vmatpush1.msra.mxu0 %v2984
  %3991 = vmatprep.subr.mxu0 %v2987
  %3992 = vmatpush1.msra.mxu0 %v2986
  %3993 = vmatprep.subr.mxu0 0.0
  %3994 = vmatpush1.msra.mxu0 0.0
  %3995 = vmatprep.subr.mxu0 0.0
  %3996 = vmatpush1.msra.mxu0 0.0
  %3997 = vmatprep.subr.mxu0 0.0
  %3998 = vmatpush1.msra.mxu0 0.0
  %3999 = vmatprep.subr.mxu0 0.0
  %4000 = vmatpush1.msra.mxu0 0.0
  %4001 = vmatprep.subr.mxu0 0.0
  %4002 = vmatpush1.msra.mxu0 0.0
  %4003 = vmatprep.subr.mxu0 0.0
  %4004 = vmatpush1.msra.mxu0 0.0
  %4005 = vmatprep.subr.mxu0 0.0
  %4006 = vmatpush1.msra.mxu0 0.0
  %4007 = vmatprep.subr.mxu0 0.0
  %4008 = vmatpush1.msra.mxu0 0.0
  %4009 = vmatprep.subr.mxu0 0.0
  %4010 = vmatpush1.msra.mxu0 0.0
  %4011 = vmatprep.subr.mxu0 0.0
  %4012 = vmatpush1.msra.mxu0 0.0
  %4013 = vmatprep.subr.mxu0 0.0
  %4014 = vmatpush1.msra.mxu0 0.0
  %4015 = vmatprep.subr.mxu0 0.0
  %4016 = vmatpush1.msra.mxu0 0.0
  %4017 = vmatprep.subr.mxu0 0.0
  %4018 = vmatpush1.msra.mxu0 0.0
  %4019 = vmatprep.subr.mxu0 0.0
  %4020 = vmatpush1.msra.mxu0 0.0
  %4021 = vmatprep.subr.mxu0 0.0
  %4022 = vmatpush1.msra.mxu0 0.0
  %4023 = vmatprep.subr.mxu0 0.0
  %4024 = vmatpush1.msra.mxu0 0.0
  %4025 = vmatprep.mubr.f32.mxu0 0.0
  %4026 = vmatmul.mubr.f32.gmra.mrb[0].mxu0 %v3164
  %v4027 = vpop.f32.mrb[0].mxu0
  %v4028 = vadd.f32 0.0, %v4027
  %v4029 = vpop.f32.mrb[0].mxu0
  %v4030 = vadd.f32 0.0, %v4029
  %4031 = vdwg.mxu0
  %4032 = vmatprep.subr.mxu0 %v3930
  %4033 = vmatpush1.msra.mxu0 %v3929
  %4034 = vmatprep.subr.mxu0 %v3932
  %4035 = vmatpush1.msra.mxu0 %v3931
  %4036 = vmatprep.subr.mxu0 %v3934
  %4037 = vmatpush1.msra.mxu0 %v3933
  %4038 = vmatprep.subr.mxu0 %v3936
  %4039 = vmatpush1.msra.mxu0 %v3935
  %4040 = vmatprep.subr.mxu0 %v3938
  %4041 = vmatpush1.msra.mxu0 %v3937
  %4042 = vmatprep.subr.mxu0 %v3940
  %4043 = vmatpush1.msra.mxu0 %v3939
  %4044 = vmatprep.subr.mxu0 %v3942
  %4045 = vmatpush1.msra.mxu0 %v3941
  %4046 = vmatprep.subr.mxu0 %v3944
  %4047 = vmatpush1.msra.mxu0 %v3943
  %4048 = vmatprep.subr.mxu0 %v3946
  %4049 = vmatpush1.msra.mxu0 %v3945
  %4050 = vmatprep.subr.mxu0 %v3948
  %4051 = vmatpush1.msra.mxu0 %v3947
  %4052 = vmatprep.subr.mxu0 %v3950
  %4053 = vmatpush1.msra.mxu0 %v3949
  %4054 = vmatprep.subr.mxu0 %v3952
  %4055 = vmatpush1.msra.mxu0 %v3951
  %4056 = vmatprep.subr.mxu0 %v3954
  %4057 = vmatpush1.msra.mxu0 %v3953
  %4058 = vmatprep.subr.mxu0 %v3956
  %4059 = vmatpush1.msra.mxu0 %v3955
  %4060 = vmatprep.subr.mxu0 %v3958
  %4061 = vmatpush1.msra.mxu0 %v3957
  %4062 = vmatprep.subr.mxu0 %v3960
  %4063 = vmatpush1.msra.mxu0 %v3959
  %4064 = vmatprep.subr.mxu0 0.0
  %4065 = vmatpush1.msra.mxu0 0.0
  %4066 = vmatprep.subr.mxu0 0.0
  %4067 = vmatpush1.msra.mxu0 0.0
  %4068 = vmatprep.subr.mxu0 0.0
  %4069 = vmatpush1.msra.mxu0 0.0
  %4070 = vmatprep.subr.mxu0 0.0
  %4071 = vmatpush1.msra.mxu0 0.0
  %4072 = vmatprep.subr.mxu0 0.0
  %4073 = vmatpush1.msra.mxu0 0.0
  %4074 = vmatprep.subr.mxu0 0.0
  %4075 = vmatpush1.msra.mxu0 0.0
  %4076 = vmatprep.subr.mxu0 0.0
  %4077 = vmatpush1.msra.mxu0 0.0
  %4078 = vmatprep.subr.mxu0 0.0
  %4079 = vmatpush1.msra.mxu0 0.0
  %4080 = vmatprep.subr.mxu0 0.0
  %4081 = vmatpush1.msra.mxu0 0.0
  %4082 = vmatprep.subr.mxu0 0.0
  %4083 = vmatpush1.msra.mxu0 0.0
  %4084 = vmatprep.subr.mxu0 0.0
  %4085 = vmatpush1.msra.mxu0 0.0
  %4086 = vmatprep.subr.mxu0 0.0
  %4087 = vmatpush1.msra.mxu0 0.0
  %4088 = vmatprep.subr.mxu0 0.0
  %4089 = vmatpush1.msra.mxu0 0.0
  %4090 = vmatprep.subr.mxu0 0.0
  %4091 = vmatpush1.msra.mxu0 0.0
  %4092 = vmatprep.subr.mxu0 0.0
  %4093 = vmatpush1.msra.mxu0 0.0
  %4094 = vmatprep.subr.mxu0 0.0
  %4095 = vmatpush1.msra.mxu0 0.0
  %4096 = vmatprep.mubr.f32.mxu0 0.0
  %4097 = vmatmul.mubr.f32.gmra.mrb[0].mxu0 %v2988
  %v4098 = vpop.f32.mrb[0].mxu0
  %v4099 = vadd.f32 %v4028, %v4098
  %v4100 = vpop.f32.mrb[0].mxu0
  %v4101 = vadd.f32 %v4030, %v4100
  %4102 = vdwg.mxu0
  %v4103 = vld [vmem:[#allocation3 + $0x6] sm:$0x3]
  %4104 = vmatprep.subr.mxu0 %v2991
  %4105 = vmatpush1.msra.mxu0 %v2990
  %4106 = vmatprep.subr.mxu0 %v2993
  %4107 = vmatpush1.msra.mxu0 %v2992
  %4108 = vmatprep.subr.mxu0 %v2995
  %4109 = vmatpush1.msra.mxu0 %v2994
  %4110 = vmatprep.subr.mxu0 %v2997
  %4111 = vmatpush1.msra.mxu0 %v2996
  %4112 = vmatprep.subr.mxu0 %v2999
  %4113 = vmatpush1.msra.mxu0 %v2998
  %4114 = vmatprep.subr.mxu0 %v3001
  %4115 = vmatpush1.msra.mxu0 %v3000
  %4116 = vmatprep.subr.mxu0 %v3003
  %4117 = vmatpush1.msra.mxu0 %v3002
  %4118 = vmatprep.subr.mxu0 %v3005
  %4119 = vmatpush1.msra.mxu0 %v3004
  %4120 = vmatprep.subr.mxu0 %v3007
  %4121 = vmatpush1.msra.mxu0 %v3006
  %4122 = vmatprep.subr.mxu0 %v3009
  %4123 = vmatpush1.msra.mxu0 %v3008
  %4124 = vmatprep.subr.mxu0 %v3011
  %4125 = vmatpush1.msra.mxu0 %v3010
  %4126 = vmatprep.subr.mxu0 %v3013
  %4127 = vmatpush1.msra.mxu0 %v3012
  %4128 = vmatprep.subr.mxu0 %v3015
  %4129 = vmatpush1.msra.mxu0 %v3014
  %4130 = vmatprep.subr.mxu0 %v3017
  %4131 = vmatpush1.msra.mxu0 %v3016
  %4132 = vmatprep.subr.mxu0 %v3019
  %4133 = vmatpush1.msra.mxu0 %v3018
  %4134 = vmatprep.subr.mxu0 %v3021
  %4135 = vmatpush1.msra.mxu0 %v3020
  %4136 = vmatprep.subr.mxu0 0.0
  %4137 = vmatpush1.msra.mxu0 0.0
  %4138 = vmatprep.subr.mxu0 0.0
  %4139 = vmatpush1.msra.mxu0 0.0
  %4140 = vmatprep.subr.mxu0 0.0
  %4141 = vmatpush1.msra.mxu0 0.0
  %4142 = vmatprep.subr.mxu0 0.0
  %4143 = vmatpush1.msra.mxu0 0.0
  %4144 = vmatprep.subr.mxu0 0.0
  %4145 = vmatpush1.msra.mxu0 0.0
  %4146 = vmatprep.subr.mxu0 0.0
  %4147 = vmatpush1.msra.mxu0 0.0
  %4148 = vmatprep.subr.mxu0 0.0
  %4149 = vmatpush1.msra.mxu0 0.0
  %4150 = vmatprep.subr.mxu0 0.0
  %4151 = vmatpush1.msra.mxu0 0.0
  %4152 = vmatprep.subr.mxu0 0.0
  %4153 = vmatpush1.msra.mxu0 0.0
  %4154 = vmatprep.subr.mxu0 0.0
  %4155 = vmatpush1.msra.mxu0 0.0
  %4156 = vmatprep.subr.mxu0 0.0
  %4157 = vmatpush1.msra.mxu0 0.0
  %4158 = vmatprep.subr.mxu0 0.0
  %4159 = vmatpush1.msra.mxu0 0.0
  %4160 = vmatprep.subr.mxu0 0.0
  %4161 = vmatpush1.msra.mxu0 0.0
  %4162 = vmatprep.subr.mxu0 0.0
  %4163 = vmatpush1.msra.mxu0 0.0
  %4164 = vmatprep.subr.mxu0 0.0
  %4165 = vmatpush1.msra.mxu0 0.0
  %4166 = vmatprep.subr.mxu0 0.0
  %4167 = vmatpush1.msra.mxu0 0.0
  %4168 = vmatprep.mubr.f32.mxu0 0.0
  %4169 = vmatmul.mubr.f32.gmra.mrb[0].mxu0 %v4103
  %v4170 = vpop.f32.mrb[0].mxu0
  %v4171 = vadd.f32 0.0, %v4170
  %v4172 = vpop.f32.mrb[0].mxu0
  %v4173 = vadd.f32 0.0, %v4172
  %4174 = vdwg.mxu0
  %v4175 = vadd.f32 %v4099, %v4171
  %v4176 = vadd.f32 %v4101, %v4173
  %s4177 = scalar_lea.vmem %s8, 2048
  %v4178 = vld [vmem:[%s4177] sm:$0xff]
  %v4179 = vld [vmem:[%s4177 + $0x8] sm:$0xff]
  %v4180 = vld [vmem:[%s4177 + $0x10] sm:$0xff]
  %v4181 = vld [vmem:[%s4177 + $0x18] sm:$0xff]
  %v4182 = vld [vmem:[%s4177 + $0x20] sm:$0xff]
  %v4183 = vld [vmem:[%s4177 + $0x28] sm:$0xff]
  %v4184 = vld [vmem:[%s4177 + $0x30] sm:$0xff]
  %v4185 = vld [vmem:[%s4177 + $0x38] sm:$0xff]
  %v4186 = vld [vmem:[%s4177 + $0x40] sm:$0xff]
  %v4187 = vld [vmem:[%s4177 + $0x48] sm:$0xff]
  %v4188 = vld [vmem:[%s4177 + $0x50] sm:$0xff]
  %v4189 = vld [vmem:[%s4177 + $0x58] sm:$0xff]
  %v4190 = vld [vmem:[%s4177 + $0x60] sm:$0xff]
  %v4191 = vld [vmem:[%s4177 + $0x68] sm:$0xff]
  %v4192 = vld [vmem:[%s4177 + $0x70] sm:$0xff]
  %v4193 = vld [vmem:[%s4177 + $0x78] sm:$0xff]
  %v4194 = vld [vmem:[%s4177 + $0x80] sm:$0xff]
  %v4195 = vld [vmem:[%s4177 + $0x88] sm:$0xff]
  %v4196 = vld [vmem:[%s4177 + $0x90] sm:$0xff]
  %v4197 = vld [vmem:[%s4177 + $0x98] sm:$0xff]
  %v4198 = vld [vmem:[%s4177 + $0xa0] sm:$0xff]
  %v4199 = vld [vmem:[%s4177 + $0xa8] sm:$0xff]
  %v4200 = vld [vmem:[%s4177 + $0xb0] sm:$0xff]
  %v4201 = vld [vmem:[%s4177 + $0xb8] sm:$0xff]
  %v4202 = vld [vmem:[%s4177 + $0xc0] sm:$0xff]
  %v4203 = vld [vmem:[%s4177 + $0xc8] sm:$0xff]
  %v4204 = vld [vmem:[%s4177 + $0xd0] sm:$0xff]
  %v4205 = vld [vmem:[%s4177 + $0xd8] sm:$0xff]
  %v4206 = vld [vmem:[%s4177 + $0xe0] sm:$0xff]
  %v4207 = vld [vmem:[%s4177 + $0xe8] sm:$0xff]
  %v4208 = vld [vmem:[%s4177 + $0xf0] sm:$0xff]
  %v4209 = vld [vmem:[%s4177 + $0xf8] sm:$0xff]
  %4210 = vmatprep.subr.mxu0 %v4179
  %4211 = vmatpush1.msra.mxu0 %v4178
  %4212 = vmatprep.subr.mxu0 %v4181
  %4213 = vmatpush1.msra.mxu0 %v4180
  %4214 = vmatprep.subr.mxu0 %v4183
  %4215 = vmatpush1.msra.mxu0 %v4182
  %4216 = vmatprep.subr.mxu0 %v4185
  %4217 = vmatpush1.msra.mxu0 %v4184
  %4218 = vmatprep.subr.mxu0 %v4187
  %4219 = vmatpush1.msra.mxu0 %v4186
  %4220 = vmatprep.subr.mxu0 %v4189
  %4221 = vmatpush1.msra.mxu0 %v4188
  %4222 = vmatprep.subr.mxu0 %v4191
  %4223 = vmatpush1.msra.mxu0 %v4190
  %4224 = vmatprep.subr.mxu0 %v4193
  %4225 = vmatpush1.msra.mxu0 %v4192
  %4226 = vmatprep.subr.mxu0 %v4195
  %4227 = vmatpush1.msra.mxu0 %v4194
  %4228 = vmatprep.subr.mxu0 %v4197
  %4229 = vmatpush1.msra.mxu0 %v4196
  %4230 = vmatprep.subr.mxu0 %v4199
  %4231 = vmatpush1.msra.mxu0 %v4198
  %4232 = vmatprep.subr.mxu0 %v4201
  %4233 = vmatpush1.msra.mxu0 %v4200
  %4234 = vmatprep.subr.mxu0 %v4203
  %4235 = vmatpush1.msra.mxu0 %v4202
  %4236 = vmatprep.subr.mxu0 %v4205
  %4237 = vmatpush1.msra.mxu0 %v4204
  %4238 = vmatprep.subr.mxu0 %v4207
  %4239 = vmatpush1.msra.mxu0 %v4206
  %4240 = vmatprep.subr.mxu0 %v4209
  %4241 = vmatpush1.msra.mxu0 %v4208
  %4242 = vmatprep.subr.mxu0 0.0
  %4243 = vmatpush1.msra.mxu0 0.0
  %4244 = vmatprep.subr.mxu0 0.0
  %4245 = vmatpush1.msra.mxu0 0.0
  %4246 = vmatprep.subr.mxu0 0.0
  %4247 = vmatpush1.msra.mxu0 0.0
  %4248 = vmatprep.subr.mxu0 0.0
  %4249 = vmatpush1.msra.mxu0 0.0
  %4250 = vmatprep.subr.mxu0 0.0
  %4251 = vmatpush1.msra.mxu0 0.0
  %4252 = vmatprep.subr.mxu0 0.0
  %4253 = vmatpush1.msra.mxu0 0.0
  %4254 = vmatprep.subr.mxu0 0.0
  %4255 = vmatpush1.msra.mxu0 0.0
  %4256 = vmatprep.subr.mxu0 0.0
  %4257 = vmatpush1.msra.mxu0 0.0
  %4258 = vmatprep.subr.mxu0 0.0
  %4259 = vmatpush1.msra.mxu0 0.0
  %4260 = vmatprep.subr.mxu0 0.0
  %4261 = vmatpush1.msra.mxu0 0.0
  %4262 = vmatprep.subr.mxu0 0.0
  %4263 = vmatpush1.msra.mxu0 0.0
  %4264 = vmatprep.subr.mxu0 0.0
  %4265 = vmatpush1.msra.mxu0 0.0
  %4266 = vmatprep.subr.mxu0 0.0
  %4267 = vmatpush1.msra.mxu0 0.0
  %4268 = vmatprep.subr.mxu0 0.0
  %4269 = vmatpush1.msra.mxu0 0.0
  %4270 = vmatprep.subr.mxu0 0.0
  %4271 = vmatpush1.msra.mxu0 0.0
  %4272 = vmatprep.subr.mxu0 0.0
  %4273 = vmatpush1.msra.mxu0 0.0
  %4274 = vmatprep.mubr.f32.mxu0 0.0
  %4275 = vmatmul.mubr.f32.gmra.mrb[0].mxu0 %v3378
  %v4276 = vpop.f32.mrb[0].mxu0
  %v4277 = vadd.f32 0.0, %v4276
  %v4278 = vpop.f32.mrb[0].mxu0
  %v4279 = vadd.f32 0.0, %v4278
  %4280 = vdwg.mxu0
  %v4281 = vadd.f32 %v4175, %v4277
  %v4282 = vadd.f32 %v4176, %v4279
  %4283 = vmatprep.subr.mxu0 %v3274
  %4284 = vmatpush1.msra.mxu0 %v3273
  %4285 = vmatprep.subr.mxu0 %v3276
  %4286 = vmatpush1.msra.mxu0 %v3275
  %4287 = vmatprep.subr.mxu0 %v3278
  %4288 = vmatpush1.msra.mxu0 %v3277
  %4289 = vmatprep.subr.mxu0 %v3280
  %4290 = vmatpush1.msra.mxu0 %v3279
  %4291 = vmatprep.subr.mxu0 %v3282
  %4292 = vmatpush1.msra.mxu0 %v3281
  %4293 = vmatprep.subr.mxu0 %v3284
  %4294 = vmatpush1.msra.mxu0 %v3283
  %4295 = vmatprep.subr.mxu0 %v3286
  %4296 = vmatpush1.msra.mxu0 %v3285
  %4297 = vmatprep.subr.mxu0 %v3288
  %4298 = vmatpush1.msra.mxu0 %v3287
  %4299 = vmatprep.subr.mxu0 %v3290
  %4300 = vmatpush1.msra.mxu0 %v3289
  %4301 = vmatprep.subr.mxu0 %v3292
  %4302 = vmatpush1.msra.mxu0 %v3291
  %4303 = vmatprep.subr.mxu0 %v3294
  %4304 = vmatpush1.msra.mxu0 %v3293
  %4305 = vmatprep.subr.mxu0 %v3296
  %4306 = vmatpush1.msra.mxu0 %v3295
  %4307 = vmatprep.subr.mxu0 %v3298
  %4308 = vmatpush1.msra.mxu0 %v3297
  %4309 = vmatprep.subr.mxu0 %v3300
  %4310 = vmatpush1.msra.mxu0 %v3299
  %4311 = vmatprep.subr.mxu0 %v3302
  %4312 = vmatpush1.msra.mxu0 %v3301
  %4313 = vmatprep.subr.mxu0 %v3304
  %4314 = vmatpush1.msra.mxu0 %v3303
  %4315 = vmatprep.subr.mxu0 0.0
  %4316 = vmatpush1.msra.mxu0 0.0
  %4317 = vmatprep.subr.mxu0 0.0
  %4318 = vmatpush1.msra.mxu0 0.0
  %4319 = vmatprep.subr.mxu0 0.0
  %4320 = vmatpush1.msra.mxu0 0.0
  %4321 = vmatprep.subr.mxu0 0.0
  %4322 = vmatpush1.msra.mxu0 0.0
  %4323 = vmatprep.subr.mxu0 0.0
  %4324 = vmatpush1.msra.mxu0 0.0
  %4325 = vmatprep.subr.mxu0 0.0
  %4326 = vmatpush1.msra.mxu0 0.0
  %4327 = vmatprep.subr.mxu0 0.0
  %4328 = vmatpush1.msra.mxu0 0.0
  %4329 = vmatprep.subr.mxu0 0.0
  %4330 = vmatpush1.msra.mxu0 0.0
  %4331 = vmatprep.subr.mxu0 0.0
  %4332 = vmatpush1.msra.mxu0 0.0
  %4333 = vmatprep.subr.mxu0 0.0
  %4334 = vmatpush1.msra.mxu0 0.0
  %4335 = vmatprep.subr.mxu0 0.0
  %4336 = vmatpush1.msra.mxu0 0.0
  %4337 = vmatprep.subr.mxu0 0.0
  %4338 = vmatpush1.msra.mxu0 0.0
  %4339 = vmatprep.subr.mxu0 0.0
  %4340 = vmatpush1.msra.mxu0 0.0
  %4341 = vmatprep.subr.mxu0 0.0
  %4342 = vmatpush1.msra.mxu0 0.0
  %4343 = vmatprep.subr.mxu0 0.0
  %4344 = vmatpush1.msra.mxu0 0.0
  %4345 = vmatprep.subr.mxu0 0.0
  %4346 = vmatpush1.msra.mxu0 0.0
  %4347 = vmatprep.mubr.f32.mxu0 0.0
  %4348 = vmatmul.mubr.f32.gmra.mrb[0].mxu0 %v3485
  %v4349 = vpop.f32.mrb[0].mxu0
  %v4350 = vadd.f32 0.0, %v4349
  %v4351 = vpop.f32.mrb[0].mxu0
  %v4352 = vadd.f32 0.0, %v4351
  %4353 = vdwg.mxu0
  %v4354 = vadd.f32 %v4281, %v4350
  %v4355 = vadd.f32 %v4282, %v4352
  %v4356 = vld [vmem:[#allocation3 + $0xe] sm:$0x3]
  %4357 = vmatprep.subr.mxu0 %v3381
  %4358 = vmatpush1.msra.mxu0 %v3380
  %4359 = vmatprep.subr.mxu0 %v3383
  %4360 = vmatpush1.msra.mxu0 %v3382
  %4361 = vmatprep.subr.mxu0 %v3385
  %4362 = vmatpush1.msra.mxu0 %v3384
  %4363 = vmatprep.subr.mxu0 %v3387
  %4364 = vmatpush1.msra.mxu0 %v3386
  %4365 = vmatprep.subr.mxu0 %v3389
  %4366 = vmatpush1.msra.mxu0 %v3388
  %4367 = vmatprep.subr.mxu0 %v3391
  %4368 = vmatpush1.msra.mxu0 %v3390
  %4369 = vmatprep.subr.mxu0 %v3393
  %4370 = vmatpush1.msra.mxu0 %v3392
  %4371 = vmatprep.subr.mxu0 %v3395
  %4372 = vmatpush1.msra.mxu0 %v3394
  %4373 = vmatprep.subr.mxu0 %v3397
  %4374 = vmatpush1.msra.mxu0 %v3396
  %4375 = vmatprep.subr.mxu0 %v3399
  %4376 = vmatpush1.msra.mxu0 %v3398
  %4377 = vmatprep.subr.mxu0 %v3401
  %4378 = vmatpush1.msra.mxu0 %v3400
  %4379 = vmatprep.subr.mxu0 %v3403
  %4380 = vmatpush1.msra.mxu0 %v3402
  %4381 = vmatprep.subr.mxu0 %v3405
  %4382 = vmatpush1.msra.mxu0 %v3404
  %4383 = vmatprep.subr.mxu0 %v3407
  %4384 = vmatpush1.msra.mxu0 %v3406
  %4385 = vmatprep.subr.mxu0 %v3409
  %4386 = vmatpush1.msra.mxu0 %v3408
  %4387 = vmatprep.subr.mxu0 %v3411
  %4388 = vmatpush1.msra.mxu0 %v3410
  %4389 = vmatprep.subr.mxu0 0.0
  %4390 = vmatpush1.msra.mxu0 0.0
  %4391 = vmatprep.subr.mxu0 0.0
  %4392 = vmatpush1.msra.mxu0 0.0
  %4393 = vmatprep.subr.mxu0 0.0
  %4394 = vmatpush1.msra.mxu0 0.0
  %4395 = vmatprep.subr.mxu0 0.0
  %4396 = vmatpush1.msra.mxu0 0.0
  %4397 = vmatprep.subr.mxu0 0.0
  %4398 = vmatpush1.msra.mxu0 0.0
  %4399 = vmatprep.subr.mxu0 0.0
  %4400 = vmatpush1.msra.mxu0 0.0
  %4401 = vmatprep.subr.mxu0 0.0
  %4402 = vmatpush1.msra.mxu0 0.0
  %4403 = vmatprep.subr.mxu0 0.0
  %4404 = vmatpush1.msra.mxu0 0.0
  %4405 = vmatprep.subr.mxu0 0.0
  %4406 = vmatpush1.msra.mxu0 0.0
  %4407 = vmatprep.subr.mxu0 0.0
  %4408 = vmatpush1.msra.mxu0 0.0
  %4409 = vmatprep.subr.mxu0 0.0
  %4410 = vmatpush1.msra.mxu0 0.0
  %4411 = vmatprep.subr.mxu0 0.0
  %4412 = vmatpush1.msra.mxu0 0.0
  %4413 = vmatprep.subr.mxu0 0.0
  %4414 = vmatpush1.msra.mxu0 0.0
  %4415 = vmatprep.subr.mxu0 0.0
  %4416 = vmatpush1.msra.mxu0 0.0
  %4417 = vmatprep.subr.mxu0 0.0
  %4418 = vmatpush1.msra.mxu0 0.0
  %4419 = vmatprep.subr.mxu0 0.0
  %4420 = vmatpush1.msra.mxu0 0.0
  %4421 = vmatprep.mubr.f32.mxu0 0.0
  %4422 = vmatmul.mubr.f32.gmra.mrb[0].mxu0 %v4356
  %v4423 = vpop.f32.mrb[0].mxu0
  %v4424 = vadd.f32 0.0, %v4423
  %v4425 = vpop.f32.mrb[0].mxu0
  %v4426 = vadd.f32 0.0, %v4425
  %4427 = vdwg.mxu0
  %v4428 = vadd.f32 %v4354, %v4424
  %v4429 = vadd.f32 %v4355, %v4426
  %s4430 = scalar_lea.vmem %s8, 3072
  %v4431 = vld [vmem:[%s4430] sm:$0xff]
  %v4432 = vld [vmem:[%s4430 + $0x8] sm:$0xff]
  %v4433 = vld [vmem:[%s4430 + $0x10] sm:$0xff]
  %v4434 = vld [vmem:[%s4430 + $0x18] sm:$0xff]
  %v4435 = vld [vmem:[%s4430 + $0x20] sm:$0xff]
  %v4436 = vld [vmem:[%s4430 + $0x28] sm:$0xff]
  %v4437 = vld [vmem:[%s4430 + $0x30] sm:$0xff]
  %v4438 = vld [vmem:[%s4430 + $0x38] sm:$0xff]
  %v4439 = vld [vmem:[%s4430 + $0x40] sm:$0xff]
  %v4440 = vld [vmem:[%s4430 + $0x48] sm:$0xff]
  %v4441 = vld [vmem:[%s4430 + $0x50] sm:$0xff]
  %v4442 = vld [vmem:[%s4430 + $0x58] sm:$0xff]
  %v4443 = vld [vmem:[%s4430 + $0x60] sm:$0xff]
  %v4444 = vld [vmem:[%s4430 + $0x68] sm:$0xff]
  %v4445 = vld [vmem:[%s4430 + $0x70] sm:$0xff]
  %v4446 = vld [vmem:[%s4430 + $0x78] sm:$0xff]
  %v4447 = vld [vmem:[%s4430 + $0x80] sm:$0xff]
  %v4448 = vld [vmem:[%s4430 + $0x88] sm:$0xff]
  %v4449 = vld [vmem:[%s4430 + $0x90] sm:$0xff]
  %v4450 = vld [vmem:[%s4430 + $0x98] sm:$0xff]
  %v4451 = vld [vmem:[%s4430 + $0xa0] sm:$0xff]
  %v4452 = vld [vmem:[%s4430 + $0xa8] sm:$0xff]
  %v4453 = vld [vmem:[%s4430 + $0xb0] sm:$0xff]
  %v4454 = vld [vmem:[%s4430 + $0xb8] sm:$0xff]
  %v4455 = vld [vmem:[%s4430 + $0xc0] sm:$0xff]
  %v4456 = vld [vmem:[%s4430 + $0xc8] sm:$0xff]
  %v4457 = vld [vmem:[%s4430 + $0xd0] sm:$0xff]
  %v4458 = vld [vmem:[%s4430 + $0xd8] sm:$0xff]
  %v4459 = vld [vmem:[%s4430 + $0xe0] sm:$0xff]
  %v4460 = vld [vmem:[%s4430 + $0xe8] sm:$0xff]
  %v4461 = vld [vmem:[%s4430 + $0xf0] sm:$0xff]
  %v4462 = vld [vmem:[%s4430 + $0xf8] sm:$0xff]
  %4463 = vmatprep.subr.mxu0 %v4432
  %4464 = vmatpush1.msra.mxu0 %v4431
  %4465 = vmatprep.subr.mxu0 %v4434
  %4466 = vmatpush1.msra.mxu0 %v4433
  %4467 = vmatprep.subr.mxu0 %v4436
  %4468 = vmatpush1.msra.mxu0 %v4435
  %4469 = vmatprep.subr.mxu0 %v4438
  %4470 = vmatpush1.msra.mxu0 %v4437
  %4471 = vmatprep.subr.mxu0 %v4440
  %4472 = vmatpush1.msra.mxu0 %v4439
  %4473 = vmatprep.subr.mxu0 %v4442
  %4474 = vmatpush1.msra.mxu0 %v4441
  %4475 = vmatprep.subr.mxu0 %v4444
  %4476 = vmatpush1.msra.mxu0 %v4443
  %4477 = vmatprep.subr.mxu0 %v4446
  %4478 = vmatpush1.msra.mxu0 %v4445
  %4479 = vmatprep.subr.mxu0 %v4448
  %4480 = vmatpush1.msra.mxu0 %v4447
  %4481 = vmatprep.subr.mxu0 %v4450
  %4482 = vmatpush1.msra.mxu0 %v4449
  %4483 = vmatprep.subr.mxu0 %v4452
  %4484 = vmatpush1.msra.mxu0 %v4451
  %4485 = vmatprep.subr.mxu0 %v4454
  %4486 = vmatpush1.msra.mxu0 %v4453
  %4487 = vmatprep.subr.mxu0 %v4456
  %4488 = vmatpush1.msra.mxu0 %v4455
  %4489 = vmatprep.subr.mxu0 %v4458
  %4490 = vmatpush1.msra.mxu0 %v4457
  %4491 = vmatprep.subr.mxu0 %v4460
  %4492 = vmatpush1.msra.mxu0 %v4459
  %4493 = vmatprep.subr.mxu0 %v4462
  %4494 = vmatpush1.msra.mxu0 %v4461
  %4495 = vmatprep.subr.mxu0 0.0
  %4496 = vmatpush1.msra.mxu0 0.0
  %4497 = vmatprep.subr.mxu0 0.0
  %4498 = vmatpush1.msra.mxu0 0.0
  %4499 = vmatprep.subr.mxu0 0.0
  %4500 = vmatpush1.msra.mxu0 0.0
  %4501 = vmatprep.subr.mxu0 0.0
  %4502 = vmatpush1.msra.mxu0 0.0
  %4503 = vmatprep.subr.mxu0 0.0
  %4504 = vmatpush1.msra.mxu0 0.0
  %4505 = vmatprep.subr.mxu0 0.0
  %4506 = vmatpush1.msra.mxu0 0.0
  %4507 = vmatprep.subr.mxu0 0.0
  %4508 = vmatpush1.msra.mxu0 0.0
  %4509 = vmatprep.subr.mxu0 0.0
  %4510 = vmatpush1.msra.mxu0 0.0
  %4511 = vmatprep.subr.mxu0 0.0
  %4512 = vmatpush1.msra.mxu0 0.0
  %4513 = vmatprep.subr.mxu0 0.0
  %4514 = vmatpush1.msra.mxu0 0.0
  %4515 = vmatprep.subr.mxu0 0.0
  %4516 = vmatpush1.msra.mxu0 0.0
  %4517 = vmatprep.subr.mxu0 0.0
  %4518 = vmatpush1.msra.mxu0 0.0
  %4519 = vmatprep.subr.mxu0 0.0
  %4520 = vmatpush1.msra.mxu0 0.0
  %4521 = vmatprep.subr.mxu0 0.0
  %4522 = vmatpush1.msra.mxu0 0.0
  %4523 = vmatprep.subr.mxu0 0.0
  %4524 = vmatpush1.msra.mxu0 0.0
  %4525 = vmatprep.subr.mxu0 0.0
  %4526 = vmatpush1.msra.mxu0 0.0
  %4527 = vmatprep.mubr.f32.mxu0 0.0
  %4528 = vmatmul.mubr.f32.gmra.mrb[0].mxu0 %v3699
  %v4529 = vpop.f32.mrb[0].mxu0
  %v4530 = vadd.f32 0.0, %v4529
  %v4531 = vpop.f32.mrb[0].mxu0
  %v4532 = vadd.f32 0.0, %v4531
  %4533 = vdwg.mxu0
  %v4534 = vadd.f32 %v4428, %v4530
  %v4535 = vadd.f32 %v4429, %v4532
  %4536 = vmatprep.subr.mxu0 %v3595
  %4537 = vmatpush1.msra.mxu0 %v3594
  %4538 = vmatprep.subr.mxu0 %v3597
  %4539 = vmatpush1.msra.mxu0 %v3596
  %4540 = vmatprep.subr.mxu0 %v3599
  %4541 = vmatpush1.msra.mxu0 %v3598
  %4542 = vmatprep.subr.mxu0 %v3601
  %4543 = vmatpush1.msra.mxu0 %v3600
  %4544 = vmatprep.subr.mxu0 %v3603
  %4545 = vmatpush1.msra.mxu0 %v3602
  %4546 = vmatprep.subr.mxu0 %v3605
  %4547 = vmatpush1.msra.mxu0 %v3604
  %4548 = vmatprep.subr.mxu0 %v3607
  %4549 = vmatpush1.msra.mxu0 %v3606
  %4550 = vmatprep.subr.mxu0 %v3609
  %4551 = vmatpush1.msra.mxu0 %v3608
  %4552 = vmatprep.subr.mxu0 %v3611
  %4553 = vmatpush1.msra.mxu0 %v3610
  %4554 = vmatprep.subr.mxu0 %v3613
  %4555 = vmatpush1.msra.mxu0 %v3612
  %4556 = vmatprep.subr.mxu0 %v3615
  %4557 = vmatpush1.msra.mxu0 %v3614
  %4558 = vmatprep.subr.mxu0 %v3617
  %4559 = vmatpush1.msra.mxu0 %v3616
  %4560 = vmatprep.subr.mxu0 %v3619
  %4561 = vmatpush1.msra.mxu0 %v3618
  %4562 = vmatprep.subr.mxu0 %v3621
  %4563 = vmatpush1.msra.mxu0 %v3620
  %4564 = vmatprep.subr.mxu0 %v3623
  %4565 = vmatpush1.msra.mxu0 %v3622
  %4566 = vmatprep.subr.mxu0 %v3625
  %4567 = vmatpush1.msra.mxu0 %v3624
  %4568 = vmatprep.subr.mxu0 0.0
  %4569 = vmatpush1.msra.mxu0 0.0
  %4570 = vmatprep.subr.mxu0 0.0
  %4571 = vmatpush1.msra.mxu0 0.0
  %4572 = vmatprep.subr.mxu0 0.0
  %4573 = vmatpush1.msra.mxu0 0.0
  %4574 = vmatprep.subr.mxu0 0.0
  %4575 = vmatpush1.msra.mxu0 0.0
  %4576 = vmatprep.subr.mxu0 0.0
  %4577 = vmatpush1.msra.mxu0 0.0
  %4578 = vmatprep.subr.mxu0 0.0
  %4579 = vmatpush1.msra.mxu0 0.0
  %4580 = vmatprep.subr.mxu0 0.0
  %4581 = vmatpush1.msra.mxu0 0.0
  %4582 = vmatprep.subr.mxu0 0.0
  %4583 = vmatpush1.msra.mxu0 0.0
  %4584 = vmatprep.subr.mxu0 0.0
  %4585 = vmatpush1.msra.mxu0 0.0
  %4586 = vmatprep.subr.mxu0 0.0
  %4587 = vmatpush1.msra.mxu0 0.0
  %4588 = vmatprep.subr.mxu0 0.0
  %4589 = vmatpush1.msra.mxu0 0.0
  %4590 = vmatprep.subr.mxu0 0.0
  %4591 = vmatpush1.msra.mxu0 0.0
  %4592 = vmatprep.subr.mxu0 0.0
  %4593 = vmatpush1.msra.mxu0 0.0
  %4594 = vmatprep.subr.mxu0 0.0
  %4595 = vmatpush1.msra.mxu0 0.0
  %4596 = vmatprep.subr.mxu0 0.0
  %4597 = vmatpush1.msra.mxu0 0.0
  %4598 = vmatprep.subr.mxu0 0.0
  %4599 = vmatpush1.msra.mxu0 0.0
  %4600 = vmatprep.mubr.f32.mxu0 0.0
  %4601 = vmatmul.mubr.f32.gmra.mrb[0].mxu0 %v3806
  %v4602 = vpop.f32.mrb[0].mxu0
  %v4603 = vadd.f32 0.0, %v4602
  %v4604 = vpop.f32.mrb[0].mxu0
  %v4605 = vadd.f32 0.0, %v4604
  %4606 = vdwg.mxu0
  %v4607 = vadd.f32 %v4534, %v4603
  %v4608 = vadd.f32 %v4535, %v4605
  %v4609 = vld [vmem:[#allocation3 + $0x16] sm:$0x3]
  %4610 = vmatprep.subr.mxu0 %v3702
  %4611 = vmatpush1.msra.mxu0 %v3701
  %4612 = vmatprep.subr.mxu0 %v3704
  %4613 = vmatpush1.msra.mxu0 %v3703
  %4614 = vmatprep.subr.mxu0 %v3706
  %4615 = vmatpush1.msra.mxu0 %v3705
  %4616 = vmatprep.subr.mxu0 %v3708
  %4617 = vmatpush1.msra.mxu0 %v3707
  %4618 = vmatprep.subr.mxu0 %v3710
  %4619 = vmatpush1.msra.mxu0 %v3709
  %4620 = vmatprep.subr.mxu0 %v3712
  %4621 = vmatpush1.msra.mxu0 %v3711
  %4622 = vmatprep.subr.mxu0 %v3714
  %4623 = vmatpush1.msra.mxu0 %v3713
  %4624 = vmatprep.subr.mxu0 %v3716
  %4625 = vmatpush1.msra.mxu0 %v3715
  %4626 = vmatprep.subr.mxu0 %v3718
  %4627 = vmatpush1.msra.mxu0 %v3717
  %4628 = vmatprep.subr.mxu0 %v3720
  %4629 = vmatpush1.msra.mxu0 %v3719
  %4630 = vmatprep.subr.mxu0 %v3722
  %4631 = vmatpush1.msra.mxu0 %v3721
  %4632 = vmatprep.subr.mxu0 %v3724
  %4633 = vmatpush1.msra.mxu0 %v3723
  %4634 = vmatprep.subr.mxu0 %v3726
  %4635 = vmatpush1.msra.mxu0 %v3725
  %4636 = vmatprep.subr.mxu0 %v3728
  %4637 = vmatpush1.msra.mxu0 %v3727
  %4638 = vmatprep.subr.mxu0 %v3730
  %4639 = vmatpush1.msra.mxu0 %v3729
  %4640 = vmatprep.subr.mxu0 %v3732
  %4641 = vmatpush1.msra.mxu0 %v3731
  %4642 = vmatprep.subr.mxu0 0.0
  %4643 = vmatpush1.msra.mxu0 0.0
  %4644 = vmatprep.subr.mxu0 0.0
  %4645 = vmatpush1.msra.mxu0 0.0
  %4646 = vmatprep.subr.mxu0 0.0
  %4647 = vmatpush1.msra.mxu0 0.0
  %4648 = vmatprep.subr.mxu0 0.0
  %4649 = vmatpush1.msra.mxu0 0.0
  %4650 = vmatprep.subr.mxu0 0.0
  %4651 = vmatpush1.msra.mxu0 0.0
  %4652 = vmatprep.subr.mxu0 0.0
  %4653 = vmatpush1.msra.mxu0 0.0
  %4654 = vmatprep.subr.mxu0 0.0
  %4655 = vmatpush1.msra.mxu0 0.0
  %4656 = vmatprep.subr.mxu0 0.0
  %4657 = vmatpush1.msra.mxu0 0.0
  %4658 = vmatprep.subr.mxu0 0.0
  %4659 = vmatpush1.msra.mxu0 0.0
  %4660 = vmatprep.subr.mxu0 0.0
  %4661 = vmatpush1.msra.mxu0 0.0
  %4662 = vmatprep.subr.mxu0 0.0
  %4663 = vmatpush1.msra.mxu0 0.0
  %4664 = vmatprep.subr.mxu0 0.0
  %4665 = vmatpush1.msra.mxu0 0.0
  %4666 = vmatprep.subr.mxu0 0.0
  %4667 = vmatpush1.msra.mxu0 0.0
  %4668 = vmatprep.subr.mxu0 0.0
  %4669 = vmatpush1.msra.mxu0 0.0
  %4670 = vmatprep.subr.mxu0 0.0
  %4671 = vmatpush1.msra.mxu0 0.0
  %4672 = vmatprep.subr.mxu0 0.0
  %4673 = vmatpush1.msra.mxu0 0.0
  %4674 = vmatprep.mubr.f32.mxu0 0.0
  %4675 = vmatmul.mubr.f32.gmra.mrb[0].mxu0 %v4609
  %v4676 = vpop.f32.mrb[0].mxu0
  %v4677 = vadd.f32 0.0, %v4676
  %v4678 = vpop.f32.mrb[0].mxu0
  %v4679 = vadd.f32 0.0, %v4678
  %4680 = vdwg.mxu0
  %v4681 = vadd.f32 %v4607, %v4677
  %v4682 = vadd.f32 %v4608, %v4679
  %v4683 = vadd.f32 %v4681, %v3917
  %v4684 = vadd.f32 %v4682, %v3921
  %v4685 = vmax.f32 %v4683, 0.0
  %v4686 = vmax.f32 %v4684, 0.0
  %s4687 = scalar_lea.vmem %s8, 256
  %v4688 = vld [vmem:[%s4687] sm:$0xff]
  %v4689 = vld [vmem:[%s4687 + $0x8] sm:$0xff]
  %v4690 = vld [vmem:[%s4687 + $0x10] sm:$0xff]
  %v4691 = vld [vmem:[%s4687 + $0x18] sm:$0xff]
  %v4692 = vld [vmem:[%s4687 + $0x20] sm:$0xff]
  %v4693 = vld [vmem:[%s4687 + $0x28] sm:$0xff]
  %v4694 = vld [vmem:[%s4687 + $0x30] sm:$0xff]
  %v4695 = vld [vmem:[%s4687 + $0x38] sm:$0xff]
  %v4696 = vld [vmem:[%s4687 + $0x40] sm:$0xff]
  %v4697 = vld [vmem:[%s4687 + $0x48] sm:$0xff]
  %v4698 = vld [vmem:[%s4687 + $0x50] sm:$0xff]
  %v4699 = vld [vmem:[%s4687 + $0x58] sm:$0xff]
  %v4700 = vld [vmem:[%s4687 + $0x60] sm:$0xff]
  %v4701 = vld [vmem:[%s4687 + $0x68] sm:$0xff]
  %v4702 = vld [vmem:[%s4687 + $0x70] sm:$0xff]
  %v4703 = vld [vmem:[%s4687 + $0x78] sm:$0xff]
  %v4704 = vld [vmem:[%s4687 + $0x80] sm:$0xff]
  %v4705 = vld [vmem:[%s4687 + $0x88] sm:$0xff]
  %v4706 = vld [vmem:[%s4687 + $0x90] sm:$0xff]
  %v4707 = vld [vmem:[%s4687 + $0x98] sm:$0xff]
  %v4708 = vld [vmem:[%s4687 + $0xa0] sm:$0xff]
  %v4709 = vld [vmem:[%s4687 + $0xa8] sm:$0xff]
  %v4710 = vld [vmem:[%s4687 + $0xb0] sm:$0xff]
  %v4711 = vld [vmem:[%s4687 + $0xb8] sm:$0xff]
  %v4712 = vld [vmem:[%s4687 + $0xc0] sm:$0xff]
  %v4713 = vld [vmem:[%s4687 + $0xc8] sm:$0xff]
  %v4714 = vld [vmem:[%s4687 + $0xd0] sm:$0xff]
  %v4715 = vld [vmem:[%s4687 + $0xd8] sm:$0xff]
  %v4716 = vld [vmem:[%s4687 + $0xe0] sm:$0xff]
  %v4717 = vld [vmem:[%s4687 + $0xe8] sm:$0xff]
  %v4718 = vld [vmem:[%s4687 + $0xf0] sm:$0xff]
  %v4719 = vld [vmem:[%s4687 + $0xf8] sm:$0xff]
  %s4720 = scalar_lea.vmem %s8, 512
  %v4721 = vld [vmem:[%s4720] sm:$0xff]
  %v4722 = vld [vmem:[%s4720 + $0x8] sm:$0xff]
  %v4723 = vld [vmem:[%s4720 + $0x10] sm:$0xff]
  %v4724 = vld [vmem:[%s4720 + $0x18] sm:$0xff]
  %v4725 = vld [vmem:[%s4720 + $0x20] sm:$0xff]
  %v4726 = vld [vmem:[%s4720 + $0x28] sm:$0xff]
  %v4727 = vld [vmem:[%s4720 + $0x30] sm:$0xff]
  %v4728 = vld [vmem:[%s4720 + $0x38] sm:$0xff]
  %v4729 = vld [vmem:[%s4720 + $0x40] sm:$0xff]
  %v4730 = vld [vmem:[%s4720 + $0x48] sm:$0xff]
  %v4731 = vld [vmem:[%s4720 + $0x50] sm:$0xff]
  %v4732 = vld [vmem:[%s4720 + $0x58] sm:$0xff]
  %v4733 = vld [vmem:[%s4720 + $0x60] sm:$0xff]
  %v4734 = vld [vmem:[%s4720 + $0x68] sm:$0xff]
  %v4735 = vld [vmem:[%s4720 + $0x70] sm:$0xff]
  %v4736 = vld [vmem:[%s4720 + $0x78] sm:$0xff]
  %v4737 = vld [vmem:[%s4720 + $0x80] sm:$0xff]
  %v4738 = vld [vmem:[%s4720 + $0x88] sm:$0xff]
  %v4739 = vld [vmem:[%s4720 + $0x90] sm:$0xff]
  %v4740 = vld [vmem:[%s4720 + $0x98] sm:$0xff]
  %v4741 = vld [vmem:[%s4720 + $0xa0] sm:$0xff]
  %v4742 = vld [vmem:[%s4720 + $0xa8] sm:$0xff]
  %v4743 = vld [vmem:[%s4720 + $0xb0] sm:$0xff]
  %v4744 = vld [vmem:[%s4720 + $0xb8] sm:$0xff]
  %v4745 = vld [vmem:[%s4720 + $0xc0] sm:$0xff]
  %v4746 = vld [vmem:[%s4720 + $0xc8] sm:$0xff]
  %v4747 = vld [vmem:[%s4720 + $0xd0] sm:$0xff]
  %v4748 = vld [vmem:[%s4720 + $0xd8] sm:$0xff]
  %v4749 = vld [vmem:[%s4720 + $0xe0] sm:$0xff]
  %v4750 = vld [vmem:[%s4720 + $0xe8] sm:$0xff]
  %v4751 = vld [vmem:[%s4720 + $0xf0] sm:$0xff]
  %v4752 = vld [vmem:[%s4720 + $0xf8] sm:$0xff]
  %4753 = vmatprep.subr.mxu0 %v4722
  %4754 = vmatpush1.msra.mxu0 %v4721
  %4755 = vmatprep.subr.mxu0 %v4724
  %4756 = vmatpush1.msra.mxu0 %v4723
  %4757 = vmatprep.subr.mxu0 %v4726
  %4758 = vmatpush1.msra.mxu0 %v4725
  %4759 = vmatprep.subr.mxu0 %v4728
  %4760 = vmatpush1.msra.mxu0 %v4727
  %4761 = vmatprep.subr.mxu0 %v4730
  %4762 = vmatpush1.msra.mxu0 %v4729
  %4763 = vmatprep.subr.mxu0 %v4732
  %4764 = vmatpush1.msra.mxu0 %v4731
  %4765 = vmatprep.subr.mxu0 %v4734
  %4766 = vmatpush1.msra.mxu0 %v4733
  %4767 = vmatprep.subr.mxu0 %v4736
  %4768 = vmatpush1.msra.mxu0 %v4735
  %4769 = vmatprep.subr.mxu0 %v4738
  %4770 = vmatpush1.msra.mxu0 %v4737
  %4771 = vmatprep.subr.mxu0 %v4740
  %4772 = vmatpush1.msra.mxu0 %v4739
  %4773 = vmatprep.subr.mxu0 %v4742
  %4774 = vmatpush1.msra.mxu0 %v4741
  %4775 = vmatprep.subr.mxu0 %v4744
  %4776 = vmatpush1.msra.mxu0 %v4743
  %4777 = vmatprep.subr.mxu0 %v4746
  %4778 = vmatpush1.msra.mxu0 %v4745
  %4779 = vmatprep.subr.mxu0 %v4748
  %4780 = vmatpush1.msra.mxu0 %v4747
  %4781 = vmatprep.subr.mxu0 %v4750
  %4782 = vmatpush1.msra.mxu0 %v4749
  %4783 = vmatprep.subr.mxu0 %v4752
  %4784 = vmatpush1.msra.mxu0 %v4751
  %4785 = vmatprep.subr.mxu0 0.0
  %4786 = vmatpush1.msra.mxu0 0.0
  %4787 = vmatprep.subr.mxu0 0.0
  %4788 = vmatpush1.msra.mxu0 0.0
  %4789 = vmatprep.subr.mxu0 0.0
  %4790 = vmatpush1.msra.mxu0 0.0
  %4791 = vmatprep.subr.mxu0 0.0
  %4792 = vmatpush1.msra.mxu0 0.0
  %4793 = vmatprep.subr.mxu0 0.0
  %4794 = vmatpush1.msra.mxu0 0.0
  %4795 = vmatprep.subr.mxu0 0.0
  %4796 = vmatpush1.msra.mxu0 0.0
  %4797 = vmatprep.subr.mxu0 0.0
  %4798 = vmatpush1.msra.mxu0 0.0
  %4799 = vmatprep.subr.mxu0 0.0
  %4800 = vmatpush1.msra.mxu0 0.0
  %4801 = vmatprep.subr.mxu0 0.0
  %4802 = vmatpush1.msra.mxu0 0.0
  %4803 = vmatprep.subr.mxu0 0.0
  %4804 = vmatpush1.msra.mxu0 0.0
  %4805 = vmatprep.subr.mxu0 0.0
  %4806 = vmatpush1.msra.mxu0 0.0
  %4807 = vmatprep.subr.mxu0 0.0
  %4808 = vmatpush1.msra.mxu0 0.0
  %4809 = vmatprep.subr.mxu0 0.0
  %4810 = vmatpush1.msra.mxu0 0.0
  %4811 = vmatprep.subr.mxu0 0.0
  %4812 = vmatpush1.msra.mxu0 0.0
  %4813 = vmatprep.subr.mxu0 0.0
  %4814 = vmatpush1.msra.mxu0 0.0
  %4815 = vmatprep.subr.mxu0 0.0
  %4816 = vmatpush1.msra.mxu0 0.0
  %4817 = vmatprep.mubr.f32.mxu0 0.0
  %4818 = vmatmul.mubr.f32.gmra.mrb[0].mxu0 %v3378
  %v4819 = vpop.f32.mrb[0].mxu0
  %v4820 = vadd.f32 0.0, %v4819
  %v4821 = vpop.f32.mrb[0].mxu0
  %v4822 = vadd.f32 0.0, %v4821
  %4823 = vdwg.mxu0
  %4824 = vmatprep.subr.mxu0 %v4689
  %4825 = vmatpush1.msra.mxu0 %v4688
  %4826 = vmatprep.subr.mxu0 %v4691
  %4827 = vmatpush1.msra.mxu0 %v4690
  %4828 = vmatprep.subr.mxu0 %v4693
  %4829 = vmatpush1.msra.mxu0 %v4692
  %4830 = vmatprep.subr.mxu0 %v4695
  %4831 = vmatpush1.msra.mxu0 %v4694
  %4832 = vmatprep.subr.mxu0 %v4697
  %4833 = vmatpush1.msra.mxu0 %v4696
  %4834 = vmatprep.subr.mxu0 %v4699
  %4835 = vmatpush1.msra.mxu0 %v4698
  %4836 = vmatprep.subr.mxu0 %v4701
  %4837 = vmatpush1.msra.mxu0 %v4700
  %4838 = vmatprep.subr.mxu0 %v4703
  %4839 = vmatpush1.msra.mxu0 %v4702
  %4840 = vmatprep.subr.mxu0 %v4705
  %4841 = vmatpush1.msra.mxu0 %v4704
  %4842 = vmatprep.subr.mxu0 %v4707
  %4843 = vmatpush1.msra.mxu0 %v4706
  %4844 = vmatprep.subr.mxu0 %v4709
  %4845 = vmatpush1.msra.mxu0 %v4708
  %4846 = vmatprep.subr.mxu0 %v4711
  %4847 = vmatpush1.msra.mxu0 %v4710
  %4848 = vmatprep.subr.mxu0 %v4713
  %4849 = vmatpush1.msra.mxu0 %v4712
  %4850 = vmatprep.subr.mxu0 %v4715
  %4851 = vmatpush1.msra.mxu0 %v4714
  %4852 = vmatprep.subr.mxu0 %v4717
  %4853 = vmatpush1.msra.mxu0 %v4716
  %4854 = vmatprep.subr.mxu0 %v4719
  %4855 = vmatpush1.msra.mxu0 %v4718
  %4856 = vmatprep.subr.mxu0 0.0
  %4857 = vmatpush1.msra.mxu0 0.0
  %4858 = vmatprep.subr.mxu0 0.0
  %4859 = vmatpush1.msra.mxu0 0.0
  %4860 = vmatprep.subr.mxu0 0.0
  %4861 = vmatpush1.msra.mxu0 0.0
  %4862 = vmatprep.subr.mxu0 0.0
  %4863 = vmatpush1.msra.mxu0 0.0
  %4864 = vmatprep.subr.mxu0 0.0
  %4865 = vmatpush1.msra.mxu0 0.0
  %4866 = vmatprep.subr.mxu0 0.0
  %4867 = vmatpush1.msra.mxu0 0.0
  %4868 = vmatprep.subr.mxu0 0.0
  %4869 = vmatpush1.msra.mxu0 0.0
  %4870 = vmatprep.subr.mxu0 0.0
  %4871 = vmatpush1.msra.mxu0 0.0
  %4872 = vmatprep.subr.mxu0 0.0
  %4873 = vmatpush1.msra.mxu0 0.0
  %4874 = vmatprep.subr.mxu0 0.0
  %4875 = vmatpush1.msra.mxu0 0.0
  %4876 = vmatprep.subr.mxu0 0.0
  %4877 = vmatpush1.msra.mxu0 0.0
  %4878 = vmatprep.subr.mxu0 0.0
  %4879 = vmatpush1.msra.mxu0 0.0
  %4880 = vmatprep.subr.mxu0 0.0
  %4881 = vmatpush1.msra.mxu0 0.0
  %4882 = vmatprep.subr.mxu0 0.0
  %4883 = vmatpush1.msra.mxu0 0.0
  %4884 = vmatprep.subr.mxu0 0.0
  %4885 = vmatpush1.msra.mxu0 0.0
  %4886 = vmatprep.subr.mxu0 0.0
  %4887 = vmatpush1.msra.mxu0 0.0
  %4888 = vmatprep.mubr.f32.mxu0 0.0
  %4889 = vmatmul.mubr.f32.gmra.mrb[0].mxu0 %v3271
  %v4890 = vpop.f32.mrb[0].mxu0
  %v4891 = vadd.f32 %v4820, %v4890
  %v4892 = vpop.f32.mrb[0].mxu0
  %v4893 = vadd.f32 %v4822, %v4892
  %4894 = vdwg.mxu0
  %s4895 = scalar_lea.vmem %s8, 768
  %v4896 = vld [vmem:[%s4895] sm:$0xff]
  %v4897 = vld [vmem:[%s4895 + $0x8] sm:$0xff]
  %v4898 = vld [vmem:[%s4895 + $0x10] sm:$0xff]
  %v4899 = vld [vmem:[%s4895 + $0x18] sm:$0xff]
  %v4900 = vld [vmem:[%s4895 + $0x20] sm:$0xff]
  %v4901 = vld [vmem:[%s4895 + $0x28] sm:$0xff]
  %v4902 = vld [vmem:[%s4895 + $0x30] sm:$0xff]
  %v4903 = vld [vmem:[%s4895 + $0x38] sm:$0xff]
  %v4904 = vld [vmem:[%s4895 + $0x40] sm:$0xff]
  %v4905 = vld [vmem:[%s4895 + $0x48] sm:$0xff]
  %v4906 = vld [vmem:[%s4895 + $0x50] sm:$0xff]
  %v4907 = vld [vmem:[%s4895 + $0x58] sm:$0xff]
  %v4908 = vld [vmem:[%s4895 + $0x60] sm:$0xff]
  %v4909 = vld [vmem:[%s4895 + $0x68] sm:$0xff]
  %v4910 = vld [vmem:[%s4895 + $0x70] sm:$0xff]
  %v4911 = vld [vmem:[%s4895 + $0x78] sm:$0xff]
  %v4912 = vld [vmem:[%s4895 + $0x80] sm:$0xff]
  %v4913 = vld [vmem:[%s4895 + $0x88] sm:$0xff]
  %v4914 = vld [vmem:[%s4895 + $0x90] sm:$0xff]
  %v4915 = vld [vmem:[%s4895 + $0x98] sm:$0xff]
  %v4916 = vld [vmem:[%s4895 + $0xa0] sm:$0xff]
  %v4917 = vld [vmem:[%s4895 + $0xa8] sm:$0xff]
  %v4918 = vld [vmem:[%s4895 + $0xb0] sm:$0xff]
  %v4919 = vld [vmem:[%s4895 + $0xb8] sm:$0xff]
  %v4920 = vld [vmem:[%s4895 + $0xc0] sm:$0xff]
  %v4921 = vld [vmem:[%s4895 + $0xc8] sm:$0xff]
  %v4922 = vld [vmem:[%s4895 + $0xd0] sm:$0xff]
  %v4923 = vld [vmem:[%s4895 + $0xd8] sm:$0xff]
  %v4924 = vld [vmem:[%s4895 + $0xe0] sm:$0xff]
  %v4925 = vld [vmem:[%s4895 + $0xe8] sm:$0xff]
  %v4926 = vld [vmem:[%s4895 + $0xf0] sm:$0xff]
  %v4927 = vld [vmem:[%s4895 + $0xf8] sm:$0xff]
  %4928 = vmatprep.subr.mxu0 %v4897
  %4929 = vmatpush1.msra.mxu0 %v4896
  %4930 = vmatprep.subr.mxu0 %v4899
  %4931 = vmatpush1.msra.mxu0 %v4898
  %4932 = vmatprep.subr.mxu0 %v4901
  %4933 = vmatpush1.msra.mxu0 %v4900
  %4934 = vmatprep.subr.mxu0 %v4903
  %4935 = vmatpush1.msra.mxu0 %v4902
  %4936 = vmatprep.subr.mxu0 %v4905
  %4937 = vmatpush1.msra.mxu0 %v4904
  %4938 = vmatprep.subr.mxu0 %v4907
  %4939 = vmatpush1.msra.mxu0 %v4906
  %4940 = vmatprep.subr.mxu0 %v4909
  %4941 = vmatpush1.msra.mxu0 %v4908
  %4942 = vmatprep.subr.mxu0 %v4911
  %4943 = vmatpush1.msra.mxu0 %v4910
  %4944 = vmatprep.subr.mxu0 %v4913
  %4945 = vmatpush1.msra.mxu0 %v4912
  %4946 = vmatprep.subr.mxu0 %v4915
  %4947 = vmatpush1.msra.mxu0 %v4914
  %4948 = vmatprep.subr.mxu0 %v4917
  %4949 = vmatpush1.msra.mxu0 %v4916
  %4950 = vmatprep.subr.mxu0 %v4919
  %4951 = vmatpush1.msra.mxu0 %v4918
  %4952 = vmatprep.subr.mxu0 %v4921
  %4953 = vmatpush1.msra.mxu0 %v4920
  %4954 = vmatprep.subr.mxu0 %v4923
  %4955 = vmatpush1.msra.mxu0 %v4922
  %4956 = vmatprep.subr.mxu0 %v4925
  %4957 = vmatpush1.msra.mxu0 %v4924
  %4958 = vmatprep.subr.mxu0 %v4927
  %4959 = vmatpush1.msra.mxu0 %v4926
  %4960 = vmatprep.subr.mxu0 0.0
  %4961 = vmatpush1.msra.mxu0 0.0
  %4962 = vmatprep.subr.mxu0 0.0
  %4963 = vmatpush1.msra.mxu0 0.0
  %4964 = vmatprep.subr.mxu0 0.0
  %4965 = vmatpush1.msra.mxu0 0.0
  %4966 = vmatprep.subr.mxu0 0.0
  %4967 = vmatpush1.msra.mxu0 0.0
  %4968 = vmatprep.subr.mxu0 0.0
  %4969 = vmatpush1.msra.mxu0 0.0
  %4970 = vmatprep.subr.mxu0 0.0
  %4971 = vmatpush1.msra.mxu0 0.0
  %4972 = vmatprep.subr.mxu0 0.0
  %4973 = vmatpush1.msra.mxu0 0.0
  %4974 = vmatprep.subr.mxu0 0.0
  %4975 = vmatpush1.msra.mxu0 0.0
  %4976 = vmatprep.subr.mxu0 0.0
  %4977 = vmatpush1.msra.mxu0 0.0
  %4978 = vmatprep.subr.mxu0 0.0
  %4979 = vmatpush1.msra.mxu0 0.0
  %4980 = vmatprep.subr.mxu0 0.0
  %4981 = vmatpush1.msra.mxu0 0.0
  %4982 = vmatprep.subr.mxu0 0.0
  %4983 = vmatpush1.msra.mxu0 0.0
  %4984 = vmatprep.subr.mxu0 0.0
  %4985 = vmatpush1.msra.mxu0 0.0
  %4986 = vmatprep.subr.mxu0 0.0
  %4987 = vmatpush1.msra.mxu0 0.0
  %4988 = vmatprep.subr.mxu0 0.0
  %4989 = vmatpush1.msra.mxu0 0.0
  %4990 = vmatprep.subr.mxu0 0.0
  %4991 = vmatpush1.msra.mxu0 0.0
  %4992 = vmatprep.mubr.f32.mxu0 0.0
  %4993 = vmatmul.mubr.f32.gmra.mrb[0].mxu0 %v3485
  %v4994 = vpop.f32.mrb[0].mxu0
  %v4995 = vadd.f32 0.0, %v4994
  %v4996 = vpop.f32.mrb[0].mxu0
  %v4997 = vadd.f32 0.0, %v4996
  %4998 = vdwg.mxu0
  %v4999 = vadd.f32 %v4891, %v4995
  %v5000 = vadd.f32 %v4893, %v4997
  %5001 = vmatprep.subr.mxu0 %v2957
  %5002 = vmatpush1.msra.mxu0 %v2956
  %5003 = vmatprep.subr.mxu0 %v2959
  %5004 = vmatpush1.msra.mxu0 %v2958
  %5005 = vmatprep.subr.mxu0 %v2961
  %5006 = vmatpush1.msra.mxu0 %v2960
  %5007 = vmatprep.subr.mxu0 %v2963
  %5008 = vmatpush1.msra.mxu0 %v2962
  %5009 = vmatprep.subr.mxu0 %v2965
  %5010 = vmatpush1.msra.mxu0 %v2964
  %5011 = vmatprep.subr.mxu0 %v2967
  %5012 = vmatpush1.msra.mxu0 %v2966
  %5013 = vmatprep.subr.mxu0 %v2969
  %5014 = vmatpush1.msra.mxu0 %v2968
  %5015 = vmatprep.subr.mxu0 %v2971
  %5016 = vmatpush1.msra.mxu0 %v2970
  %5017 = vmatprep.subr.mxu0 %v2973
  %5018 = vmatpush1.msra.mxu0 %v2972
  %5019 = vmatprep.subr.mxu0 %v2975
  %5020 = vmatpush1.msra.mxu0 %v2974
  %5021 = vmatprep.subr.mxu0 %v2977
  %5022 = vmatpush1.msra.mxu0 %v2976
  %5023 = vmatprep.subr.mxu0 %v2979
  %5024 = vmatpush1.msra.mxu0 %v2978
  %5025 = vmatprep.subr.mxu0 %v2981
  %5026 = vmatpush1.msra.mxu0 %v2980
  %5027 = vmatprep.subr.mxu0 %v2983
  %5028 = vmatpush1.msra.mxu0 %v2982
  %5029 = vmatprep.subr.mxu0 %v2985
  %5030 = vmatpush1.msra.mxu0 %v2984
  %5031 = vmatprep.subr.mxu0 %v2987
  %5032 = vmatpush1.msra.mxu0 %v2986
  %5033 = vmatprep.subr.mxu0 0.0
  %5034 = vmatpush1.msra.mxu0 0.0
  %5035 = vmatprep.subr.mxu0 0.0
  %5036 = vmatpush1.msra.mxu0 0.0
  %5037 = vmatprep.subr.mxu0 0.0
  %5038 = vmatpush1.msra.mxu0 0.0
  %5039 = vmatprep.subr.mxu0 0.0
  %5040 = vmatpush1.msra.mxu0 0.0
  %5041 = vmatprep.subr.mxu0 0.0
  %5042 = vmatpush1.msra.mxu0 0.0
  %5043 = vmatprep.subr.mxu0 0.0
  %5044 = vmatpush1.msra.mxu0 0.0
  %5045 = vmatprep.subr.mxu0 0.0
  %5046 = vmatpush1.msra.mxu0 0.0
  %5047 = vmatprep.subr.mxu0 0.0
  %5048 = vmatpush1.msra.mxu0 0.0
  %5049 = vmatprep.subr.mxu0 0.0
  %5050 = vmatpush1.msra.mxu0 0.0
  %5051 = vmatprep.subr.mxu0 0.0
  %5052 = vmatpush1.msra.mxu0 0.0
  %5053 = vmatprep.subr.mxu0 0.0
  %5054 = vmatpush1.msra.mxu0 0.0
  %5055 = vmatprep.subr.mxu0 0.0
  %5056 = vmatpush1.msra.mxu0 0.0
  %5057 = vmatprep.subr.mxu0 0.0
  %5058 = vmatpush1.msra.mxu0 0.0
  %5059 = vmatprep.subr.mxu0 0.0
  %5060 = vmatpush1.msra.mxu0 0.0
  %5061 = vmatprep.subr.mxu0 0.0
  %5062 = vmatpush1.msra.mxu0 0.0
  %5063 = vmatprep.subr.mxu0 0.0
  %5064 = vmatpush1.msra.mxu0 0.0
  %5065 = vmatprep.mubr.f32.mxu0 0.0
  %5066 = vmatmul.mubr.f32.gmra.mrb[0].mxu0 %v3592
  %v5067 = vpop.f32.mrb[0].mxu0
  %v5068 = vadd.f32 0.0, %v5067
  %v5069 = vpop.f32.mrb[0].mxu0
  %v5070 = vadd.f32 0.0, %v5069
  %5071 = vdwg.mxu0
  %v5072 = vadd.f32 %v4999, %v5068
  %v5073 = vadd.f32 %v5000, %v5070
  %5074 = vmatprep.subr.mxu0 %v2991
  %5075 = vmatpush1.msra.mxu0 %v2990
  %5076 = vmatprep.subr.mxu0 %v2993
  %5077 = vmatpush1.msra.mxu0 %v2992
  %5078 = vmatprep.subr.mxu0 %v2995
  %5079 = vmatpush1.msra.mxu0 %v2994
  %5080 = vmatprep.subr.mxu0 %v2997
  %5081 = vmatpush1.msra.mxu0 %v2996
  %5082 = vmatprep.subr.mxu0 %v2999
  %5083 = vmatpush1.msra.mxu0 %v2998
  %5084 = vmatprep.subr.mxu0 %v3001
  %5085 = vmatpush1.msra.mxu0 %v3000
  %5086 = vmatprep.subr.mxu0 %v3003
  %5087 = vmatpush1.msra.mxu0 %v3002
  %5088 = vmatprep.subr.mxu0 %v3005
  %5089 = vmatpush1.msra.mxu0 %v3004
  %5090 = vmatprep.subr.mxu0 %v3007
  %5091 = vmatpush1.msra.mxu0 %v3006
  %5092 = vmatprep.subr.mxu0 %v3009
  %5093 = vmatpush1.msra.mxu0 %v3008
  %5094 = vmatprep.subr.mxu0 %v3011
  %5095 = vmatpush1.msra.mxu0 %v3010
  %5096 = vmatprep.subr.mxu0 %v3013
  %5097 = vmatpush1.msra.mxu0 %v3012
  %5098 = vmatprep.subr.mxu0 %v3015
  %5099 = vmatpush1.msra.mxu0 %v3014
  %5100 = vmatprep.subr.mxu0 %v3017
  %5101 = vmatpush1.msra.mxu0 %v3016
  %5102 = vmatprep.subr.mxu0 %v3019
  %5103 = vmatpush1.msra.mxu0 %v3018
  %5104 = vmatprep.subr.mxu0 %v3021
  %5105 = vmatpush1.msra.mxu0 %v3020
  %5106 = vmatprep.subr.mxu0 0.0
  %5107 = vmatpush1.msra.mxu0 0.0
  %5108 = vmatprep.subr.mxu0 0.0
  %5109 = vmatpush1.msra.mxu0 0.0
  %5110 = vmatprep.subr.mxu0 0.0
  %5111 = vmatpush1.msra.mxu0 0.0
  %5112 = vmatprep.subr.mxu0 0.0
  %5113 = vmatpush1.msra.mxu0 0.0
  %5114 = vmatprep.subr.mxu0 0.0
  %5115 = vmatpush1.msra.mxu0 0.0
  %5116 = vmatprep.subr.mxu0 0.0
  %5117 = vmatpush1.msra.mxu0 0.0
  %5118 = vmatprep.subr.mxu0 0.0
  %5119 = vmatpush1.msra.mxu0 0.0
  %5120 = vmatprep.subr.mxu0 0.0
  %5121 = vmatpush1.msra.mxu0 0.0
  %5122 = vmatprep.subr.mxu0 0.0
  %5123 = vmatpush1.msra.mxu0 0.0
  %5124 = vmatprep.subr.mxu0 0.0
  %5125 = vmatpush1.msra.mxu0 0.0
  %5126 = vmatprep.subr.mxu0 0.0
  %5127 = vmatpush1.msra.mxu0 0.0
  %5128 = vmatprep.subr.mxu0 0.0
  %5129 = vmatpush1.msra.mxu0 0.0
  %5130 = vmatprep.subr.mxu0 0.0
  %5131 = vmatpush1.msra.mxu0 0.0
  %5132 = vmatprep.subr.mxu0 0.0
  %5133 = vmatpush1.msra.mxu0 0.0
  %5134 = vmatprep.subr.mxu0 0.0
  %5135 = vmatpush1.msra.mxu0 0.0
  %5136 = vmatprep.subr.mxu0 0.0
  %5137 = vmatpush1.msra.mxu0 0.0
  %5138 = vmatprep.mubr.f32.mxu0 0.0
  %5139 = vmatmul.mubr.f32.gmra.mrb[0].mxu0 %v3699
  %v5140 = vpop.f32.mrb[0].mxu0
  %v5141 = vadd.f32 0.0, %v5140
  %v5142 = vpop.f32.mrb[0].mxu0
  %v5143 = vadd.f32 0.0, %v5142
  %5144 = vdwg.mxu0
  %v5145 = vadd.f32 %v5072, %v5141
  %v5146 = vadd.f32 %v5073, %v5143
  %5147 = vmatprep.subr.mxu0 %v3167
  %5148 = vmatpush1.msra.mxu0 %v3166
  %5149 = vmatprep.subr.mxu0 %v3169
  %5150 = vmatpush1.msra.mxu0 %v3168
  %5151 = vmatprep.subr.mxu0 %v3171
  %5152 = vmatpush1.msra.mxu0 %v3170
  %5153 = vmatprep.subr.mxu0 %v3173
  %5154 = vmatpush1.msra.mxu0 %v3172
  %5155 = vmatprep.subr.mxu0 %v3175
  %5156 = vmatpush1.msra.mxu0 %v3174
  %5157 = vmatprep.subr.mxu0 %v3177
  %5158 = vmatpush1.msra.mxu0 %v3176
  %5159 = vmatprep.subr.mxu0 %v3179
  %5160 = vmatpush1.msra.mxu0 %v3178
  %5161 = vmatprep.subr.mxu0 %v3181
  %5162 = vmatpush1.msra.mxu0 %v3180
  %5163 = vmatprep.subr.mxu0 %v3183
  %5164 = vmatpush1.msra.mxu0 %v3182
  %5165 = vmatprep.subr.mxu0 %v3185
  %5166 = vmatpush1.msra.mxu0 %v3184
  %5167 = vmatprep.subr.mxu0 %v3187
  %5168 = vmatpush1.msra.mxu0 %v3186
  %5169 = vmatprep.subr.mxu0 %v3189
  %5170 = vmatpush1.msra.mxu0 %v3188
  %5171 = vmatprep.subr.mxu0 %v3191
  %5172 = vmatpush1.msra.mxu0 %v3190
  %5173 = vmatprep.subr.mxu0 %v3193
  %5174 = vmatpush1.msra.mxu0 %v3192
  %5175 = vmatprep.subr.mxu0 %v3195
  %5176 = vmatpush1.msra.mxu0 %v3194
  %5177 = vmatprep.subr.mxu0 %v3197
  %5178 = vmatpush1.msra.mxu0 %v3196
  %5179 = vmatprep.subr.mxu0 0.0
  %5180 = vmatpush1.msra.mxu0 0.0
  %5181 = vmatprep.subr.mxu0 0.0
  %5182 = vmatpush1.msra.mxu0 0.0
  %5183 = vmatprep.subr.mxu0 0.0
  %5184 = vmatpush1.msra.mxu0 0.0
  %5185 = vmatprep.subr.mxu0 0.0
  %5186 = vmatpush1.msra.mxu0 0.0
  %5187 = vmatprep.subr.mxu0 0.0
  %5188 = vmatpush1.msra.mxu0 0.0
  %5189 = vmatprep.subr.mxu0 0.0
  %5190 = vmatpush1.msra.mxu0 0.0
  %5191 = vmatprep.subr.mxu0 0.0
  %5192 = vmatpush1.msra.mxu0 0.0
  %5193 = vmatprep.subr.mxu0 0.0
  %5194 = vmatpush1.msra.mxu0 0.0
  %5195 = vmatprep.subr.mxu0 0.0
  %5196 = vmatpush1.msra.mxu0 0.0
  %5197 = vmatprep.subr.mxu0 0.0
  %5198 = vmatpush1.msra.mxu0 0.0
  %5199 = vmatprep.subr.mxu0 0.0
  %5200 = vmatpush1.msra.mxu0 0.0
  %5201 = vmatprep.subr.mxu0 0.0
  %5202 = vmatpush1.msra.mxu0 0.0
  %5203 = vmatprep.subr.mxu0 0.0
  %5204 = vmatpush1.msra.mxu0 0.0
  %5205 = vmatprep.subr.mxu0 0.0
  %5206 = vmatpush1.msra.mxu0 0.0
  %5207 = vmatprep.subr.mxu0 0.0
  %5208 = vmatpush1.msra.mxu0 0.0
  %5209 = vmatprep.subr.mxu0 0.0
  %5210 = vmatpush1.msra.mxu0 0.0
  %5211 = vmatprep.mubr.f32.mxu0 0.0
  %5212 = vmatmul.mubr.f32.gmra.mrb[0].mxu0 %v3806
  %v5213 = vpop.f32.mrb[0].mxu0
  %v5214 = vadd.f32 0.0, %v5213
  %v5215 = vpop.f32.mrb[0].mxu0
  %v5216 = vadd.f32 0.0, %v5215
  %5217 = vdwg.mxu0
  %v5218 = vadd.f32 %v5145, %v5214
  %v5219 = vadd.f32 %v5146, %v5216
  %v5220 = vld [vmem:[#allocation3 + $0x18] sm:$0x3]
  %5221 = vmatprep.subr.mxu0 %v3274
  %5222 = vmatpush1.msra.mxu0 %v3273
  %5223 = vmatprep.subr.mxu0 %v3276
  %5224 = vmatpush1.msra.mxu0 %v3275
  %5225 = vmatprep.subr.mxu0 %v3278
  %5226 = vmatpush1.msra.mxu0 %v3277
  %5227 = vmatprep.subr.mxu0 %v3280
  %5228 = vmatpush1.msra.mxu0 %v3279
  %5229 = vmatprep.subr.mxu0 %v3282
  %5230 = vmatpush1.msra.mxu0 %v3281
  %5231 = vmatprep.subr.mxu0 %v3284
  %5232 = vmatpush1.msra.mxu0 %v3283
  %5233 = vmatprep.subr.mxu0 %v3286
  %5234 = vmatpush1.msra.mxu0 %v3285
  %5235 = vmatprep.subr.mxu0 %v3288
  %5236 = vmatpush1.msra.mxu0 %v3287
  %5237 = vmatprep.subr.mxu0 %v3290
  %5238 = vmatpush1.msra.mxu0 %v3289
  %5239 = vmatprep.subr.mxu0 %v3292
  %5240 = vmatpush1.msra.mxu0 %v3291
  %5241 = vmatprep.subr.mxu0 %v3294
  %5242 = vmatpush1.msra.mxu0 %v3293
  %5243 = vmatprep.subr.mxu0 %v3296
  %5244 = vmatpush1.msra.mxu0 %v3295
  %5245 = vmatprep.subr.mxu0 %v3298
  %5246 = vmatpush1.msra.mxu0 %v3297
  %5247 = vmatprep.subr.mxu0 %v3300
  %5248 = vmatpush1.msra.mxu0 %v3299
  %5249 = vmatprep.subr.mxu0 %v3302
  %5250 = vmatpush1.msra.mxu0 %v3301
  %5251 = vmatprep.subr.mxu0 %v3304
  %5252 = vmatpush1.msra.mxu0 %v3303
  %5253 = vmatprep.subr.mxu0 0.0
  %5254 = vmatpush1.msra.mxu0 0.0
  %5255 = vmatprep.subr.mxu0 0.0
  %5256 = vmatpush1.msra.mxu0 0.0
  %5257 = vmatprep.subr.mxu0 0.0
  %5258 = vmatpush1.msra.mxu0 0.0
  %5259 = vmatprep.subr.mxu0 0.0
  %5260 = vmatpush1.msra.mxu0 0.0
  %5261 = vmatprep.subr.mxu0 0.0
  %5262 = vmatpush1.msra.mxu0 0.0
  %5263 = vmatprep.subr.mxu0 0.0
  %5264 = vmatpush1.msra.mxu0 0.0
  %5265 = vmatprep.subr.mxu0 0.0
  %5266 = vmatpush1.msra.mxu0 0.0
  %5267 = vmatprep.subr.mxu0 0.0
  %5268 = vmatpush1.msra.mxu0 0.0
  %5269 = vmatprep.subr.mxu0 0.0
  %5270 = vmatpush1.msra.mxu0 0.0
  %5271 = vmatprep.subr.mxu0 0.0
  %5272 = vmatpush1.msra.mxu0 0.0
  %5273 = vmatprep.subr.mxu0 0.0
  %5274 = vmatpush1.msra.mxu0 0.0
  %5275 = vmatprep.subr.mxu0 0.0
  %5276 = vmatpush1.msra.mxu0 0.0
  %5277 = vmatprep.subr.mxu0 0.0
  %5278 = vmatpush1.msra.mxu0 0.0
  %5279 = vmatprep.subr.mxu0 0.0
  %5280 = vmatpush1.msra.mxu0 0.0
  %5281 = vmatprep.subr.mxu0 0.0
  %5282 = vmatpush1.msra.mxu0 0.0
  %5283 = vmatprep.subr.mxu0 0.0
  %5284 = vmatpush1.msra.mxu0 0.0
  %5285 = vmatprep.mubr.f32.mxu0 0.0
  %5286 = vmatmul.mubr.f32.gmra.mrb[0].mxu0 %v5220
  %v5287 = vpop.f32.mrb[0].mxu0
  %v5288 = vadd.f32 0.0, %v5287
  %v5289 = vpop.f32.mrb[0].mxu0
  %v5290 = vadd.f32 0.0, %v5289
  %5291 = vdwg.mxu0
  %v5292 = vadd.f32 %v5218, %v5288
  %v5293 = vadd.f32 %v5219, %v5290
  %v5294 = vld [vmem:[#allocation3 + $0x1a] sm:$0x3]
  %5295 = vmatprep.subr.mxu0 %v3381
  %5296 = vmatpush1.msra.mxu0 %v3380
  %5297 = vmatprep.subr.mxu0 %v3383
  %5298 = vmatpush1.msra.mxu0 %v3382
  %5299 = vmatprep.subr.mxu0 %v3385
  %5300 = vmatpush1.msra.mxu0 %v3384
  %5301 = vmatprep.subr.mxu0 %v3387
  %5302 = vmatpush1.msra.mxu0 %v3386
  %5303 = vmatprep.subr.mxu0 %v3389
  %5304 = vmatpush1.msra.mxu0 %v3388
  %5305 = vmatprep.subr.mxu0 %v3391
  %5306 = vmatpush1.msra.mxu0 %v3390
  %5307 = vmatprep.subr.mxu0 %v3393
  %5308 = vmatpush1.msra.mxu0 %v3392
  %5309 = vmatprep.subr.mxu0 %v3395
  %5310 = vmatpush1.msra.mxu0 %v3394
  %5311 = vmatprep.subr.mxu0 %v3397
  %5312 = vmatpush1.msra.mxu0 %v3396
  %5313 = vmatprep.subr.mxu0 %v3399
  %5314 = vmatpush1.msra.mxu0 %v3398
  %5315 = vmatprep.subr.mxu0 %v3401
  %5316 = vmatpush1.msra.mxu0 %v3400
  %5317 = vmatprep.subr.mxu0 %v3403
  %5318 = vmatpush1.msra.mxu0 %v3402
  %5319 = vmatprep.subr.mxu0 %v3405
  %5320 = vmatpush1.msra.mxu0 %v3404
  %5321 = vmatprep.subr.mxu0 %v3407
  %5322 = vmatpush1.msra.mxu0 %v3406
  %5323 = vmatprep.subr.mxu0 %v3409
  %5324 = vmatpush1.msra.mxu0 %v3408
  %5325 = vmatprep.subr.mxu0 %v3411
  %5326 = vmatpush1.msra.mxu0 %v3410
  %5327 = vmatprep.subr.mxu0 0.0
  %5328 = vmatpush1.msra.mxu0 0.0
  %5329 = vmatprep.subr.mxu0 0.0
  %5330 = vmatpush1.msra.mxu0 0.0
  %5331 = vmatprep.subr.mxu0 0.0
  %5332 = vmatpush1.msra.mxu0 0.0
  %5333 = vmatprep.subr.mxu0 0.0
  %5334 = vmatpush1.msra.mxu0 0.0
  %5335 = vmatprep.subr.mxu0 0.0
  %5336 = vmatpush1.msra.mxu0 0.0
  %5337 = vmatprep.subr.mxu0 0.0
  %5338 = vmatpush1.msra.mxu0 0.0
  %5339 = vmatprep.subr.mxu0 0.0
  %5340 = vmatpush1.msra.mxu0 0.0
  %5341 = vmatprep.subr.mxu0 0.0
  %5342 = vmatpush1.msra.mxu0 0.0
  %5343 = vmatprep.subr.mxu0 0.0
  %5344 = vmatpush1.msra.mxu0 0.0
  %5345 = vmatprep.subr.mxu0 0.0
  %5346 = vmatpush1.msra.mxu0 0.0
  %5347 = vmatprep.subr.mxu0 0.0
  %5348 = vmatpush1.msra.mxu0 0.0
  %5349 = vmatprep.subr.mxu0 0.0
  %5350 = vmatpush1.msra.mxu0 0.0
  %5351 = vmatprep.subr.mxu0 0.0
  %5352 = vmatpush1.msra.mxu0 0.0
  %5353 = vmatprep.subr.mxu0 0.0
  %5354 = vmatpush1.msra.mxu0 0.0
  %5355 = vmatprep.subr.mxu0 0.0
  %5356 = vmatpush1.msra.mxu0 0.0
  %5357 = vmatprep.subr.mxu0 0.0
  %5358 = vmatpush1.msra.mxu0 0.0
  %5359 = vmatprep.mubr.f32.mxu0 0.0
  %5360 = vmatmul.mubr.f32.gmra.mrb[0].mxu0 %v5294
  %v5361 = vpop.f32.mrb[0].mxu0
  %v5362 = vadd.f32 0.0, %v5361
  %v5363 = vpop.f32.mrb[0].mxu0
  %v5364 = vadd.f32 0.0, %v5363
  %5365 = vdwg.mxu0
  %v5366 = vadd.f32 %v5292, %v5362
  %v5367 = vadd.f32 %v5293, %v5364
  %v5368 = vld [vmem:[#allocation3 + $0x1c] sm:$0x3]
  %5369 = vmatprep.subr.mxu0 %v3488
  %5370 = vmatpush1.msra.mxu0 %v3487
  %5371 = vmatprep.subr.mxu0 %v3490
  %5372 = vmatpush1.msra.mxu0 %v3489
  %5373 = vmatprep.subr.mxu0 %v3492
  %5374 = vmatpush1.msra.mxu0 %v3491
  %5375 = vmatprep.subr.mxu0 %v3494
  %5376 = vmatpush1.msra.mxu0 %v3493
  %5377 = vmatprep.subr.mxu0 %v3496
  %5378 = vmatpush1.msra.mxu0 %v3495
  %5379 = vmatprep.subr.mxu0 %v3498
  %5380 = vmatpush1.msra.mxu0 %v3497
  %5381 = vmatprep.subr.mxu0 %v3500
  %5382 = vmatpush1.msra.mxu0 %v3499
  %5383 = vmatprep.subr.mxu0 %v3502
  %5384 = vmatpush1.msra.mxu0 %v3501
  %5385 = vmatprep.subr.mxu0 %v3504
  %5386 = vmatpush1.msra.mxu0 %v3503
  %5387 = vmatprep.subr.mxu0 %v3506
  %5388 = vmatpush1.msra.mxu0 %v3505
  %5389 = vmatprep.subr.mxu0 %v3508
  %5390 = vmatpush1.msra.mxu0 %v3507
  %5391 = vmatprep.subr.mxu0 %v3510
  %5392 = vmatpush1.msra.mxu0 %v3509
  %5393 = vmatprep.subr.mxu0 %v3512
  %5394 = vmatpush1.msra.mxu0 %v3511
  %5395 = vmatprep.subr.mxu0 %v3514
  %5396 = vmatpush1.msra.mxu0 %v3513
  %5397 = vmatprep.subr.mxu0 %v3516
  %5398 = vmatpush1.msra.mxu0 %v3515
  %5399 = vmatprep.subr.mxu0 %v3518
  %5400 = vmatpush1.msra.mxu0 %v3517
  %5401 = vmatprep.subr.mxu0 0.0
  %5402 = vmatpush1.msra.mxu0 0.0
  %5403 = vmatprep.subr.mxu0 0.0
  %5404 = vmatpush1.msra.mxu0 0.0
  %5405 = vmatprep.subr.mxu0 0.0
  %5406 = vmatpush1.msra.mxu0 0.0
  %5407 = vmatprep.subr.mxu0 0.0
  %5408 = vmatpush1.msra.mxu0 0.0
  %5409 = vmatprep.subr.mxu0 0.0
  %5410 = vmatpush1.msra.mxu0 0.0
  %5411 = vmatprep.subr.mxu0 0.0
  %5412 = vmatpush1.msra.mxu0 0.0
  %5413 = vmatprep.subr.mxu0 0.0
  %5414 = vmatpush1.msra.mxu0 0.0
  %5415 = vmatprep.subr.mxu0 0.0
  %5416 = vmatpush1.msra.mxu0 0.0
  %5417 = vmatprep.subr.mxu0 0.0
  %5418 = vmatpush1.msra.mxu0 0.0
  %5419 = vmatprep.subr.mxu0 0.0
  %5420 = vmatpush1.msra.mxu0 0.0
  %5421 = vmatprep.subr.mxu0 0.0
  %5422 = vmatpush1.msra.mxu0 0.0
  %5423 = vmatprep.subr.mxu0 0.0
  %5424 = vmatpush1.msra.mxu0 0.0
  %5425 = vmatprep.subr.mxu0 0.0
  %5426 = vmatpush1.msra.mxu0 0.0
  %5427 = vmatprep.subr.mxu0 0.0
  %5428 = vmatpush1.msra.mxu0 0.0
  %5429 = vmatprep.subr.mxu0 0.0
  %5430 = vmatpush1.msra.mxu0 0.0
  %5431 = vmatprep.subr.mxu0 0.0
  %5432 = vmatpush1.msra.mxu0 0.0
  %5433 = vmatprep.mubr.f32.mxu0 0.0
  %5434 = vmatmul.mubr.f32.gmra.mrb[0].mxu0 %v5368
  %v5435 = vpop.f32.mrb[0].mxu0
  %v5436 = vadd.f32 0.0, %v5435
  %v5437 = vpop.f32.mrb[0].mxu0
  %v5438 = vadd.f32 0.0, %v5437
  %5439 = vdwg.mxu0
  %v5440 = vadd.f32 %v5366, %v5436
  %v5441 = vadd.f32 %v5367, %v5438
  %v5442 = vadd.f32 %v5440, %v3917
  %v5443 = vadd.f32 %v5441, %v3921
  %v5444 = vmax.f32 %v5442, 0.0
  %v5445 = vmax.f32 %v5443, 0.0
  %v5446 = vld [vmem:[%s8] sm:$0xff]
  %v5447 = vld [vmem:[%s8 + $0x8] sm:$0xff]
  %v5448 = vld [vmem:[%s8 + $0x10] sm:$0xff]
  %v5449 = vld [vmem:[%s8 + $0x18] sm:$0xff]
  %v5450 = vld [vmem:[%s8 + $0x20] sm:$0xff]
  %v5451 = vld [vmem:[%s8 + $0x28] sm:$0xff]
  %v5452 = vld [vmem:[%s8 + $0x30] sm:$0xff]
  %v5453 = vld [vmem:[%s8 + $0x38] sm:$0xff]
  %v5454 = vld [vmem:[%s8 + $0x40] sm:$0xff]
  %v5455 = vld [vmem:[%s8 + $0x48] sm:$0xff]
  %v5456 = vld [vmem:[%s8 + $0x50] sm:$0xff]
  %v5457 = vld [vmem:[%s8 + $0x58] sm:$0xff]
  %v5458 = vld [vmem:[%s8 + $0x60] sm:$0xff]
  %v5459 = vld [vmem:[%s8 + $0x68] sm:$0xff]
  %v5460 = vld [vmem:[%s8 + $0x70] sm:$0xff]
  %v5461 = vld [vmem:[%s8 + $0x78] sm:$0xff]
  %v5462 = vld [vmem:[%s8 + $0x80] sm:$0xff]
  %v5463 = vld [vmem:[%s8 + $0x88] sm:$0xff]
  %v5464 = vld [vmem:[%s8 + $0x90] sm:$0xff]
  %v5465 = vld [vmem:[%s8 + $0x98] sm:$0xff]
  %v5466 = vld [vmem:[%s8 + $0xa0] sm:$0xff]
  %v5467 = vld [vmem:[%s8 + $0xa8] sm:$0xff]
  %v5468 = vld [vmem:[%s8 + $0xb0] sm:$0xff]
  %v5469 = vld [vmem:[%s8 + $0xb8] sm:$0xff]
  %v5470 = vld [vmem:[%s8 + $0xc0] sm:$0xff]
  %v5471 = vld [vmem:[%s8 + $0xc8] sm:$0xff]
  %v5472 = vld [vmem:[%s8 + $0xd0] sm:$0xff]
  %v5473 = vld [vmem:[%s8 + $0xd8] sm:$0xff]
  %v5474 = vld [vmem:[%s8 + $0xe0] sm:$0xff]
  %v5475 = vld [vmem:[%s8 + $0xe8] sm:$0xff]
  %v5476 = vld [vmem:[%s8 + $0xf0] sm:$0xff]
  %v5477 = vld [vmem:[%s8 + $0xf8] sm:$0xff]
  %5478 = vmatprep.subr.mxu0 %v4689
  %5479 = vmatpush1.msra.mxu0 %v4688
  %5480 = vmatprep.subr.mxu0 %v4691
  %5481 = vmatpush1.msra.mxu0 %v4690
  %5482 = vmatprep.subr.mxu0 %v4693
  %5483 = vmatpush1.msra.mxu0 %v4692
  %5484 = vmatprep.subr.mxu0 %v4695
  %5485 = vmatpush1.msra.mxu0 %v4694
  %5486 = vmatprep.subr.mxu0 %v4697
  %5487 = vmatpush1.msra.mxu0 %v4696
  %5488 = vmatprep.subr.mxu0 %v4699
  %5489 = vmatpush1.msra.mxu0 %v4698
  %5490 = vmatprep.subr.mxu0 %v4701
  %5491 = vmatpush1.msra.mxu0 %v4700
  %5492 = vmatprep.subr.mxu0 %v4703
  %5493 = vmatpush1.msra.mxu0 %v4702
  %5494 = vmatprep.subr.mxu0 %v4705
  %5495 = vmatpush1.msra.mxu0 %v4704
  %5496 = vmatprep.subr.mxu0 %v4707
  %5497 = vmatpush1.msra.mxu0 %v4706
  %5498 = vmatprep.subr.mxu0 %v4709
  %5499 = vmatpush1.msra.mxu0 %v4708
  %5500 = vmatprep.subr.mxu0 %v4711
  %5501 = vmatpush1.msra.mxu0 %v4710
  %5502 = vmatprep.subr.mxu0 %v4713
  %5503 = vmatpush1.msra.mxu0 %v4712
  %5504 = vmatprep.subr.mxu0 %v4715
  %5505 = vmatpush1.msra.mxu0 %v4714
  %5506 = vmatprep.subr.mxu0 %v4717
  %5507 = vmatpush1.msra.mxu0 %v4716
  %5508 = vmatprep.subr.mxu0 %v4719
  %5509 = vmatpush1.msra.mxu0 %v4718
  %5510 = vmatprep.subr.mxu0 0.0
  %5511 = vmatpush1.msra.mxu0 0.0
  %5512 = vmatprep.subr.mxu0 0.0
  %5513 = vmatpush1.msra.mxu0 0.0
  %5514 = vmatprep.subr.mxu0 0.0
  %5515 = vmatpush1.msra.mxu0 0.0
  %5516 = vmatprep.subr.mxu0 0.0
  %5517 = vmatpush1.msra.mxu0 0.0
  %5518 = vmatprep.subr.mxu0 0.0
  %5519 = vmatpush1.msra.mxu0 0.0
  %5520 = vmatprep.subr.mxu0 0.0
  %5521 = vmatpush1.msra.mxu0 0.0
  %5522 = vmatprep.subr.mxu0 0.0
  %5523 = vmatpush1.msra.mxu0 0.0
  %5524 = vmatprep.subr.mxu0 0.0
  %5525 = vmatpush1.msra.mxu0 0.0
  %5526 = vmatprep.subr.mxu0 0.0
  %5527 = vmatpush1.msra.mxu0 0.0
  %5528 = vmatprep.subr.mxu0 0.0
  %5529 = vmatpush1.msra.mxu0 0.0
  %5530 = vmatprep.subr.mxu0 0.0
  %5531 = vmatpush1.msra.mxu0 0.0
  %5532 = vmatprep.subr.mxu0 0.0
  %5533 = vmatpush1.msra.mxu0 0.0
  %5534 = vmatprep.subr.mxu0 0.0
  %5535 = vmatpush1.msra.mxu0 0.0
  %5536 = vmatprep.subr.mxu0 0.0
  %5537 = vmatpush1.msra.mxu0 0.0
  %5538 = vmatprep.subr.mxu0 0.0
  %5539 = vmatpush1.msra.mxu0 0.0
  %5540 = vmatprep.subr.mxu0 0.0
  %5541 = vmatpush1.msra.mxu0 0.0
  %5542 = vmatprep.mubr.f32.mxu0 0.0
  %5543 = vmatmul.mubr.f32.gmra.mrb[0].mxu0 %v3485
  %v5544 = vpop.f32.mrb[0].mxu0
  %v5545 = vadd.f32 0.0, %v5544
  %v5546 = vpop.f32.mrb[0].mxu0
  %v5547 = vadd.f32 0.0, %v5546
  %5548 = vdwg.mxu0
  %5549 = vmatprep.subr.mxu0 %v5447
  %5550 = vmatpush1.msra.mxu0 %v5446
  %5551 = vmatprep.subr.mxu0 %v5449
  %5552 = vmatpush1.msra.mxu0 %v5448
  %5553 = vmatprep.subr.mxu0 %v5451
  %5554 = vmatpush1.msra.mxu0 %v5450
  %5555 = vmatprep.subr.mxu0 %v5453
  %5556 = vmatpush1.msra.mxu0 %v5452
  %5557 = vmatprep.subr.mxu0 %v5455
  %5558 = vmatpush1.msra.mxu0 %v5454
  %5559 = vmatprep.subr.mxu0 %v5457
  %5560 = vmatpush1.msra.mxu0 %v5456
  %5561 = vmatprep.subr.mxu0 %v5459
  %5562 = vmatpush1.msra.mxu0 %v5458
  %5563 = vmatprep.subr.mxu0 %v5461
  %5564 = vmatpush1.msra.mxu0 %v5460
  %5565 = vmatprep.subr.mxu0 %v5463
  %5566 = vmatpush1.msra.mxu0 %v5462
  %5567 = vmatprep.subr.mxu0 %v5465
  %5568 = vmatpush1.msra.mxu0 %v5464
  %5569 = vmatprep.subr.mxu0 %v5467
  %5570 = vmatpush1.msra.mxu0 %v5466
  %5571 = vmatprep.subr.mxu0 %v5469
  %5572 = vmatpush1.msra.mxu0 %v5468
  %5573 = vmatprep.subr.mxu0 %v5471
  %5574 = vmatpush1.msra.mxu0 %v5470
  %5575 = vmatprep.subr.mxu0 %v5473
  %5576 = vmatpush1.msra.mxu0 %v5472
  %5577 = vmatprep.subr.mxu0 %v5475
  %5578 = vmatpush1.msra.mxu0 %v5474
  %5579 = vmatprep.subr.mxu0 %v5477
  %5580 = vmatpush1.msra.mxu0 %v5476
  %5581 = vmatprep.subr.mxu0 0.0
  %5582 = vmatpush1.msra.mxu0 0.0
  %5583 = vmatprep.subr.mxu0 0.0
  %5584 = vmatpush1.msra.mxu0 0.0
  %5585 = vmatprep.subr.mxu0 0.0
  %5586 = vmatpush1.msra.mxu0 0.0
  %5587 = vmatprep.subr.mxu0 0.0
  %5588 = vmatpush1.msra.mxu0 0.0
  %5589 = vmatprep.subr.mxu0 0.0
  %5590 = vmatpush1.msra.mxu0 0.0
  %5591 = vmatprep.subr.mxu0 0.0
  %5592 = vmatpush1.msra.mxu0 0.0
  %5593 = vmatprep.subr.mxu0 0.0
  %5594 = vmatpush1.msra.mxu0 0.0
  %5595 = vmatprep.subr.mxu0 0.0
  %5596 = vmatpush1.msra.mxu0 0.0
  %5597 = vmatprep.subr.mxu0 0.0
  %5598 = vmatpush1.msra.mxu0 0.0
  %5599 = vmatprep.subr.mxu0 0.0
  %5600 = vmatpush1.msra.mxu0 0.0
  %5601 = vmatprep.subr.mxu0 0.0
  %5602 = vmatpush1.msra.mxu0 0.0
  %5603 = vmatprep.subr.mxu0 0.0
  %5604 = vmatpush1.msra.mxu0 0.0
  %5605 = vmatprep.subr.mxu0 0.0
  %5606 = vmatpush1.msra.mxu0 0.0
  %5607 = vmatprep.subr.mxu0 0.0
  %5608 = vmatpush1.msra.mxu0 0.0
  %5609 = vmatprep.subr.mxu0 0.0
  %5610 = vmatpush1.msra.mxu0 0.0
  %5611 = vmatprep.subr.mxu0 0.0
  %5612 = vmatpush1.msra.mxu0 0.0
  %5613 = vmatprep.mubr.f32.mxu0 0.0
  %5614 = vmatmul.mubr.f32.gmra.mrb[0].mxu0 %v3378
  %v5615 = vpop.f32.mrb[0].mxu0
  %v5616 = vadd.f32 %v5545, %v5615
  %v5617 = vpop.f32.mrb[0].mxu0
  %v5618 = vadd.f32 %v5547, %v5617
  %5619 = vdwg.mxu0
  %5620 = vmatprep.subr.mxu0 %v4722
  %5621 = vmatpush1.msra.mxu0 %v4721
  %5622 = vmatprep.subr.mxu0 %v4724
  %5623 = vmatpush1.msra.mxu0 %v4723
  %5624 = vmatprep.subr.mxu0 %v4726
  %5625 = vmatpush1.msra.mxu0 %v4725
  %5626 = vmatprep.subr.mxu0 %v4728
  %5627 = vmatpush1.msra.mxu0 %v4727
  %5628 = vmatprep.subr.mxu0 %v4730
  %5629 = vmatpush1.msra.mxu0 %v4729
  %5630 = vmatprep.subr.mxu0 %v4732
  %5631 = vmatpush1.msra.mxu0 %v4731
  %5632 = vmatprep.subr.mxu0 %v4734
  %5633 = vmatpush1.msra.mxu0 %v4733
  %5634 = vmatprep.subr.mxu0 %v4736
  %5635 = vmatpush1.msra.mxu0 %v4735
  %5636 = vmatprep.subr.mxu0 %v4738
  %5637 = vmatpush1.msra.mxu0 %v4737
  %5638 = vmatprep.subr.mxu0 %v4740
  %5639 = vmatpush1.msra.mxu0 %v4739
  %5640 = vmatprep.subr.mxu0 %v4742
  %5641 = vmatpush1.msra.mxu0 %v4741
  %5642 = vmatprep.subr.mxu0 %v4744
  %5643 = vmatpush1.msra.mxu0 %v4743
  %5644 = vmatprep.subr.mxu0 %v4746
  %5645 = vmatpush1.msra.mxu0 %v4745
  %5646 = vmatprep.subr.mxu0 %v4748
  %5647 = vmatpush1.msra.mxu0 %v4747
  %5648 = vmatprep.subr.mxu0 %v4750
  %5649 = vmatpush1.msra.mxu0 %v4749
  %5650 = vmatprep.subr.mxu0 %v4752
  %5651 = vmatpush1.msra.mxu0 %v4751
  %5652 = vmatprep.subr.mxu0 0.0
  %5653 = vmatpush1.msra.mxu0 0.0
  %5654 = vmatprep.subr.mxu0 0.0
  %5655 = vmatpush1.msra.mxu0 0.0
  %5656 = vmatprep.subr.mxu0 0.0
  %5657 = vmatpush1.msra.mxu0 0.0
  %5658 = vmatprep.subr.mxu0 0.0
  %5659 = vmatpush1.msra.mxu0 0.0
  %5660 = vmatprep.subr.mxu0 0.0
  %5661 = vmatpush1.msra.mxu0 0.0
  %5662 = vmatprep.subr.mxu0 0.0
  %5663 = vmatpush1.msra.mxu0 0.0
  %5664 = vmatprep.subr.mxu0 0.0
  %5665 = vmatpush1.msra.mxu0 0.0
  %5666 = vmatprep.subr.mxu0 0.0
  %5667 = vmatpush1.msra.mxu0 0.0
  %5668 = vmatprep.subr.mxu0 0.0
  %5669 = vmatpush1.msra.mxu0 0.0
  %5670 = vmatprep.subr.mxu0 0.0
  %5671 = vmatpush1.msra.mxu0 0.0
  %5672 = vmatprep.subr.mxu0 0.0
  %5673 = vmatpush1.msra.mxu0 0.0
  %5674 = vmatprep.subr.mxu0 0.0
  %5675 = vmatpush1.msra.mxu0 0.0
  %5676 = vmatprep.subr.mxu0 0.0
  %5677 = vmatpush1.msra.mxu0 0.0
  %5678 = vmatprep.subr.mxu0 0.0
  %5679 = vmatpush1.msra.mxu0 0.0
  %5680 = vmatprep.subr.mxu0 0.0
  %5681 = vmatpush1.msra.mxu0 0.0
  %5682 = vmatprep.subr.mxu0 0.0
  %5683 = vmatpush1.msra.mxu0 0.0
  %5684 = vmatprep.mubr.f32.mxu0 0.0
  %5685 = vmatmul.mubr.f32.gmra.mrb[0].mxu0 %v4356
  %v5686 = vpop.f32.mrb[0].mxu0
  %v5687 = vadd.f32 0.0, %v5686
  %v5688 = vpop.f32.mrb[0].mxu0
  %v5689 = vadd.f32 0.0, %v5688
  %5690 = vdwg.mxu0
  %v5691 = vadd.f32 %v5616, %v5687
  %v5692 = vadd.f32 %v5618, %v5689
  %5693 = vmatprep.subr.mxu0 %v3930
  %5694 = vmatpush1.msra.mxu0 %v3929
  %5695 = vmatprep.subr.mxu0 %v3932
  %5696 = vmatpush1.msra.mxu0 %v3931
  %5697 = vmatprep.subr.mxu0 %v3934
  %5698 = vmatpush1.msra.mxu0 %v3933
  %5699 = vmatprep.subr.mxu0 %v3936
  %5700 = vmatpush1.msra.mxu0 %v3935
  %5701 = vmatprep.subr.mxu0 %v3938
  %5702 = vmatpush1.msra.mxu0 %v3937
  %5703 = vmatprep.subr.mxu0 %v3940
  %5704 = vmatpush1.msra.mxu0 %v3939
  %5705 = vmatprep.subr.mxu0 %v3942
  %5706 = vmatpush1.msra.mxu0 %v3941
  %5707 = vmatprep.subr.mxu0 %v3944
  %5708 = vmatpush1.msra.mxu0 %v3943
  %5709 = vmatprep.subr.mxu0 %v3946
  %5710 = vmatpush1.msra.mxu0 %v3945
  %5711 = vmatprep.subr.mxu0 %v3948
  %5712 = vmatpush1.msra.mxu0 %v3947
  %5713 = vmatprep.subr.mxu0 %v3950
  %5714 = vmatpush1.msra.mxu0 %v3949
  %5715 = vmatprep.subr.mxu0 %v3952
  %5716 = vmatpush1.msra.mxu0 %v3951
  %5717 = vmatprep.subr.mxu0 %v3954
  %5718 = vmatpush1.msra.mxu0 %v3953
  %5719 = vmatprep.subr.mxu0 %v3956
  %5720 = vmatpush1.msra.mxu0 %v3955
  %5721 = vmatprep.subr.mxu0 %v3958
  %5722 = vmatpush1.msra.mxu0 %v3957
  %5723 = vmatprep.subr.mxu0 %v3960
  %5724 = vmatpush1.msra.mxu0 %v3959
  %5725 = vmatprep.subr.mxu0 0.0
  %5726 = vmatpush1.msra.mxu0 0.0
  %5727 = vmatprep.subr.mxu0 0.0
  %5728 = vmatpush1.msra.mxu0 0.0
  %5729 = vmatprep.subr.mxu0 0.0
  %5730 = vmatpush1.msra.mxu0 0.0
  %5731 = vmatprep.subr.mxu0 0.0
  %5732 = vmatpush1.msra.mxu0 0.0
  %5733 = vmatprep.subr.mxu0 0.0
  %5734 = vmatpush1.msra.mxu0 0.0
  %5735 = vmatprep.subr.mxu0 0.0
  %5736 = vmatpush1.msra.mxu0 0.0
  %5737 = vmatprep.subr.mxu0 0.0
  %5738 = vmatpush1.msra.mxu0 0.0
  %5739 = vmatprep.subr.mxu0 0.0
  %5740 = vmatpush1.msra.mxu0 0.0
  %5741 = vmatprep.subr.mxu0 0.0
  %5742 = vmatpush1.msra.mxu0 0.0
  %5743 = vmatprep.subr.mxu0 0.0
  %5744 = vmatpush1.msra.mxu0 0.0
  %5745 = vmatprep.subr.mxu0 0.0
  %5746 = vmatpush1.msra.mxu0 0.0
  %5747 = vmatprep.subr.mxu0 0.0
  %5748 = vmatpush1.msra.mxu0 0.0
  %5749 = vmatprep.subr.mxu0 0.0
  %5750 = vmatpush1.msra.mxu0 0.0
  %5751 = vmatprep.subr.mxu0 0.0
  %5752 = vmatpush1.msra.mxu0 0.0
  %5753 = vmatprep.subr.mxu0 0.0
  %5754 = vmatpush1.msra.mxu0 0.0
  %5755 = vmatprep.subr.mxu0 0.0
  %5756 = vmatpush1.msra.mxu0 0.0
  %5757 = vmatprep.mubr.f32.mxu0 0.0
  %5758 = vmatmul.mubr.f32.gmra.mrb[0].mxu0 %v3699
  %v5759 = vpop.f32.mrb[0].mxu0
  %v5760 = vadd.f32 0.0, %v5759
  %v5761 = vpop.f32.mrb[0].mxu0
  %v5762 = vadd.f32 0.0, %v5761
  %5763 = vdwg.mxu0
  %v5764 = vadd.f32 %v5691, %v5760
  %v5765 = vadd.f32 %v5692, %v5762
  %5766 = vmatprep.subr.mxu0 %v2957
  %5767 = vmatpush1.msra.mxu0 %v2956
  %5768 = vmatprep.subr.mxu0 %v2959
  %5769 = vmatpush1.msra.mxu0 %v2958
  %5770 = vmatprep.subr.mxu0 %v2961
  %5771 = vmatpush1.msra.mxu0 %v2960
  %5772 = vmatprep.subr.mxu0 %v2963
  %5773 = vmatpush1.msra.mxu0 %v2962
  %5774 = vmatprep.subr.mxu0 %v2965
  %5775 = vmatpush1.msra.mxu0 %v2964
  %5776 = vmatprep.subr.mxu0 %v2967
  %5777 = vmatpush1.msra.mxu0 %v2966
  %5778 = vmatprep.subr.mxu0 %v2969
  %5779 = vmatpush1.msra.mxu0 %v2968
  %5780 = vmatprep.subr.mxu0 %v2971
  %5781 = vmatpush1.msra.mxu0 %v2970
  %5782 = vmatprep.subr.mxu0 %v2973
  %5783 = vmatpush1.msra.mxu0 %v2972
  %5784 = vmatprep.subr.mxu0 %v2975
  %5785 = vmatpush1.msra.mxu0 %v2974
  %5786 = vmatprep.subr.mxu0 %v2977
  %5787 = vmatpush1.msra.mxu0 %v2976
  %5788 = vmatprep.subr.mxu0 %v2979
  %5789 = vmatpush1.msra.mxu0 %v2978
  %5790 = vmatprep.subr.mxu0 %v2981
  %5791 = vmatpush1.msra.mxu0 %v2980
  %5792 = vmatprep.subr.mxu0 %v2983
  %5793 = vmatpush1.msra.mxu0 %v2982
  %5794 = vmatprep.subr.mxu0 %v2985
  %5795 = vmatpush1.msra.mxu0 %v2984
  %5796 = vmatprep.subr.mxu0 %v2987
  %5797 = vmatpush1.msra.mxu0 %v2986
  %5798 = vmatprep.subr.mxu0 0.0
  %5799 = vmatpush1.msra.mxu0 0.0
  %5800 = vmatprep.subr.mxu0 0.0
  %5801 = vmatpush1.msra.mxu0 0.0
  %5802 = vmatprep.subr.mxu0 0.0
  %5803 = vmatpush1.msra.mxu0 0.0
  %5804 = vmatprep.subr.mxu0 0.0
  %5805 = vmatpush1.msra.mxu0 0.0
  %5806 = vmatprep.subr.mxu0 0.0
  %5807 = vmatpush1.msra.mxu0 0.0
  %5808 = vmatprep.subr.mxu0 0.0
  %5809 = vmatpush1.msra.mxu0 0.0
  %5810 = vmatprep.subr.mxu0 0.0
  %5811 = vmatpush1.msra.mxu0 0.0
  %5812 = vmatprep.subr.mxu0 0.0
  %5813 = vmatpush1.msra.mxu0 0.0
  %5814 = vmatprep.subr.mxu0 0.0
  %5815 = vmatpush1.msra.mxu0 0.0
  %5816 = vmatprep.subr.mxu0 0.0
  %5817 = vmatpush1.msra.mxu0 0.0
  %5818 = vmatprep.subr.mxu0 0.0
  %5819 = vmatpush1.msra.mxu0 0.0
  %5820 = vmatprep.subr.mxu0 0.0
  %5821 = vmatpush1.msra.mxu0 0.0
  %5822 = vmatprep.subr.mxu0 0.0
  %5823 = vmatpush1.msra.mxu0 0.0
  %5824 = vmatprep.subr.mxu0 0.0
  %5825 = vmatpush1.msra.mxu0 0.0
  %5826 = vmatprep.subr.mxu0 0.0
  %5827 = vmatpush1.msra.mxu0 0.0
  %5828 = vmatprep.subr.mxu0 0.0
  %5829 = vmatpush1.msra.mxu0 0.0
  %5830 = vmatprep.mubr.f32.mxu0 0.0
  %5831 = vmatmul.mubr.f32.gmra.mrb[0].mxu0 %v3806
  %v5832 = vpop.f32.mrb[0].mxu0
  %v5833 = vadd.f32 0.0, %v5832
  %v5834 = vpop.f32.mrb[0].mxu0
  %v5835 = vadd.f32 0.0, %v5834
  %5836 = vdwg.mxu0
  %v5837 = vadd.f32 %v5764, %v5833
  %v5838 = vadd.f32 %v5765, %v5835
  %5839 = vmatprep.subr.mxu0 %v2991
  %5840 = vmatpush1.msra.mxu0 %v2990
  %5841 = vmatprep.subr.mxu0 %v2993
  %5842 = vmatpush1.msra.mxu0 %v2992
  %5843 = vmatprep.subr.mxu0 %v2995
  %5844 = vmatpush1.msra.mxu0 %v2994
  %5845 = vmatprep.subr.mxu0 %v2997
  %5846 = vmatpush1.msra.mxu0 %v2996
  %5847 = vmatprep.subr.mxu0 %v2999
  %5848 = vmatpush1.msra.mxu0 %v2998
  %5849 = vmatprep.subr.mxu0 %v3001
  %5850 = vmatpush1.msra.mxu0 %v3000
  %5851 = vmatprep.subr.mxu0 %v3003
  %5852 = vmatpush1.msra.mxu0 %v3002
  %5853 = vmatprep.subr.mxu0 %v3005
  %5854 = vmatpush1.msra.mxu0 %v3004
  %5855 = vmatprep.subr.mxu0 %v3007
  %5856 = vmatpush1.msra.mxu0 %v3006
  %5857 = vmatprep.subr.mxu0 %v3009
  %5858 = vmatpush1.msra.mxu0 %v3008
  %5859 = vmatprep.subr.mxu0 %v3011
  %5860 = vmatpush1.msra.mxu0 %v3010
  %5861 = vmatprep.subr.mxu0 %v3013
  %5862 = vmatpush1.msra.mxu0 %v3012
  %5863 = vmatprep.subr.mxu0 %v3015
  %5864 = vmatpush1.msra.mxu0 %v3014
  %5865 = vmatprep.subr.mxu0 %v3017
  %5866 = vmatpush1.msra.mxu0 %v3016
  %5867 = vmatprep.subr.mxu0 %v3019
  %5868 = vmatpush1.msra.mxu0 %v3018
  %5869 = vmatprep.subr.mxu0 %v3021
  %5870 = vmatpush1.msra.mxu0 %v3020
  %5871 = vmatprep.subr.mxu0 0.0
  %5872 = vmatpush1.msra.mxu0 0.0
  %5873 = vmatprep.subr.mxu0 0.0
  %5874 = vmatpush1.msra.mxu0 0.0
  %5875 = vmatprep.subr.mxu0 0.0
  %5876 = vmatpush1.msra.mxu0 0.0
  %5877 = vmatprep.subr.mxu0 0.0
  %5878 = vmatpush1.msra.mxu0 0.0
  %5879 = vmatprep.subr.mxu0 0.0
  %5880 = vmatpush1.msra.mxu0 0.0
  %5881 = vmatprep.subr.mxu0 0.0
  %5882 = vmatpush1.msra.mxu0 0.0
  %5883 = vmatprep.subr.mxu0 0.0
  %5884 = vmatpush1.msra.mxu0 0.0
  %5885 = vmatprep.subr.mxu0 0.0
  %5886 = vmatpush1.msra.mxu0 0.0
  %5887 = vmatprep.subr.mxu0 0.0
  %5888 = vmatpush1.msra.mxu0 0.0
  %5889 = vmatprep.subr.mxu0 0.0
  %5890 = vmatpush1.msra.mxu0 0.0
  %5891 = vmatprep.subr.mxu0 0.0
  %5892 = vmatpush1.msra.mxu0 0.0
  %5893 = vmatprep.subr.mxu0 0.0
  %5894 = vmatpush1.msra.mxu0 0.0
  %5895 = vmatprep.subr.mxu0 0.0
  %5896 = vmatpush1.msra.mxu0 0.0
  %5897 = vmatprep.subr.mxu0 0.0
  %5898 = vmatpush1.msra.mxu0 0.0
  %5899 = vmatprep.subr.mxu0 0.0
  %5900 = vmatpush1.msra.mxu0 0.0
  %5901 = vmatprep.subr.mxu0 0.0
  %5902 = vmatpush1.msra.mxu0 0.0
  %5903 = vmatprep.mubr.f32.mxu0 0.0
  %5904 = vmatmul.mubr.f32.gmra.mrb[0].mxu0 %v4609
  %v5905 = vpop.f32.mrb[0].mxu0
  %v5906 = vadd.f32 0.0, %v5905
  %v5907 = vpop.f32.mrb[0].mxu0
  %v5908 = vadd.f32 0.0, %v5907
  %5909 = vdwg.mxu0
  %v5910 = vadd.f32 %v5837, %v5906
  %v5911 = vadd.f32 %v5838, %v5908
  %5912 = vmatprep.subr.mxu0 %v4179
  %5913 = vmatpush1.msra.mxu0 %v4178
  %5914 = vmatprep.subr.mxu0 %v4181
  %5915 = vmatpush1.msra.mxu0 %v4180
  %5916 = vmatprep.subr.mxu0 %v4183
  %5917 = vmatpush1.msra.mxu0 %v4182
  %5918 = vmatprep.subr.mxu0 %v4185
  %5919 = vmatpush1.msra.mxu0 %v4184
  %5920 = vmatprep.subr.mxu0 %v4187
  %5921 = vmatpush1.msra.mxu0 %v4186
  %5922 = vmatprep.subr.mxu0 %v4189
  %5923 = vmatpush1.msra.mxu0 %v4188
  %5924 = vmatprep.subr.mxu0 %v4191
  %5925 = vmatpush1.msra.mxu0 %v4190
  %5926 = vmatprep.subr.mxu0 %v4193
  %5927 = vmatpush1.msra.mxu0 %v4192
  %5928 = vmatprep.subr.mxu0 %v4195
  %5929 = vmatpush1.msra.mxu0 %v4194
  %5930 = vmatprep.subr.mxu0 %v4197
  %5931 = vmatpush1.msra.mxu0 %v4196
  %5932 = vmatprep.subr.mxu0 %v4199
  %5933 = vmatpush1.msra.mxu0 %v4198
  %5934 = vmatprep.subr.mxu0 %v4201
  %5935 = vmatpush1.msra.mxu0 %v4200
  %5936 = vmatprep.subr.mxu0 %v4203
  %5937 = vmatpush1.msra.mxu0 %v4202
  %5938 = vmatprep.subr.mxu0 %v4205
  %5939 = vmatpush1.msra.mxu0 %v4204
  %5940 = vmatprep.subr.mxu0 %v4207
  %5941 = vmatpush1.msra.mxu0 %v4206
  %5942 = vmatprep.subr.mxu0 %v4209
  %5943 = vmatpush1.msra.mxu0 %v4208
  %5944 = vmatprep.subr.mxu0 0.0
  %5945 = vmatpush1.msra.mxu0 0.0
  %5946 = vmatprep.subr.mxu0 0.0
  %5947 = vmatpush1.msra.mxu0 0.0
  %5948 = vmatprep.subr.mxu0 0.0
  %5949 = vmatpush1.msra.mxu0 0.0
  %5950 = vmatprep.subr.mxu0 0.0
  %5951 = vmatpush1.msra.mxu0 0.0
  %5952 = vmatprep.subr.mxu0 0.0
  %5953 = vmatpush1.msra.mxu0 0.0
  %5954 = vmatprep.subr.mxu0 0.0
  %5955 = vmatpush1.msra.mxu0 0.0
  %5956 = vmatprep.subr.mxu0 0.0
  %5957 = vmatpush1.msra.mxu0 0.0
  %5958 = vmatprep.subr.mxu0 0.0
  %5959 = vmatpush1.msra.mxu0 0.0
  %5960 = vmatprep.subr.mxu0 0.0
  %5961 = vmatpush1.msra.mxu0 0.0
  %5962 = vmatprep.subr.mxu0 0.0
  %5963 = vmatpush1.msra.mxu0 0.0
  %5964 = vmatprep.subr.mxu0 0.0
  %5965 = vmatpush1.msra.mxu0 0.0
  %5966 = vmatprep.subr.mxu0 0.0
  %5967 = vmatpush1.msra.mxu0 0.0
  %5968 = vmatprep.subr.mxu0 0.0
  %5969 = vmatpush1.msra.mxu0 0.0
  %5970 = vmatprep.subr.mxu0 0.0
  %5971 = vmatpush1.msra.mxu0 0.0
  %5972 = vmatprep.subr.mxu0 0.0
  %5973 = vmatpush1.msra.mxu0 0.0
  %5974 = vmatprep.subr.mxu0 0.0
  %5975 = vmatpush1.msra.mxu0 0.0
  %5976 = vmatprep.mubr.f32.mxu0 0.0
  %5977 = vmatmul.mubr.f32.gmra.mrb[0].mxu0 %v5294
  %v5978 = vpop.f32.mrb[0].mxu0
  %v5979 = vadd.f32 0.0, %v5978
  %v5980 = vpop.f32.mrb[0].mxu0
  %v5981 = vadd.f32 0.0, %v5980
  %5982 = vdwg.mxu0
  %v5983 = vadd.f32 %v5910, %v5979
  %v5984 = vadd.f32 %v5911, %v5981
  %5985 = vmatprep.subr.mxu0 %v3274
  %5986 = vmatpush1.msra.mxu0 %v3273
  %5987 = vmatprep.subr.mxu0 %v3276
  %5988 = vmatpush1.msra.mxu0 %v3275
  %5989 = vmatprep.subr.mxu0 %v3278
  %5990 = vmatpush1.msra.mxu0 %v3277
  %5991 = vmatprep.subr.mxu0 %v3280
  %5992 = vmatpush1.msra.mxu0 %v3279
  %5993 = vmatprep.subr.mxu0 %v3282
  %5994 = vmatpush1.msra.mxu0 %v3281
  %5995 = vmatprep.subr.mxu0 %v3284
  %5996 = vmatpush1.msra.mxu0 %v3283
  %5997 = vmatprep.subr.mxu0 %v3286
  %5998 = vmatpush1.msra.mxu0 %v3285
  %5999 = vmatprep.subr.mxu0 %v3288
  %6000 = vmatpush1.msra.mxu0 %v3287
  %6001 = vmatprep.subr.mxu0 %v3290
  %6002 = vmatpush1.msra.mxu0 %v3289
  %6003 = vmatprep.subr.mxu0 %v3292
  %6004 = vmatpush1.msra.mxu0 %v3291
  %6005 = vmatprep.subr.mxu0 %v3294
  %6006 = vmatpush1.msra.mxu0 %v3293
  %6007 = vmatprep.subr.mxu0 %v3296
  %6008 = vmatpush1.msra.mxu0 %v3295
  %6009 = vmatprep.subr.mxu0 %v3298
  %6010 = vmatpush1.msra.mxu0 %v3297
  %6011 = vmatprep.subr.mxu0 %v3300
  %6012 = vmatpush1.msra.mxu0 %v3299
  %6013 = vmatprep.subr.mxu0 %v3302
  %6014 = vmatpush1.msra.mxu0 %v3301
  %6015 = vmatprep.subr.mxu0 %v3304
  %6016 = vmatpush1.msra.mxu0 %v3303
  %6017 = vmatprep.subr.mxu0 0.0
  %6018 = vmatpush1.msra.mxu0 0.0
  %6019 = vmatprep.subr.mxu0 0.0
  %6020 = vmatpush1.msra.mxu0 0.0
  %6021 = vmatprep.subr.mxu0 0.0
  %6022 = vmatpush1.msra.mxu0 0.0
  %6023 = vmatprep.subr.mxu0 0.0
  %6024 = vmatpush1.msra.mxu0 0.0
  %6025 = vmatprep.subr.mxu0 0.0
  %6026 = vmatpush1.msra.mxu0 0.0
  %6027 = vmatprep.subr.mxu0 0.0
  %6028 = vmatpush1.msra.mxu0 0.0
  %6029 = vmatprep.subr.mxu0 0.0
  %6030 = vmatpush1.msra.mxu0 0.0
  %6031 = vmatprep.subr.mxu0 0.0
  %6032 = vmatpush1.msra.mxu0 0.0
  %6033 = vmatprep.subr.mxu0 0.0
  %6034 = vmatpush1.msra.mxu0 0.0
  %6035 = vmatprep.subr.mxu0 0.0
  %6036 = vmatpush1.msra.mxu0 0.0
  %6037 = vmatprep.subr.mxu0 0.0
  %6038 = vmatpush1.msra.mxu0 0.0
  %6039 = vmatprep.subr.mxu0 0.0
  %6040 = vmatpush1.msra.mxu0 0.0
  %6041 = vmatprep.subr.mxu0 0.0
  %6042 = vmatpush1.msra.mxu0 0.0
  %6043 = vmatprep.subr.mxu0 0.0
  %6044 = vmatpush1.msra.mxu0 0.0
  %6045 = vmatprep.subr.mxu0 0.0
  %6046 = vmatpush1.msra.mxu0 0.0
  %6047 = vmatprep.subr.mxu0 0.0
  %6048 = vmatpush1.msra.mxu0 0.0
  %6049 = vmatprep.mubr.f32.mxu0 0.0
  %6050 = vmatmul.mubr.f32.gmra.mrb[0].mxu0 %v5368
  %v6051 = vpop.f32.mrb[0].mxu0
  %v6052 = vadd.f32 0.0, %v6051
  %v6053 = vpop.f32.mrb[0].mxu0
  %v6054 = vadd.f32 0.0, %v6053
  %6055 = vdwg.mxu0
  %v6056 = vadd.f32 %v5983, %v6052
  %v6057 = vadd.f32 %v5984, %v6054
  %v6058 = vld [vmem:[#allocation3 + $0x1e] sm:$0x3]
  %6059 = vmatprep.subr.mxu0 %v3381
  %6060 = vmatpush1.msra.mxu0 %v3380
  %6061 = vmatprep.subr.mxu0 %v3383
  %6062 = vmatpush1.msra.mxu0 %v3382
  %6063 = vmatprep.subr.mxu0 %v3385
  %6064 = vmatpush1.msra.mxu0 %v3384
  %6065 = vmatprep.subr.mxu0 %v3387
  %6066 = vmatpush1.msra.mxu0 %v3386
  %6067 = vmatprep.subr.mxu0 %v3389
  %6068 = vmatpush1.msra.mxu0 %v3388
  %6069 = vmatprep.subr.mxu0 %v3391
  %6070 = vmatpush1.msra.mxu0 %v3390
  %6071 = vmatprep.subr.mxu0 %v3393
  %6072 = vmatpush1.msra.mxu0 %v3392
  %6073 = vmatprep.subr.mxu0 %v3395
  %6074 = vmatpush1.msra.mxu0 %v3394
  %6075 = vmatprep.subr.mxu0 %v3397
  %6076 = vmatpush1.msra.mxu0 %v3396
  %6077 = vmatprep.subr.mxu0 %v3399
  %6078 = vmatpush1.msra.mxu0 %v3398
  %6079 = vmatprep.subr.mxu0 %v3401
  %6080 = vmatpush1.msra.mxu0 %v3400
  %6081 = vmatprep.subr.mxu0 %v3403
  %6082 = vmatpush1.msra.mxu0 %v3402
  %6083 = vmatprep.subr.mxu0 %v3405
  %6084 = vmatpush1.msra.mxu0 %v3404
  %6085 = vmatprep.subr.mxu0 %v3407
  %6086 = vmatpush1.msra.mxu0 %v3406
  %6087 = vmatprep.subr.mxu0 %v3409
  %6088 = vmatpush1.msra.mxu0 %v3408
  %6089 = vmatprep.subr.mxu0 %v3411
  %6090 = vmatpush1.msra.mxu0 %v3410
  %6091 = vmatprep.subr.mxu0 0.0
  %6092 = vmatpush1.msra.mxu0 0.0
  %6093 = vmatprep.subr.mxu0 0.0
  %6094 = vmatpush1.msra.mxu0 0.0
  %6095 = vmatprep.subr.mxu0 0.0
  %6096 = vmatpush1.msra.mxu0 0.0
  %6097 = vmatprep.subr.mxu0 0.0
  %6098 = vmatpush1.msra.mxu0 0.0
  %6099 = vmatprep.subr.mxu0 0.0
  %6100 = vmatpush1.msra.mxu0 0.0
  %6101 = vmatprep.subr.mxu0 0.0
  %6102 = vmatpush1.msra.mxu0 0.0
  %6103 = vmatprep.subr.mxu0 0.0
  %6104 = vmatpush1.msra.mxu0 0.0
  %6105 = vmatprep.subr.mxu0 0.0
  %6106 = vmatpush1.msra.mxu0 0.0
  %6107 = vmatprep.subr.mxu0 0.0
  %6108 = vmatpush1.msra.mxu0 0.0
  %6109 = vmatprep.subr.mxu0 0.0
  %6110 = vmatpush1.msra.mxu0 0.0
  %6111 = vmatprep.subr.mxu0 0.0
  %6112 = vmatpush1.msra.mxu0 0.0
  %6113 = vmatprep.subr.mxu0 0.0
  %6114 = vmatpush1.msra.mxu0 0.0
  %6115 = vmatprep.subr.mxu0 0.0
  %6116 = vmatpush1.msra.mxu0 0.0
  %6117 = vmatprep.subr.mxu0 0.0
  %6118 = vmatpush1.msra.mxu0 0.0
  %6119 = vmatprep.subr.mxu0 0.0
  %6120 = vmatpush1.msra.mxu0 0.0
  %6121 = vmatprep.subr.mxu0 0.0
  %6122 = vmatpush1.msra.mxu0 0.0
  %6123 = vmatprep.mubr.f32.mxu0 0.0
  %6124 = vmatmul.mubr.f32.gmra.mrb[0].mxu0 %v6058
  %v6125 = vpop.f32.mrb[0].mxu0
  %v6126 = vadd.f32 0.0, %v6125
  %v6127 = vpop.f32.mrb[0].mxu0
  %v6128 = vadd.f32 0.0, %v6127
  %6129 = vdwg.mxu0
  %v6130 = vadd.f32 %v6056, %v6126
  %v6131 = vadd.f32 %v6057, %v6128
  %v6132 = vadd.f32 %v6130, %v3917
  %v6133 = vadd.f32 %v6131, %v3921
  %v6134 = vmax.f32 %v6132, 0.0
  %v6135 = vmax.f32 %v6133, 0.0
  %v6136 = vld [vmem:[%s10] sm:$0xff]
  %v6137 = vld [vmem:[%s10 + $0x8] sm:$0xff]
  %v6138 = vld [vmem:[%s10 + $0x10] sm:$0xff]
  %v6139 = vld [vmem:[%s10 + $0x18] sm:$0xff]
  %v6140 = vld [vmem:[%s10 + $0x20] sm:$0xff]
  %v6141 = vld [vmem:[%s10 + $0x28] sm:$0xff]
  %v6142 = vld [vmem:[%s10 + $0x30] sm:$0xff]
  %v6143 = vld [vmem:[%s10 + $0x38] sm:$0xff]
  %v6144 = vld [vmem:[%s10 + $0x40] sm:$0xff]
  %v6145 = vld [vmem:[%s10 + $0x48] sm:$0xff]
  %v6146 = vld [vmem:[%s10 + $0x50] sm:$0xff]
  %v6147 = vld [vmem:[%s10 + $0x58] sm:$0xff]
  %v6148 = vld [vmem:[%s10 + $0x60] sm:$0xff]
  %v6149 = vld [vmem:[%s10 + $0x68] sm:$0xff]
  %v6150 = vld [vmem:[%s10 + $0x70] sm:$0xff]
  %v6151 = vld [vmem:[%s10 + $0x78] sm:$0xff]
  %v6152 = vld [vmem:[%s10 + $0x80] sm:$0xff]
  %v6153 = vld [vmem:[%s10 + $0x88] sm:$0xff]
  %v6154 = vld [vmem:[%s10 + $0x90] sm:$0xff]
  %v6155 = vld [vmem:[%s10 + $0x98] sm:$0xff]
  %v6156 = vld [vmem:[%s10 + $0xa0] sm:$0xff]
  %v6157 = vld [vmem:[%s10 + $0xa8] sm:$0xff]
  %v6158 = vld [vmem:[%s10 + $0xb0] sm:$0xff]
  %v6159 = vld [vmem:[%s10 + $0xb8] sm:$0xff]
  %v6160 = vld [vmem:[%s10 + $0xc0] sm:$0xff]
  %v6161 = vld [vmem:[%s10 + $0xc8] sm:$0xff]
  %v6162 = vld [vmem:[%s10 + $0xd0] sm:$0xff]
  %v6163 = vld [vmem:[%s10 + $0xd8] sm:$0xff]
  %v6164 = vld [vmem:[%s10 + $0xe0] sm:$0xff]
  %v6165 = vld [vmem:[%s10 + $0xe8] sm:$0xff]
  %v6166 = vld [vmem:[%s10 + $0xf0] sm:$0xff]
  %v6167 = vld [vmem:[%s10 + $0xf8] sm:$0xff]
  %v6168 = vld [vmem:[%s10 + $0x100] sm:$0xff]
  %v6169 = vld [vmem:[%s10 + $0x108] sm:$0xff]
  %v6170 = vld [vmem:[%s10 + $0x110] sm:$0xff]
  %v6171 = vld [vmem:[%s10 + $0x118] sm:$0xff]
  %v6172 = vld [vmem:[%s10 + $0x120] sm:$0xff]
  %v6173 = vld [vmem:[%s10 + $0x128] sm:$0xff]
  %v6174 = vld [vmem:[%s10 + $0x130] sm:$0xff]
  %v6175 = vld [vmem:[%s10 + $0x138] sm:$0xff]
  %v6176 = vld [vmem:[%s10 + $0x140] sm:$0xff]
  %v6177 = vld [vmem:[%s10 + $0x148] sm:$0xff]
  %v6178 = vld [vmem:[%s10 + $0x150] sm:$0xff]
  %v6179 = vld [vmem:[%s10 + $0x158] sm:$0xff]
  %v6180 = vld [vmem:[%s10 + $0x160] sm:$0xff]
  %v6181 = vld [vmem:[%s10 + $0x168] sm:$0xff]
  %v6182 = vld [vmem:[%s10 + $0x170] sm:$0xff]
  %v6183 = vld [vmem:[%s10 + $0x178] sm:$0xff]
  %v6184 = vld [vmem:[%s10 + $0x180] sm:$0xff]
  %v6185 = vld [vmem:[%s10 + $0x188] sm:$0xff]
  %v6186 = vld [vmem:[%s10 + $0x190] sm:$0xff]
  %v6187 = vld [vmem:[%s10 + $0x198] sm:$0xff]
  %v6188 = vld [vmem:[%s10 + $0x1a0] sm:$0xff]
  %v6189 = vld [vmem:[%s10 + $0x1a8] sm:$0xff]
  %v6190 = vld [vmem:[%s10 + $0x1b0] sm:$0xff]
  %v6191 = vld [vmem:[%s10 + $0x1b8] sm:$0xff]
  %v6192 = vld [vmem:[%s10 + $0x1c0] sm:$0xff]
  %v6193 = vld [vmem:[%s10 + $0x1c8] sm:$0xff]
  %v6194 = vld [vmem:[%s10 + $0x1d0] sm:$0xff]
  %v6195 = vld [vmem:[%s10 + $0x1d8] sm:$0xff]
  %v6196 = vld [vmem:[%s10 + $0x1e0] sm:$0xff]
  %v6197 = vld [vmem:[%s10 + $0x1e8] sm:$0xff]
  %v6198 = vld [vmem:[%s10 + $0x1f0] sm:$0xff]
  %v6199 = vld [vmem:[%s10 + $0x1f8] sm:$0xff]
  %v6200 = vld [vmem:[%s10 + $0x200] sm:$0xff]
  %v6201 = vld [vmem:[%s10 + $0x208] sm:$0xff]
  %v6202 = vld [vmem:[%s10 + $0x210] sm:$0xff]
  %v6203 = vld [vmem:[%s10 + $0x218] sm:$0xff]
  %v6204 = vld [vmem:[%s10 + $0x220] sm:$0xff]
  %v6205 = vld [vmem:[%s10 + $0x228] sm:$0xff]
  %v6206 = vld [vmem:[%s10 + $0x230] sm:$0xff]
  %v6207 = vld [vmem:[%s10 + $0x238] sm:$0xff]
  %v6208 = vld [vmem:[%s10 + $0x240] sm:$0xff]
  %v6209 = vld [vmem:[%s10 + $0x248] sm:$0xff]
  %v6210 = vld [vmem:[%s10 + $0x250] sm:$0xff]
  %v6211 = vld [vmem:[%s10 + $0x258] sm:$0xff]
  %v6212 = vld [vmem:[%s10 + $0x260] sm:$0xff]
  %v6213 = vld [vmem:[%s10 + $0x268] sm:$0xff]
  %v6214 = vld [vmem:[%s10 + $0x270] sm:$0xff]
  %v6215 = vld [vmem:[%s10 + $0x278] sm:$0xff]
  %v6216 = vld [vmem:[%s10 + $0x280] sm:$0xff]
  %v6217 = vld [vmem:[%s10 + $0x288] sm:$0xff]
  %v6218 = vld [vmem:[%s10 + $0x290] sm:$0xff]
  %v6219 = vld [vmem:[%s10 + $0x298] sm:$0xff]
  %v6220 = vld [vmem:[%s10 + $0x2a0] sm:$0xff]
  %v6221 = vld [vmem:[%s10 + $0x2a8] sm:$0xff]
  %v6222 = vld [vmem:[%s10 + $0x2b0] sm:$0xff]
  %v6223 = vld [vmem:[%s10 + $0x2b8] sm:$0xff]
  %v6224 = vld [vmem:[%s10 + $0x2c0] sm:$0xff]
  %v6225 = vld [vmem:[%s10 + $0x2c8] sm:$0xff]
  %v6226 = vld [vmem:[%s10 + $0x2d0] sm:$0xff]
  %v6227 = vld [vmem:[%s10 + $0x2d8] sm:$0xff]
  %v6228 = vld [vmem:[%s10 + $0x2e0] sm:$0xff]
  %v6229 = vld [vmem:[%s10 + $0x2e8] sm:$0xff]
  %v6230 = vld [vmem:[%s10 + $0x2f0] sm:$0xff]
  %v6231 = vld [vmem:[%s10 + $0x2f8] sm:$0xff]
  %v6232 = vld [vmem:[%s10 + $0x300] sm:$0xff]
  %v6233 = vld [vmem:[%s10 + $0x308] sm:$0xff]
  %v6234 = vld [vmem:[%s10 + $0x310] sm:$0xff]
  %v6235 = vld [vmem:[%s10 + $0x318] sm:$0xff]
  %v6236 = vld [vmem:[%s10 + $0x320] sm:$0xff]
  %v6237 = vld [vmem:[%s10 + $0x328] sm:$0xff]
  %v6238 = vld [vmem:[%s10 + $0x330] sm:$0xff]
  %v6239 = vld [vmem:[%s10 + $0x338] sm:$0xff]
  %v6240 = vld [vmem:[%s10 + $0x340] sm:$0xff]
  %v6241 = vld [vmem:[%s10 + $0x348] sm:$0xff]
  %v6242 = vld [vmem:[%s10 + $0x350] sm:$0xff]
  %v6243 = vld [vmem:[%s10 + $0x358] sm:$0xff]
  %v6244 = vld [vmem:[%s10 + $0x360] sm:$0xff]
  %v6245 = vld [vmem:[%s10 + $0x368] sm:$0xff]
  %v6246 = vld [vmem:[%s10 + $0x370] sm:$0xff]
  %v6247 = vld [vmem:[%s10 + $0x378] sm:$0xff]
  %v6248 = vld [vmem:[%s10 + $0x380] sm:$0xff]
  %v6249 = vld [vmem:[%s10 + $0x388] sm:$0xff]
  %v6250 = vld [vmem:[%s10 + $0x390] sm:$0xff]
  %v6251 = vld [vmem:[%s10 + $0x398] sm:$0xff]
  %v6252 = vld [vmem:[%s10 + $0x3a0] sm:$0xff]
  %v6253 = vld [vmem:[%s10 + $0x3a8] sm:$0xff]
  %v6254 = vld [vmem:[%s10 + $0x3b0] sm:$0xff]
  %v6255 = vld [vmem:[%s10 + $0x3b8] sm:$0xff]
  %v6256 = vld [vmem:[%s10 + $0x3c0] sm:$0xff]
  %v6257 = vld [vmem:[%s10 + $0x3c8] sm:$0xff]
  %v6258 = vld [vmem:[%s10 + $0x3d0] sm:$0xff]
  %v6259 = vld [vmem:[%s10 + $0x3d8] sm:$0xff]
  %v6260 = vld [vmem:[%s10 + $0x3e0] sm:$0xff]
  %v6261 = vld [vmem:[%s10 + $0x3e8] sm:$0xff]
  %v6262 = vld [vmem:[%s10 + $0x3f0] sm:$0xff]
  %v6263 = vld [vmem:[%s10 + $0x3f8] sm:$0xff]
  %s6264 = scalar_lea.vmem %s10, 1024
  %v6265 = vld [vmem:[%s6264] sm:$0xff]
  %v6266 = vld [vmem:[%s6264 + $0x8] sm:$0xff]
  %v6267 = vld [vmem:[%s6264 + $0x10] sm:$0xff]
  %v6268 = vld [vmem:[%s6264 + $0x18] sm:$0xff]
  %v6269 = vld [vmem:[%s6264 + $0x20] sm:$0xff]
  %v6270 = vld [vmem:[%s6264 + $0x28] sm:$0xff]
  %v6271 = vld [vmem:[%s6264 + $0x30] sm:$0xff]
  %v6272 = vld [vmem:[%s6264 + $0x38] sm:$0xff]
  %v6273 = vld [vmem:[%s6264 + $0x40] sm:$0xff]
  %v6274 = vld [vmem:[%s6264 + $0x48] sm:$0xff]
  %v6275 = vld [vmem:[%s6264 + $0x50] sm:$0xff]
  %v6276 = vld [vmem:[%s6264 + $0x58] sm:$0xff]
  %v6277 = vld [vmem:[%s6264 + $0x60] sm:$0xff]
  %v6278 = vld [vmem:[%s6264 + $0x68] sm:$0xff]
  %v6279 = vld [vmem:[%s6264 + $0x70] sm:$0xff]
  %v6280 = vld [vmem:[%s6264 + $0x78] sm:$0xff]
  %v6281 = vld [vmem:[%s6264 + $0x80] sm:$0xff]
  %v6282 = vld [vmem:[%s6264 + $0x88] sm:$0xff]
  %v6283 = vld [vmem:[%s6264 + $0x90] sm:$0xff]
  %v6284 = vld [vmem:[%s6264 + $0x98] sm:$0xff]
  %v6285 = vld [vmem:[%s6264 + $0xa0] sm:$0xff]
  %v6286 = vld [vmem:[%s6264 + $0xa8] sm:$0xff]
  %v6287 = vld [vmem:[%s6264 + $0xb0] sm:$0xff]
  %v6288 = vld [vmem:[%s6264 + $0xb8] sm:$0xff]
  %v6289 = vld [vmem:[%s6264 + $0xc0] sm:$0xff]
  %v6290 = vld [vmem:[%s6264 + $0xc8] sm:$0xff]
  %v6291 = vld [vmem:[%s6264 + $0xd0] sm:$0xff]
  %v6292 = vld [vmem:[%s6264 + $0xd8] sm:$0xff]
  %v6293 = vld [vmem:[%s6264 + $0xe0] sm:$0xff]
  %v6294 = vld [vmem:[%s6264 + $0xe8] sm:$0xff]
  %v6295 = vld [vmem:[%s6264 + $0xf0] sm:$0xff]
  %v6296 = vld [vmem:[%s6264 + $0xf8] sm:$0xff]
  %v6297 = vld [vmem:[%s6264 + $0x100] sm:$0xff]
  %v6298 = vld [vmem:[%s6264 + $0x108] sm:$0xff]
  %v6299 = vld [vmem:[%s6264 + $0x110] sm:$0xff]
  %v6300 = vld [vmem:[%s6264 + $0x118] sm:$0xff]
  %v6301 = vld [vmem:[%s6264 + $0x120] sm:$0xff]
  %v6302 = vld [vmem:[%s6264 + $0x128] sm:$0xff]
  %v6303 = vld [vmem:[%s6264 + $0x130] sm:$0xff]
  %v6304 = vld [vmem:[%s6264 + $0x138] sm:$0xff]
  %v6305 = vld [vmem:[%s6264 + $0x140] sm:$0xff]
  %v6306 = vld [vmem:[%s6264 + $0x148] sm:$0xff]
  %v6307 = vld [vmem:[%s6264 + $0x150] sm:$0xff]
  %v6308 = vld [vmem:[%s6264 + $0x158] sm:$0xff]
  %v6309 = vld [vmem:[%s6264 + $0x160] sm:$0xff]
  %v6310 = vld [vmem:[%s6264 + $0x168] sm:$0xff]
  %v6311 = vld [vmem:[%s6264 + $0x170] sm:$0xff]
  %v6312 = vld [vmem:[%s6264 + $0x178] sm:$0xff]
  %v6313 = vld [vmem:[%s6264 + $0x180] sm:$0xff]
  %v6314 = vld [vmem:[%s6264 + $0x188] sm:$0xff]
  %v6315 = vld [vmem:[%s6264 + $0x190] sm:$0xff]
  %v6316 = vld [vmem:[%s6264 + $0x198] sm:$0xff]
  %v6317 = vld [vmem:[%s6264 + $0x1a0] sm:$0xff]
  %v6318 = vld [vmem:[%s6264 + $0x1a8] sm:$0xff]
  %v6319 = vld [vmem:[%s6264 + $0x1b0] sm:$0xff]
  %v6320 = vld [vmem:[%s6264 + $0x1b8] sm:$0xff]
  %v6321 = vld [vmem:[%s6264 + $0x1c0] sm:$0xff]
  %v6322 = vld [vmem:[%s6264 + $0x1c8] sm:$0xff]
  %v6323 = vld [vmem:[%s6264 + $0x1d0] sm:$0xff]
  %v6324 = vld [vmem:[%s6264 + $0x1d8] sm:$0xff]
  %v6325 = vld [vmem:[%s6264 + $0x1e0] sm:$0xff]
  %v6326 = vld [vmem:[%s6264 + $0x1e8] sm:$0xff]
  %v6327 = vld [vmem:[%s6264 + $0x1f0] sm:$0xff]
  %v6328 = vld [vmem:[%s6264 + $0x1f8] sm:$0xff]
  %v6329 = vld [vmem:[%s6264 + $0x200] sm:$0xff]
  %v6330 = vld [vmem:[%s6264 + $0x208] sm:$0xff]
  %v6331 = vld [vmem:[%s6264 + $0x210] sm:$0xff]
  %v6332 = vld [vmem:[%s6264 + $0x218] sm:$0xff]
  %v6333 = vld [vmem:[%s6264 + $0x220] sm:$0xff]
  %v6334 = vld [vmem:[%s6264 + $0x228] sm:$0xff]
  %v6335 = vld [vmem:[%s6264 + $0x230] sm:$0xff]
  %v6336 = vld [vmem:[%s6264 + $0x238] sm:$0xff]
  %v6337 = vld [vmem:[%s6264 + $0x240] sm:$0xff]
  %v6338 = vld [vmem:[%s6264 + $0x248] sm:$0xff]
  %v6339 = vld [vmem:[%s6264 + $0x250] sm:$0xff]
  %v6340 = vld [vmem:[%s6264 + $0x258] sm:$0xff]
  %v6341 = vld [vmem:[%s6264 + $0x260] sm:$0xff]
  %v6342 = vld [vmem:[%s6264 + $0x268] sm:$0xff]
  %v6343 = vld [vmem:[%s6264 + $0x270] sm:$0xff]
  %v6344 = vld [vmem:[%s6264 + $0x278] sm:$0xff]
  %v6345 = vld [vmem:[%s6264 + $0x280] sm:$0xff]
  %v6346 = vld [vmem:[%s6264 + $0x288] sm:$0xff]
  %v6347 = vld [vmem:[%s6264 + $0x290] sm:$0xff]
  %v6348 = vld [vmem:[%s6264 + $0x298] sm:$0xff]
  %v6349 = vld [vmem:[%s6264 + $0x2a0] sm:$0xff]
  %v6350 = vld [vmem:[%s6264 + $0x2a8] sm:$0xff]
  %v6351 = vld [vmem:[%s6264 + $0x2b0] sm:$0xff]
  %v6352 = vld [vmem:[%s6264 + $0x2b8] sm:$0xff]
  %v6353 = vld [vmem:[%s6264 + $0x2c0] sm:$0xff]
  %v6354 = vld [vmem:[%s6264 + $0x2c8] sm:$0xff]
  %v6355 = vld [vmem:[%s6264 + $0x2d0] sm:$0xff]
  %v6356 = vld [vmem:[%s6264 + $0x2d8] sm:$0xff]
  %v6357 = vld [vmem:[%s6264 + $0x2e0] sm:$0xff]
  %v6358 = vld [vmem:[%s6264 + $0x2e8] sm:$0xff]
  %v6359 = vld [vmem:[%s6264 + $0x2f0] sm:$0xff]
  %v6360 = vld [vmem:[%s6264 + $0x2f8] sm:$0xff]
  %v6361 = vld [vmem:[%s6264 + $0x300] sm:$0xff]
  %v6362 = vld [vmem:[%s6264 + $0x308] sm:$0xff]
  %v6363 = vld [vmem:[%s6264 + $0x310] sm:$0xff]
  %v6364 = vld [vmem:[%s6264 + $0x318] sm:$0xff]
  %v6365 = vld [vmem:[%s6264 + $0x320] sm:$0xff]
  %v6366 = vld [vmem:[%s6264 + $0x328] sm:$0xff]
  %v6367 = vld [vmem:[%s6264 + $0x330] sm:$0xff]
  %v6368 = vld [vmem:[%s6264 + $0x338] sm:$0xff]
  %v6369 = vld [vmem:[%s6264 + $0x340] sm:$0xff]
  %v6370 = vld [vmem:[%s6264 + $0x348] sm:$0xff]
  %v6371 = vld [vmem:[%s6264 + $0x350] sm:$0xff]
  %v6372 = vld [vmem:[%s6264 + $0x358] sm:$0xff]
  %v6373 = vld [vmem:[%s6264 + $0x360] sm:$0xff]
  %v6374 = vld [vmem:[%s6264 + $0x368] sm:$0xff]
  %v6375 = vld [vmem:[%s6264 + $0x370] sm:$0xff]
  %v6376 = vld [vmem:[%s6264 + $0x378] sm:$0xff]
  %v6377 = vld [vmem:[%s6264 + $0x380] sm:$0xff]
  %v6378 = vld [vmem:[%s6264 + $0x388] sm:$0xff]
  %v6379 = vld [vmem:[%s6264 + $0x390] sm:$0xff]
  %v6380 = vld [vmem:[%s6264 + $0x398] sm:$0xff]
  %v6381 = vld [vmem:[%s6264 + $0x3a0] sm:$0xff]
  %v6382 = vld [vmem:[%s6264 + $0x3a8] sm:$0xff]
  %v6383 = vld [vmem:[%s6264 + $0x3b0] sm:$0xff]
  %v6384 = vld [vmem:[%s6264 + $0x3b8] sm:$0xff]
  %v6385 = vld [vmem:[%s6264 + $0x3c0] sm:$0xff]
  %v6386 = vld [vmem:[%s6264 + $0x3c8] sm:$0xff]
  %v6387 = vld [vmem:[%s6264 + $0x3d0] sm:$0xff]
  %v6388 = vld [vmem:[%s6264 + $0x3d8] sm:$0xff]
  %v6389 = vld [vmem:[%s6264 + $0x3e0] sm:$0xff]
  %v6390 = vld [vmem:[%s6264 + $0x3e8] sm:$0xff]
  %v6391 = vld [vmem:[%s6264 + $0x3f0] sm:$0xff]
  %v6392 = vld [vmem:[%s6264 + $0x3f8] sm:$0xff]
  %6393 = vmatprep.subr.mxu0 %v6266
  %6394 = vmatpush1.msra.mxu0 %v6265
  %6395 = vmatprep.subr.mxu0 %v6270
  %6396 = vmatpush1.msra.mxu0 %v6269
  %6397 = vmatprep.subr.mxu0 %v6274
  %6398 = vmatpush1.msra.mxu0 %v6273
  %6399 = vmatprep.subr.mxu0 %v6278
  %6400 = vmatpush1.msra.mxu0 %v6277
  %6401 = vmatprep.subr.mxu0 %v6282
  %6402 = vmatpush1.msra.mxu0 %v6281
  %6403 = vmatprep.subr.mxu0 %v6286
  %6404 = vmatpush1.msra.mxu0 %v6285
  %6405 = vmatprep.subr.mxu0 %v6290
  %6406 = vmatpush1.msra.mxu0 %v6289
  %6407 = vmatprep.subr.mxu0 %v6294
  %6408 = vmatpush1.msra.mxu0 %v6293
  %6409 = vmatprep.subr.mxu0 %v6298
  %6410 = vmatpush1.msra.mxu0 %v6297
  %6411 = vmatprep.subr.mxu0 %v6302
  %6412 = vmatpush1.msra.mxu0 %v6301
  %6413 = vmatprep.subr.mxu0 %v6306
  %6414 = vmatpush1.msra.mxu0 %v6305
  %6415 = vmatprep.subr.mxu0 %v6310
  %6416 = vmatpush1.msra.mxu0 %v6309
  %6417 = vmatprep.subr.mxu0 %v6314
  %6418 = vmatpush1.msra.mxu0 %v6313
  %6419 = vmatprep.subr.mxu0 %v6318
  %6420 = vmatpush1.msra.mxu0 %v6317
  %6421 = vmatprep.subr.mxu0 %v6322
  %6422 = vmatpush1.msra.mxu0 %v6321
  %6423 = vmatprep.subr.mxu0 %v6326
  %6424 = vmatpush1.msra.mxu0 %v6325
  %6425 = vmatprep.subr.mxu0 %v6330
  %6426 = vmatpush1.msra.mxu0 %v6329
  %6427 = vmatprep.subr.mxu0 %v6334
  %6428 = vmatpush1.msra.mxu0 %v6333
  %6429 = vmatprep.subr.mxu0 %v6338
  %6430 = vmatpush1.msra.mxu0 %v6337
  %6431 = vmatprep.subr.mxu0 %v6342
  %6432 = vmatpush1.msra.mxu0 %v6341
  %6433 = vmatprep.subr.mxu0 %v6346
  %6434 = vmatpush1.msra.mxu0 %v6345
  %6435 = vmatprep.subr.mxu0 %v6350
  %6436 = vmatpush1.msra.mxu0 %v6349
  %6437 = vmatprep.subr.mxu0 %v6354
  %6438 = vmatpush1.msra.mxu0 %v6353
  %6439 = vmatprep.subr.mxu0 %v6358
  %6440 = vmatpush1.msra.mxu0 %v6357
  %6441 = vmatprep.subr.mxu0 %v6362
  %6442 = vmatpush1.msra.mxu0 %v6361
  %6443 = vmatprep.subr.mxu0 %v6366
  %6444 = vmatpush1.msra.mxu0 %v6365
  %6445 = vmatprep.subr.mxu0 %v6370
  %6446 = vmatpush1.msra.mxu0 %v6369
  %6447 = vmatprep.subr.mxu0 %v6374
  %6448 = vmatpush1.msra.mxu0 %v6373
  %6449 = vmatprep.subr.mxu0 %v6378
  %6450 = vmatpush1.msra.mxu0 %v6377
  %6451 = vmatprep.subr.mxu0 %v6382
  %6452 = vmatpush1.msra.mxu0 %v6381
  %6453 = vmatprep.subr.mxu0 %v6386
  %6454 = vmatpush1.msra.mxu0 %v6385
  %6455 = vmatprep.subr.mxu0 %v6390
  %6456 = vmatpush1.msra.mxu0 %v6389
  %6457 = vmatprep.mubr.f32.mxu0 %v4686
  %6458 = vmatmul.mubr.f32.gmra.mrb[0].mxu0 %v4685
  %v6459 = vpop.f32.mrb[0].mxu0
  %v6460 = vadd.f32 0.0, %v6459
  %v6461 = vpop.f32.mrb[0].mxu0
  %v6462 = vadd.f32 0.0, %v6461
  %6463 = vdwg.mxu0
  %6464 = vmatprep.subr.mxu0 %v6268
  %6465 = vmatpush1.msra.mxu0 %v6267
  %6466 = vmatprep.subr.mxu0 %v6272
  %6467 = vmatpush1.msra.mxu0 %v6271
  %6468 = vmatprep.subr.mxu0 %v6276
  %6469 = vmatpush1.msra.mxu0 %v6275
  %6470 = vmatprep.subr.mxu0 %v6280
  %6471 = vmatpush1.msra.mxu0 %v6279
  %6472 = vmatprep.subr.mxu0 %v6284
  %6473 = vmatpush1.msra.mxu0 %v6283
  %6474 = vmatprep.subr.mxu0 %v6288
  %6475 = vmatpush1.msra.mxu0 %v6287
  %6476 = vmatprep.subr.mxu0 %v6292
  %6477 = vmatpush1.msra.mxu0 %v6291
  %6478 = vmatprep.subr.mxu0 %v6296
  %6479 = vmatpush1.msra.mxu0 %v6295
  %6480 = vmatprep.subr.mxu0 %v6300
  %6481 = vmatpush1.msra.mxu0 %v6299
  %6482 = vmatprep.subr.mxu0 %v6304
  %6483 = vmatpush1.msra.mxu0 %v6303
  %6484 = vmatprep.subr.mxu0 %v6308
  %6485 = vmatpush1.msra.mxu0 %v6307
  %6486 = vmatprep.subr.mxu0 %v6312
  %6487 = vmatpush1.msra.mxu0 %v6311
  %6488 = vmatprep.subr.mxu0 %v6316
  %6489 = vmatpush1.msra.mxu0 %v6315
  %6490 = vmatprep.subr.mxu0 %v6320
  %6491 = vmatpush1.msra.mxu0 %v6319
  %6492 = vmatprep.subr.mxu0 %v6324
  %6493 = vmatpush1.msra.mxu0 %v6323
  %6494 = vmatprep.subr.mxu0 %v6328
  %6495 = vmatpush1.msra.mxu0 %v6327
  %6496 = vmatprep.subr.mxu0 %v6332
  %6497 = vmatpush1.msra.mxu0 %v6331
  %6498 = vmatprep.subr.mxu0 %v6336
  %6499 = vmatpush1.msra.mxu0 %v6335
  %6500 = vmatprep.subr.mxu0 %v6340
  %6501 = vmatpush1.msra.mxu0 %v6339
  %6502 = vmatprep.subr.mxu0 %v6344
  %6503 = vmatpush1.msra.mxu0 %v6343
  %6504 = vmatprep.subr.mxu0 %v6348
  %6505 = vmatpush1.msra.mxu0 %v6347
  %6506 = vmatprep.subr.mxu0 %v6352
  %6507 = vmatpush1.msra.mxu0 %v6351
  %6508 = vmatprep.subr.mxu0 %v6356
  %6509 = vmatpush1.msra.mxu0 %v6355
  %6510 = vmatprep.subr.mxu0 %v6360
  %6511 = vmatpush1.msra.mxu0 %v6359
  %6512 = vmatprep.subr.mxu0 %v6364
  %6513 = vmatpush1.msra.mxu0 %v6363
  %6514 = vmatprep.subr.mxu0 %v6368
  %6515 = vmatpush1.msra.mxu0 %v6367
  %6516 = vmatprep.subr.mxu0 %v6372
  %6517 = vmatpush1.msra.mxu0 %v6371
  %6518 = vmatprep.subr.mxu0 %v6376
  %6519 = vmatpush1.msra.mxu0 %v6375
  %6520 = vmatprep.subr.mxu0 %v6380
  %6521 = vmatpush1.msra.mxu0 %v6379
  %6522 = vmatprep.subr.mxu0 %v6384
  %6523 = vmatpush1.msra.mxu0 %v6383
  %6524 = vmatprep.subr.mxu0 %v6388
  %6525 = vmatpush1.msra.mxu0 %v6387
  %6526 = vmatprep.subr.mxu0 %v6392
  %6527 = vmatpush1.msra.mxu0 %v6391
  %6528 = vmatprep.mubr.f32.mxu0 %v4686
  %6529 = vmatmul.mubr.f32.gmra.mrb[0].mxu0 %v4685
  %v6530 = vpop.f32.mrb[0].mxu0
  %v6531 = vadd.f32 0.0, %v6530
  %v6532 = vpop.f32.mrb[0].mxu0
  %v6533 = vadd.f32 0.0, %v6532
  %6534 = vdwg.mxu0
  %6535 = vmatprep.subr.mxu0 %v6137
  %6536 = vmatpush1.msra.mxu0 %v6136
  %6537 = vmatprep.subr.mxu0 %v6141
  %6538 = vmatpush1.msra.mxu0 %v6140
  %6539 = vmatprep.subr.mxu0 %v6145
  %6540 = vmatpush1.msra.mxu0 %v6144
  %6541 = vmatprep.subr.mxu0 %v6149
  %6542 = vmatpush1.msra.mxu0 %v6148
  %6543 = vmatprep.subr.mxu0 %v6153
  %6544 = vmatpush1.msra.mxu0 %v6152
  %6545 = vmatprep.subr.mxu0 %v6157
  %6546 = vmatpush1.msra.mxu0 %v6156
  %6547 = vmatprep.subr.mxu0 %v6161
  %6548 = vmatpush1.msra.mxu0 %v6160
  %6549 = vmatprep.subr.mxu0 %v6165
  %6550 = vmatpush1.msra.mxu0 %v6164
  %6551 = vmatprep.subr.mxu0 %v6169
  %6552 = vmatpush1.msra.mxu0 %v6168
  %6553 = vmatprep.subr.mxu0 %v6173
  %6554 = vmatpush1.msra.mxu0 %v6172
  %6555 = vmatprep.subr.mxu0 %v6177
  %6556 = vmatpush1.msra.mxu0 %v6176
  %6557 = vmatprep.subr.mxu0 %v6181
  %6558 = vmatpush1.msra.mxu0 %v6180
  %6559 = vmatprep.subr.mxu0 %v6185
  %6560 = vmatpush1.msra.mxu0 %v6184
  %6561 = vmatprep.subr.mxu0 %v6189
  %6562 = vmatpush1.msra.mxu0 %v6188
  %6563 = vmatprep.subr.mxu0 %v6193
  %6564 = vmatpush1.msra.mxu0 %v6192
  %6565 = vmatprep.subr.mxu0 %v6197
  %6566 = vmatpush1.msra.mxu0 %v6196
  %6567 = vmatprep.subr.mxu0 %v6201
  %6568 = vmatpush1.msra.mxu0 %v6200
  %6569 = vmatprep.subr.mxu0 %v6205
  %6570 = vmatpush1.msra.mxu0 %v6204
  %6571 = vmatprep.subr.mxu0 %v6209
  %6572 = vmatpush1.msra.mxu0 %v6208
  %6573 = vmatprep.subr.mxu0 %v6213
  %6574 = vmatpush1.msra.mxu0 %v6212
  %6575 = vmatprep.subr.mxu0 %v6217
  %6576 = vmatpush1.msra.mxu0 %v6216
  %6577 = vmatprep.subr.mxu0 %v6221
  %6578 = vmatpush1.msra.mxu0 %v6220
  %6579 = vmatprep.subr.mxu0 %v6225
  %6580 = vmatpush1.msra.mxu0 %v6224
  %6581 = vmatprep.subr.mxu0 %v6229
  %6582 = vmatpush1.msra.mxu0 %v6228
  %6583 = vmatprep.subr.mxu0 %v6233
  %6584 = vmatpush1.msra.mxu0 %v6232
  %6585 = vmatprep.subr.mxu0 %v6237
  %6586 = vmatpush1.msra.mxu0 %v6236
  %6587 = vmatprep.subr.mxu0 %v6241
  %6588 = vmatpush1.msra.mxu0 %v6240
  %6589 = vmatprep.subr.mxu0 %v6245
  %6590 = vmatpush1.msra.mxu0 %v6244
  %6591 = vmatprep.subr.mxu0 %v6249
  %6592 = vmatpush1.msra.mxu0 %v6248
  %6593 = vmatprep.subr.mxu0 %v6253
  %6594 = vmatpush1.msra.mxu0 %v6252
  %6595 = vmatprep.subr.mxu0 %v6257
  %6596 = vmatpush1.msra.mxu0 %v6256
  %6597 = vmatprep.subr.mxu0 %v6261
  %6598 = vmatpush1.msra.mxu0 %v6260
  %6599 = vmatprep.mubr.f32.mxu0 %v3927
  %6600 = vmatmul.mubr.f32.gmra.mrb[0].mxu0 %v3926
  %v6601 = vpop.f32.mrb[0].mxu0
  %v6602 = vadd.f32 %v6460, %v6601
  %v6603 = vpop.f32.mrb[0].mxu0
  %v6604 = vadd.f32 %v6462, %v6603
  %6605 = vdwg.mxu0
  %6606 = vmatprep.subr.mxu0 %v6139
  %6607 = vmatpush1.msra.mxu0 %v6138
  %6608 = vmatprep.subr.mxu0 %v6143
  %6609 = vmatpush1.msra.mxu0 %v6142
  %6610 = vmatprep.subr.mxu0 %v6147
  %6611 = vmatpush1.msra.mxu0 %v6146
  %6612 = vmatprep.subr.mxu0 %v6151
  %6613 = vmatpush1.msra.mxu0 %v6150
  %6614 = vmatprep.subr.mxu0 %v6155
  %6615 = vmatpush1.msra.mxu0 %v6154
  %6616 = vmatprep.subr.mxu0 %v6159
  %6617 = vmatpush1.msra.mxu0 %v6158
  %6618 = vmatprep.subr.mxu0 %v6163
  %6619 = vmatpush1.msra.mxu0 %v6162
  %6620 = vmatprep.subr.mxu0 %v6167
  %6621 = vmatpush1.msra.mxu0 %v6166
  %6622 = vmatprep.subr.mxu0 %v6171
  %6623 = vmatpush1.msra.mxu0 %v6170
  %6624 = vmatprep.subr.mxu0 %v6175
  %6625 = vmatpush1.msra.mxu0 %v6174
  %6626 = vmatprep.subr.mxu0 %v6179
  %6627 = vmatpush1.msra.mxu0 %v6178
  %6628 = vmatprep.subr.mxu0 %v6183
  %6629 = vmatpush1.msra.mxu0 %v6182
  %6630 = vmatprep.subr.mxu0 %v6187
  %6631 = vmatpush1.msra.mxu0 %v6186
  %6632 = vmatprep.subr.mxu0 %v6191
  %6633 = vmatpush1.msra.mxu0 %v6190
  %6634 = vmatprep.subr.mxu0 %v6195
  %6635 = vmatpush1.msra.mxu0 %v6194
  %6636 = vmatprep.subr.mxu0 %v6199
  %6637 = vmatpush1.msra.mxu0 %v6198
  %6638 = vmatprep.subr.mxu0 %v6203
  %6639 = vmatpush1.msra.mxu0 %v6202
  %6640 = vmatprep.subr.mxu0 %v6207
  %6641 = vmatpush1.msra.mxu0 %v6206
  %6642 = vmatprep.subr.mxu0 %v6211
  %6643 = vmatpush1.msra.mxu0 %v6210
  %6644 = vmatprep.subr.mxu0 %v6215
  %6645 = vmatpush1.msra.mxu0 %v6214
  %6646 = vmatprep.subr.mxu0 %v6219
  %6647 = vmatpush1.msra.mxu0 %v6218
  %6648 = vmatprep.subr.mxu0 %v6223
  %6649 = vmatpush1.msra.mxu0 %v6222
  %6650 = vmatprep.subr.mxu0 %v6227
  %6651 = vmatpush1.msra.mxu0 %v6226
  %6652 = vmatprep.subr.mxu0 %v6231
  %6653 = vmatpush1.msra.mxu0 %v6230
  %6654 = vmatprep.subr.mxu0 %v6235
  %6655 = vmatpush1.msra.mxu0 %v6234
  %6656 = vmatprep.subr.mxu0 %v6239
  %6657 = vmatpush1.msra.mxu0 %v6238
  %6658 = vmatprep.subr.mxu0 %v6243
  %6659 = vmatpush1.msra.mxu0 %v6242
  %6660 = vmatprep.subr.mxu0 %v6247
  %6661 = vmatpush1.msra.mxu0 %v6246
  %6662 = vmatprep.subr.mxu0 %v6251
  %6663 = vmatpush1.msra.mxu0 %v6250
  %6664 = vmatprep.subr.mxu0 %v6255
  %6665 = vmatpush1.msra.mxu0 %v6254
  %6666 = vmatprep.subr.mxu0 %v6259
  %6667 = vmatpush1.msra.mxu0 %v6258
  %6668 = vmatprep.subr.mxu0 %v6263
  %6669 = vmatpush1.msra.mxu0 %v6262
  %6670 = vmatprep.mubr.f32.mxu0 %v3927
  %6671 = vmatmul.mubr.f32.gmra.mrb[0].mxu0 %v3926
  %v6672 = vpop.f32.mrb[0].mxu0
  %v6673 = vadd.f32 %v6531, %v6672
  %v6674 = vpop.f32.mrb[0].mxu0
  %v6675 = vadd.f32 %v6533, %v6674
  %6676 = vdwg.mxu0
  %s6677 = scalar_lea.vmem %s10, 2048
  %v6678 = vld [vmem:[%s6677] sm:$0xff]
  %v6679 = vld [vmem:[%s6677 + $0x8] sm:$0xff]
  %v6680 = vld [vmem:[%s6677 + $0x10] sm:$0xff]
  %v6681 = vld [vmem:[%s6677 + $0x18] sm:$0xff]
  %v6682 = vld [vmem:[%s6677 + $0x20] sm:$0xff]
  %v6683 = vld [vmem:[%s6677 + $0x28] sm:$0xff]
  %v6684 = vld [vmem:[%s6677 + $0x30] sm:$0xff]
  %v6685 = vld [vmem:[%s6677 + $0x38] sm:$0xff]
  %v6686 = vld [vmem:[%s6677 + $0x40] sm:$0xff]
  %v6687 = vld [vmem:[%s6677 + $0x48] sm:$0xff]
  %v6688 = vld [vmem:[%s6677 + $0x50] sm:$0xff]
  %v6689 = vld [vmem:[%s6677 + $0x58] sm:$0xff]
  %v6690 = vld [vmem:[%s6677 + $0x60] sm:$0xff]
  %v6691 = vld [vmem:[%s6677 + $0x68] sm:$0xff]
  %v6692 = vld [vmem:[%s6677 + $0x70] sm:$0xff]
  %v6693 = vld [vmem:[%s6677 + $0x78] sm:$0xff]
  %v6694 = vld [vmem:[%s6677 + $0x80] sm:$0xff]
  %v6695 = vld [vmem:[%s6677 + $0x88] sm:$0xff]
  %v6696 = vld [vmem:[%s6677 + $0x90] sm:$0xff]
  %v6697 = vld [vmem:[%s6677 + $0x98] sm:$0xff]
  %v6698 = vld [vmem:[%s6677 + $0xa0] sm:$0xff]
  %v6699 = vld [vmem:[%s6677 + $0xa8] sm:$0xff]
  %v6700 = vld [vmem:[%s6677 + $0xb0] sm:$0xff]
  %v6701 = vld [vmem:[%s6677 + $0xb8] sm:$0xff]
  %v6702 = vld [vmem:[%s6677 + $0xc0] sm:$0xff]
  %v6703 = vld [vmem:[%s6677 + $0xc8] sm:$0xff]
  %v6704 = vld [vmem:[%s6677 + $0xd0] sm:$0xff]
  %v6705 = vld [vmem:[%s6677 + $0xd8] sm:$0xff]
  %v6706 = vld [vmem:[%s6677 + $0xe0] sm:$0xff]
  %v6707 = vld [vmem:[%s6677 + $0xe8] sm:$0xff]
  %v6708 = vld [vmem:[%s6677 + $0xf0] sm:$0xff]
  %v6709 = vld [vmem:[%s6677 + $0xf8] sm:$0xff]
  %v6710 = vld [vmem:[%s6677 + $0x100] sm:$0xff]
  %v6711 = vld [vmem:[%s6677 + $0x108] sm:$0xff]
  %v6712 = vld [vmem:[%s6677 + $0x110] sm:$0xff]
  %v6713 = vld [vmem:[%s6677 + $0x118] sm:$0xff]
  %v6714 = vld [vmem:[%s6677 + $0x120] sm:$0xff]
  %v6715 = vld [vmem:[%s6677 + $0x128] sm:$0xff]
  %v6716 = vld [vmem:[%s6677 + $0x130] sm:$0xff]
  %v6717 = vld [vmem:[%s6677 + $0x138] sm:$0xff]
  %v6718 = vld [vmem:[%s6677 + $0x140] sm:$0xff]
  %v6719 = vld [vmem:[%s6677 + $0x148] sm:$0xff]
  %v6720 = vld [vmem:[%s6677 + $0x150] sm:$0xff]
  %v6721 = vld [vmem:[%s6677 + $0x158] sm:$0xff]
  %v6722 = vld [vmem:[%s6677 + $0x160] sm:$0xff]
  %v6723 = vld [vmem:[%s6677 + $0x168] sm:$0xff]
  %v6724 = vld [vmem:[%s6677 + $0x170] sm:$0xff]
  %v6725 = vld [vmem:[%s6677 + $0x178] sm:$0xff]
  %v6726 = vld [vmem:[%s6677 + $0x180] sm:$0xff]
  %v6727 = vld [vmem:[%s6677 + $0x188] sm:$0xff]
  %v6728 = vld [vmem:[%s6677 + $0x190] sm:$0xff]
  %v6729 = vld [vmem:[%s6677 + $0x198] sm:$0xff]
  %v6730 = vld [vmem:[%s6677 + $0x1a0] sm:$0xff]
  %v6731 = vld [vmem:[%s6677 + $0x1a8] sm:$0xff]
  %v6732 = vld [vmem:[%s6677 + $0x1b0] sm:$0xff]
  %v6733 = vld [vmem:[%s6677 + $0x1b8] sm:$0xff]
  %v6734 = vld [vmem:[%s6677 + $0x1c0] sm:$0xff]
  %v6735 = vld [vmem:[%s6677 + $0x1c8] sm:$0xff]
  %v6736 = vld [vmem:[%s6677 + $0x1d0] sm:$0xff]
  %v6737 = vld [vmem:[%s6677 + $0x1d8] sm:$0xff]
  %v6738 = vld [vmem:[%s6677 + $0x1e0] sm:$0xff]
  %v6739 = vld [vmem:[%s6677 + $0x1e8] sm:$0xff]
  %v6740 = vld [vmem:[%s6677 + $0x1f0] sm:$0xff]
  %v6741 = vld [vmem:[%s6677 + $0x1f8] sm:$0xff]
  %v6742 = vld [vmem:[%s6677 + $0x200] sm:$0xff]
  %v6743 = vld [vmem:[%s6677 + $0x208] sm:$0xff]
  %v6744 = vld [vmem:[%s6677 + $0x210] sm:$0xff]
  %v6745 = vld [vmem:[%s6677 + $0x218] sm:$0xff]
  %v6746 = vld [vmem:[%s6677 + $0x220] sm:$0xff]
  %v6747 = vld [vmem:[%s6677 + $0x228] sm:$0xff]
  %v6748 = vld [vmem:[%s6677 + $0x230] sm:$0xff]
  %v6749 = vld [vmem:[%s6677 + $0x238] sm:$0xff]
  %v6750 = vld [vmem:[%s6677 + $0x240] sm:$0xff]
  %v6751 = vld [vmem:[%s6677 + $0x248] sm:$0xff]
  %v6752 = vld [vmem:[%s6677 + $0x250] sm:$0xff]
  %v6753 = vld [vmem:[%s6677 + $0x258] sm:$0xff]
  %v6754 = vld [vmem:[%s6677 + $0x260] sm:$0xff]
  %v6755 = vld [vmem:[%s6677 + $0x268] sm:$0xff]
  %v6756 = vld [vmem:[%s6677 + $0x270] sm:$0xff]
  %v6757 = vld [vmem:[%s6677 + $0x278] sm:$0xff]
  %v6758 = vld [vmem:[%s6677 + $0x280] sm:$0xff]
  %v6759 = vld [vmem:[%s6677 + $0x288] sm:$0xff]
  %v6760 = vld [vmem:[%s6677 + $0x290] sm:$0xff]
  %v6761 = vld [vmem:[%s6677 + $0x298] sm:$0xff]
  %v6762 = vld [vmem:[%s6677 + $0x2a0] sm:$0xff]
  %v6763 = vld [vmem:[%s6677 + $0x2a8] sm:$0xff]
  %v6764 = vld [vmem:[%s6677 + $0x2b0] sm:$0xff]
  %v6765 = vld [vmem:[%s6677 + $0x2b8] sm:$0xff]
  %v6766 = vld [vmem:[%s6677 + $0x2c0] sm:$0xff]
  %v6767 = vld [vmem:[%s6677 + $0x2c8] sm:$0xff]
  %v6768 = vld [vmem:[%s6677 + $0x2d0] sm:$0xff]
  %v6769 = vld [vmem:[%s6677 + $0x2d8] sm:$0xff]
  %v6770 = vld [vmem:[%s6677 + $0x2e0] sm:$0xff]
  %v6771 = vld [vmem:[%s6677 + $0x2e8] sm:$0xff]
  %v6772 = vld [vmem:[%s6677 + $0x2f0] sm:$0xff]
  %v6773 = vld [vmem:[%s6677 + $0x2f8] sm:$0xff]
  %v6774 = vld [vmem:[%s6677 + $0x300] sm:$0xff]
  %v6775 = vld [vmem:[%s6677 + $0x308] sm:$0xff]
  %v6776 = vld [vmem:[%s6677 + $0x310] sm:$0xff]
  %v6777 = vld [vmem:[%s6677 + $0x318] sm:$0xff]
  %v6778 = vld [vmem:[%s6677 + $0x320] sm:$0xff]
  %v6779 = vld [vmem:[%s6677 + $0x328] sm:$0xff]
  %v6780 = vld [vmem:[%s6677 + $0x330] sm:$0xff]
  %v6781 = vld [vmem:[%s6677 + $0x338] sm:$0xff]
  %v6782 = vld [vmem:[%s6677 + $0x340] sm:$0xff]
  %v6783 = vld [vmem:[%s6677 + $0x348] sm:$0xff]
  %v6784 = vld [vmem:[%s6677 + $0x350] sm:$0xff]
  %v6785 = vld [vmem:[%s6677 + $0x358] sm:$0xff]
  %v6786 = vld [vmem:[%s6677 + $0x360] sm:$0xff]
  %v6787 = vld [vmem:[%s6677 + $0x368] sm:$0xff]
  %v6788 = vld [vmem:[%s6677 + $0x370] sm:$0xff]
  %v6789 = vld [vmem:[%s6677 + $0x378] sm:$0xff]
  %v6790 = vld [vmem:[%s6677 + $0x380] sm:$0xff]
  %v6791 = vld [vmem:[%s6677 + $0x388] sm:$0xff]
  %v6792 = vld [vmem:[%s6677 + $0x390] sm:$0xff]
  %v6793 = vld [vmem:[%s6677 + $0x398] sm:$0xff]
  %v6794 = vld [vmem:[%s6677 + $0x3a0] sm:$0xff]
  %v6795 = vld [vmem:[%s6677 + $0x3a8] sm:$0xff]
  %v6796 = vld [vmem:[%s6677 + $0x3b0] sm:$0xff]
  %v6797 = vld [vmem:[%s6677 + $0x3b8] sm:$0xff]
  %v6798 = vld [vmem:[%s6677 + $0x3c0] sm:$0xff]
  %v6799 = vld [vmem:[%s6677 + $0x3c8] sm:$0xff]
  %v6800 = vld [vmem:[%s6677 + $0x3d0] sm:$0xff]
  %v6801 = vld [vmem:[%s6677 + $0x3d8] sm:$0xff]
  %v6802 = vld [vmem:[%s6677 + $0x3e0] sm:$0xff]
  %v6803 = vld [vmem:[%s6677 + $0x3e8] sm:$0xff]
  %v6804 = vld [vmem:[%s6677 + $0x3f0] sm:$0xff]
  %v6805 = vld [vmem:[%s6677 + $0x3f8] sm:$0xff]
  %6806 = vmatprep.subr.mxu0 %v6679
  %6807 = vmatpush1.msra.mxu0 %v6678
  %6808 = vmatprep.subr.mxu0 %v6683
  %6809 = vmatpush1.msra.mxu0 %v6682
  %6810 = vmatprep.subr.mxu0 %v6687
  %6811 = vmatpush1.msra.mxu0 %v6686
  %6812 = vmatprep.subr.mxu0 %v6691
  %6813 = vmatpush1.msra.mxu0 %v6690
  %6814 = vmatprep.subr.mxu0 %v6695
  %6815 = vmatpush1.msra.mxu0 %v6694
  %6816 = vmatprep.subr.mxu0 %v6699
  %6817 = vmatpush1.msra.mxu0 %v6698
  %6818 = vmatprep.subr.mxu0 %v6703
  %6819 = vmatpush1.msra.mxu0 %v6702
  %6820 = vmatprep.subr.mxu0 %v6707
  %6821 = vmatpush1.msra.mxu0 %v6706
  %6822 = vmatprep.subr.mxu0 %v6711
  %6823 = vmatpush1.msra.mxu0 %v6710
  %6824 = vmatprep.subr.mxu0 %v6715
  %6825 = vmatpush1.msra.mxu0 %v6714
  %6826 = vmatprep.subr.mxu0 %v6719
  %6827 = vmatpush1.msra.mxu0 %v6718
  %6828 = vmatprep.subr.mxu0 %v6723
  %6829 = vmatpush1.msra.mxu0 %v6722
  %6830 = vmatprep.subr.mxu0 %v6727
  %6831 = vmatpush1.msra.mxu0 %v6726
  %6832 = vmatprep.subr.mxu0 %v6731
  %6833 = vmatpush1.msra.mxu0 %v6730
  %6834 = vmatprep.subr.mxu0 %v6735
  %6835 = vmatpush1.msra.mxu0 %v6734
  %6836 = vmatprep.subr.mxu0 %v6739
  %6837 = vmatpush1.msra.mxu0 %v6738
  %6838 = vmatprep.subr.mxu0 %v6743
  %6839 = vmatpush1.msra.mxu0 %v6742
  %6840 = vmatprep.subr.mxu0 %v6747
  %6841 = vmatpush1.msra.mxu0 %v6746
  %6842 = vmatprep.subr.mxu0 %v6751
  %6843 = vmatpush1.msra.mxu0 %v6750
  %6844 = vmatprep.subr.mxu0 %v6755
  %6845 = vmatpush1.msra.mxu0 %v6754
  %6846 = vmatprep.subr.mxu0 %v6759
  %6847 = vmatpush1.msra.mxu0 %v6758
  %6848 = vmatprep.subr.mxu0 %v6763
  %6849 = vmatpush1.msra.mxu0 %v6762
  %6850 = vmatprep.subr.mxu0 %v6767
  %6851 = vmatpush1.msra.mxu0 %v6766
  %6852 = vmatprep.subr.mxu0 %v6771
  %6853 = vmatpush1.msra.mxu0 %v6770
  %6854 = vmatprep.subr.mxu0 %v6775
  %6855 = vmatpush1.msra.mxu0 %v6774
  %6856 = vmatprep.subr.mxu0 %v6779
  %6857 = vmatpush1.msra.mxu0 %v6778
  %6858 = vmatprep.subr.mxu0 %v6783
  %6859 = vmatpush1.msra.mxu0 %v6782
  %6860 = vmatprep.subr.mxu0 %v6787
  %6861 = vmatpush1.msra.mxu0 %v6786
  %6862 = vmatprep.subr.mxu0 %v6791
  %6863 = vmatpush1.msra.mxu0 %v6790
  %6864 = vmatprep.subr.mxu0 %v6795
  %6865 = vmatpush1.msra.mxu0 %v6794
  %6866 = vmatprep.subr.mxu0 %v6799
  %6867 = vmatpush1.msra.mxu0 %v6798
  %6868 = vmatprep.subr.mxu0 %v6803
  %6869 = vmatpush1.msra.mxu0 %v6802
  %6870 = vmatprep.mubr.f32.mxu0 %v5445
  %6871 = vmatmul.mubr.f32.gmra.mrb[0].mxu0 %v5444
  %v6872 = vpop.f32.mrb[0].mxu0
  %v6873 = vadd.f32 0.0, %v6872
  %v6874 = vpop.f32.mrb[0].mxu0
  %v6875 = vadd.f32 0.0, %v6874
  %6876 = vdwg.mxu0
  %6877 = vmatprep.subr.mxu0 %v6681
  %6878 = vmatpush1.msra.mxu0 %v6680
  %6879 = vmatprep.subr.mxu0 %v6685
  %6880 = vmatpush1.msra.mxu0 %v6684
  %6881 = vmatprep.subr.mxu0 %v6689
  %6882 = vmatpush1.msra.mxu0 %v6688
  %6883 = vmatprep.subr.mxu0 %v6693
  %6884 = vmatpush1.msra.mxu0 %v6692
  %6885 = vmatprep.subr.mxu0 %v6697
  %6886 = vmatpush1.msra.mxu0 %v6696
  %6887 = vmatprep.subr.mxu0 %v6701
  %6888 = vmatpush1.msra.mxu0 %v6700
  %6889 = vmatprep.subr.mxu0 %v6705
  %6890 = vmatpush1.msra.mxu0 %v6704
  %6891 = vmatprep.subr.mxu0 %v6709
  %6892 = vmatpush1.msra.mxu0 %v6708
  %6893 = vmatprep.subr.mxu0 %v6713
  %6894 = vmatpush1.msra.mxu0 %v6712
  %6895 = vmatprep.subr.mxu0 %v6717
  %6896 = vmatpush1.msra.mxu0 %v6716
  %6897 = vmatprep.subr.mxu0 %v6721
  %6898 = vmatpush1.msra.mxu0 %v6720
  %6899 = vmatprep.subr.mxu0 %v6725
  %6900 = vmatpush1.msra.mxu0 %v6724
  %6901 = vmatprep.subr.mxu0 %v6729
  %6902 = vmatpush1.msra.mxu0 %v6728
  %6903 = vmatprep.subr.mxu0 %v6733
  %6904 = vmatpush1.msra.mxu0 %v6732
  %6905 = vmatprep.subr.mxu0 %v6737
  %6906 = vmatpush1.msra.mxu0 %v6736
  %6907 = vmatprep.subr.mxu0 %v6741
  %6908 = vmatpush1.msra.mxu0 %v6740
  %6909 = vmatprep.subr.mxu0 %v6745
  %6910 = vmatpush1.msra.mxu0 %v6744
  %6911 = vmatprep.subr.mxu0 %v6749
  %6912 = vmatpush1.msra.mxu0 %v6748
  %6913 = vmatprep.subr.mxu0 %v6753
  %6914 = vmatpush1.msra.mxu0 %v6752
  %6915 = vmatprep.subr.mxu0 %v6757
  %6916 = vmatpush1.msra.mxu0 %v6756
  %6917 = vmatprep.subr.mxu0 %v6761
  %6918 = vmatpush1.msra.mxu0 %v6760
  %6919 = vmatprep.subr.mxu0 %v6765
  %6920 = vmatpush1.msra.mxu0 %v6764
  %6921 = vmatprep.subr.mxu0 %v6769
  %6922 = vmatpush1.msra.mxu0 %v6768
  %6923 = vmatprep.subr.mxu0 %v6773
  %6924 = vmatpush1.msra.mxu0 %v6772
  %6925 = vmatprep.subr.mxu0 %v6777
  %6926 = vmatpush1.msra.mxu0 %v6776
  %6927 = vmatprep.subr.mxu0 %v6781
  %6928 = vmatpush1.msra.mxu0 %v6780
  %6929 = vmatprep.subr.mxu0 %v6785
  %6930 = vmatpush1.msra.mxu0 %v6784
  %6931 = vmatprep.subr.mxu0 %v6789
  %6932 = vmatpush1.msra.mxu0 %v6788
  %6933 = vmatprep.subr.mxu0 %v6793
  %6934 = vmatpush1.msra.mxu0 %v6792
  %6935 = vmatprep.subr.mxu0 %v6797
  %6936 = vmatpush1.msra.mxu0 %v6796
  %6937 = vmatprep.subr.mxu0 %v6801
  %6938 = vmatpush1.msra.mxu0 %v6800
  %6939 = vmatprep.subr.mxu0 %v6805
  %6940 = vmatpush1.msra.mxu0 %v6804
  %6941 = vmatprep.mubr.f32.mxu0 %v5445
  %6942 = vmatmul.mubr.f32.gmra.mrb[0].mxu0 %v5444
  %v6943 = vpop.f32.mrb[0].mxu0
  %v6944 = vadd.f32 0.0, %v6943
  %v6945 = vpop.f32.mrb[0].mxu0
  %v6946 = vadd.f32 0.0, %v6945
  %6947 = vdwg.mxu0
  %v6948 = vadd.f32 %v6602, %v6873
  %v6949 = vadd.f32 %v6604, %v6875
  %v6950 = vadd.f32 %v6673, %v6944
  %v6951 = vadd.f32 %v6675, %v6946
  %s6952 = scalar_lea.vmem %s10, 3072
  %v6953 = vld [vmem:[%s6952] sm:$0xff]
  %v6954 = vld [vmem:[%s6952 + $0x8] sm:$0xff]
  %v6955 = vld [vmem:[%s6952 + $0x10] sm:$0xff]
  %v6956 = vld [vmem:[%s6952 + $0x18] sm:$0xff]
  %v6957 = vld [vmem:[%s6952 + $0x20] sm:$0xff]
  %v6958 = vld [vmem:[%s6952 + $0x28] sm:$0xff]
  %v6959 = vld [vmem:[%s6952 + $0x30] sm:$0xff]
  %v6960 = vld [vmem:[%s6952 + $0x38] sm:$0xff]
  %v6961 = vld [vmem:[%s6952 + $0x40] sm:$0xff]
  %v6962 = vld [vmem:[%s6952 + $0x48] sm:$0xff]
  %v6963 = vld [vmem:[%s6952 + $0x50] sm:$0xff]
  %v6964 = vld [vmem:[%s6952 + $0x58] sm:$0xff]
  %v6965 = vld [vmem:[%s6952 + $0x60] sm:$0xff]
  %v6966 = vld [vmem:[%s6952 + $0x68] sm:$0xff]
  %v6967 = vld [vmem:[%s6952 + $0x70] sm:$0xff]
  %v6968 = vld [vmem:[%s6952 + $0x78] sm:$0xff]
  %v6969 = vld [vmem:[%s6952 + $0x80] sm:$0xff]
  %v6970 = vld [vmem:[%s6952 + $0x88] sm:$0xff]
  %v6971 = vld [vmem:[%s6952 + $0x90] sm:$0xff]
  %v6972 = vld [vmem:[%s6952 + $0x98] sm:$0xff]
  %v6973 = vld [vmem:[%s6952 + $0xa0] sm:$0xff]
  %v6974 = vld [vmem:[%s6952 + $0xa8] sm:$0xff]
  %v6975 = vld [vmem:[%s6952 + $0xb0] sm:$0xff]
  %v6976 = vld [vmem:[%s6952 + $0xb8] sm:$0xff]
  %v6977 = vld [vmem:[%s6952 + $0xc0] sm:$0xff]
  %v6978 = vld [vmem:[%s6952 + $0xc8] sm:$0xff]
  %v6979 = vld [vmem:[%s6952 + $0xd0] sm:$0xff]
  %v6980 = vld [vmem:[%s6952 + $0xd8] sm:$0xff]
  %v6981 = vld [vmem:[%s6952 + $0xe0] sm:$0xff]
  %v6982 = vld [vmem:[%s6952 + $0xe8] sm:$0xff]
  %v6983 = vld [vmem:[%s6952 + $0xf0] sm:$0xff]
  %v6984 = vld [vmem:[%s6952 + $0xf8] sm:$0xff]
  %v6985 = vld [vmem:[%s6952 + $0x100] sm:$0xff]
  %v6986 = vld [vmem:[%s6952 + $0x108] sm:$0xff]
  %v6987 = vld [vmem:[%s6952 + $0x110] sm:$0xff]
  %v6988 = vld [vmem:[%s6952 + $0x118] sm:$0xff]
  %v6989 = vld [vmem:[%s6952 + $0x120] sm:$0xff]
  %v6990 = vld [vmem:[%s6952 + $0x128] sm:$0xff]
  %v6991 = vld [vmem:[%s6952 + $0x130] sm:$0xff]
  %v6992 = vld [vmem:[%s6952 + $0x138] sm:$0xff]
  %v6993 = vld [vmem:[%s6952 + $0x140] sm:$0xff]
  %v6994 = vld [vmem:[%s6952 + $0x148] sm:$0xff]
  %v6995 = vld [vmem:[%s6952 + $0x150] sm:$0xff]
  %v6996 = vld [vmem:[%s6952 + $0x158] sm:$0xff]
  %v6997 = vld [vmem:[%s6952 + $0x160] sm:$0xff]
  %v6998 = vld [vmem:[%s6952 + $0x168] sm:$0xff]
  %v6999 = vld [vmem:[%s6952 + $0x170] sm:$0xff]
  %v7000 = vld [vmem:[%s6952 + $0x178] sm:$0xff]
  %v7001 = vld [vmem:[%s6952 + $0x180] sm:$0xff]
  %v7002 = vld [vmem:[%s6952 + $0x188] sm:$0xff]
  %v7003 = vld [vmem:[%s6952 + $0x190] sm:$0xff]
  %v7004 = vld [vmem:[%s6952 + $0x198] sm:$0xff]
  %v7005 = vld [vmem:[%s6952 + $0x1a0] sm:$0xff]
  %v7006 = vld [vmem:[%s6952 + $0x1a8] sm:$0xff]
  %v7007 = vld [vmem:[%s6952 + $0x1b0] sm:$0xff]
  %v7008 = vld [vmem:[%s6952 + $0x1b8] sm:$0xff]
  %v7009 = vld [vmem:[%s6952 + $0x1c0] sm:$0xff]
  %v7010 = vld [vmem:[%s6952 + $0x1c8] sm:$0xff]
  %v7011 = vld [vmem:[%s6952 + $0x1d0] sm:$0xff]
  %v7012 = vld [vmem:[%s6952 + $0x1d8] sm:$0xff]
  %v7013 = vld [vmem:[%s6952 + $0x1e0] sm:$0xff]
  %v7014 = vld [vmem:[%s6952 + $0x1e8] sm:$0xff]
  %v7015 = vld [vmem:[%s6952 + $0x1f0] sm:$0xff]
  %v7016 = vld [vmem:[%s6952 + $0x1f8] sm:$0xff]
  %v7017 = vld [vmem:[%s6952 + $0x200] sm:$0xff]
  %v7018 = vld [vmem:[%s6952 + $0x208] sm:$0xff]
  %v7019 = vld [vmem:[%s6952 + $0x210] sm:$0xff]
  %v7020 = vld [vmem:[%s6952 + $0x218] sm:$0xff]
  %v7021 = vld [vmem:[%s6952 + $0x220] sm:$0xff]
  %v7022 = vld [vmem:[%s6952 + $0x228] sm:$0xff]
  %v7023 = vld [vmem:[%s6952 + $0x230] sm:$0xff]
  %v7024 = vld [vmem:[%s6952 + $0x238] sm:$0xff]
  %v7025 = vld [vmem:[%s6952 + $0x240] sm:$0xff]
  %v7026 = vld [vmem:[%s6952 + $0x248] sm:$0xff]
  %v7027 = vld [vmem:[%s6952 + $0x250] sm:$0xff]
  %v7028 = vld [vmem:[%s6952 + $0x258] sm:$0xff]
  %v7029 = vld [vmem:[%s6952 + $0x260] sm:$0xff]
  %v7030 = vld [vmem:[%s6952 + $0x268] sm:$0xff]
  %v7031 = vld [vmem:[%s6952 + $0x270] sm:$0xff]
  %v7032 = vld [vmem:[%s6952 + $0x278] sm:$0xff]
  %v7033 = vld [vmem:[%s6952 + $0x280] sm:$0xff]
  %v7034 = vld [vmem:[%s6952 + $0x288] sm:$0xff]
  %v7035 = vld [vmem:[%s6952 + $0x290] sm:$0xff]
  %v7036 = vld [vmem:[%s6952 + $0x298] sm:$0xff]
  %v7037 = vld [vmem:[%s6952 + $0x2a0] sm:$0xff]
  %v7038 = vld [vmem:[%s6952 + $0x2a8] sm:$0xff]
  %v7039 = vld [vmem:[%s6952 + $0x2b0] sm:$0xff]
  %v7040 = vld [vmem:[%s6952 + $0x2b8] sm:$0xff]
  %v7041 = vld [vmem:[%s6952 + $0x2c0] sm:$0xff]
  %v7042 = vld [vmem:[%s6952 + $0x2c8] sm:$0xff]
  %v7043 = vld [vmem:[%s6952 + $0x2d0] sm:$0xff]
  %v7044 = vld [vmem:[%s6952 + $0x2d8] sm:$0xff]
  %v7045 = vld [vmem:[%s6952 + $0x2e0] sm:$0xff]
  %v7046 = vld [vmem:[%s6952 + $0x2e8] sm:$0xff]
  %v7047 = vld [vmem:[%s6952 + $0x2f0] sm:$0xff]
  %v7048 = vld [vmem:[%s6952 + $0x2f8] sm:$0xff]
  %v7049 = vld [vmem:[%s6952 + $0x300] sm:$0xff]
  %v7050 = vld [vmem:[%s6952 + $0x308] sm:$0xff]
  %v7051 = vld [vmem:[%s6952 + $0x310] sm:$0xff]
  %v7052 = vld [vmem:[%s6952 + $0x318] sm:$0xff]
  %v7053 = vld [vmem:[%s6952 + $0x320] sm:$0xff]
  %v7054 = vld [vmem:[%s6952 + $0x328] sm:$0xff]
  %v7055 = vld [vmem:[%s6952 + $0x330] sm:$0xff]
  %v7056 = vld [vmem:[%s6952 + $0x338] sm:$0xff]
  %v7057 = vld [vmem:[%s6952 + $0x340] sm:$0xff]
  %v7058 = vld [vmem:[%s6952 + $0x348] sm:$0xff]
  %v7059 = vld [vmem:[%s6952 + $0x350] sm:$0xff]
  %v7060 = vld [vmem:[%s6952 + $0x358] sm:$0xff]
  %v7061 = vld [vmem:[%s6952 + $0x360] sm:$0xff]
  %v7062 = vld [vmem:[%s6952 + $0x368] sm:$0xff]
  %v7063 = vld [vmem:[%s6952 + $0x370] sm:$0xff]
  %v7064 = vld [vmem:[%s6952 + $0x378] sm:$0xff]
  %v7065 = vld [vmem:[%s6952 + $0x380] sm:$0xff]
  %v7066 = vld [vmem:[%s6952 + $0x388] sm:$0xff]
  %v7067 = vld [vmem:[%s6952 + $0x390] sm:$0xff]
  %v7068 = vld [vmem:[%s6952 + $0x398] sm:$0xff]
  %v7069 = vld [vmem:[%s6952 + $0x3a0] sm:$0xff]
  %v7070 = vld [vmem:[%s6952 + $0x3a8] sm:$0xff]
  %v7071 = vld [vmem:[%s6952 + $0x3b0] sm:$0xff]
  %v7072 = vld [vmem:[%s6952 + $0x3b8] sm:$0xff]
  %v7073 = vld [vmem:[%s6952 + $0x3c0] sm:$0xff]
  %v7074 = vld [vmem:[%s6952 + $0x3c8] sm:$0xff]
  %v7075 = vld [vmem:[%s6952 + $0x3d0] sm:$0xff]
  %v7076 = vld [vmem:[%s6952 + $0x3d8] sm:$0xff]
  %v7077 = vld [vmem:[%s6952 + $0x3e0] sm:$0xff]
  %v7078 = vld [vmem:[%s6952 + $0x3e8] sm:$0xff]
  %v7079 = vld [vmem:[%s6952 + $0x3f0] sm:$0xff]
  %v7080 = vld [vmem:[%s6952 + $0x3f8] sm:$0xff]
  %7081 = vmatprep.subr.mxu0 %v6954
  %7082 = vmatpush1.msra.mxu0 %v6953
  %7083 = vmatprep.subr.mxu0 %v6958
  %7084 = vmatpush1.msra.mxu0 %v6957
  %7085 = vmatprep.subr.mxu0 %v6962
  %7086 = vmatpush1.msra.mxu0 %v6961
  %7087 = vmatprep.subr.mxu0 %v6966
  %7088 = vmatpush1.msra.mxu0 %v6965
  %7089 = vmatprep.subr.mxu0 %v6970
  %7090 = vmatpush1.msra.mxu0 %v6969
  %7091 = vmatprep.subr.mxu0 %v6974
  %7092 = vmatpush1.msra.mxu0 %v6973
  %7093 = vmatprep.subr.mxu0 %v6978
  %7094 = vmatpush1.msra.mxu0 %v6977
  %7095 = vmatprep.subr.mxu0 %v6982
  %7096 = vmatpush1.msra.mxu0 %v6981
  %7097 = vmatprep.subr.mxu0 %v6986
  %7098 = vmatpush1.msra.mxu0 %v6985
  %7099 = vmatprep.subr.mxu0 %v6990
  %7100 = vmatpush1.msra.mxu0 %v6989
  %7101 = vmatprep.subr.mxu0 %v6994
  %7102 = vmatpush1.msra.mxu0 %v6993
  %7103 = vmatprep.subr.mxu0 %v6998
  %7104 = vmatpush1.msra.mxu0 %v6997
  %7105 = vmatprep.subr.mxu0 %v7002
  %7106 = vmatpush1.msra.mxu0 %v7001
  %7107 = vmatprep.subr.mxu0 %v7006
  %7108 = vmatpush1.msra.mxu0 %v7005
  %7109 = vmatprep.subr.mxu0 %v7010
  %7110 = vmatpush1.msra.mxu0 %v7009
  %7111 = vmatprep.subr.mxu0 %v7014
  %7112 = vmatpush1.msra.mxu0 %v7013
  %7113 = vmatprep.subr.mxu0 %v7018
  %7114 = vmatpush1.msra.mxu0 %v7017
  %7115 = vmatprep.subr.mxu0 %v7022
  %7116 = vmatpush1.msra.mxu0 %v7021
  %7117 = vmatprep.subr.mxu0 %v7026
  %7118 = vmatpush1.msra.mxu0 %v7025
  %7119 = vmatprep.subr.mxu0 %v7030
  %7120 = vmatpush1.msra.mxu0 %v7029
  %7121 = vmatprep.subr.mxu0 %v7034
  %7122 = vmatpush1.msra.mxu0 %v7033
  %7123 = vmatprep.subr.mxu0 %v7038
  %7124 = vmatpush1.msra.mxu0 %v7037
  %7125 = vmatprep.subr.mxu0 %v7042
  %7126 = vmatpush1.msra.mxu0 %v7041
  %7127 = vmatprep.subr.mxu0 %v7046
  %7128 = vmatpush1.msra.mxu0 %v7045
  %7129 = vmatprep.subr.mxu0 %v7050
  %7130 = vmatpush1.msra.mxu0 %v7049
  %7131 = vmatprep.subr.mxu0 %v7054
  %7132 = vmatpush1.msra.mxu0 %v7053
  %7133 = vmatprep.subr.mxu0 %v7058
  %7134 = vmatpush1.msra.mxu0 %v7057
  %7135 = vmatprep.subr.mxu0 %v7062
  %7136 = vmatpush1.msra.mxu0 %v7061
  %7137 = vmatprep.subr.mxu0 %v7066
  %7138 = vmatpush1.msra.mxu0 %v7065
  %7139 = vmatprep.subr.mxu0 %v7070
  %7140 = vmatpush1.msra.mxu0 %v7069
  %7141 = vmatprep.subr.mxu0 %v7074
  %7142 = vmatpush1.msra.mxu0 %v7073
  %7143 = vmatprep.subr.mxu0 %v7078
  %7144 = vmatpush1.msra.mxu0 %v7077
  %7145 = vmatprep.mubr.f32.mxu0 %v6135
  %7146 = vmatmul.mubr.f32.gmra.mrb[0].mxu0 %v6134
  %v7147 = vpop.f32.mrb[0].mxu0
  %v7148 = vadd.f32 0.0, %v7147
  %v7149 = vpop.f32.mrb[0].mxu0
  %v7150 = vadd.f32 0.0, %v7149
  %7151 = vdwg.mxu0
  %7152 = vmatprep.subr.mxu0 %v6956
  %7153 = vmatpush1.msra.mxu0 %v6955
  %7154 = vmatprep.subr.mxu0 %v6960
  %7155 = vmatpush1.msra.mxu0 %v6959
  %7156 = vmatprep.subr.mxu0 %v6964
  %7157 = vmatpush1.msra.mxu0 %v6963
  %7158 = vmatprep.subr.mxu0 %v6968
  %7159 = vmatpush1.msra.mxu0 %v6967
  %7160 = vmatprep.subr.mxu0 %v6972
  %7161 = vmatpush1.msra.mxu0 %v6971
  %7162 = vmatprep.subr.mxu0 %v6976
  %7163 = vmatpush1.msra.mxu0 %v6975
  %7164 = vmatprep.subr.mxu0 %v6980
  %7165 = vmatpush1.msra.mxu0 %v6979
  %7166 = vmatprep.subr.mxu0 %v6984
  %7167 = vmatpush1.msra.mxu0 %v6983
  %7168 = vmatprep.subr.mxu0 %v6988
  %7169 = vmatpush1.msra.mxu0 %v6987
  %7170 = vmatprep.subr.mxu0 %v6992
  %7171 = vmatpush1.msra.mxu0 %v6991
  %7172 = vmatprep.subr.mxu0 %v6996
  %7173 = vmatpush1.msra.mxu0 %v6995
  %7174 = vmatprep.subr.mxu0 %v7000
  %7175 = vmatpush1.msra.mxu0 %v6999
  %7176 = vmatprep.subr.mxu0 %v7004
  %7177 = vmatpush1.msra.mxu0 %v7003
  %7178 = vmatprep.subr.mxu0 %v7008
  %7179 = vmatpush1.msra.mxu0 %v7007
  %7180 = vmatprep.subr.mxu0 %v7012
  %7181 = vmatpush1.msra.mxu0 %v7011
  %7182 = vmatprep.subr.mxu0 %v7016
  %7183 = vmatpush1.msra.mxu0 %v7015
  %7184 = vmatprep.subr.mxu0 %v7020
  %7185 = vmatpush1.msra.mxu0 %v7019
  %7186 = vmatprep.subr.mxu0 %v7024
  %7187 = vmatpush1.msra.mxu0 %v7023
  %7188 = vmatprep.subr.mxu0 %v7028
  %7189 = vmatpush1.msra.mxu0 %v7027
  %7190 = vmatprep.subr.mxu0 %v7032
  %7191 = vmatpush1.msra.mxu0 %v7031
  %7192 = vmatprep.subr.mxu0 %v7036
  %7193 = vmatpush1.msra.mxu0 %v7035
  %7194 = vmatprep.subr.mxu0 %v7040
  %7195 = vmatpush1.msra.mxu0 %v7039
  %7196 = vmatprep.subr.mxu0 %v7044
  %7197 = vmatpush1.msra.mxu0 %v7043
  %7198 = vmatprep.subr.mxu0 %v7048
  %7199 = vmatpush1.msra.mxu0 %v7047
  %7200 = vmatprep.subr.mxu0 %v7052
  %7201 = vmatpush1.msra.mxu0 %v7051
  %7202 = vmatprep.subr.mxu0 %v7056
  %7203 = vmatpush1.msra.mxu0 %v7055
  %7204 = vmatprep.subr.mxu0 %v7060
  %7205 = vmatpush1.msra.mxu0 %v7059
  %7206 = vmatprep.subr.mxu0 %v7064
  %7207 = vmatpush1.msra.mxu0 %v7063
  %7208 = vmatprep.subr.mxu0 %v7068
  %7209 = vmatpush1.msra.mxu0 %v7067
  %7210 = vmatprep.subr.mxu0 %v7072
  %7211 = vmatpush1.msra.mxu0 %v7071
  %7212 = vmatprep.subr.mxu0 %v7076
  %7213 = vmatpush1.msra.mxu0 %v7075
  %7214 = vmatprep.subr.mxu0 %v7080
  %7215 = vmatpush1.msra.mxu0 %v7079
  %7216 = vmatprep.mubr.f32.mxu0 %v6135
  %7217 = vmatmul.mubr.f32.gmra.mrb[0].mxu0 %v6134
  %v7218 = vpop.f32.mrb[0].mxu0
  %v7219 = vadd.f32 0.0, %v7218
  %v7220 = vpop.f32.mrb[0].mxu0
  %v7221 = vadd.f32 0.0, %v7220
  %7222 = vdwg.mxu0
  %v7223 = vadd.f32 %v6948, %v7148
  %v7224 = vadd.f32 %v6949, %v7150
  %v7225 = vadd.f32 %v6950, %v7219
  %v7226 = vadd.f32 %v6951, %v7221
  %v7227 = vld [vmem:[%s11] sm:$0xf]
  %v7229 = vlaneseq
  %v7230 = vshrl.u32 %v7229, 7
  %v7231 = vsub.s32 0, %v7230
  %v7232 = vrot.slane %v7227, %v7231
  %v7233 = vlaneseq
  %v7234 = vshrl.u32 %v7233, 7
  %v7235 = vsub.s32 1, %v7234
  %v7236 = vrot.slane %v7227, %v7235
  %v7237 = vlaneseq
  %v7238 = vshrl.u32 %v7237, 7
  %v7239 = vsub.s32 2, %v7238
  %v7240 = vrot.slane %v7227, %v7239
  %v7241 = vlaneseq
  %v7242 = vshrl.u32 %v7241, 7
  %v7243 = vsub.s32 3, %v7242
  %v7244 = vrot.slane %v7227, %v7243
  %v7249 = vadd.f32 %v7223, %v7232
  %v7250 = vadd.f32 %v7224, %v7236
  %v7251 = vadd.f32 %v7225, %v7240
  %v7252 = vadd.f32 %v7226, %v7244
  %v7253 = vmax.f32 %v7249, 0.0
  %v7254 = vmax.f32 %v7250, 0.0
  %v7255 = vmax.f32 %v7251, 0.0
  %v7256 = vmax.f32 %v7252, 0.0
  %v7257 = vld [vmem:[%s12] sm:$0xff]
  %v7258 = vld [vmem:[%s12 + $0x8] sm:$0xff]
  %v7259 = vld [vmem:[%s12 + $0x10] sm:$0xff]
  %v7260 = vld [vmem:[%s12 + $0x18] sm:$0xff]
  %v7261 = vld [vmem:[%s12 + $0x20] sm:$0xff]
  %v7262 = vld [vmem:[%s12 + $0x28] sm:$0xff]
  %v7263 = vld [vmem:[%s12 + $0x30] sm:$0xff]
  %v7264 = vld [vmem:[%s12 + $0x38] sm:$0xff]
  %v7265 = vld [vmem:[%s12 + $0x40] sm:$0xff]
  %v7266 = vld [vmem:[%s12 + $0x48] sm:$0xff]
  %v7267 = vld [vmem:[%s12 + $0x50] sm:$0xff]
  %v7268 = vld [vmem:[%s12 + $0x58] sm:$0xff]
  %v7269 = vld [vmem:[%s12 + $0x60] sm:$0xff]
  %v7270 = vld [vmem:[%s12 + $0x68] sm:$0xff]
  %v7271 = vld [vmem:[%s12 + $0x70] sm:$0xff]
  %v7272 = vld [vmem:[%s12 + $0x78] sm:$0xff]
  %v7273 = vld [vmem:[%s12 + $0x80] sm:$0xff]
  %v7274 = vld [vmem:[%s12 + $0x88] sm:$0xff]
  %v7275 = vld [vmem:[%s12 + $0x90] sm:$0xff]
  %v7276 = vld [vmem:[%s12 + $0x98] sm:$0xff]
  %v7277 = vld [vmem:[%s12 + $0xa0] sm:$0xff]
  %v7278 = vld [vmem:[%s12 + $0xa8] sm:$0xff]
  %v7279 = vld [vmem:[%s12 + $0xb0] sm:$0xff]
  %v7280 = vld [vmem:[%s12 + $0xb8] sm:$0xff]
  %v7281 = vld [vmem:[%s12 + $0xc0] sm:$0xff]
  %v7282 = vld [vmem:[%s12 + $0xc8] sm:$0xff]
  %v7283 = vld [vmem:[%s12 + $0xd0] sm:$0xff]
  %v7284 = vld [vmem:[%s12 + $0xd8] sm:$0xff]
  %v7285 = vld [vmem:[%s12 + $0xe0] sm:$0xff]
  %v7286 = vld [vmem:[%s12 + $0xe8] sm:$0xff]
  %v7287 = vld [vmem:[%s12 + $0xf0] sm:$0xff]
  %v7288 = vld [vmem:[%s12 + $0xf8] sm:$0xff]
  %v7289 = vld [vmem:[%s12 + $0x100] sm:$0xff]
  %v7290 = vld [vmem:[%s12 + $0x108] sm:$0xff]
  %v7291 = vld [vmem:[%s12 + $0x110] sm:$0xff]
  %v7292 = vld [vmem:[%s12 + $0x118] sm:$0xff]
  %v7293 = vld [vmem:[%s12 + $0x120] sm:$0xff]
  %v7294 = vld [vmem:[%s12 + $0x128] sm:$0xff]
  %v7295 = vld [vmem:[%s12 + $0x130] sm:$0xff]
  %v7296 = vld [vmem:[%s12 + $0x138] sm:$0xff]
  %v7297 = vld [vmem:[%s12 + $0x140] sm:$0xff]
  %v7298 = vld [vmem:[%s12 + $0x148] sm:$0xff]
  %v7299 = vld [vmem:[%s12 + $0x150] sm:$0xff]
  %v7300 = vld [vmem:[%s12 + $0x158] sm:$0xff]
  %v7301 = vld [vmem:[%s12 + $0x160] sm:$0xff]
  %v7302 = vld [vmem:[%s12 + $0x168] sm:$0xff]
  %v7303 = vld [vmem:[%s12 + $0x170] sm:$0xff]
  %v7304 = vld [vmem:[%s12 + $0x178] sm:$0xff]
  %v7305 = vld [vmem:[%s12 + $0x180] sm:$0xff]
  %v7306 = vld [vmem:[%s12 + $0x188] sm:$0xff]
  %v7307 = vld [vmem:[%s12 + $0x190] sm:$0xff]
  %v7308 = vld [vmem:[%s12 + $0x198] sm:$0xff]
  %v7309 = vld [vmem:[%s12 + $0x1a0] sm:$0xff]
  %v7310 = vld [vmem:[%s12 + $0x1a8] sm:$0xff]
  %v7311 = vld [vmem:[%s12 + $0x1b0] sm:$0xff]
  %v7312 = vld [vmem:[%s12 + $0x1b8] sm:$0xff]
  %v7313 = vld [vmem:[%s12 + $0x1c0] sm:$0xff]
  %v7314 = vld [vmem:[%s12 + $0x1c8] sm:$0xff]
  %v7315 = vld [vmem:[%s12 + $0x1d0] sm:$0xff]
  %v7316 = vld [vmem:[%s12 + $0x1d8] sm:$0xff]
  %v7317 = vld [vmem:[%s12 + $0x1e0] sm:$0xff]
  %v7318 = vld [vmem:[%s12 + $0x1e8] sm:$0xff]
  %v7319 = vld [vmem:[%s12 + $0x1f0] sm:$0xff]
  %v7320 = vld [vmem:[%s12 + $0x1f8] sm:$0xff]
  %v7321 = vld [vmem:[%s13] sm:$0x1]
  %v7323 = vlaneseq
  %v7324 = vshrl.u32 %v7323, 7
  %v7325 = vsub.s32 0, %v7324
  %v7326 = vrot.slane %v7321, %v7325
  %7328 = vmatprep.subr.mxu0 0.0
  %7329 = vmatpush1.msra.mxu0 %v7257
  %7330 = vmatprep.subr.mxu0 0.0
  %7331 = vmatpush1.msra.mxu0 %v7258
  %7332 = vmatprep.subr.mxu0 0.0
  %7333 = vmatpush1.msra.mxu0 %v7259
  %7334 = vmatprep.subr.mxu0 0.0
  %7335 = vmatpush1.msra.mxu0 %v7260
  %7336 = vmatprep.subr.mxu0 0.0
  %7337 = vmatpush1.msra.mxu0 %v7261
  %7338 = vmatprep.subr.mxu0 0.0
  %7339 = vmatpush1.msra.mxu0 %v7262
  %7340 = vmatprep.subr.mxu0 0.0
  %7341 = vmatpush1.msra.mxu0 %v7263
  %7342 = vmatprep.subr.mxu0 0.0
  %7343 = vmatpush1.msra.mxu0 %v7264
  %7344 = vmatprep.subr.mxu0 0.0
  %7345 = vmatpush1.msra.mxu0 %v7265
  %7346 = vmatprep.subr.mxu0 0.0
  %7347 = vmatpush1.msra.mxu0 %v7266
  %7348 = vmatprep.subr.mxu0 0.0
  %7349 = vmatpush1.msra.mxu0 %v7267
  %7350 = vmatprep.subr.mxu0 0.0
  %7351 = vmatpush1.msra.mxu0 %v7268
  %7352 = vmatprep.subr.mxu0 0.0
  %7353 = vmatpush1.msra.mxu0 %v7269
  %7354 = vmatprep.subr.mxu0 0.0
  %7355 = vmatpush1.msra.mxu0 %v7270
  %7356 = vmatprep.subr.mxu0 0.0
  %7357 = vmatpush1.msra.mxu0 %v7271
  %7358 = vmatprep.subr.mxu0 0.0
  %7359 = vmatpush1.msra.mxu0 %v7272
  %7360 = vmatprep.subr.mxu0 0.0
  %7361 = vmatpush1.msra.mxu0 %v7273
  %7362 = vmatprep.subr.mxu0 0.0
  %7363 = vmatpush1.msra.mxu0 %v7274
  %7364 = vmatprep.subr.mxu0 0.0
  %7365 = vmatpush1.msra.mxu0 %v7275
  %7366 = vmatprep.subr.mxu0 0.0
  %7367 = vmatpush1.msra.mxu0 %v7276
  %7368 = vmatprep.subr.mxu0 0.0
  %7369 = vmatpush1.msra.mxu0 %v7277
  %7370 = vmatprep.subr.mxu0 0.0
  %7371 = vmatpush1.msra.mxu0 %v7278
  %7372 = vmatprep.subr.mxu0 0.0
  %7373 = vmatpush1.msra.mxu0 %v7279
  %7374 = vmatprep.subr.mxu0 0.0
  %7375 = vmatpush1.msra.mxu0 %v7280
  %7376 = vmatprep.subr.mxu0 0.0
  %7377 = vmatpush1.msra.mxu0 %v7281
  %7378 = vmatprep.subr.mxu0 0.0
  %7379 = vmatpush1.msra.mxu0 %v7282
  %7380 = vmatprep.subr.mxu0 0.0
  %7381 = vmatpush1.msra.mxu0 %v7283
  %7382 = vmatprep.subr.mxu0 0.0
  %7383 = vmatpush1.msra.mxu0 %v7284
  %7384 = vmatprep.subr.mxu0 0.0
  %7385 = vmatpush1.msra.mxu0 %v7285
  %7386 = vmatprep.subr.mxu0 0.0
  %7387 = vmatpush1.msra.mxu0 %v7286
  %7388 = vmatprep.subr.mxu0 0.0
  %7389 = vmatpush1.msra.mxu0 %v7287
  %7390 = vmatprep.subr.mxu0 0.0
  %7391 = vmatpush1.msra.mxu0 %v7288
  %7392 = vmatprep.mubr.f32.mxu0 %v7254
  %7393 = vmatmul.mubr.f32.gmra.mrb[0].mxu0 %v7253
  %v7394 = vpop.f32.mrb[0].mxu0
  %v7395 = vadd.f32 %v7326, %v7394
  %v7396 = vpop.f32.mrb[0].mxu0
  %7397 = vdwg.mxu0
  %7398 = vmatprep.subr.mxu0 0.0
  %7399 = vmatpush1.msra.mxu0 %v7289
  %7400 = vmatprep.subr.mxu0 0.0
  %7401 = vmatpush1.msra.mxu0 %v7290
  %7402 = vmatprep.subr.mxu0 0.0
  %7403 = vmatpush1.msra.mxu0 %v7291
  %7404 = vmatprep.subr.mxu0 0.0
  %7405 = vmatpush1.msra.mxu0 %v7292
  %7406 = vmatprep.subr.mxu0 0.0
  %7407 = vmatpush1.msra.mxu0 %v7293
  %7408 = vmatprep.subr.mxu0 0.0
  %7409 = vmatpush1.msra.mxu0 %v7294
  %7410 = vmatprep.subr.mxu0 0.0
  %7411 = vmatpush1.msra.mxu0 %v7295
  %7412 = vmatprep.subr.mxu0 0.0
  %7413 = vmatpush1.msra.mxu0 %v7296
  %7414 = vmatprep.subr.mxu0 0.0
  %7415 = vmatpush1.msra.mxu0 %v7297
  %7416 = vmatprep.subr.mxu0 0.0
  %7417 = vmatpush1.msra.mxu0 %v7298
  %7418 = vmatprep.subr.mxu0 0.0
  %7419 = vmatpush1.msra.mxu0 %v7299
  %7420 = vmatprep.subr.mxu0 0.0
  %7421 = vmatpush1.msra.mxu0 %v7300
  %7422 = vmatprep.subr.mxu0 0.0
  %7423 = vmatpush1.msra.mxu0 %v7301
  %7424 = vmatprep.subr.mxu0 0.0
  %7425 = vmatpush1.msra.mxu0 %v7302
  %7426 = vmatprep.subr.mxu0 0.0
  %7427 = vmatpush1.msra.mxu0 %v7303
  %7428 = vmatprep.subr.mxu0 0.0
  %7429 = vmatpush1.msra.mxu0 %v7304
  %7430 = vmatprep.subr.mxu0 0.0
  %7431 = vmatpush1.msra.mxu0 %v7305
  %7432 = vmatprep.subr.mxu0 0.0
  %7433 = vmatpush1.msra.mxu0 %v7306
  %7434 = vmatprep.subr.mxu0 0.0
  %7435 = vmatpush1.msra.mxu0 %v7307
  %7436 = vmatprep.subr.mxu0 0.0
  %7437 = vmatpush1.msra.mxu0 %v7308
  %7438 = vmatprep.subr.mxu0 0.0
  %7439 = vmatpush1.msra.mxu0 %v7309
  %7440 = vmatprep.subr.mxu0 0.0
  %7441 = vmatpush1.msra.mxu0 %v7310
  %7442 = vmatprep.subr.mxu0 0.0
  %7443 = vmatpush1.msra.mxu0 %v7311
  %7444 = vmatprep.subr.mxu0 0.0
  %7445 = vmatpush1.msra.mxu0 %v7312
  %7446 = vmatprep.subr.mxu0 0.0
  %7447 = vmatpush1.msra.mxu0 %v7313
  %7448 = vmatprep.subr.mxu0 0.0
  %7449 = vmatpush1.msra.mxu0 %v7314
  %7450 = vmatprep.subr.mxu0 0.0
  %7451 = vmatpush1.msra.mxu0 %v7315
  %7452 = vmatprep.subr.mxu0 0.0
  %7453 = vmatpush1.msra.mxu0 %v7316
  %7454 = vmatprep.subr.mxu0 0.0
  %7455 = vmatpush1.msra.mxu0 %v7317
  %7456 = vmatprep.subr.mxu0 0.0
  %7457 = vmatpush1.msra.mxu0 %v7318
  %7458 = vmatprep.subr.mxu0 0.0
  %7459 = vmatpush1.msra.mxu0 %v7319
  %7460 = vmatprep.subr.mxu0 0.0
  %7461 = vmatpush1.msra.mxu0 %v7320
  %7462 = vmatprep.mubr.f32.mxu0 %v7256
  %7463 = vmatmul.mubr.f32.gmra.mrb[0].mxu0 %v7255
  %v7464 = vpop.f32.mrb[0].mxu0
  %v7465 = vadd.f32 %v7395, %v7464
  %v7466 = vpop.f32.mrb[0].mxu0
  %7467 = vdwg.mxu0
  %v7468 = vld [vmem:[%s16] sm:$0xff]
  %v7469 = vld [vmem:[%s16 + $0x8] sm:$0xff]
  %v7470 = vld [vmem:[%s16 + $0x10] sm:$0xff]
  %v7471 = vld [vmem:[%s16 + $0x18] sm:$0xff]
  %v7472 = vld [vmem:[%s16 + $0x20] sm:$0xff]
  %v7473 = vld [vmem:[%s16 + $0x28] sm:$0xff]
  %v7474 = vld [vmem:[%s16 + $0x30] sm:$0xff]
  %v7475 = vld [vmem:[%s16 + $0x38] sm:$0xff]
  %v7476 = vld [vmem:[%s16 + $0x40] sm:$0xff]
  %v7477 = vld [vmem:[%s16 + $0x48] sm:$0xff]
  %v7478 = vld [vmem:[%s16 + $0x50] sm:$0xff]
  %v7479 = vld [vmem:[%s16 + $0x58] sm:$0xff]
  %v7480 = vld [vmem:[%s16 + $0x60] sm:$0xff]
  %v7481 = vld [vmem:[%s16 + $0x68] sm:$0xff]
  %v7482 = vld [vmem:[%s16 + $0x70] sm:$0xff]
  %v7483 = vld [vmem:[%s16 + $0x78] sm:$0xff]
  %v7485 = vsel %vm990, %v750, 0
  %7487 = vmatprep.subr.mxu0 0.0
  %7488 = vmatpush1.msra.mxu0 %v7476
  %7489 = vmatprep.subr.mxu0 0.0
  %7490 = vmatpush1.msra.mxu0 %v7477
  %7491 = vmatprep.subr.mxu0 0.0
  %7492 = vmatpush1.msra.mxu0 %v7478
  %7493 = vmatprep.subr.mxu0 0.0
  %7494 = vmatpush1.msra.mxu0 %v7479
  %7495 = vmatprep.subr.mxu0 0.0
  %7496 = vmatpush1.msra.mxu0 %v7480
  %7497 = vmatprep.subr.mxu0 0.0
  %7498 = vmatpush1.msra.mxu0 %v7481
  %7499 = vmatprep.subr.mxu0 0.0
  %7500 = vmatpush1.msra.mxu0 %v7482
  %7501 = vmatprep.subr.mxu0 0.0
  %7502 = vmatpush1.msra.mxu0 %v7483
  %7503 = vmatprep.subr.mxu0 0.0
  %7504 = vmatpush1.msra.mxu0 0.0
  %7505 = vmatprep.subr.mxu0 0.0
  %7506 = vmatpush1.msra.mxu0 0.0
  %7507 = vmatprep.subr.mxu0 0.0
  %7508 = vmatpush1.msra.mxu0 0.0
  %7509 = vmatprep.subr.mxu0 0.0
  %7510 = vmatpush1.msra.mxu0 0.0
  %7511 = vmatprep.subr.mxu0 0.0
  %7512 = vmatpush1.msra.mxu0 0.0
  %7513 = vmatprep.subr.mxu0 0.0
  %7514 = vmatpush1.msra.mxu0 0.0
  %7515 = vmatprep.subr.mxu0 0.0
  %7516 = vmatpush1.msra.mxu0 0.0
  %7517 = vmatprep.subr.mxu0 0.0
  %7518 = vmatpush1.msra.mxu0 0.0
  %7519 = vmatprep.subr.mxu0 0.0
  %7520 = vmatpush1.msra.mxu0 0.0
  %7521 = vmatprep.subr.mxu0 0.0
  %7522 = vmatpush1.msra.mxu0 0.0
  %7523 = vmatprep.subr.mxu0 0.0
  %7524 = vmatpush1.msra.mxu0 0.0
  %7525 = vmatprep.subr.mxu0 0.0
  %7526 = vmatpush1.msra.mxu0 0.0
  %7527 = vmatprep.subr.mxu0 0.0
  %7528 = vmatpush1.msra.mxu0 0.0
  %7529 = vmatprep.subr.mxu0 0.0
  %7530 = vmatpush1.msra.mxu0 0.0
  %7531 = vmatprep.subr.mxu0 0.0
  %7532 = vmatpush1.msra.mxu0 0.0
  %7533 = vmatprep.subr.mxu0 0.0
  %7534 = vmatpush1.msra.mxu0 0.0
  %7535 = vmatprep.subr.mxu0 0.0
  %7536 = vmatpush1.msra.mxu0 0.0
  %7537 = vmatprep.subr.mxu0 0.0
  %7538 = vmatpush1.msra.mxu0 0.0
  %7539 = vmatprep.subr.mxu0 0.0
  %7540 = vmatpush1.msra.mxu0 0.0
  %7541 = vmatprep.subr.mxu0 0.0
  %7542 = vmatpush1.msra.mxu0 0.0
  %7543 = vmatprep.subr.mxu0 0.0
  %7544 = vmatpush1.msra.mxu0 0.0
  %7545 = vmatprep.subr.mxu0 0.0
  %7546 = vmatpush1.msra.mxu0 0.0
  %7547 = vmatprep.subr.mxu0 0.0
  %7548 = vmatpush1.msra.mxu0 0.0
  %7549 = vmatprep.subr.mxu0 0.0
  %7550 = vmatpush1.msra.mxu0 0.0
  %7551 = vmatprep.mubr.f32.mxu0 0.0
  %7552 = vmatmul.mubr.f32.gmra.mrb[0].mxu0 %v7485
  %v7553 = vpop.f32.mrb[0].mxu0
  %v7554 = vadd.f32 0.0, %v7553
  %v7555 = vpop.f32.mrb[0].mxu0
  %7556 = vdwg.mxu0
  %v7558 = vsel %vm990, %v7465, 0
  %7560 = vmatprep.subr.mxu0 0.0
  %7561 = vmatpush1.msra.mxu0 %v7468
  %7562 = vmatprep.subr.mxu0 0.0
  %7563 = vmatpush1.msra.mxu0 %v7469
  %7564 = vmatprep.subr.mxu0 0.0
  %7565 = vmatpush1.msra.mxu0 %v7470
  %7566 = vmatprep.subr.mxu0 0.0
  %7567 = vmatpush1.msra.mxu0 %v7471
  %7568 = vmatprep.subr.mxu0 0.0
  %7569 = vmatpush1.msra.mxu0 %v7472
  %7570 = vmatprep.subr.mxu0 0.0
  %7571 = vmatpush1.msra.mxu0 %v7473
  %7572 = vmatprep.subr.mxu0 0.0
  %7573 = vmatpush1.msra.mxu0 %v7474
  %7574 = vmatprep.subr.mxu0 0.0
  %7575 = vmatpush1.msra.mxu0 %v7475
  %7576 = vmatprep.subr.mxu0 0.0
  %7577 = vmatpush1.msra.mxu0 0.0
  %7578 = vmatprep.subr.mxu0 0.0
  %7579 = vmatpush1.msra.mxu0 0.0
  %7580 = vmatprep.subr.mxu0 0.0
  %7581 = vmatpush1.msra.mxu0 0.0
  %7582 = vmatprep.subr.mxu0 0.0
  %7583 = vmatpush1.msra.mxu0 0.0
  %7584 = vmatprep.subr.mxu0 0.0
  %7585 = vmatpush1.msra.mxu0 0.0
  %7586 = vmatprep.subr.mxu0 0.0
  %7587 = vmatpush1.msra.mxu0 0.0
  %7588 = vmatprep.subr.mxu0 0.0
  %7589 = vmatpush1.msra.mxu0 0.0
  %7590 = vmatprep.subr.mxu0 0.0
  %7591 = vmatpush1.msra.mxu0 0.0
  %7592 = vmatprep.subr.mxu0 0.0
  %7593 = vmatpush1.msra.mxu0 0.0
  %7594 = vmatprep.subr.mxu0 0.0
  %7595 = vmatpush1.msra.mxu0 0.0
  %7596 = vmatprep.subr.mxu0 0.0
  %7597 = vmatpush1.msra.mxu0 0.0
  %7598 = vmatprep.subr.mxu0 0.0
  %7599 = vmatpush1.msra.mxu0 0.0
  %7600 = vmatprep.subr.mxu0 0.0
  %7601 = vmatpush1.msra.mxu0 0.0
  %7602 = vmatprep.subr.mxu0 0.0
  %7603 = vmatpush1.msra.mxu0 0.0
  %7604 = vmatprep.subr.mxu0 0.0
  %7605 = vmatpush1.msra.mxu0 0.0
  %7606 = vmatprep.subr.mxu0 0.0
  %7607 = vmatpush1.msra.mxu0 0.0
  %7608 = vmatprep.subr.mxu0 0.0
  %7609 = vmatpush1.msra.mxu0 0.0
  %7610 = vmatprep.subr.mxu0 0.0
  %7611 = vmatpush1.msra.mxu0 0.0
  %7612 = vmatprep.subr.mxu0 0.0
  %7613 = vmatpush1.msra.mxu0 0.0
  %7614 = vmatprep.subr.mxu0 0.0
  %7615 = vmatpush1.msra.mxu0 0.0
  %7616 = vmatprep.subr.mxu0 0.0
  %7617 = vmatpush1.msra.mxu0 0.0
  %7618 = vmatprep.subr.mxu0 0.0
  %7619 = vmatpush1.msra.mxu0 0.0
  %7620 = vmatprep.subr.mxu0 0.0
  %7621 = vmatpush1.msra.mxu0 0.0
  %7622 = vmatprep.subr.mxu0 0.0
  %7623 = vmatpush1.msra.mxu0 0.0
  %7624 = vmatprep.mubr.f32.mxu0 0.0
  %7625 = vmatmul.mubr.f32.gmra.mrb[0].mxu0 %v7558
  %v7626 = vpop.f32.mrb[0].mxu0
  %v7627 = vadd.f32 %v7554, %v7626
  %v7628 = vpop.f32.mrb[0].mxu0
  %7629 = vdwg.mxu0
  %v7630 = vld [vmem:[%s17] sm:$0x1]
  %v7632 = vlaneseq
  %v7633 = vshrl.u32 %v7632, 7
  %v7634 = vsub.s32 0, %v7633
  %v7635 = vrot.slane %v7630, %v7634
  %v7637 = vadd.f32 %v7627, %v7635
  %vm7638 = vcmask 17408
  %7639 = vst.msk [vmem:[%s18] sm:$0x3] %vm7638, %v7637
  // Predicated region
  $region74: #{color_embedding_forward.1} parent=0 // pred_check
    _
  $region75: #{color_embedding_forward.1} parent=0 // pred_check_branch
    %7641 = sbr.rel (0) target = $region77
  $region76: #{color_embedding_forward.1} parent=0 // pred_region
    _
  $region77: #{color_embedding_forward.1} parent=0 // pred_fallthru
    _
  // Predicated region
  $region78: #{color_embedding_forward.1} parent=0 // pred_check
    _
  $region79: #{color_embedding_forward.1} parent=0 // pred_check_branch
    %7643 = sbr.rel (0) target = $region81
  $region80: #{color_embedding_forward.1} parent=0 // pred_region
    _
  $region81: #{color_embedding_forward.1} parent=0 // pred_fallthru
    _

</llo_original>
